<compile_context>
chip_gen: v5e
topology: v5e:2x2
jax: 0.10.0
libtpu: 0.0.40
codegen_flags: <defaults>
</compile_context>

<pallas_src>
import jax
import jax.numpy as jnp
from jax import lax
from jax.experimental import pallas as pl
from jax.experimental.pallas import tpu as pltpu


# ----------------------------------------------------------------------------
# Geometry of the "virtual output" layout.
#
# The activation is zero-padded 2 rows top/bottom and 1 column left/right and
# flattened row-major to (Npad, C) with Wp = W + 2.  The conv output for pixel
# (i, j) lives at virtual row q = (i + 1) * Wp + j, and every 3x3 tap (di, dj)
# of every virtual row is the contiguous slice rows [di*Wp + dj, di*Wp+dj+Q).
# Rows outside the valid set (top halo row and the 2 halo columns) compute
# garbage and are zeroed by a precomputed mask.
# ----------------------------------------------------------------------------
def _geom(H, W):
    Wp = W + 2
    Q = H * Wp + W            # virtual-output rows covering all H*W pixels
    Npad = (H + 4) * Wp       # padded-activation rows
    return Wp, Q, Npad


def _valid_mask(H, W):
    Wp, Q, _ = _geom(H, W)
    q = jnp.arange(Q)
    r, c = q // Wp, q % Wp
    valid = (r >= 1) & (r <= H) & (c < W)
    return valid.astype(jnp.float32).reshape(Q, 1)


def _cat_conv_weight(w_oihw, c_pad):
    """OIHW -> (kh, kw, Cin, Cout), zero-pad Cin to c_pad, flatten to (9*c_pad, Cout)."""
    w = jnp.transpose(w_oihw, (2, 3, 1, 0))
    w = jnp.pad(w, ((0, 0), (0, 0), (0, c_pad - w.shape[2]), (0, 0)))
    return w.reshape(9 * c_pad, w.shape[3]).astype(jnp.bfloat16)


# ----------------------------------------------------------------------------
# Fused kernel: conv1 + ReLU -> (VMEM) -> conv2 + residual + ReLU -> GAP -> fc1
# ----------------------------------------------------------------------------
def _make_fused_kernel(H, W, C):
    Wp, Q, Npad = _geom(H, W)
    inv_hw = 1.0 / float(H * W)

    def im2col_dot(load_rows, t_ref, w_ref):
        # Build the (Q, 9*C) im2col slab in VMEM from 9 static shifted
        # row-slices, then one wide-K (K = 9*C) MXU matmul.
        for di in range(3):
            for dj in range(3):
                tap = di * 3 + dj
                off = di * Wp + dj
                t_ref[:, tap * C:(tap + 1) * C] = load_rows(off)
        return jnp.dot(t_ref[...], w_ref[...], preferred_element_type=jnp.float32)

    def kernel(x_ref, w1_ref, b1_ref, w2_ref, b2_ref, fw_ref, fb_ref, m_ref,
               o_ref, t1_ref, t2_ref, s_ref):
        mask = m_ref[...]                                          # (Q, 1) f32

        # ---- conv1 (stem): im2col + one K=9*C matmul, bias + ReLU ----------
        acc1 = im2col_dot(lambda off: x_ref[off:off + Q, :], t1_ref, w1_ref)
        act1 = jnp.maximum(acc1 + b1_ref[...], 0.0) * mask         # (Q, C) f32

        # ---- stash conv1 output as conv2's zero-padded input (VMEM only) ---
        # Valid pixel (i, j) lands at padded row (i+2)*Wp + (j+1) == q + Wp+1.
        s_ref[0:Wp + 1, :] = jnp.zeros((Wp + 1, C), s_ref.dtype)
        s_ref[Wp + 1:Wp + 1 + Q, :] = act1.astype(s_ref.dtype)
        s_ref[Wp + 1 + Q:Npad, :] = jnp.zeros((Npad - (Wp + 1 + Q), C), s_ref.dtype)

        # ---- conv2 (residual block): im2col + matmul + identity + ReLU -----
        acc2 = im2col_dot(lambda off: s_ref[off:off + Q, :], t2_ref, w2_ref)
        acc2 = acc2 + s_ref[Wp + 1:Wp + 1 + Q, :].astype(jnp.float32)   # identity
        act2 = jnp.maximum(acc2 + b2_ref[...], 0.0) * mask

        # ---- fused global-average-pool + fc1 head --------------------------
        pooled = jnp.sum(act2, axis=0, keepdims=True) * inv_hw          # (1, C)
        o_ref[...] = (jnp.dot(pooled, fw_ref[...],
                              preferred_element_type=jnp.float32) + fb_ref[...])

    return kernel


def resnet_model_forward_impl(x_nchw, params):
    B, Cin, H, W = x_nchw.shape
    C = params["conv1_w"].shape[0]                 # hidden_size
    ncls = params["fc1_w"].shape[0]
    assert Cin <= C, "stem input channels are padded up to hidden_size"
    Wp, Q, Npad = _geom(H, W)

    # NCHW -> NHWC, zero-pad channels to C (lane alignment), pad spatial halo
    # (2 rows top/bottom, 1 col left/right), flatten (H+4, W+2) -> rows, bf16.
    x = jnp.transpose(x_nchw, (0, 2, 3, 1)).astype(jnp.float32)
    xp = jnp.pad(x, ((0, 0), (2, 2), (1, 1), (0, C - Cin)))
    xp = xp.reshape(B, Npad, C).astype(jnp.bfloat16)

    w1 = _cat_conv_weight(params["conv1_w"], C)                      # (9C, C) bf16
    w2 = _cat_conv_weight(params["conv2_w"], C)                      # (9C, C) bf16
    b1 = params["conv1_b"].reshape(1, C).astype(jnp.float32)
    b2 = params["conv2_b"].reshape(1, C).astype(jnp.float32)
    fw = jnp.transpose(params["fc1_w"], (1, 0)).astype(jnp.float32)  # (C, ncls)
    fb = params["fc1_b"].reshape(1, ncls).astype(jnp.float32)
    mask = _valid_mask(H, W)

    inv = lambda b: (0, 0)   # grid-invariant blocks (fetched once)
    out = pl.pallas_call(
        _make_fused_kernel(H, W, C),
        out_shape=jax.ShapeDtypeStruct((B, 1, ncls), jnp.float32),
        grid=(B,),
        in_specs=[
            pl.BlockSpec((None, Npad, C), lambda b: (b, 0, 0)),   # padded input
            pl.BlockSpec((9 * C, C), inv),                        # conv1 weight
            pl.BlockSpec((1, C), inv),                            # conv1 bias
            pl.BlockSpec((9 * C, C), inv),                        # conv2 weight
            pl.BlockSpec((1, C), inv),                            # conv2 bias
            pl.BlockSpec((C, ncls), inv),                         # fc1 weight
            pl.BlockSpec((1, ncls), inv),                         # fc1 bias
            pl.BlockSpec((Q, 1), inv),                            # valid-pixel mask
        ],
        out_specs=pl.BlockSpec((None, 1, ncls), lambda b: (b, 0, 0)),
        scratch_shapes=[
            pltpu.VMEM((Q, 9 * C), jnp.bfloat16),   # conv1 im2col slab
            pltpu.VMEM((Q, 9 * C), jnp.bfloat16),   # conv2 im2col slab
            pltpu.VMEM((Npad, C), jnp.bfloat16),    # padded conv1 activation
        ],
        compiler_params=pltpu.CompilerParams(
            dimension_semantics=("parallel",),      # 2 balanced steps -> both v7x TCs
            vmem_limit_bytes=32 * 1024 * 1024,
        ),
    )(xp, w1, b1, w2, b2, fw, fb, mask)
    return out.reshape(B, ncls)


# ----------------------------------------------------------------------------
# Params + pure-JAX f32 reference
# ----------------------------------------------------------------------------
def init_params(key, c_in, hidden_size, num_classes):
    ks = jax.random.split(key, 6)
    scale = 0.1
    return {
        "conv1_w": scale * jax.random.normal(ks[0], (hidden_size, c_in, 3, 3), jnp.float32),
        "conv1_b": scale * jax.random.normal(ks[1], (hidden_size,), jnp.float32),
        "conv2_w": scale * jax.random.normal(ks[2], (hidden_size, hidden_size, 3, 3), jnp.float32),
        "conv2_b": scale * jax.random.normal(ks[3], (hidden_size,), jnp.float32),
        "fc1_w": scale * jax.random.normal(ks[4], (num_classes, hidden_size), jnp.float32),
        "fc1_b": scale * jax.random.normal(ks[5], (num_classes,), jnp.float32),
    }


@jax.jit
def resnet_model_forward(x_nchw, params):
    return resnet_model_forward_impl(x_nchw, params)


def resnet_model_reference(x_nchw, params):
    x = jnp.transpose(x_nchw, (0, 2, 3, 1)).astype(jnp.float32)

    def conv(x, w, b):
        w_hwio = jnp.transpose(w, (2, 3, 1, 0))
        y = lax.conv_general_dilated(
            x, w_hwio, window_strides=(1, 1), padding="SAME",
            dimension_numbers=("NHWC", "HWIO", "NHWC"))
        return y + b.reshape(1, 1, 1, -1)

    y = jnp.maximum(conv(x, params["conv1_w"], params["conv1_b"]), 0.0)
    y = jnp.maximum(conv(y, params["conv2_w"], params["conv2_b"]) + y, 0.0)
    feat = jnp.mean(y, axis=(1, 2))
    return feat @ params["fc1_w"].T + params["fc1_b"]


if __name__ == "__main__":
    B, C_in, H, W = 2, 4, 16, 16
    hidden_size, num_classes = 32, 10

    key = jax.random.PRNGKey(0)
    k_x, k_p = jax.random.split(key)
    x = jax.random.normal(k_x, (B, C_in, H, W), jnp.float32)
    params = init_params(k_p, C_in, hidden_size, num_classes)

    out = resnet_model_forward(x, params)
    out = jax.block_until_ready(out)

    ref = resnet_model_reference(x, params)
    assert out.shape == (B, num_classes)
    # bf16 MXU operands, bf16 VMEM-resident intermediate, f32 accumulation.
    assert jnp.allclose(out, ref, atol=3e-2, rtol=3e-2), "mismatch vs reference"

    print("KERNEL_OK")
</pallas_src>

<mosaic_0001>
module attributes {stable_mosaic.version = 11 : i64} {
  func.func @kernel(%arg0: i32, %arg1: memref<1x360x32xbf16, #tpu.memory_space<vmem>>, %arg2: memref<288x32xbf16, #tpu.memory_space<vmem>>, %arg3: memref<1x32xf32, #tpu.memory_space<vmem>>, %arg4: memref<288x32xbf16, #tpu.memory_space<vmem>>, %arg5: memref<1x32xf32, #tpu.memory_space<vmem>>, %arg6: memref<32x10xf32, #tpu.memory_space<vmem>>, %arg7: memref<1x10xf32, #tpu.memory_space<vmem>>, %arg8: memref<304x1xf32, #tpu.memory_space<vmem>>, %arg9: memref<1x1x10xf32, #tpu.memory_space<vmem>>, %arg10: memref<304x288xbf16, #tpu.memory_space<vmem>>, %arg11: memref<304x288xbf16, #tpu.memory_space<vmem>>, %arg12: memref<360x32xbf16, #tpu.memory_space<vmem>>) attributes {dimension_semantics = [#tpu.dimension_semantics<parallel>], iteration_bounds = array<i64: 2>, scalar_prefetch = 0 : i64, scratch_operands = 3 : i64, tpu.core_type = #tpu.core_type<tc>, window_params = [{transform_indices = @transform_0, window_bounds = array<i64: 1, 360, 32>}, {pipeline_mode = #tpu.pipeline_mode<synchronous>, transform_indices = @transform_1, window_bounds = array<i64: 288, 32>}, {pipeline_mode = #tpu.pipeline_mode<synchronous>, transform_indices = @transform_2, window_bounds = array<i64: 1, 32>}, {pipeline_mode = #tpu.pipeline_mode<synchronous>, transform_indices = @transform_3, window_bounds = array<i64: 288, 32>}, {pipeline_mode = #tpu.pipeline_mode<synchronous>, transform_indices = @transform_4, window_bounds = array<i64: 1, 32>}, {pipeline_mode = #tpu.pipeline_mode<synchronous>, transform_indices = @transform_5, window_bounds = array<i64: 32, 10>}, {pipeline_mode = #tpu.pipeline_mode<synchronous>, transform_indices = @transform_6, window_bounds = array<i64: 1, 10>}, {pipeline_mode = #tpu.pipeline_mode<synchronous>, transform_indices = @transform_7, window_bounds = array<i64: 304, 1>}, {transform_indices = @transform_8, window_bounds = array<i64: 1, 1, 10>}]} {
    %c0 = arith.constant 0 : index
    %c0_0 = arith.constant 0 : index
    %0 = vector.load %arg8[%c0, %c0_0] : memref<304x1xf32, #tpu.memory_space<vmem>>, vector<304x1xf32>
    %c0_1 = arith.constant 0 : index
    %c0_2 = arith.constant 0 : index
    %c0_3 = arith.constant 0 : index
    %1 = vector.load %arg1[%c0_1, %c0_2, %c0_3] : memref<1x360x32xbf16, #tpu.memory_space<vmem>>, vector<1x304x32xbf16>
    %2 = vector.shape_cast %1 : vector<1x304x32xbf16> to vector<304x32xbf16>
    %c0_4 = arith.constant 0 : index
    %c0_5 = arith.constant 0 : index
    %3 = vector.load %arg10[%c0_4, %c0_5] : memref<304x288xbf16, #tpu.memory_space<vmem>>, vector<304x32xbf16>
    tpu.vector_store %arg10[%c0_4, %c0_5], %2 {strides = array<i32>} : memref<304x288xbf16, #tpu.memory_space<vmem>>, vector<304x32xbf16>,
    %c0_6 = arith.constant 0 : index
    %c1 = arith.constant 1 : index
    %c0_7 = arith.constant 0 : index
    %4 = vector.load %arg1[%c0_6, %c1, %c0_7] : memref<1x360x32xbf16, #tpu.memory_space<vmem>>, vector<1x304x32xbf16>
    %5 = vector.shape_cast %4 : vector<1x304x32xbf16> to vector<304x32xbf16>
    %c0_8 = arith.constant 0 : index
    %c32 = arith.constant 32 : index
    %6 = vector.load %arg10[%c0_8, %c32] : memref<304x288xbf16, #tpu.memory_space<vmem>>, vector<304x32xbf16>
    tpu.vector_store %arg10[%c0_8, %c32], %5 {strides = array<i32>} : memref<304x288xbf16, #tpu.memory_space<vmem>>, vector<304x32xbf16>,
    %c0_9 = arith.constant 0 : index
    %c2 = arith.constant 2 : index
    %c0_10 = arith.constant 0 : index
    %7 = vector.load %arg1[%c0_9, %c2, %c0_10] : memref<1x360x32xbf16, #tpu.memory_space<vmem>>, vector<1x304x32xbf16>
    %8 = vector.shape_cast %7 : vector<1x304x32xbf16> to vector<304x32xbf16>
    %c0_11 = arith.constant 0 : index
    %c64 = arith.constant 64 : index
    %9 = vector.load %arg10[%c0_11, %c64] : memref<304x288xbf16, #tpu.memory_space<vmem>>, vector<304x32xbf16>
    tpu.vector_store %arg10[%c0_11, %c64], %8 {strides = array<i32>} : memref<304x288xbf16, #tpu.memory_space<vmem>>, vector<304x32xbf16>,
    %c0_12 = arith.constant 0 : index
    %c18 = arith.constant 18 : index
    %c0_13 = arith.constant 0 : index
    %10 = vector.load %arg1[%c0_12, %c18, %c0_13] : memref<1x360x32xbf16, #tpu.memory_space<vmem>>, vector<1x304x32xbf16>
    %11 = vector.shape_cast %10 : vector<1x304x32xbf16> to vector<304x32xbf16>
    %c0_14 = arith.constant 0 : index
    %c96 = arith.constant 96 : index
    %12 = vector.load %arg10[%c0_14, %c96] : memref<304x288xbf16, #tpu.memory_space<vmem>>, vector<304x32xbf16>
    tpu.vector_store %arg10[%c0_14, %c96], %11 {strides = array<i32>} : memref<304x288xbf16, #tpu.memory_space<vmem>>, vector<304x32xbf16>,
    %c0_15 = arith.constant 0 : index
    %c19 = arith.constant 19 : index
    %c0_16 = arith.constant 0 : index
    %13 = vector.load %arg1[%c0_15, %c19, %c0_16] : memref<1x360x32xbf16, #tpu.memory_space<vmem>>, vector<1x304x32xbf16>
    %14 = vector.shape_cast %13 : vector<1x304x32xbf16> to vector<304x32xbf16>
    %c0_17 = arith.constant 0 : index
    %c128 = arith.constant 128 : index
    %15 = vector.load %arg10[%c0_17, %c128] : memref<304x288xbf16, #tpu.memory_space<vmem>>, vector<304x32xbf16>
    tpu.vector_store %arg10[%c0_17, %c128], %14 {strides = array<i32>} : memref<304x288xbf16, #tpu.memory_space<vmem>>, vector<304x32xbf16>,
    %c0_18 = arith.constant 0 : index
    %c20 = arith.constant 20 : index
    %c0_19 = arith.constant 0 : index
    %16 = vector.load %arg1[%c0_18, %c20, %c0_19] : memref<1x360x32xbf16, #tpu.memory_space<vmem>>, vector<1x304x32xbf16>
    %17 = vector.shape_cast %16 : vector<1x304x32xbf16> to vector<304x32xbf16>
    %c0_20 = arith.constant 0 : index
    %c160 = arith.constant 160 : index
    %18 = vector.load %arg10[%c0_20, %c160] : memref<304x288xbf16, #tpu.memory_space<vmem>>, vector<304x32xbf16>
    tpu.vector_store %arg10[%c0_20, %c160], %17 {strides = array<i32>} : memref<304x288xbf16, #tpu.memory_space<vmem>>, vector<304x32xbf16>,
    %c0_21 = arith.constant 0 : index
    %c36 = arith.constant 36 : index
    %c0_22 = arith.constant 0 : index
    %19 = vector.load %arg1[%c0_21, %c36, %c0_22] : memref<1x360x32xbf16, #tpu.memory_space<vmem>>, vector<1x304x32xbf16>
    %20 = vector.shape_cast %19 : vector<1x304x32xbf16> to vector<304x32xbf16>
    %c0_23 = arith.constant 0 : index
    %c192 = arith.constant 192 : index
    %21 = vector.load %arg10[%c0_23, %c192] : memref<304x288xbf16, #tpu.memory_space<vmem>>, vector<304x32xbf16>
    tpu.vector_store %arg10[%c0_23, %c192], %20 {strides = array<i32>} : memref<304x288xbf16, #tpu.memory_space<vmem>>, vector<304x32xbf16>,
    %c0_24 = arith.constant 0 : index
    %c37 = arith.constant 37 : index
    %c0_25 = arith.constant 0 : index
    %22 = vector.load %arg1[%c0_24, %c37, %c0_25] : memref<1x360x32xbf16, #tpu.memory_space<vmem>>, vector<1x304x32xbf16>
    %23 = vector.shape_cast %22 : vector<1x304x32xbf16> to vector<304x32xbf16>
    %c0_26 = arith.constant 0 : index
    %c224 = arith.constant 224 : index
    %24 = vector.load %arg10[%c0_26, %c224] : memref<304x288xbf16, #tpu.memory_space<vmem>>, vector<304x32xbf16>
    tpu.vector_store %arg10[%c0_26, %c224], %23 {strides = array<i32>} : memref<304x288xbf16, #tpu.memory_space<vmem>>, vector<304x32xbf16>,
    %c0_27 = arith.constant 0 : index
    %c38 = arith.constant 38 : index
    %c0_28 = arith.constant 0 : index
    %25 = vector.load %arg1[%c0_27, %c38, %c0_28] : memref<1x360x32xbf16, #tpu.memory_space<vmem>>, vector<1x304x32xbf16>
    %26 = vector.shape_cast %25 : vector<1x304x32xbf16> to vector<304x32xbf16>
    %c0_29 = arith.constant 0 : index
    %c256 = arith.constant 256 : index
    %27 = vector.load %arg10[%c0_29, %c256] : memref<304x288xbf16, #tpu.memory_space<vmem>>, vector<304x32xbf16>
    tpu.vector_store %arg10[%c0_29, %c256], %26 {strides = array<i32>} : memref<304x288xbf16, #tpu.memory_space<vmem>>, vector<304x32xbf16>,
    %c0_30 = arith.constant 0 : index
    %c0_31 = arith.constant 0 : index
    %28 = vector.load %arg10[%c0_30, %c0_31] : memref<304x288xbf16, #tpu.memory_space<vmem>>, vector<304x288xbf16>
    %c0_32 = arith.constant 0 : index
    %c0_33 = arith.constant 0 : index
    %29 = vector.load %arg2[%c0_32, %c0_33] : memref<288x32xbf16, #tpu.memory_space<vmem>>, vector<288x32xbf16>
    %cst = arith.constant dense<0.000000e+00> : vector<304x32xf32>
    %30 = tpu.matmul %28, %29, %cst {dimension_numbers = #tpu.dot_dimension_numbers<[1], [0], [0], [1], [0, 0, 1, 1], [], []>} : vector<304x288xbf16>, vector<288x32xbf16>, vector<304x32xf32> -> vector<304x32xf32>
    %c0_34 = arith.constant 0 : index
    %c0_35 = arith.constant 0 : index
    %31 = vector.load %arg3[%c0_34, %c0_35] : memref<1x32xf32, #tpu.memory_space<vmem>>, vector<1x32xf32>
    %32 = vector.broadcast %31 : vector<1x32xf32> to vector<304x32xf32>
    %33 = arith.addf %30, %32 : vector<304x32xf32>
    %cst_36 = arith.constant 0.000000e+00 : f32
    %34 = vector.broadcast %cst_36 : f32 to vector<304x32xf32>
    %35 = arith.maximumf %33, %34 : vector<304x32xf32>
    %36 = vector.broadcast %0 : vector<304x1xf32> to vector<304x32xf32>
    %37 = arith.mulf %35, %36 : vector<304x32xf32>
    %cst_37 = arith.constant 0.000000e+00 : bf16
    %38 = vector.broadcast %cst_37 : bf16 to vector<19x32xbf16>
    %c0_38 = arith.constant 0 : index
    %c0_39 = arith.constant 0 : index
    %39 = vector.load %arg12[%c0_38, %c0_39] : memref<360x32xbf16, #tpu.memory_space<vmem>>, vector<19x32xbf16>
    tpu.vector_store %arg12[%c0_38, %c0_39], %38 {strides = array<i32>} : memref<360x32xbf16, #tpu.memory_space<vmem>>, vector<19x32xbf16>,
    %40 = arith.truncf %37 : vector<304x32xf32> to vector<304x32xbf16>
    %c19_40 = arith.constant 19 : index
    %c0_41 = arith.constant 0 : index
    %41 = vector.load %arg12[%c19_40, %c0_41] : memref<360x32xbf16, #tpu.memory_space<vmem>>, vector<304x32xbf16>
    tpu.vector_store %arg12[%c19_40, %c0_41], %40 {strides = array<i32>} : memref<360x32xbf16, #tpu.memory_space<vmem>>, vector<304x32xbf16>,
    %cst_42 = arith.constant 0.000000e+00 : bf16
    %42 = vector.broadcast %cst_42 : bf16 to vector<37x32xbf16>
    %c323 = arith.constant 323 : index
    %c0_43 = arith.constant 0 : index
    %43 = vector.load %arg12[%c323, %c0_43] : memref<360x32xbf16, #tpu.memory_space<vmem>>, vector<37x32xbf16>
    tpu.vector_store %arg12[%c323, %c0_43], %42 {strides = array<i32>} : memref<360x32xbf16, #tpu.memory_space<vmem>>, vector<37x32xbf16>,
    %c0_44 = arith.constant 0 : index
    %c0_45 = arith.constant 0 : index
    %44 = vector.load %arg12[%c0_44, %c0_45] : memref<360x32xbf16, #tpu.memory_space<vmem>>, vector<304x32xbf16>
    %c0_46 = arith.constant 0 : index
    %c0_47 = arith.constant 0 : index
    %45 = vector.load %arg11[%c0_46, %c0_47] : memref<304x288xbf16, #tpu.memory_space<vmem>>, vector<304x32xbf16>
    tpu.vector_store %arg11[%c0_46, %c0_47], %44 {strides = array<i32>} : memref<304x288xbf16, #tpu.memory_space<vmem>>, vector<304x32xbf16>,
    %c1_48 = arith.constant 1 : index
    %c0_49 = arith.constant 0 : index
    %46 = vector.load %arg12[%c1_48, %c0_49] : memref<360x32xbf16, #tpu.memory_space<vmem>>, vector<304x32xbf16>
    %c0_50 = arith.constant 0 : index
    %c32_51 = arith.constant 32 : index
    %47 = vector.load %arg11[%c0_50, %c32_51] : memref<304x288xbf16, #tpu.memory_space<vmem>>, vector<304x32xbf16>
    tpu.vector_store %arg11[%c0_50, %c32_51], %46 {strides = array<i32>} : memref<304x288xbf16, #tpu.memory_space<vmem>>, vector<304x32xbf16>,
    %c2_52 = arith.constant 2 : index
    %c0_53 = arith.constant 0 : index
    %48 = vector.load %arg12[%c2_52, %c0_53] : memref<360x32xbf16, #tpu.memory_space<vmem>>, vector<304x32xbf16>
    %c0_54 = arith.constant 0 : index
    %c64_55 = arith.constant 64 : index
    %49 = vector.load %arg11[%c0_54, %c64_55] : memref<304x288xbf16, #tpu.memory_space<vmem>>, vector<304x32xbf16>
    tpu.vector_store %arg11[%c0_54, %c64_55], %48 {strides = array<i32>} : memref<304x288xbf16, #tpu.memory_space<vmem>>, vector<304x32xbf16>,
    %c18_56 = arith.constant 18 : index
    %c0_57 = arith.constant 0 : index
    %50 = vector.load %arg12[%c18_56, %c0_57] : memref<360x32xbf16, #tpu.memory_space<vmem>>, vector<304x32xbf16>
    %c0_58 = arith.constant 0 : index
    %c96_59 = arith.constant 96 : index
    %51 = vector.load %arg11[%c0_58, %c96_59] : memref<304x288xbf16, #tpu.memory_space<vmem>>, vector<304x32xbf16>
    tpu.vector_store %arg11[%c0_58, %c96_59], %50 {strides = array<i32>} : memref<304x288xbf16, #tpu.memory_space<vmem>>, vector<304x32xbf16>,
    %c19_60 = arith.constant 19 : index
    %c0_61 = arith.constant 0 : index
    %52 = vector.load %arg12[%c19_60, %c0_61] : memref<360x32xbf16, #tpu.memory_space<vmem>>, vector<304x32xbf16>
    %c0_62 = arith.constant 0 : index
    %c128_63 = arith.constant 128 : index
    %53 = vector.load %arg11[%c0_62, %c128_63] : memref<304x288xbf16, #tpu.memory_space<vmem>>, vector<304x32xbf16>
    tpu.vector_store %arg11[%c0_62, %c128_63], %52 {strides = array<i32>} : memref<304x288xbf16, #tpu.memory_space<vmem>>, vector<304x32xbf16>,
    %c20_64 = arith.constant 20 : index
    %c0_65 = arith.constant 0 : index
    %54 = vector.load %arg12[%c20_64, %c0_65] : memref<360x32xbf16, #tpu.memory_space<vmem>>, vector<304x32xbf16>
    %c0_66 = arith.constant 0 : index
    %c160_67 = arith.constant 160 : index
    %55 = vector.load %arg11[%c0_66, %c160_67] : memref<304x288xbf16, #tpu.memory_space<vmem>>, vector<304x32xbf16>
    tpu.vector_store %arg11[%c0_66, %c160_67], %54 {strides = array<i32>} : memref<304x288xbf16, #tpu.memory_space<vmem>>, vector<304x32xbf16>,
    %c36_68 = arith.constant 36 : index
    %c0_69 = arith.constant 0 : index
    %56 = vector.load %arg12[%c36_68, %c0_69] : memref<360x32xbf16, #tpu.memory_space<vmem>>, vector<304x32xbf16>
    %c0_70 = arith.constant 0 : index
    %c192_71 = arith.constant 192 : index
    %57 = vector.load %arg11[%c0_70, %c192_71] : memref<304x288xbf16, #tpu.memory_space<vmem>>, vector<304x32xbf16>
    tpu.vector_store %arg11[%c0_70, %c192_71], %56 {strides = array<i32>} : memref<304x288xbf16, #tpu.memory_space<vmem>>, vector<304x32xbf16>,
    %c37_72 = arith.constant 37 : index
    %c0_73 = arith.constant 0 : index
    %58 = vector.load %arg12[%c37_72, %c0_73] : memref<360x32xbf16, #tpu.memory_space<vmem>>, vector<304x32xbf16>
    %c0_74 = arith.constant 0 : index
    %c224_75 = arith.constant 224 : index
    %59 = vector.load %arg11[%c0_74, %c224_75] : memref<304x288xbf16, #tpu.memory_space<vmem>>, vector<304x32xbf16>
    tpu.vector_store %arg11[%c0_74, %c224_75], %58 {strides = array<i32>} : memref<304x288xbf16, #tpu.memory_space<vmem>>, vector<304x32xbf16>,
    %c38_76 = arith.constant 38 : index
    %c0_77 = arith.constant 0 : index
    %60 = vector.load %arg12[%c38_76, %c0_77] : memref<360x32xbf16, #tpu.memory_space<vmem>>, vector<304x32xbf16>
    %c0_78 = arith.constant 0 : index
    %c256_79 = arith.constant 256 : index
    %61 = vector.load %arg11[%c0_78, %c256_79] : memref<304x288xbf16, #tpu.memory_space<vmem>>, vector<304x32xbf16>
    tpu.vector_store %arg11[%c0_78, %c256_79], %60 {strides = array<i32>} : memref<304x288xbf16, #tpu.memory_space<vmem>>, vector<304x32xbf16>,
    %c0_80 = arith.constant 0 : index
    %c0_81 = arith.constant 0 : index
    %62 = vector.load %arg11[%c0_80, %c0_81] : memref<304x288xbf16, #tpu.memory_space<vmem>>, vector<304x288xbf16>
    %c0_82 = arith.constant 0 : index
    %c0_83 = arith.constant 0 : index
    %63 = vector.load %arg4[%c0_82, %c0_83] : memref<288x32xbf16, #tpu.memory_space<vmem>>, vector<288x32xbf16>
    %cst_84 = arith.constant dense<0.000000e+00> : vector<304x32xf32>
    %64 = tpu.matmul %62, %63, %cst_84 {dimension_numbers = #tpu.dot_dimension_numbers<[1], [0], [0], [1], [0, 0, 1, 1], [], []>} : vector<304x288xbf16>, vector<288x32xbf16>, vector<304x32xf32> -> vector<304x32xf32>
    %c19_85 = arith.constant 19 : index
    %c0_86 = arith.constant 0 : index
    %65 = vector.load %arg12[%c19_85, %c0_86] : memref<360x32xbf16, #tpu.memory_space<vmem>>, vector<304x32xbf16>
    %66 = arith.extf %65 : vector<304x32xbf16> to vector<304x32xf32>
    %67 = arith.addf %64, %66 : vector<304x32xf32>
    %c0_87 = arith.constant 0 : index
    %c0_88 = arith.constant 0 : index
    %68 = vector.load %arg5[%c0_87, %c0_88] : memref<1x32xf32, #tpu.memory_space<vmem>>, vector<1x32xf32>
    %69 = vector.broadcast %68 : vector<1x32xf32> to vector<304x32xf32>
    %70 = arith.addf %67, %69 : vector<304x32xf32>
    %cst_89 = arith.constant 0.000000e+00 : f32
    %71 = vector.broadcast %cst_89 : f32 to vector<304x32xf32>
    %72 = arith.maximumf %70, %71 : vector<304x32xf32>
    %73 = vector.broadcast %0 : vector<304x1xf32> to vector<304x32xf32>
    %74 = arith.mulf %72, %73 : vector<304x32xf32>
    %cst_90 = arith.constant dense<0.000000e+00> : vector<32xf32>
    %75 = vector.multi_reduction <add>, %74, %cst_90 [0] : vector<304x32xf32> to vector<32xf32>
    %76 = vector.shape_cast %75 : vector<32xf32> to vector<1x32xf32>
    %cst_91 = arith.constant 3.906250e-03 : f32
    %77 = vector.broadcast %cst_91 : f32 to vector<1x32xf32>
    %78 = arith.mulf %76, %77 : vector<1x32xf32>
    %c0_92 = arith.constant 0 : index
    %c0_93 = arith.constant 0 : index
    %79 = vector.load %arg6[%c0_92, %c0_93] : memref<32x10xf32, #tpu.memory_space<vmem>>, vector<32x10xf32>
    %cst_94 = arith.constant dense<0.000000e+00> : vector<1x10xf32>
    %80 = tpu.matmul %78, %79, %cst_94 {dimension_numbers = #tpu.dot_dimension_numbers<[1], [0], [0], [1], [0, 0, 1, 1], [], []>} : vector<1x32xf32>, vector<32x10xf32>, vector<1x10xf32> -> vector<1x10xf32>
    %c0_95 = arith.constant 0 : index
    %c0_96 = arith.constant 0 : index
    %81 = vector.load %arg7[%c0_95, %c0_96] : memref<1x10xf32, #tpu.memory_space<vmem>>, vector<1x10xf32>
    %82 = arith.addf %80, %81 : vector<1x10xf32>
    %c0_97 = arith.constant 0 : index
    %c0_98 = arith.constant 0 : index
    %c0_99 = arith.constant 0 : index
    %83 = vector.load %arg9[%c0_97, %c0_98, %c0_99] : memref<1x1x10xf32, #tpu.memory_space<vmem>>, vector<1x1x10xf32>
    %84 = vector.shape_cast %83 : vector<1x1x10xf32> to vector<1x10xf32>
    %85 = vector.shape_cast %82 : vector<1x10xf32> to vector<1x1x10xf32>
    tpu.vector_store %arg9[%c0_97, %c0_98, %c0_99], %85 {strides = array<i32>} : memref<1x1x10xf32, #tpu.memory_space<vmem>>, vector<1x1x10xf32>,
    return
  }
  func.func @transform_0(%arg0: i32) -> (i32, i32, i32) {
    %c0_i32 = arith.constant 0 : i32
    %c0_i32_0 = arith.constant 0 : i32
    %c0_i32_1 = arith.constant 0 : i32
    return %arg0, %c0_i32, %c0_i32_0 : i32, i32, i32
  }
  func.func @transform_1(%arg0: i32) -> (i32, i32) {
    %c0_i32 = arith.constant 0 : i32
    %c0_i32_0 = arith.constant 0 : i32
    %c0_i32_1 = arith.constant 0 : i32
    return %c0_i32, %c0_i32_0 : i32, i32
  }
  func.func @transform_2(%arg0: i32) -> (i32, i32) {
    %c0_i32 = arith.constant 0 : i32
    %c0_i32_0 = arith.constant 0 : i32
    %c0_i32_1 = arith.constant 0 : i32
    return %c0_i32, %c0_i32_0 : i32, i32
  }
  func.func @transform_3(%arg0: i32) -> (i32, i32) {
    %c0_i32 = arith.constant 0 : i32
    %c0_i32_0 = arith.constant 0 : i32
    %c0_i32_1 = arith.constant 0 : i32
    return %c0_i32, %c0_i32_0 : i32, i32
  }
  func.func @transform_4(%arg0: i32) -> (i32, i32) {
    %c0_i32 = arith.constant 0 : i32
    %c0_i32_0 = arith.constant 0 : i32
    %c0_i32_1 = arith.constant 0 : i32
    return %c0_i32, %c0_i32_0 : i32, i32
  }
  func.func @transform_5(%arg0: i32) -> (i32, i32) {
    %c0_i32 = arith.constant 0 : i32
    %c0_i32_0 = arith.constant 0 : i32
    %c0_i32_1 = arith.constant 0 : i32
    return %c0_i32, %c0_i32_0 : i32, i32
  }
  func.func @transform_6(%arg0: i32) -> (i32, i32) {
    %c0_i32 = arith.constant 0 : i32
    %c0_i32_0 = arith.constant 0 : i32
    %c0_i32_1 = arith.constant 0 : i32
    return %c0_i32, %c0_i32_0 : i32, i32
  }
  func.func @transform_7(%arg0: i32) -> (i32, i32) {
    %c0_i32 = arith.constant 0 : i32
    %c0_i32_0 = arith.constant 0 : i32
    %c0_i32_1 = arith.constant 0 : i32
    return %c0_i32, %c0_i32_0 : i32, i32
  }
  func.func @transform_8(%arg0: i32) -> (i32, i32, i32) {
    %c0_i32 = arith.constant 0 : i32
    %c0_i32_0 = arith.constant 0 : i32
    %c0_i32_1 = arith.constant 0 : i32
    return %arg0, %c0_i32, %c0_i32_0 : i32, i32, i32
  }
}

</mosaic_0001>

<llo_original>
// kernel: resnet_model_forward.1
$region0: #{resnet_model_forward.1}
  #allocation0 [shape = 'u32[]', space=smem, size = 0x4, offset = 0x4, fixed_abs, tag = 'smem constant byte address 0x4 - core index']
  #allocation1 [shape = 'u32[72,128]{1,0:T(1,128)}', space=vmem, size = 0x9000, scoped, tag = 'internal scratch']
  #allocation2 [shape = 'bf16[304,288]{1,0:T(8,128)(2,1)}', space=vmem, size = 0x39000, scoped, tag = 'scratch operand']
  #allocation3 [shape = 'bf16[304,288]{1,0:T(8,128)(2,1)}', space=vmem, size = 0x39000, scoped, tag = 'scratch operand']
  #allocation4 [shape = 'bf16[360,32]{1,0:T(8,128)(2,1)}', space=vmem, size = 0x16800, scoped, tag = 'scratch operand']
  %s0 = inlined_call_operand.vmem [shape: bf16[2,360,32], index: 0, kind: input, shape index: {}]
  %s1 = inlined_call_operand.vmem [shape: bf16[288,32], index: 1, kind: input, shape index: {}]
  %s2 = inlined_call_operand.vmem [shape: f32[1,32], index: 2, kind: input, shape index: {}]
  %s3 = inlined_call_operand.vmem [shape: bf16[288,32], index: 3, kind: input, shape index: {}]
  %s4 = inlined_call_operand.vmem [shape: f32[1,32], index: 4, kind: input, shape index: {}]
  %s5 = inlined_call_operand.vmem [shape: f32[32,10], index: 5, kind: input, shape index: {}]
  %s6 = inlined_call_operand.vmem [shape: f32[1,10], index: 6, kind: input, shape index: {}]
  %s7 = inlined_call_operand.vmem [shape: f32[304,1], index: 7, kind: input, shape index: {}]
  %s8 = inlined_call_operand.hbm [shape: f32[2,1,10], index: 8, kind: output, shape index: {}]
  %s9 = sld [smem:[#allocation0]]
  $region65: #{resnet_model_forward.1} parent=0
    _
  %s11 = ssub.s32 1, %s9
  %s12 = scalar_select 0, %s11, %s9
  $region1: #{resnet_model_forward.1} parent=0
    #allocation5 [shape = 'u8[1024]{0}', space=vmem, size = 0x400, scoped, tag = 'output window, operand 0']
    #allocation6 [shape = 's32[2]{0}', space=sflag, size = 0x8, scoped, tag = 'scoped memory for resnet_model_forward.1']
    %13 = vsyncpa [#allocation6], 0
    %s14 = scalar_lea.sflag [#allocation6], 1
    %15 = vsyncpa %s14, 0
    loop: start=0, step=1, limit=4
    $region2: #{resnet_model_forward.1} parent=1 // loop_pre_header
      _
    $region3: #{resnet_model_forward.1} parent=1 // loop_header
      %s17 = sphi 0, %s21
      %p18 = scmp.ge.s32.totalorder %s17, 4
      %s27 = sphi 0, %s29
      %s30 = sphi 0, %s27
      %s31 = sphi 0, %s30
      %s47 = sphi 0, %s31
      %s51 = sphi 0, %s51
      %s53 = sphi 0, %s51
      %s54 = sphi 0, %s53
      %s68 = sphi 0, %s54
      %s72 = sphi 0, %s72
      %s74 = sphi 0, %s72
      %s75 = sphi 0, %s74
      %s89 = sphi 0, %s75
      %s93 = sphi 0, %s93
      %s95 = sphi 0, %s93
      %s96 = sphi 0, %s95
      %s110 = sphi 0, %s96
      %s114 = sphi 0, %s114
      %s116 = sphi 0, %s114
      %s117 = sphi 0, %s116
      %s131 = sphi 0, %s117
      %s135 = sphi 0, %s135
      %s137 = sphi 0, %s135
      %s138 = sphi 0, %s137
      %s152 = sphi 0, %s138
      %s156 = sphi 0, %s156
      %s158 = sphi 0, %s156
      %s159 = sphi 0, %s158
      %s173 = sphi 0, %s159
      %s177 = sphi 0, %s177
      %s179 = sphi 0, %s177
      %s180 = sphi 0, %s179
      %s194 = sphi 0, %s180
      %s200 = sphi 0, %s202
      %s203 = sphi 0, %s200
      %s204 = sphi 0, %s203
      %s220 = sphi 0, %s204
    $region4: #{resnet_model_forward.1} parent=1 // loop_header_branch
      %20 = sbr.rel (%p18) target = $region8
    $region5: #{resnet_model_forward.1} parent=1 // loop_body
      %s22 = ssub.s32 %s17, 1
      %s23 = ssub.s32 %s17, 2
      %s24 = sadd.s32 %s17, 1
      %s25 = ssub.s32 %s17, %s24
      %p26 = scmp.eq.s32.totalorder %s25, 0
      %s28 = sadd.s32 %s27, 1
      %s29 = scalar_select %p26, %s27, %s28
      %p32 = pneg %p26
      %p33 = scmp.eq.s32.totalorder %s17, 1
      %p34 = por %p32, %p33
      %p35 = scmp.ne.s32.totalorder %s27, %s30
      %p36 = scmp.eq.s32.totalorder %s17, 0
      %p37 = por %p35, %p36
      %p38 = scmp.ne.s32.totalorder %s27, %s30
      %p39 = scmp.eq.s32.totalorder %s22, 1
      %p40 = por %p38, %p39
      %p41 = scmp.ne.s32.totalorder %s30, %s31
      %p42 = scmp.eq.s32.totalorder %s22, 0
      %p43 = por %p41, %p42
      %p44 = scmp.ne.s32.totalorder %s30, %s31
      %p45 = scmp.eq.s32.totalorder %s23, 1
      %p46 = por %p44, %p45
      %p48 = scmp.ne.s32.totalorder %s31, %s47
      %p49 = scmp.eq.s32.totalorder %s23, 0
      %p50 = por %p48, %p49
      %s52 = sadd.s32 %s51, 1
      %p55 = scmp.eq.s32.totalorder %s17, 1
      %p56 = scmp.ne.s32.totalorder %s51, %s53
      %p57 = scmp.eq.s32.totalorder %s17, 0
      %p58 = por %p56, %p57
      %p59 = scmp.ne.s32.totalorder %s51, %s53
      %p60 = scmp.eq.s32.totalorder %s22, 1
      %p61 = por %p59, %p60
      %p62 = scmp.ne.s32.totalorder %s53, %s54
      %p63 = scmp.eq.s32.totalorder %s22, 0
      %p64 = por %p62, %p63
      %p65 = scmp.ne.s32.totalorder %s53, %s54
      %p66 = scmp.eq.s32.totalorder %s23, 1
      %p67 = por %p65, %p66
      %p69 = scmp.ne.s32.totalorder %s54, %s68
      %p70 = scmp.eq.s32.totalorder %s23, 0
      %p71 = por %p69, %p70
      %s73 = sadd.s32 %s72, 1
      %p76 = scmp.eq.s32.totalorder %s17, 1
      %p77 = scmp.ne.s32.totalorder %s72, %s74
      %p78 = scmp.eq.s32.totalorder %s17, 0
      %p79 = por %p77, %p78
      %p80 = scmp.ne.s32.totalorder %s72, %s74
      %p81 = scmp.eq.s32.totalorder %s22, 1
      %p82 = por %p80, %p81
      %p83 = scmp.ne.s32.totalorder %s74, %s75
      %p84 = scmp.eq.s32.totalorder %s22, 0
      %p85 = por %p83, %p84
      %p86 = scmp.ne.s32.totalorder %s74, %s75
      %p87 = scmp.eq.s32.totalorder %s23, 1
      %p88 = por %p86, %p87
      %p90 = scmp.ne.s32.totalorder %s75, %s89
      %p91 = scmp.eq.s32.totalorder %s23, 0
      %p92 = por %p90, %p91
      %s94 = sadd.s32 %s93, 1
      %p97 = scmp.eq.s32.totalorder %s17, 1
      %p98 = scmp.ne.s32.totalorder %s93, %s95
      %p99 = scmp.eq.s32.totalorder %s17, 0
      %p100 = por %p98, %p99
      %p101 = scmp.ne.s32.totalorder %s93, %s95
      %p102 = scmp.eq.s32.totalorder %s22, 1
      %p103 = por %p101, %p102
      %p104 = scmp.ne.s32.totalorder %s95, %s96
      %p105 = scmp.eq.s32.totalorder %s22, 0
      %p106 = por %p104, %p105
      %p107 = scmp.ne.s32.totalorder %s95, %s96
      %p108 = scmp.eq.s32.totalorder %s23, 1
      %p109 = por %p107, %p108
      %p111 = scmp.ne.s32.totalorder %s96, %s110
      %p112 = scmp.eq.s32.totalorder %s23, 0
      %p113 = por %p111, %p112
      %s115 = sadd.s32 %s114, 1
      %p118 = scmp.eq.s32.totalorder %s17, 1
      %p119 = scmp.ne.s32.totalorder %s114, %s116
      %p120 = scmp.eq.s32.totalorder %s17, 0
      %p121 = por %p119, %p120
      %p122 = scmp.ne.s32.totalorder %s114, %s116
      %p123 = scmp.eq.s32.totalorder %s22, 1
      %p124 = por %p122, %p123
      %p125 = scmp.ne.s32.totalorder %s116, %s117
      %p126 = scmp.eq.s32.totalorder %s22, 0
      %p127 = por %p125, %p126
      %p128 = scmp.ne.s32.totalorder %s116, %s117
      %p129 = scmp.eq.s32.totalorder %s23, 1
      %p130 = por %p128, %p129
      %p132 = scmp.ne.s32.totalorder %s117, %s131
      %p133 = scmp.eq.s32.totalorder %s23, 0
      %p134 = por %p132, %p133
      %s136 = sadd.s32 %s135, 1
      %p139 = scmp.eq.s32.totalorder %s17, 1
      %p140 = scmp.ne.s32.totalorder %s135, %s137
      %p141 = scmp.eq.s32.totalorder %s17, 0
      %p142 = por %p140, %p141
      %p143 = scmp.ne.s32.totalorder %s135, %s137
      %p144 = scmp.eq.s32.totalorder %s22, 1
      %p145 = por %p143, %p144
      %p146 = scmp.ne.s32.totalorder %s137, %s138
      %p147 = scmp.eq.s32.totalorder %s22, 0
      %p148 = por %p146, %p147
      %p149 = scmp.ne.s32.totalorder %s137, %s138
      %p150 = scmp.eq.s32.totalorder %s23, 1
      %p151 = por %p149, %p150
      %p153 = scmp.ne.s32.totalorder %s138, %s152
      %p154 = scmp.eq.s32.totalorder %s23, 0
      %p155 = por %p153, %p154
      %s157 = sadd.s32 %s156, 1
      %p160 = scmp.eq.s32.totalorder %s17, 1
      %p161 = scmp.ne.s32.totalorder %s156, %s158
      %p162 = scmp.eq.s32.totalorder %s17, 0
      %p163 = por %p161, %p162
      %p164 = scmp.ne.s32.totalorder %s156, %s158
      %p165 = scmp.eq.s32.totalorder %s22, 1
      %p166 = por %p164, %p165
      %p167 = scmp.ne.s32.totalorder %s158, %s159
      %p168 = scmp.eq.s32.totalorder %s22, 0
      %p169 = por %p167, %p168
      %p170 = scmp.ne.s32.totalorder %s158, %s159
      %p171 = scmp.eq.s32.totalorder %s23, 1
      %p172 = por %p170, %p171
      %p174 = scmp.ne.s32.totalorder %s159, %s173
      %p175 = scmp.eq.s32.totalorder %s23, 0
      %p176 = por %p174, %p175
      %s178 = sadd.s32 %s177, 1
      %p181 = scmp.eq.s32.totalorder %s17, 1
      %p182 = scmp.ne.s32.totalorder %s177, %s179
      %p183 = scmp.eq.s32.totalorder %s17, 0
      %p184 = por %p182, %p183
      %p185 = scmp.ne.s32.totalorder %s177, %s179
      %p186 = scmp.eq.s32.totalorder %s22, 1
      %p187 = por %p185, %p186
      %p188 = scmp.ne.s32.totalorder %s179, %s180
      %p189 = scmp.eq.s32.totalorder %s22, 0
      %p190 = por %p188, %p189
      %p191 = scmp.ne.s32.totalorder %s179, %s180
      %p192 = scmp.eq.s32.totalorder %s23, 1
      %p193 = por %p191, %p192
      %p195 = scmp.ne.s32.totalorder %s180, %s194
      %p196 = scmp.eq.s32.totalorder %s23, 0
      %p197 = por %p195, %p196
      %s198 = ssub.s32 %s17, %s24
      %p199 = scmp.eq.s32.totalorder %s198, 0
      %s201 = sadd.s32 %s200, 1
      %s202 = scalar_select %p199, %s200, %s201
      %p205 = pneg %p199
      %p206 = scmp.eq.s32.totalorder %s17, 1
      %p207 = por %p205, %p206
      %p208 = scmp.ne.s32.totalorder %s200, %s203
      %p209 = scmp.eq.s32.totalorder %s17, 0
      %p210 = por %p208, %p209
      %p211 = scmp.ne.s32.totalorder %s200, %s203
      %p212 = scmp.eq.s32.totalorder %s22, 1
      %p213 = por %p211, %p212
      %p214 = scmp.ne.s32.totalorder %s203, %s204
      %p215 = scmp.eq.s32.totalorder %s22, 0
      %p216 = por %p214, %p215
      %p217 = scmp.ne.s32.totalorder %s203, %s204
      %p218 = scmp.eq.s32.totalorder %s23, 1
      %p219 = por %p217, %p218
      %p221 = scmp.ne.s32.totalorder %s204, %s220
      %p222 = scmp.eq.s32.totalorder %s23, 0
      %p223 = por %p221, %p222
      %p224 = scmp.le.s32.totalorder 1, %s17
      %p225 = scmp.lt.s32.totalorder %s17, 3
      %p226 = pnand %p224, %p225
      %p227 = pneg %p226
      // Predicated region
      $region9: #{resnet_model_forward.1} parent=5 // pred_check
        _
      $region10: #{resnet_model_forward.1} parent=5 // pred_check_branch
        %229 = sbr.rel (%p226) target = $region12
      $region11: #{resnet_model_forward.1} parent=5 // pred_region
        %s230 = ssub.s32 %s17, 1
        // Predicated region
        $region13: #{resnet_model_forward.1} parent=11 // pred_check
          %p231 = pneg %p64
        $region14: #{resnet_model_forward.1} parent=11 // pred_check_branch
          %233 = sbr.rel (%p231) target = $region16
        $region15: #{resnet_model_forward.1} parent=11 // pred_region
          _
        $region16: #{resnet_model_forward.1} parent=11 // pred_fallthru
          _
        // Predicated region
        $region17: #{resnet_model_forward.1} parent=11 // pred_check
          %p234 = pneg %p85
        $region18: #{resnet_model_forward.1} parent=11 // pred_check_branch
          %236 = sbr.rel (%p234) target = $region20
        $region19: #{resnet_model_forward.1} parent=11 // pred_region
          _
        $region20: #{resnet_model_forward.1} parent=11 // pred_fallthru
          _
        // Predicated region
        $region21: #{resnet_model_forward.1} parent=11 // pred_check
          %p237 = pneg %p106
        $region22: #{resnet_model_forward.1} parent=11 // pred_check_branch
          %239 = sbr.rel (%p237) target = $region24
        $region23: #{resnet_model_forward.1} parent=11 // pred_region
          _
        $region24: #{resnet_model_forward.1} parent=11 // pred_fallthru
          _
        // Predicated region
        $region25: #{resnet_model_forward.1} parent=11 // pred_check
          %p240 = pneg %p127
        $region26: #{resnet_model_forward.1} parent=11 // pred_check_branch
          %242 = sbr.rel (%p240) target = $region28
        $region27: #{resnet_model_forward.1} parent=11 // pred_region
          _
        $region28: #{resnet_model_forward.1} parent=11 // pred_fallthru
          _
        // Predicated region
        $region29: #{resnet_model_forward.1} parent=11 // pred_check
          %p243 = pneg %p148
        $region30: #{resnet_model_forward.1} parent=11 // pred_check_branch
          %245 = sbr.rel (%p243) target = $region32
        $region31: #{resnet_model_forward.1} parent=11 // pred_region
          _
        $region32: #{resnet_model_forward.1} parent=11 // pred_fallthru
          _
        // Predicated region
        $region33: #{resnet_model_forward.1} parent=11 // pred_check
          %p246 = pneg %p169
        $region34: #{resnet_model_forward.1} parent=11 // pred_check_branch
          %248 = sbr.rel (%p246) target = $region36
        $region35: #{resnet_model_forward.1} parent=11 // pred_region
          _
        $region36: #{resnet_model_forward.1} parent=11 // pred_fallthru
          _
        // Predicated region
        $region37: #{resnet_model_forward.1} parent=11 // pred_check
          %p249 = pneg %p190
        $region38: #{resnet_model_forward.1} parent=11 // pred_check_branch
          %251 = sbr.rel (%p249) target = $region40
        $region39: #{resnet_model_forward.1} parent=11 // pred_region
          _
        $region40: #{resnet_model_forward.1} parent=11 // pred_fallthru
          _
      $region12: #{resnet_model_forward.1} parent=5 // pred_fallthru
        _
      %p252 = scmp.lt.s32.totalorder %s17, 2
      // Predicated region
      $region41: #{resnet_model_forward.1} parent=5 // pred_check
        %p253 = pneg %p252
      $region42: #{resnet_model_forward.1} parent=5 // pred_check_branch
        %255 = sbr.rel (%p253) target = $region44
      $region43: #{resnet_model_forward.1} parent=5 // pred_region
        // Predicated region
        $region45: #{resnet_model_forward.1} parent=43 // pred_check
          %p256 = pneg %p37
        $region46: #{resnet_model_forward.1} parent=43 // pred_check_branch
          %258 = sbr.rel (%p256) target = $region48
        $region47: #{resnet_model_forward.1} parent=43 // pred_region
          %p259 = scmp.lt.s32.totalorder %s17, 1
          %s260 = scalar_select %p259, %s17, 1
          %s261 = smul.addr %s260, 45
          %s262 = smul.addr %s261, 4
          %s263 = scalar_lea.vmem %s0, %s262
        $region48: #{resnet_model_forward.1} parent=43 // pred_fallthru
          _
      $region44: #{resnet_model_forward.1} parent=5 // pred_fallthru
        _
      %p264 = scmp.le.s32.totalorder 1, %s17
      %p265 = scmp.lt.s32.totalorder %s17, 3
      %p266 = pnand %p264, %p265
      %p267 = pneg %p266
      // Predicated region
      $region49: #{resnet_model_forward.1} parent=5 // pred_check
        _
      $region50: #{resnet_model_forward.1} parent=5 // pred_check_branch
        %269 = sbr.rel (%p266) target = $region52
      $region51: #{resnet_model_forward.1} parent=5 // pred_region
        %s270 = ssub.s32 %s17, 1
        %p271 = scmp.lt.s32.totalorder %s22, 1
        %s272 = scalar_select %p271, %s22, 1
        %s273 = smul.addr %s272, 45
        %s274 = smul.addr %s273, 4
        %s275 = scalar_lea.vmem %s0, %s274
        %p276 = pneg %p43
        %p277 = pneg %p40
        %p278 = pneg %p64
        %p279 = pneg %p61
        %p280 = pneg %p85
        %p281 = pneg %p82
        %p282 = pneg %p106
        %p283 = pneg %p103
        %p284 = pneg %p127
        %p285 = pneg %p124
        %p286 = pneg %p148
        %p287 = pneg %p145
        %p288 = pneg %p169
        %p289 = pneg %p166
        %p290 = pneg %p190
        %p291 = pneg %p187
        %p292 = pneg %p216
        %p293 = pneg %p213
        %s294 = sand.u32 %s203, 1
        %s295 = scalar_lea.sflag [#allocation6], %s294
        %s296 = sand.u32 %s203, 1
        %s297 = scalar_lea.vmem [#allocation5], %s296
        %p298 = scmp.lt.s32.totalorder %s22, 1
        %s299 = scalar_select %p298, %s22, 1
        %s300 = smul.addr %s299, 45
        %s301 = smul.addr %s300, 4
        %s302 = scalar_lea.vmem %s0, %s301
        %v304 = vld [vmem:[%s7] sm:$0xff]
        %v305 = vld [vmem:[%s7 + $0x8] sm:$0xff]
        %v306 = vld [vmem:[%s7 + $0x10] sm:$0xff]
        %v307 = vld [vmem:[%s7 + $0x18] sm:$0xff]
        %v308 = vld [vmem:[%s7 + $0x20] sm:$0xff]
        %v309 = vld [vmem:[%s7 + $0x28] sm:$0xff]
        %v310 = vld [vmem:[%s7 + $0x30] sm:$0xff]
        %v311 = vld [vmem:[%s7 + $0x38] sm:$0xff]
        %v312 = vld [vmem:[%s7 + $0x40] sm:$0xff]
        %v313 = vld [vmem:[%s7 + $0x48] sm:$0xff]
        %v314 = vld [vmem:[%s7 + $0x50] sm:$0xff]
        %v315 = vld [vmem:[%s7 + $0x58] sm:$0xff]
        %v316 = vld [vmem:[%s7 + $0x60] sm:$0xff]
        %v317 = vld [vmem:[%s7 + $0x68] sm:$0xff]
        %v318 = vld [vmem:[%s7 + $0x70] sm:$0xff]
        %v319 = vld [vmem:[%s7 + $0x78] sm:$0xff]
        %v320 = vld [vmem:[%s7 + $0x80] sm:$0xff]
        %v321 = vld [vmem:[%s7 + $0x88] sm:$0xff]
        %v322 = vld [vmem:[%s7 + $0x90] sm:$0xff]
        %v323 = vld [vmem:[%s7 + $0x98] sm:$0xff]
        %v324 = vld [vmem:[%s7 + $0xa0] sm:$0xff]
        %v325 = vld [vmem:[%s7 + $0xa8] sm:$0xff]
        %v326 = vld [vmem:[%s7 + $0xb0] sm:$0xff]
        %v327 = vld [vmem:[%s7 + $0xb8] sm:$0xff]
        %v328 = vld [vmem:[%s7 + $0xc0] sm:$0xff]
        %v329 = vld [vmem:[%s7 + $0xc8] sm:$0xff]
        %v330 = vld [vmem:[%s7 + $0xd0] sm:$0xff]
        %v331 = vld [vmem:[%s7 + $0xd8] sm:$0xff]
        %v332 = vld [vmem:[%s7 + $0xe0] sm:$0xff]
        %v333 = vld [vmem:[%s7 + $0xe8] sm:$0xff]
        %v334 = vld [vmem:[%s7 + $0xf0] sm:$0xff]
        %v335 = vld [vmem:[%s7 + $0xf8] sm:$0xff]
        %v336 = vld [vmem:[%s7 + $0x100] sm:$0xff]
        %v337 = vld [vmem:[%s7 + $0x108] sm:$0xff]
        %v338 = vld [vmem:[%s7 + $0x110] sm:$0xff]
        %v339 = vld [vmem:[%s7 + $0x118] sm:$0xff]
        %v340 = vld [vmem:[%s7 + $0x120] sm:$0xff]
        %v341 = vld [vmem:[%s7 + $0x128] sm:$0xff]
        %v342 = vld [vmem:[%s302] sm:$0xf]
        %v343 = vld [vmem:[%s302 + $0x4] sm:$0xf]
        %v344 = vld [vmem:[%s302 + $0x8] sm:$0xf]
        %v345 = vld [vmem:[%s302 + $0xc] sm:$0xf]
        %v346 = vld [vmem:[%s302 + $0x10] sm:$0xf]
        %v347 = vld [vmem:[%s302 + $0x14] sm:$0xf]
        %v348 = vld [vmem:[%s302 + $0x18] sm:$0xf]
        %v349 = vld [vmem:[%s302 + $0x1c] sm:$0xf]
        %v350 = vld [vmem:[%s302 + $0x20] sm:$0xf]
        %v351 = vld [vmem:[%s302 + $0x24] sm:$0xf]
        %v352 = vld [vmem:[%s302 + $0x28] sm:$0xf]
        %v353 = vld [vmem:[%s302 + $0x2c] sm:$0xf]
        %v354 = vld [vmem:[%s302 + $0x30] sm:$0xf]
        %v355 = vld [vmem:[%s302 + $0x34] sm:$0xf]
        %v356 = vld [vmem:[%s302 + $0x38] sm:$0xf]
        %v357 = vld [vmem:[%s302 + $0x3c] sm:$0xf]
        %v358 = vld [vmem:[%s302 + $0x40] sm:$0xf]
        %v359 = vld [vmem:[%s302 + $0x44] sm:$0xf]
        %v360 = vld [vmem:[%s302 + $0x48] sm:$0xf]
        %v361 = vld [vmem:[%s302 + $0x4c] sm:$0xf]
        %v362 = vld [vmem:[%s302 + $0x50] sm:$0xf]
        %v363 = vld [vmem:[%s302 + $0x54] sm:$0xf]
        %v364 = vld [vmem:[%s302 + $0x58] sm:$0xf]
        %v365 = vld [vmem:[%s302 + $0x5c] sm:$0xf]
        %v366 = vld [vmem:[%s302 + $0x60] sm:$0xf]
        %v367 = vld [vmem:[%s302 + $0x64] sm:$0xf]
        %v368 = vld [vmem:[%s302 + $0x68] sm:$0xf]
        %v369 = vld [vmem:[%s302 + $0x6c] sm:$0xf]
        %v370 = vld [vmem:[%s302 + $0x70] sm:$0xf]
        %v371 = vld [vmem:[%s302 + $0x74] sm:$0xf]
        %v372 = vld [vmem:[%s302 + $0x78] sm:$0xf]
        %v373 = vld [vmem:[%s302 + $0x7c] sm:$0xf]
        %v374 = vld [vmem:[%s302 + $0x80] sm:$0xf]
        %v375 = vld [vmem:[%s302 + $0x84] sm:$0xf]
        %v376 = vld [vmem:[%s302 + $0x88] sm:$0xf]
        %v377 = vld [vmem:[%s302 + $0x8c] sm:$0xf]
        %v378 = vld [vmem:[%s302 + $0x90] sm:$0xf]
        %v379 = vld [vmem:[%s302 + $0x94] sm:$0xf]
        %vm380 = vcmask 257024
        %381 = vst.msk [vmem:[#allocation2] sm:$0xf] %vm380, %v342
        %382 = vst.msk [vmem:[#allocation2 + $0xc] sm:$0xf] %vm380, %v343
        %383 = vst.msk [vmem:[#allocation2 + $0x18] sm:$0xf] %vm380, %v344
        %384 = vst.msk [vmem:[#allocation2 + $0x24] sm:$0xf] %vm380, %v345
        %385 = vst.msk [vmem:[#allocation2 + $0x30] sm:$0xf] %vm380, %v346
        %386 = vst.msk [vmem:[#allocation2 + $0x3c] sm:$0xf] %vm380, %v347
        %387 = vst.msk [vmem:[#allocation2 + $0x48] sm:$0xf] %vm380, %v348
        %388 = vst.msk [vmem:[#allocation2 + $0x54] sm:$0xf] %vm380, %v349
        %389 = vst.msk [vmem:[#allocation2 + $0x60] sm:$0xf] %vm380, %v350
        %390 = vst.msk [vmem:[#allocation2 + $0x6c] sm:$0xf] %vm380, %v351
        %391 = vst.msk [vmem:[#allocation2 + $0x78] sm:$0xf] %vm380, %v352
        %392 = vst.msk [vmem:[#allocation2 + $0x84] sm:$0xf] %vm380, %v353
        %393 = vst.msk [vmem:[#allocation2 + $0x90] sm:$0xf] %vm380, %v354
        %394 = vst.msk [vmem:[#allocation2 + $0x9c] sm:$0xf] %vm380, %v355
        %395 = vst.msk [vmem:[#allocation2 + $0xa8] sm:$0xf] %vm380, %v356
        %396 = vst.msk [vmem:[#allocation2 + $0xb4] sm:$0xf] %vm380, %v357
        %397 = vst.msk [vmem:[#allocation2 + $0xc0] sm:$0xf] %vm380, %v358
        %398 = vst.msk [vmem:[#allocation2 + $0xcc] sm:$0xf] %vm380, %v359
        %399 = vst.msk [vmem:[#allocation2 + $0xd8] sm:$0xf] %vm380, %v360
        %400 = vst.msk [vmem:[#allocation2 + $0xe4] sm:$0xf] %vm380, %v361
        %401 = vst.msk [vmem:[#allocation2 + $0xf0] sm:$0xf] %vm380, %v362
        %402 = vst.msk [vmem:[#allocation2 + $0xfc] sm:$0xf] %vm380, %v363
        %403 = vst.msk [vmem:[#allocation2 + $0x108] sm:$0xf] %vm380, %v364
        %404 = vst.msk [vmem:[#allocation2 + $0x114] sm:$0xf] %vm380, %v365
        %405 = vst.msk [vmem:[#allocation2 + $0x120] sm:$0xf] %vm380, %v366
        %406 = vst.msk [vmem:[#allocation2 + $0x12c] sm:$0xf] %vm380, %v367
        %407 = vst.msk [vmem:[#allocation2 + $0x138] sm:$0xf] %vm380, %v368
        %408 = vst.msk [vmem:[#allocation2 + $0x144] sm:$0xf] %vm380, %v369
        %409 = vst.msk [vmem:[#allocation2 + $0x150] sm:$0xf] %vm380, %v370
        %410 = vst.msk [vmem:[#allocation2 + $0x15c] sm:$0xf] %vm380, %v371
        %411 = vst.msk [vmem:[#allocation2 + $0x168] sm:$0xf] %vm380, %v372
        %412 = vst.msk [vmem:[#allocation2 + $0x174] sm:$0xf] %vm380, %v373
        %413 = vst.msk [vmem:[#allocation2 + $0x180] sm:$0xf] %vm380, %v374
        %414 = vst.msk [vmem:[#allocation2 + $0x18c] sm:$0xf] %vm380, %v375
        %415 = vst.msk [vmem:[#allocation2 + $0x198] sm:$0xf] %vm380, %v376
        %416 = vst.msk [vmem:[#allocation2 + $0x1a4] sm:$0xf] %vm380, %v377
        %417 = vst.msk [vmem:[#allocation2 + $0x1b0] sm:$0xf] %vm380, %v378
        %418 = vst.msk [vmem:[#allocation2 + $0x1bc] sm:$0xf] %vm380, %v379
        %v419 = vld [vmem:[%s302] sm:$0xf]
        %v420 = vld [vmem:[%s302 + $0x4] sm:$0xf]
        %v421 = vld [vmem:[%s302 + $0x8] sm:$0xf]
        %v422 = vld [vmem:[%s302 + $0xc] sm:$0xf]
        %v423 = vld [vmem:[%s302 + $0x10] sm:$0xf]
        %v424 = vld [vmem:[%s302 + $0x14] sm:$0xf]
        %v425 = vld [vmem:[%s302 + $0x18] sm:$0xf]
        %v426 = vld [vmem:[%s302 + $0x1c] sm:$0xf]
        %v427 = vld [vmem:[%s302 + $0x20] sm:$0xf]
        %v428 = vld [vmem:[%s302 + $0x24] sm:$0xf]
        %v429 = vld [vmem:[%s302 + $0x28] sm:$0xf]
        %v430 = vld [vmem:[%s302 + $0x2c] sm:$0xf]
        %v431 = vld [vmem:[%s302 + $0x30] sm:$0xf]
        %v432 = vld [vmem:[%s302 + $0x34] sm:$0xf]
        %v433 = vld [vmem:[%s302 + $0x38] sm:$0xf]
        %v434 = vld [vmem:[%s302 + $0x3c] sm:$0xf]
        %v435 = vld [vmem:[%s302 + $0x40] sm:$0xf]
        %v436 = vld [vmem:[%s302 + $0x44] sm:$0xf]
        %v437 = vld [vmem:[%s302 + $0x48] sm:$0xf]
        %v438 = vld [vmem:[%s302 + $0x4c] sm:$0xf]
        %v439 = vld [vmem:[%s302 + $0x50] sm:$0xf]
        %v440 = vld [vmem:[%s302 + $0x54] sm:$0xf]
        %v441 = vld [vmem:[%s302 + $0x58] sm:$0xf]
        %v442 = vld [vmem:[%s302 + $0x5c] sm:$0xf]
        %v443 = vld [vmem:[%s302 + $0x60] sm:$0xf]
        %v444 = vld [vmem:[%s302 + $0x64] sm:$0xf]
        %v445 = vld [vmem:[%s302 + $0x68] sm:$0xf]
        %v446 = vld [vmem:[%s302 + $0x6c] sm:$0xf]
        %v447 = vld [vmem:[%s302 + $0x70] sm:$0xf]
        %v448 = vld [vmem:[%s302 + $0x74] sm:$0xf]
        %v449 = vld [vmem:[%s302 + $0x78] sm:$0xf]
        %v450 = vld [vmem:[%s302 + $0x7c] sm:$0xf]
        %v451 = vld [vmem:[%s302 + $0x80] sm:$0xf]
        %v452 = vld [vmem:[%s302 + $0x84] sm:$0xf]
        %v453 = vld [vmem:[%s302 + $0x88] sm:$0xf]
        %v454 = vld [vmem:[%s302 + $0x8c] sm:$0xf]
        %v455 = vld [vmem:[%s302 + $0x90] sm:$0xf]
        %v456 = vld [vmem:[%s302 + $0x94] sm:$0xf]
        %v457 = vld [vmem:[%s302 + $0x98] sm:$0x1]
        %vm458 = vsmask.f32 3328
        %vm459 = vsmask.f32 7440
        %vm460 = vmor %vm458, %vm459
        %v462 = vshrl.u32 %v419, 16
        %v464 = vrot.slane %v462, 4
        %v465 = vshll.u32 %v419, 16
        %v467 = vrot.slane %v465, 5
        %v468 = vor.u32 %v464, %v467
        %v469 = vrot.slane %v468, 4
        %v471 = vshll.u32 %v420, 16
        %v473 = vrot.slane %v471, 5
        %v474 = vsel %vm460, %v469, %v473
        %v475 = vshrl.u32 %v420, 16
        %v477 = vrot.slane %v475, 4
        %v478 = vor.u32 %v477, %v473
        %v479 = vrot.slane %v478, 4
        %v481 = vshll.u32 %v421, 16
        %v483 = vrot.slane %v481, 5
        %v484 = vsel %vm460, %v479, %v483
        %v485 = vshrl.u32 %v421, 16
        %v487 = vrot.slane %v485, 4
        %v488 = vor.u32 %v487, %v483
        %v489 = vrot.slane %v488, 4
        %v491 = vshll.u32 %v422, 16
        %v493 = vrot.slane %v491, 5
        %v494 = vsel %vm460, %v489, %v493
        %v495 = vshrl.u32 %v422, 16
        %v497 = vrot.slane %v495, 4
        %v498 = vor.u32 %v497, %v493
        %v499 = vrot.slane %v498, 4
        %v501 = vshll.u32 %v423, 16
        %v503 = vrot.slane %v501, 5
        %v504 = vsel %vm460, %v499, %v503
        %v505 = vshrl.u32 %v423, 16
        %v507 = vrot.slane %v505, 4
        %v508 = vor.u32 %v507, %v503
        %v509 = vrot.slane %v508, 4
        %v511 = vshll.u32 %v424, 16
        %v513 = vrot.slane %v511, 5
        %v514 = vsel %vm460, %v509, %v513
        %v515 = vshrl.u32 %v424, 16
        %v517 = vrot.slane %v515, 4
        %v518 = vor.u32 %v517, %v513
        %v519 = vrot.slane %v518, 4
        %v521 = vshll.u32 %v425, 16
        %v523 = vrot.slane %v521, 5
        %v524 = vsel %vm460, %v519, %v523
        %v525 = vshrl.u32 %v425, 16
        %v527 = vrot.slane %v525, 4
        %v528 = vor.u32 %v527, %v523
        %v529 = vrot.slane %v528, 4
        %v531 = vshll.u32 %v426, 16
        %v533 = vrot.slane %v531, 5
        %v534 = vsel %vm460, %v529, %v533
        %v535 = vshrl.u32 %v426, 16
        %v537 = vrot.slane %v535, 4
        %v538 = vor.u32 %v537, %v533
        %v539 = vrot.slane %v538, 4
        %v541 = vshll.u32 %v427, 16
        %v543 = vrot.slane %v541, 5
        %v544 = vsel %vm460, %v539, %v543
        %v545 = vshrl.u32 %v427, 16
        %v547 = vrot.slane %v545, 4
        %v548 = vor.u32 %v547, %v543
        %v549 = vrot.slane %v548, 4
        %v551 = vshll.u32 %v428, 16
        %v553 = vrot.slane %v551, 5
        %v554 = vsel %vm460, %v549, %v553
        %v555 = vshrl.u32 %v428, 16
        %v557 = vrot.slane %v555, 4
        %v558 = vor.u32 %v557, %v553
        %v559 = vrot.slane %v558, 4
        %v561 = vshll.u32 %v429, 16
        %v563 = vrot.slane %v561, 5
        %v564 = vsel %vm460, %v559, %v563
        %v565 = vshrl.u32 %v429, 16
        %v567 = vrot.slane %v565, 4
        %v568 = vor.u32 %v567, %v563
        %v569 = vrot.slane %v568, 4
        %v571 = vshll.u32 %v430, 16
        %v573 = vrot.slane %v571, 5
        %v574 = vsel %vm460, %v569, %v573
        %v575 = vshrl.u32 %v430, 16
        %v577 = vrot.slane %v575, 4
        %v578 = vor.u32 %v577, %v573
        %v579 = vrot.slane %v578, 4
        %v581 = vshll.u32 %v431, 16
        %v583 = vrot.slane %v581, 5
        %v584 = vsel %vm460, %v579, %v583
        %v585 = vshrl.u32 %v431, 16
        %v587 = vrot.slane %v585, 4
        %v588 = vor.u32 %v587, %v583
        %v589 = vrot.slane %v588, 4
        %v591 = vshll.u32 %v432, 16
        %v593 = vrot.slane %v591, 5
        %v594 = vsel %vm460, %v589, %v593
        %v595 = vshrl.u32 %v432, 16
        %v597 = vrot.slane %v595, 4
        %v598 = vor.u32 %v597, %v593
        %v599 = vrot.slane %v598, 4
        %v601 = vshll.u32 %v433, 16
        %v603 = vrot.slane %v601, 5
        %v604 = vsel %vm460, %v599, %v603
        %v605 = vshrl.u32 %v433, 16
        %v607 = vrot.slane %v605, 4
        %v608 = vor.u32 %v607, %v603
        %v609 = vrot.slane %v608, 4
        %v611 = vshll.u32 %v434, 16
        %v613 = vrot.slane %v611, 5
        %v614 = vsel %vm460, %v609, %v613
        %v615 = vshrl.u32 %v434, 16
        %v617 = vrot.slane %v615, 4
        %v618 = vor.u32 %v617, %v613
        %v619 = vrot.slane %v618, 4
        %v621 = vshll.u32 %v435, 16
        %v623 = vrot.slane %v621, 5
        %v624 = vsel %vm460, %v619, %v623
        %v625 = vshrl.u32 %v435, 16
        %v627 = vrot.slane %v625, 4
        %v628 = vor.u32 %v627, %v623
        %v629 = vrot.slane %v628, 4
        %v631 = vshll.u32 %v436, 16
        %v633 = vrot.slane %v631, 5
        %v634 = vsel %vm460, %v629, %v633
        %v635 = vshrl.u32 %v436, 16
        %v637 = vrot.slane %v635, 4
        %v638 = vor.u32 %v637, %v633
        %v639 = vrot.slane %v638, 4
        %v641 = vshll.u32 %v437, 16
        %v643 = vrot.slane %v641, 5
        %v644 = vsel %vm460, %v639, %v643
        %v645 = vshrl.u32 %v437, 16
        %v647 = vrot.slane %v645, 4
        %v648 = vor.u32 %v647, %v643
        %v649 = vrot.slane %v648, 4
        %v651 = vshll.u32 %v438, 16
        %v653 = vrot.slane %v651, 5
        %v654 = vsel %vm460, %v649, %v653
        %v655 = vshrl.u32 %v438, 16
        %v657 = vrot.slane %v655, 4
        %v658 = vor.u32 %v657, %v653
        %v659 = vrot.slane %v658, 4
        %v661 = vshll.u32 %v439, 16
        %v663 = vrot.slane %v661, 5
        %v664 = vsel %vm460, %v659, %v663
        %v665 = vshrl.u32 %v439, 16
        %v667 = vrot.slane %v665, 4
        %v668 = vor.u32 %v667, %v663
        %v669 = vrot.slane %v668, 4
        %v671 = vshll.u32 %v440, 16
        %v673 = vrot.slane %v671, 5
        %v674 = vsel %vm460, %v669, %v673
        %v675 = vshrl.u32 %v440, 16
        %v677 = vrot.slane %v675, 4
        %v678 = vor.u32 %v677, %v673
        %v679 = vrot.slane %v678, 4
        %v681 = vshll.u32 %v441, 16
        %v683 = vrot.slane %v681, 5
        %v684 = vsel %vm460, %v679, %v683
        %v685 = vshrl.u32 %v441, 16
        %v687 = vrot.slane %v685, 4
        %v688 = vor.u32 %v687, %v683
        %v689 = vrot.slane %v688, 4
        %v691 = vshll.u32 %v442, 16
        %v693 = vrot.slane %v691, 5
        %v694 = vsel %vm460, %v689, %v693
        %v695 = vshrl.u32 %v442, 16
        %v697 = vrot.slane %v695, 4
        %v698 = vor.u32 %v697, %v693
        %v699 = vrot.slane %v698, 4
        %v701 = vshll.u32 %v443, 16
        %v703 = vrot.slane %v701, 5
        %v704 = vsel %vm460, %v699, %v703
        %v705 = vshrl.u32 %v443, 16
        %v707 = vrot.slane %v705, 4
        %v708 = vor.u32 %v707, %v703
        %v709 = vrot.slane %v708, 4
        %v711 = vshll.u32 %v444, 16
        %v713 = vrot.slane %v711, 5
        %v714 = vsel %vm460, %v709, %v713
        %v715 = vshrl.u32 %v444, 16
        %v717 = vrot.slane %v715, 4
        %v718 = vor.u32 %v717, %v713
        %v719 = vrot.slane %v718, 4
        %v721 = vshll.u32 %v445, 16
        %v723 = vrot.slane %v721, 5
        %v724 = vsel %vm460, %v719, %v723
        %v725 = vshrl.u32 %v445, 16
        %v727 = vrot.slane %v725, 4
        %v728 = vor.u32 %v727, %v723
        %v729 = vrot.slane %v728, 4
        %v731 = vshll.u32 %v446, 16
        %v733 = vrot.slane %v731, 5
        %v734 = vsel %vm460, %v729, %v733
        %v735 = vshrl.u32 %v446, 16
        %v737 = vrot.slane %v735, 4
        %v738 = vor.u32 %v737, %v733
        %v739 = vrot.slane %v738, 4
        %v741 = vshll.u32 %v447, 16
        %v743 = vrot.slane %v741, 5
        %v744 = vsel %vm460, %v739, %v743
        %v745 = vshrl.u32 %v447, 16
        %v747 = vrot.slane %v745, 4
        %v748 = vor.u32 %v747, %v743
        %v749 = vrot.slane %v748, 4
        %v751 = vshll.u32 %v448, 16
        %v753 = vrot.slane %v751, 5
        %v754 = vsel %vm460, %v749, %v753
        %v755 = vshrl.u32 %v448, 16
        %v757 = vrot.slane %v755, 4
        %v758 = vor.u32 %v757, %v753
        %v759 = vrot.slane %v758, 4
        %v761 = vshll.u32 %v449, 16
        %v763 = vrot.slane %v761, 5
        %v764 = vsel %vm460, %v759, %v763
        %v765 = vshrl.u32 %v449, 16
        %v767 = vrot.slane %v765, 4
        %v768 = vor.u32 %v767, %v763
        %v769 = vrot.slane %v768, 4
        %v771 = vshll.u32 %v450, 16
        %v773 = vrot.slane %v771, 5
        %v774 = vsel %vm460, %v769, %v773
        %v775 = vshrl.u32 %v450, 16
        %v777 = vrot.slane %v775, 4
        %v778 = vor.u32 %v777, %v773
        %v779 = vrot.slane %v778, 4
        %v781 = vshll.u32 %v451, 16
        %v783 = vrot.slane %v781, 5
        %v784 = vsel %vm460, %v779, %v783
        %v785 = vshrl.u32 %v451, 16
        %v787 = vrot.slane %v785, 4
        %v788 = vor.u32 %v787, %v783
        %v789 = vrot.slane %v788, 4
        %v791 = vshll.u32 %v452, 16
        %v793 = vrot.slane %v791, 5
        %v794 = vsel %vm460, %v789, %v793
        %v795 = vshrl.u32 %v452, 16
        %v797 = vrot.slane %v795, 4
        %v798 = vor.u32 %v797, %v793
        %v799 = vrot.slane %v798, 4
        %v801 = vshll.u32 %v453, 16
        %v803 = vrot.slane %v801, 5
        %v804 = vsel %vm460, %v799, %v803
        %v805 = vshrl.u32 %v453, 16
        %v807 = vrot.slane %v805, 4
        %v808 = vor.u32 %v807, %v803
        %v809 = vrot.slane %v808, 4
        %v811 = vshll.u32 %v454, 16
        %v813 = vrot.slane %v811, 5
        %v814 = vsel %vm460, %v809, %v813
        %v815 = vshrl.u32 %v454, 16
        %v817 = vrot.slane %v815, 4
        %v818 = vor.u32 %v817, %v813
        %v819 = vrot.slane %v818, 4
        %v821 = vshll.u32 %v455, 16
        %v823 = vrot.slane %v821, 5
        %v824 = vsel %vm460, %v819, %v823
        %v825 = vshrl.u32 %v455, 16
        %v827 = vrot.slane %v825, 4
        %v828 = vor.u32 %v827, %v823
        %v829 = vrot.slane %v828, 4
        %v831 = vshll.u32 %v456, 16
        %v833 = vrot.slane %v831, 5
        %v834 = vsel %vm460, %v829, %v833
        %v835 = vshrl.u32 %v456, 16
        %v837 = vrot.slane %v835, 4
        %v838 = vor.u32 %v837, %v833
        %v839 = vrot.slane %v838, 4
        %v841 = vshll.u32 %v457, 16
        %v843 = vrot.slane %v841, 5
        %v844 = vsel %vm460, %v839, %v843
        %845 = vrot.lane.b32.xlu0 %v474, 32
        %v846 = vpop.permute.xlu0 %845
        %847 = vrot.lane.b32.xlu0 %v484, 32
        %v848 = vpop.permute.xlu0 %847
        %849 = vrot.lane.b32.xlu0 %v494, 32
        %v850 = vpop.permute.xlu0 %849
        %851 = vrot.lane.b32.xlu0 %v504, 32
        %v852 = vpop.permute.xlu0 %851
        %853 = vrot.lane.b32.xlu0 %v514, 32
        %v854 = vpop.permute.xlu0 %853
        %855 = vrot.lane.b32.xlu0 %v524, 32
        %v856 = vpop.permute.xlu0 %855
        %857 = vrot.lane.b32.xlu0 %v534, 32
        %v858 = vpop.permute.xlu0 %857
        %859 = vrot.lane.b32.xlu0 %v544, 32
        %v860 = vpop.permute.xlu0 %859
        %861 = vrot.lane.b32.xlu0 %v554, 32
        %v862 = vpop.permute.xlu0 %861
        %863 = vrot.lane.b32.xlu0 %v564, 32
        %v864 = vpop.permute.xlu0 %863
        %865 = vrot.lane.b32.xlu0 %v574, 32
        %v866 = vpop.permute.xlu0 %865
        %867 = vrot.lane.b32.xlu0 %v584, 32
        %v868 = vpop.permute.xlu0 %867
        %869 = vrot.lane.b32.xlu0 %v594, 32
        %v870 = vpop.permute.xlu0 %869
        %871 = vrot.lane.b32.xlu0 %v604, 32
        %v872 = vpop.permute.xlu0 %871
        %873 = vrot.lane.b32.xlu0 %v614, 32
        %v874 = vpop.permute.xlu0 %873
        %875 = vrot.lane.b32.xlu0 %v624, 32
        %v876 = vpop.permute.xlu0 %875
        %877 = vrot.lane.b32.xlu0 %v634, 32
        %v878 = vpop.permute.xlu0 %877
        %879 = vrot.lane.b32.xlu0 %v644, 32
        %v880 = vpop.permute.xlu0 %879
        %881 = vrot.lane.b32.xlu0 %v654, 32
        %v882 = vpop.permute.xlu0 %881
        %883 = vrot.lane.b32.xlu0 %v664, 32
        %v884 = vpop.permute.xlu0 %883
        %885 = vrot.lane.b32.xlu0 %v674, 32
        %v886 = vpop.permute.xlu0 %885
        %887 = vrot.lane.b32.xlu0 %v684, 32
        %v888 = vpop.permute.xlu0 %887
        %889 = vrot.lane.b32.xlu0 %v694, 32
        %v890 = vpop.permute.xlu0 %889
        %891 = vrot.lane.b32.xlu0 %v704, 32
        %v892 = vpop.permute.xlu0 %891
        %893 = vrot.lane.b32.xlu0 %v714, 32
        %v894 = vpop.permute.xlu0 %893
        %895 = vrot.lane.b32.xlu0 %v724, 32
        %v896 = vpop.permute.xlu0 %895
        %897 = vrot.lane.b32.xlu0 %v734, 32
        %v898 = vpop.permute.xlu0 %897
        %899 = vrot.lane.b32.xlu0 %v744, 32
        %v900 = vpop.permute.xlu0 %899
        %901 = vrot.lane.b32.xlu0 %v754, 32
        %v902 = vpop.permute.xlu0 %901
        %903 = vrot.lane.b32.xlu0 %v764, 32
        %v904 = vpop.permute.xlu0 %903
        %905 = vrot.lane.b32.xlu0 %v774, 32
        %v906 = vpop.permute.xlu0 %905
        %907 = vrot.lane.b32.xlu0 %v784, 32
        %v908 = vpop.permute.xlu0 %907
        %909 = vrot.lane.b32.xlu0 %v794, 32
        %v910 = vpop.permute.xlu0 %909
        %911 = vrot.lane.b32.xlu0 %v804, 32
        %v912 = vpop.permute.xlu0 %911
        %913 = vrot.lane.b32.xlu0 %v814, 32
        %v914 = vpop.permute.xlu0 %913
        %915 = vrot.lane.b32.xlu0 %v824, 32
        %v916 = vpop.permute.xlu0 %915
        %917 = vrot.lane.b32.xlu0 %v834, 32
        %v918 = vpop.permute.xlu0 %917
        %919 = vrot.lane.b32.xlu0 %v844, 32
        %v920 = vpop.permute.xlu0 %919
        %vm959 = vcmask 519424
        %960 = vst.msk [vmem:[#allocation2] sm:$0xf] %vm959, %v846
        %961 = vst.msk [vmem:[#allocation2 + $0xc] sm:$0xf] %vm959, %v848
        %962 = vst.msk [vmem:[#allocation2 + $0x18] sm:$0xf] %vm959, %v850
        %963 = vst.msk [vmem:[#allocation2 + $0x24] sm:$0xf] %vm959, %v852
        %964 = vst.msk [vmem:[#allocation2 + $0x30] sm:$0xf] %vm959, %v854
        %965 = vst.msk [vmem:[#allocation2 + $0x3c] sm:$0xf] %vm959, %v856
        %966 = vst.msk [vmem:[#allocation2 + $0x48] sm:$0xf] %vm959, %v858
        %967 = vst.msk [vmem:[#allocation2 + $0x54] sm:$0xf] %vm959, %v860
        %968 = vst.msk [vmem:[#allocation2 + $0x60] sm:$0xf] %vm959, %v862
        %969 = vst.msk [vmem:[#allocation2 + $0x6c] sm:$0xf] %vm959, %v864
        %970 = vst.msk [vmem:[#allocation2 + $0x78] sm:$0xf] %vm959, %v866
        %971 = vst.msk [vmem:[#allocation2 + $0x84] sm:$0xf] %vm959, %v868
        %972 = vst.msk [vmem:[#allocation2 + $0x90] sm:$0xf] %vm959, %v870
        %973 = vst.msk [vmem:[#allocation2 + $0x9c] sm:$0xf] %vm959, %v872
        %974 = vst.msk [vmem:[#allocation2 + $0xa8] sm:$0xf] %vm959, %v874
        %975 = vst.msk [vmem:[#allocation2 + $0xb4] sm:$0xf] %vm959, %v876
        %976 = vst.msk [vmem:[#allocation2 + $0xc0] sm:$0xf] %vm959, %v878
        %977 = vst.msk [vmem:[#allocation2 + $0xcc] sm:$0xf] %vm959, %v880
        %978 = vst.msk [vmem:[#allocation2 + $0xd8] sm:$0xf] %vm959, %v882
        %979 = vst.msk [vmem:[#allocation2 + $0xe4] sm:$0xf] %vm959, %v884
        %980 = vst.msk [vmem:[#allocation2 + $0xf0] sm:$0xf] %vm959, %v886
        %981 = vst.msk [vmem:[#allocation2 + $0xfc] sm:$0xf] %vm959, %v888
        %982 = vst.msk [vmem:[#allocation2 + $0x108] sm:$0xf] %vm959, %v890
        %983 = vst.msk [vmem:[#allocation2 + $0x114] sm:$0xf] %vm959, %v892
        %984 = vst.msk [vmem:[#allocation2 + $0x120] sm:$0xf] %vm959, %v894
        %985 = vst.msk [vmem:[#allocation2 + $0x12c] sm:$0xf] %vm959, %v896
        %986 = vst.msk [vmem:[#allocation2 + $0x138] sm:$0xf] %vm959, %v898
        %987 = vst.msk [vmem:[#allocation2 + $0x144] sm:$0xf] %vm959, %v900
        %988 = vst.msk [vmem:[#allocation2 + $0x150] sm:$0xf] %vm959, %v902
        %989 = vst.msk [vmem:[#allocation2 + $0x15c] sm:$0xf] %vm959, %v904
        %990 = vst.msk [vmem:[#allocation2 + $0x168] sm:$0xf] %vm959, %v906
        %991 = vst.msk [vmem:[#allocation2 + $0x174] sm:$0xf] %vm959, %v908
        %992 = vst.msk [vmem:[#allocation2 + $0x180] sm:$0xf] %vm959, %v910
        %993 = vst.msk [vmem:[#allocation2 + $0x18c] sm:$0xf] %vm959, %v912
        %994 = vst.msk [vmem:[#allocation2 + $0x198] sm:$0xf] %vm959, %v914
        %995 = vst.msk [vmem:[#allocation2 + $0x1a4] sm:$0xf] %vm959, %v916
        %996 = vst.msk [vmem:[#allocation2 + $0x1b0] sm:$0xf] %vm959, %v918
        %997 = vst.msk [vmem:[#allocation2 + $0x1bc] sm:$0xf] %vm959, %v920
        %v998 = vld [vmem:[%s302] sm:$0xe]
        %v999 = vld [vmem:[%s302 + $0x4] sm:$0xf]
        %v1000 = vld [vmem:[%s302 + $0x8] sm:$0xf]
        %v1001 = vld [vmem:[%s302 + $0xc] sm:$0xf]
        %v1002 = vld [vmem:[%s302 + $0x10] sm:$0xf]
        %v1003 = vld [vmem:[%s302 + $0x14] sm:$0xf]
        %v1004 = vld [vmem:[%s302 + $0x18] sm:$0xf]
        %v1005 = vld [vmem:[%s302 + $0x1c] sm:$0xf]
        %v1006 = vld [vmem:[%s302 + $0x20] sm:$0xf]
        %v1007 = vld [vmem:[%s302 + $0x24] sm:$0xf]
        %v1008 = vld [vmem:[%s302 + $0x28] sm:$0xf]
        %v1009 = vld [vmem:[%s302 + $0x2c] sm:$0xf]
        %v1010 = vld [vmem:[%s302 + $0x30] sm:$0xf]
        %v1011 = vld [vmem:[%s302 + $0x34] sm:$0xf]
        %v1012 = vld [vmem:[%s302 + $0x38] sm:$0xf]
        %v1013 = vld [vmem:[%s302 + $0x3c] sm:$0xf]
        %v1014 = vld [vmem:[%s302 + $0x40] sm:$0xf]
        %v1015 = vld [vmem:[%s302 + $0x44] sm:$0xf]
        %v1016 = vld [vmem:[%s302 + $0x48] sm:$0xf]
        %v1017 = vld [vmem:[%s302 + $0x4c] sm:$0xf]
        %v1018 = vld [vmem:[%s302 + $0x50] sm:$0xf]
        %v1019 = vld [vmem:[%s302 + $0x54] sm:$0xf]
        %v1020 = vld [vmem:[%s302 + $0x58] sm:$0xf]
        %v1021 = vld [vmem:[%s302 + $0x5c] sm:$0xf]
        %v1022 = vld [vmem:[%s302 + $0x60] sm:$0xf]
        %v1023 = vld [vmem:[%s302 + $0x64] sm:$0xf]
        %v1024 = vld [vmem:[%s302 + $0x68] sm:$0xf]
        %v1025 = vld [vmem:[%s302 + $0x6c] sm:$0xf]
        %v1026 = vld [vmem:[%s302 + $0x70] sm:$0xf]
        %v1027 = vld [vmem:[%s302 + $0x74] sm:$0xf]
        %v1028 = vld [vmem:[%s302 + $0x78] sm:$0xf]
        %v1029 = vld [vmem:[%s302 + $0x7c] sm:$0xf]
        %v1030 = vld [vmem:[%s302 + $0x80] sm:$0xf]
        %v1031 = vld [vmem:[%s302 + $0x84] sm:$0xf]
        %v1032 = vld [vmem:[%s302 + $0x88] sm:$0xf]
        %v1033 = vld [vmem:[%s302 + $0x8c] sm:$0xf]
        %v1034 = vld [vmem:[%s302 + $0x90] sm:$0xf]
        %v1035 = vld [vmem:[%s302 + $0x94] sm:$0xf]
        %v1036 = vld [vmem:[%s302 + $0x98] sm:$0x1]
        %vm1076 = vcmask 1042432
        %vm1077 = vcmask 1046532
        %vm1078 = vmor %vm1076, %vm1077
        %v1079 = vrot.slane %v998, 5
        %v1080 = vrot.slane %v1079, 4
        %v1081 = vrot.slane %v999, 5
        %v1082 = vsel %vm1078, %v1080, %v1081
        %v1083 = vrot.slane %v1081, 4
        %v1084 = vrot.slane %v1000, 5
        %v1085 = vsel %vm1078, %v1083, %v1084
        %v1086 = vrot.slane %v1084, 4
        %v1087 = vrot.slane %v1001, 5
        %v1088 = vsel %vm1078, %v1086, %v1087
        %v1089 = vrot.slane %v1087, 4
        %v1090 = vrot.slane %v1002, 5
        %v1091 = vsel %vm1078, %v1089, %v1090
        %v1092 = vrot.slane %v1090, 4
        %v1093 = vrot.slane %v1003, 5
        %v1094 = vsel %vm1078, %v1092, %v1093
        %v1095 = vrot.slane %v1093, 4
        %v1096 = vrot.slane %v1004, 5
        %v1097 = vsel %vm1078, %v1095, %v1096
        %v1098 = vrot.slane %v1096, 4
        %v1099 = vrot.slane %v1005, 5
        %v1100 = vsel %vm1078, %v1098, %v1099
        %v1101 = vrot.slane %v1099, 4
        %v1102 = vrot.slane %v1006, 5
        %v1103 = vsel %vm1078, %v1101, %v1102
        %v1104 = vrot.slane %v1102, 4
        %v1105 = vrot.slane %v1007, 5
        %v1106 = vsel %vm1078, %v1104, %v1105
        %v1107 = vrot.slane %v1105, 4
        %v1108 = vrot.slane %v1008, 5
        %v1109 = vsel %vm1078, %v1107, %v1108
        %v1110 = vrot.slane %v1108, 4
        %v1111 = vrot.slane %v1009, 5
        %v1112 = vsel %vm1078, %v1110, %v1111
        %v1113 = vrot.slane %v1111, 4
        %v1114 = vrot.slane %v1010, 5
        %v1115 = vsel %vm1078, %v1113, %v1114
        %v1116 = vrot.slane %v1114, 4
        %v1117 = vrot.slane %v1011, 5
        %v1118 = vsel %vm1078, %v1116, %v1117
        %v1119 = vrot.slane %v1117, 4
        %v1120 = vrot.slane %v1012, 5
        %v1121 = vsel %vm1078, %v1119, %v1120
        %v1122 = vrot.slane %v1120, 4
        %v1123 = vrot.slane %v1013, 5
        %v1124 = vsel %vm1078, %v1122, %v1123
        %v1125 = vrot.slane %v1123, 4
        %v1126 = vrot.slane %v1014, 5
        %v1127 = vsel %vm1078, %v1125, %v1126
        %v1128 = vrot.slane %v1126, 4
        %v1129 = vrot.slane %v1015, 5
        %v1130 = vsel %vm1078, %v1128, %v1129
        %v1131 = vrot.slane %v1129, 4
        %v1132 = vrot.slane %v1016, 5
        %v1133 = vsel %vm1078, %v1131, %v1132
        %v1134 = vrot.slane %v1132, 4
        %v1135 = vrot.slane %v1017, 5
        %v1136 = vsel %vm1078, %v1134, %v1135
        %v1137 = vrot.slane %v1135, 4
        %v1138 = vrot.slane %v1018, 5
        %v1139 = vsel %vm1078, %v1137, %v1138
        %v1140 = vrot.slane %v1138, 4
        %v1141 = vrot.slane %v1019, 5
        %v1142 = vsel %vm1078, %v1140, %v1141
        %v1143 = vrot.slane %v1141, 4
        %v1144 = vrot.slane %v1020, 5
        %v1145 = vsel %vm1078, %v1143, %v1144
        %v1146 = vrot.slane %v1144, 4
        %v1147 = vrot.slane %v1021, 5
        %v1148 = vsel %vm1078, %v1146, %v1147
        %v1149 = vrot.slane %v1147, 4
        %v1150 = vrot.slane %v1022, 5
        %v1151 = vsel %vm1078, %v1149, %v1150
        %v1152 = vrot.slane %v1150, 4
        %v1153 = vrot.slane %v1023, 5
        %v1154 = vsel %vm1078, %v1152, %v1153
        %v1155 = vrot.slane %v1153, 4
        %v1156 = vrot.slane %v1024, 5
        %v1157 = vsel %vm1078, %v1155, %v1156
        %v1158 = vrot.slane %v1156, 4
        %v1159 = vrot.slane %v1025, 5
        %v1160 = vsel %vm1078, %v1158, %v1159
        %v1161 = vrot.slane %v1159, 4
        %v1162 = vrot.slane %v1026, 5
        %v1163 = vsel %vm1078, %v1161, %v1162
        %v1164 = vrot.slane %v1162, 4
        %v1165 = vrot.slane %v1027, 5
        %v1166 = vsel %vm1078, %v1164, %v1165
        %v1167 = vrot.slane %v1165, 4
        %v1168 = vrot.slane %v1028, 5
        %v1169 = vsel %vm1078, %v1167, %v1168
        %v1170 = vrot.slane %v1168, 4
        %v1171 = vrot.slane %v1029, 5
        %v1172 = vsel %vm1078, %v1170, %v1171
        %v1173 = vrot.slane %v1171, 4
        %v1174 = vrot.slane %v1030, 5
        %v1175 = vsel %vm1078, %v1173, %v1174
        %v1176 = vrot.slane %v1174, 4
        %v1177 = vrot.slane %v1031, 5
        %v1178 = vsel %vm1078, %v1176, %v1177
        %v1179 = vrot.slane %v1177, 4
        %v1180 = vrot.slane %v1032, 5
        %v1181 = vsel %vm1078, %v1179, %v1180
        %v1182 = vrot.slane %v1180, 4
        %v1183 = vrot.slane %v1033, 5
        %v1184 = vsel %vm1078, %v1182, %v1183
        %v1185 = vrot.slane %v1183, 4
        %v1186 = vrot.slane %v1034, 5
        %v1187 = vsel %vm1078, %v1185, %v1186
        %v1188 = vrot.slane %v1186, 4
        %v1189 = vrot.slane %v1035, 5
        %v1190 = vsel %vm1078, %v1188, %v1189
        %v1191 = vrot.slane %v1189, 4
        %v1192 = vrot.slane %v1036, 5
        %v1193 = vsel %vm1078, %v1191, %v1192
        %1194 = vrot.lane.b32.xlu0 %v1082, 64
        %v1195 = vpop.permute.xlu0 %1194
        %1196 = vrot.lane.b32.xlu0 %v1085, 64
        %v1197 = vpop.permute.xlu0 %1196
        %1198 = vrot.lane.b32.xlu0 %v1088, 64
        %v1199 = vpop.permute.xlu0 %1198
        %1200 = vrot.lane.b32.xlu0 %v1091, 64
        %v1201 = vpop.permute.xlu0 %1200
        %1202 = vrot.lane.b32.xlu0 %v1094, 64
        %v1203 = vpop.permute.xlu0 %1202
        %1204 = vrot.lane.b32.xlu0 %v1097, 64
        %v1205 = vpop.permute.xlu0 %1204
        %1206 = vrot.lane.b32.xlu0 %v1100, 64
        %v1207 = vpop.permute.xlu0 %1206
        %1208 = vrot.lane.b32.xlu0 %v1103, 64
        %v1209 = vpop.permute.xlu0 %1208
        %1210 = vrot.lane.b32.xlu0 %v1106, 64
        %v1211 = vpop.permute.xlu0 %1210
        %1212 = vrot.lane.b32.xlu0 %v1109, 64
        %v1213 = vpop.permute.xlu0 %1212
        %1214 = vrot.lane.b32.xlu0 %v1112, 64
        %v1215 = vpop.permute.xlu0 %1214
        %1216 = vrot.lane.b32.xlu0 %v1115, 64
        %v1217 = vpop.permute.xlu0 %1216
        %1218 = vrot.lane.b32.xlu0 %v1118, 64
        %v1219 = vpop.permute.xlu0 %1218
        %1220 = vrot.lane.b32.xlu0 %v1121, 64
        %v1221 = vpop.permute.xlu0 %1220
        %1222 = vrot.lane.b32.xlu0 %v1124, 64
        %v1223 = vpop.permute.xlu0 %1222
        %1224 = vrot.lane.b32.xlu0 %v1127, 64
        %v1225 = vpop.permute.xlu0 %1224
        %1226 = vrot.lane.b32.xlu0 %v1130, 64
        %v1227 = vpop.permute.xlu0 %1226
        %1228 = vrot.lane.b32.xlu0 %v1133, 64
        %v1229 = vpop.permute.xlu0 %1228
        %1230 = vrot.lane.b32.xlu0 %v1136, 64
        %v1231 = vpop.permute.xlu0 %1230
        %1232 = vrot.lane.b32.xlu0 %v1139, 64
        %v1233 = vpop.permute.xlu0 %1232
        %1234 = vrot.lane.b32.xlu0 %v1142, 64
        %v1235 = vpop.permute.xlu0 %1234
        %1236 = vrot.lane.b32.xlu0 %v1145, 64
        %v1237 = vpop.permute.xlu0 %1236
        %1238 = vrot.lane.b32.xlu0 %v1148, 64
        %v1239 = vpop.permute.xlu0 %1238
        %1240 = vrot.lane.b32.xlu0 %v1151, 64
        %v1241 = vpop.permute.xlu0 %1240
        %1242 = vrot.lane.b32.xlu0 %v1154, 64
        %v1243 = vpop.permute.xlu0 %1242
        %1244 = vrot.lane.b32.xlu0 %v1157, 64
        %v1245 = vpop.permute.xlu0 %1244
        %1246 = vrot.lane.b32.xlu0 %v1160, 64
        %v1247 = vpop.permute.xlu0 %1246
        %1248 = vrot.lane.b32.xlu0 %v1163, 64
        %v1249 = vpop.permute.xlu0 %1248
        %1250 = vrot.lane.b32.xlu0 %v1166, 64
        %v1251 = vpop.permute.xlu0 %1250
        %1252 = vrot.lane.b32.xlu0 %v1169, 64
        %v1253 = vpop.permute.xlu0 %1252
        %1254 = vrot.lane.b32.xlu0 %v1172, 64
        %v1255 = vpop.permute.xlu0 %1254
        %1256 = vrot.lane.b32.xlu0 %v1175, 64
        %v1257 = vpop.permute.xlu0 %1256
        %1258 = vrot.lane.b32.xlu0 %v1178, 64
        %v1259 = vpop.permute.xlu0 %1258
        %1260 = vrot.lane.b32.xlu0 %v1181, 64
        %v1261 = vpop.permute.xlu0 %1260
        %1262 = vrot.lane.b32.xlu0 %v1184, 64
        %v1263 = vpop.permute.xlu0 %1262
        %1264 = vrot.lane.b32.xlu0 %v1187, 64
        %v1265 = vpop.permute.xlu0 %1264
        %1266 = vrot.lane.b32.xlu0 %v1190, 64
        %v1267 = vpop.permute.xlu0 %1266
        %1268 = vrot.lane.b32.xlu0 %v1193, 64
        %v1269 = vpop.permute.xlu0 %1268
        %vm1308 = vcmask 781824
        %1309 = vst.msk [vmem:[#allocation2] sm:$0xf] %vm1308, %v1195
        %1310 = vst.msk [vmem:[#allocation2 + $0xc] sm:$0xf] %vm1308, %v1197
        %1311 = vst.msk [vmem:[#allocation2 + $0x18] sm:$0xf] %vm1308, %v1199
        %1312 = vst.msk [vmem:[#allocation2 + $0x24] sm:$0xf] %vm1308, %v1201
        %1313 = vst.msk [vmem:[#allocation2 + $0x30] sm:$0xf] %vm1308, %v1203
        %1314 = vst.msk [vmem:[#allocation2 + $0x3c] sm:$0xf] %vm1308, %v1205
        %1315 = vst.msk [vmem:[#allocation2 + $0x48] sm:$0xf] %vm1308, %v1207
        %1316 = vst.msk [vmem:[#allocation2 + $0x54] sm:$0xf] %vm1308, %v1209
        %1317 = vst.msk [vmem:[#allocation2 + $0x60] sm:$0xf] %vm1308, %v1211
        %1318 = vst.msk [vmem:[#allocation2 + $0x6c] sm:$0xf] %vm1308, %v1213
        %1319 = vst.msk [vmem:[#allocation2 + $0x78] sm:$0xf] %vm1308, %v1215
        %1320 = vst.msk [vmem:[#allocation2 + $0x84] sm:$0xf] %vm1308, %v1217
        %1321 = vst.msk [vmem:[#allocation2 + $0x90] sm:$0xf] %vm1308, %v1219
        %1322 = vst.msk [vmem:[#allocation2 + $0x9c] sm:$0xf] %vm1308, %v1221
        %1323 = vst.msk [vmem:[#allocation2 + $0xa8] sm:$0xf] %vm1308, %v1223
        %1324 = vst.msk [vmem:[#allocation2 + $0xb4] sm:$0xf] %vm1308, %v1225
        %1325 = vst.msk [vmem:[#allocation2 + $0xc0] sm:$0xf] %vm1308, %v1227
        %1326 = vst.msk [vmem:[#allocation2 + $0xcc] sm:$0xf] %vm1308, %v1229
        %1327 = vst.msk [vmem:[#allocation2 + $0xd8] sm:$0xf] %vm1308, %v1231
        %1328 = vst.msk [vmem:[#allocation2 + $0xe4] sm:$0xf] %vm1308, %v1233
        %1329 = vst.msk [vmem:[#allocation2 + $0xf0] sm:$0xf] %vm1308, %v1235
        %1330 = vst.msk [vmem:[#allocation2 + $0xfc] sm:$0xf] %vm1308, %v1237
        %1331 = vst.msk [vmem:[#allocation2 + $0x108] sm:$0xf] %vm1308, %v1239
        %1332 = vst.msk [vmem:[#allocation2 + $0x114] sm:$0xf] %vm1308, %v1241
        %1333 = vst.msk [vmem:[#allocation2 + $0x120] sm:$0xf] %vm1308, %v1243
        %1334 = vst.msk [vmem:[#allocation2 + $0x12c] sm:$0xf] %vm1308, %v1245
        %1335 = vst.msk [vmem:[#allocation2 + $0x138] sm:$0xf] %vm1308, %v1247
        %1336 = vst.msk [vmem:[#allocation2 + $0x144] sm:$0xf] %vm1308, %v1249
        %1337 = vst.msk [vmem:[#allocation2 + $0x150] sm:$0xf] %vm1308, %v1251
        %1338 = vst.msk [vmem:[#allocation2 + $0x15c] sm:$0xf] %vm1308, %v1253
        %1339 = vst.msk [vmem:[#allocation2 + $0x168] sm:$0xf] %vm1308, %v1255
        %1340 = vst.msk [vmem:[#allocation2 + $0x174] sm:$0xf] %vm1308, %v1257
        %1341 = vst.msk [vmem:[#allocation2 + $0x180] sm:$0xf] %vm1308, %v1259
        %1342 = vst.msk [vmem:[#allocation2 + $0x18c] sm:$0xf] %vm1308, %v1261
        %1343 = vst.msk [vmem:[#allocation2 + $0x198] sm:$0xf] %vm1308, %v1263
        %1344 = vst.msk [vmem:[#allocation2 + $0x1a4] sm:$0xf] %vm1308, %v1265
        %1345 = vst.msk [vmem:[#allocation2 + $0x1b0] sm:$0xf] %vm1308, %v1267
        %1346 = vst.msk [vmem:[#allocation2 + $0x1bc] sm:$0xf] %vm1308, %v1269
        %v1347 = vld [vmem:[%s302 + $0x8] sm:$0xe]
        %v1348 = vld [vmem:[%s302 + $0xc] sm:$0xf]
        %v1349 = vld [vmem:[%s302 + $0x10] sm:$0xf]
        %v1350 = vld [vmem:[%s302 + $0x14] sm:$0xf]
        %v1351 = vld [vmem:[%s302 + $0x18] sm:$0xf]
        %v1352 = vld [vmem:[%s302 + $0x1c] sm:$0xf]
        %v1353 = vld [vmem:[%s302 + $0x20] sm:$0xf]
        %v1354 = vld [vmem:[%s302 + $0x24] sm:$0xf]
        %v1355 = vld [vmem:[%s302 + $0x28] sm:$0xf]
        %v1356 = vld [vmem:[%s302 + $0x2c] sm:$0xf]
        %v1357 = vld [vmem:[%s302 + $0x30] sm:$0xf]
        %v1358 = vld [vmem:[%s302 + $0x34] sm:$0xf]
        %v1359 = vld [vmem:[%s302 + $0x38] sm:$0xf]
        %v1360 = vld [vmem:[%s302 + $0x3c] sm:$0xf]
        %v1361 = vld [vmem:[%s302 + $0x40] sm:$0xf]
        %v1362 = vld [vmem:[%s302 + $0x44] sm:$0xf]
        %v1363 = vld [vmem:[%s302 + $0x48] sm:$0xf]
        %v1364 = vld [vmem:[%s302 + $0x4c] sm:$0xf]
        %v1365 = vld [vmem:[%s302 + $0x50] sm:$0xf]
        %v1366 = vld [vmem:[%s302 + $0x54] sm:$0xf]
        %v1367 = vld [vmem:[%s302 + $0x58] sm:$0xf]
        %v1368 = vld [vmem:[%s302 + $0x5c] sm:$0xf]
        %v1369 = vld [vmem:[%s302 + $0x60] sm:$0xf]
        %v1370 = vld [vmem:[%s302 + $0x64] sm:$0xf]
        %v1371 = vld [vmem:[%s302 + $0x68] sm:$0xf]
        %v1372 = vld [vmem:[%s302 + $0x6c] sm:$0xf]
        %v1373 = vld [vmem:[%s302 + $0x70] sm:$0xf]
        %v1374 = vld [vmem:[%s302 + $0x74] sm:$0xf]
        %v1375 = vld [vmem:[%s302 + $0x78] sm:$0xf]
        %v1376 = vld [vmem:[%s302 + $0x7c] sm:$0xf]
        %v1377 = vld [vmem:[%s302 + $0x80] sm:$0xf]
        %v1378 = vld [vmem:[%s302 + $0x84] sm:$0xf]
        %v1379 = vld [vmem:[%s302 + $0x88] sm:$0xf]
        %v1380 = vld [vmem:[%s302 + $0x8c] sm:$0xf]
        %v1381 = vld [vmem:[%s302 + $0x90] sm:$0xf]
        %v1382 = vld [vmem:[%s302 + $0x94] sm:$0xf]
        %v1383 = vld [vmem:[%s302 + $0x98] sm:$0xf]
        %v1384 = vld [vmem:[%s302 + $0x9c] sm:$0xf]
        %v1385 = vld [vmem:[%s302 + $0xa0] sm:$0x1]
        %v1425 = vrot.slane %v1347, 5
        %v1426 = vrot.slane %v1425, 4
        %v1427 = vrot.slane %v1348, 5
        %v1428 = vsel %vm1078, %v1426, %v1427
        %v1429 = vrot.slane %v1427, 4
        %v1430 = vrot.slane %v1349, 5
        %v1431 = vsel %vm1078, %v1429, %v1430
        %v1432 = vrot.slane %v1430, 4
        %v1433 = vrot.slane %v1350, 5
        %v1434 = vsel %vm1078, %v1432, %v1433
        %v1435 = vrot.slane %v1433, 4
        %v1436 = vrot.slane %v1351, 5
        %v1437 = vsel %vm1078, %v1435, %v1436
        %v1438 = vrot.slane %v1436, 4
        %v1439 = vrot.slane %v1352, 5
        %v1440 = vsel %vm1078, %v1438, %v1439
        %v1441 = vrot.slane %v1439, 4
        %v1442 = vrot.slane %v1353, 5
        %v1443 = vsel %vm1078, %v1441, %v1442
        %v1444 = vrot.slane %v1442, 4
        %v1445 = vrot.slane %v1354, 5
        %v1446 = vsel %vm1078, %v1444, %v1445
        %v1447 = vrot.slane %v1445, 4
        %v1448 = vrot.slane %v1355, 5
        %v1449 = vsel %vm1078, %v1447, %v1448
        %v1450 = vrot.slane %v1448, 4
        %v1451 = vrot.slane %v1356, 5
        %v1452 = vsel %vm1078, %v1450, %v1451
        %v1453 = vrot.slane %v1451, 4
        %v1454 = vrot.slane %v1357, 5
        %v1455 = vsel %vm1078, %v1453, %v1454
        %v1456 = vrot.slane %v1454, 4
        %v1457 = vrot.slane %v1358, 5
        %v1458 = vsel %vm1078, %v1456, %v1457
        %v1459 = vrot.slane %v1457, 4
        %v1460 = vrot.slane %v1359, 5
        %v1461 = vsel %vm1078, %v1459, %v1460
        %v1462 = vrot.slane %v1460, 4
        %v1463 = vrot.slane %v1360, 5
        %v1464 = vsel %vm1078, %v1462, %v1463
        %v1465 = vrot.slane %v1463, 4
        %v1466 = vrot.slane %v1361, 5
        %v1467 = vsel %vm1078, %v1465, %v1466
        %v1468 = vrot.slane %v1466, 4
        %v1469 = vrot.slane %v1362, 5
        %v1470 = vsel %vm1078, %v1468, %v1469
        %v1471 = vrot.slane %v1469, 4
        %v1472 = vrot.slane %v1363, 5
        %v1473 = vsel %vm1078, %v1471, %v1472
        %v1474 = vrot.slane %v1472, 4
        %v1475 = vrot.slane %v1364, 5
        %v1476 = vsel %vm1078, %v1474, %v1475
        %v1477 = vrot.slane %v1475, 4
        %v1478 = vrot.slane %v1365, 5
        %v1479 = vsel %vm1078, %v1477, %v1478
        %v1480 = vrot.slane %v1478, 4
        %v1481 = vrot.slane %v1366, 5
        %v1482 = vsel %vm1078, %v1480, %v1481
        %v1483 = vrot.slane %v1481, 4
        %v1484 = vrot.slane %v1367, 5
        %v1485 = vsel %vm1078, %v1483, %v1484
        %v1486 = vrot.slane %v1484, 4
        %v1487 = vrot.slane %v1368, 5
        %v1488 = vsel %vm1078, %v1486, %v1487
        %v1489 = vrot.slane %v1487, 4
        %v1490 = vrot.slane %v1369, 5
        %v1491 = vsel %vm1078, %v1489, %v1490
        %v1492 = vrot.slane %v1490, 4
        %v1493 = vrot.slane %v1370, 5
        %v1494 = vsel %vm1078, %v1492, %v1493
        %v1495 = vrot.slane %v1493, 4
        %v1496 = vrot.slane %v1371, 5
        %v1497 = vsel %vm1078, %v1495, %v1496
        %v1498 = vrot.slane %v1496, 4
        %v1499 = vrot.slane %v1372, 5
        %v1500 = vsel %vm1078, %v1498, %v1499
        %v1501 = vrot.slane %v1499, 4
        %v1502 = vrot.slane %v1373, 5
        %v1503 = vsel %vm1078, %v1501, %v1502
        %v1504 = vrot.slane %v1502, 4
        %v1505 = vrot.slane %v1374, 5
        %v1506 = vsel %vm1078, %v1504, %v1505
        %v1507 = vrot.slane %v1505, 4
        %v1508 = vrot.slane %v1375, 5
        %v1509 = vsel %vm1078, %v1507, %v1508
        %v1510 = vrot.slane %v1508, 4
        %v1511 = vrot.slane %v1376, 5
        %v1512 = vsel %vm1078, %v1510, %v1511
        %v1513 = vrot.slane %v1511, 4
        %v1514 = vrot.slane %v1377, 5
        %v1515 = vsel %vm1078, %v1513, %v1514
        %v1516 = vrot.slane %v1514, 4
        %v1517 = vrot.slane %v1378, 5
        %v1518 = vsel %vm1078, %v1516, %v1517
        %v1519 = vrot.slane %v1517, 4
        %v1520 = vrot.slane %v1379, 5
        %v1521 = vsel %vm1078, %v1519, %v1520
        %v1522 = vrot.slane %v1520, 4
        %v1523 = vrot.slane %v1380, 5
        %v1524 = vsel %vm1078, %v1522, %v1523
        %v1525 = vrot.slane %v1523, 4
        %v1526 = vrot.slane %v1381, 5
        %v1527 = vsel %vm1078, %v1525, %v1526
        %v1528 = vrot.slane %v1526, 4
        %v1529 = vrot.slane %v1382, 5
        %v1530 = vsel %vm1078, %v1528, %v1529
        %v1531 = vrot.slane %v1529, 4
        %v1532 = vrot.slane %v1383, 5
        %v1533 = vsel %vm1078, %v1531, %v1532
        %v1534 = vrot.slane %v1532, 4
        %v1535 = vrot.slane %v1384, 5
        %v1536 = vsel %vm1078, %v1534, %v1535
        %v1537 = vrot.slane %v1535, 4
        %v1538 = vrot.slane %v1385, 5
        %v1539 = vsel %vm1078, %v1537, %v1538
        %1540 = vrot.lane.b32.xlu0 %v1428, 96
        %v1541 = vpop.permute.xlu0 %1540
        %1542 = vrot.lane.b32.xlu0 %v1431, 96
        %v1543 = vpop.permute.xlu0 %1542
        %1544 = vrot.lane.b32.xlu0 %v1434, 96
        %v1545 = vpop.permute.xlu0 %1544
        %1546 = vrot.lane.b32.xlu0 %v1437, 96
        %v1547 = vpop.permute.xlu0 %1546
        %1548 = vrot.lane.b32.xlu0 %v1440, 96
        %v1549 = vpop.permute.xlu0 %1548
        %1550 = vrot.lane.b32.xlu0 %v1443, 96
        %v1551 = vpop.permute.xlu0 %1550
        %1552 = vrot.lane.b32.xlu0 %v1446, 96
        %v1553 = vpop.permute.xlu0 %1552
        %1554 = vrot.lane.b32.xlu0 %v1449, 96
        %v1555 = vpop.permute.xlu0 %1554
        %1556 = vrot.lane.b32.xlu0 %v1452, 96
        %v1557 = vpop.permute.xlu0 %1556
        %1558 = vrot.lane.b32.xlu0 %v1455, 96
        %v1559 = vpop.permute.xlu0 %1558
        %1560 = vrot.lane.b32.xlu0 %v1458, 96
        %v1561 = vpop.permute.xlu0 %1560
        %1562 = vrot.lane.b32.xlu0 %v1461, 96
        %v1563 = vpop.permute.xlu0 %1562
        %1564 = vrot.lane.b32.xlu0 %v1464, 96
        %v1565 = vpop.permute.xlu0 %1564
        %1566 = vrot.lane.b32.xlu0 %v1467, 96
        %v1567 = vpop.permute.xlu0 %1566
        %1568 = vrot.lane.b32.xlu0 %v1470, 96
        %v1569 = vpop.permute.xlu0 %1568
        %1570 = vrot.lane.b32.xlu0 %v1473, 96
        %v1571 = vpop.permute.xlu0 %1570
        %1572 = vrot.lane.b32.xlu0 %v1476, 96
        %v1573 = vpop.permute.xlu0 %1572
        %1574 = vrot.lane.b32.xlu0 %v1479, 96
        %v1575 = vpop.permute.xlu0 %1574
        %1576 = vrot.lane.b32.xlu0 %v1482, 96
        %v1577 = vpop.permute.xlu0 %1576
        %1578 = vrot.lane.b32.xlu0 %v1485, 96
        %v1579 = vpop.permute.xlu0 %1578
        %1580 = vrot.lane.b32.xlu0 %v1488, 96
        %v1581 = vpop.permute.xlu0 %1580
        %1582 = vrot.lane.b32.xlu0 %v1491, 96
        %v1583 = vpop.permute.xlu0 %1582
        %1584 = vrot.lane.b32.xlu0 %v1494, 96
        %v1585 = vpop.permute.xlu0 %1584
        %1586 = vrot.lane.b32.xlu0 %v1497, 96
        %v1587 = vpop.permute.xlu0 %1586
        %1588 = vrot.lane.b32.xlu0 %v1500, 96
        %v1589 = vpop.permute.xlu0 %1588
        %1590 = vrot.lane.b32.xlu0 %v1503, 96
        %v1591 = vpop.permute.xlu0 %1590
        %1592 = vrot.lane.b32.xlu0 %v1506, 96
        %v1593 = vpop.permute.xlu0 %1592
        %1594 = vrot.lane.b32.xlu0 %v1509, 96
        %v1595 = vpop.permute.xlu0 %1594
        %1596 = vrot.lane.b32.xlu0 %v1512, 96
        %v1597 = vpop.permute.xlu0 %1596
        %1598 = vrot.lane.b32.xlu0 %v1515, 96
        %v1599 = vpop.permute.xlu0 %1598
        %1600 = vrot.lane.b32.xlu0 %v1518, 96
        %v1601 = vpop.permute.xlu0 %1600
        %1602 = vrot.lane.b32.xlu0 %v1521, 96
        %v1603 = vpop.permute.xlu0 %1602
        %1604 = vrot.lane.b32.xlu0 %v1524, 96
        %v1605 = vpop.permute.xlu0 %1604
        %1606 = vrot.lane.b32.xlu0 %v1527, 96
        %v1607 = vpop.permute.xlu0 %1606
        %1608 = vrot.lane.b32.xlu0 %v1530, 96
        %v1609 = vpop.permute.xlu0 %1608
        %1610 = vrot.lane.b32.xlu0 %v1533, 96
        %v1611 = vpop.permute.xlu0 %1610
        %1612 = vrot.lane.b32.xlu0 %v1536, 96
        %v1613 = vpop.permute.xlu0 %1612
        %1614 = vrot.lane.b32.xlu0 %v1539, 96
        %v1615 = vpop.permute.xlu0 %1614
        %vm1654 = vcmask 1044224
        %1655 = vst.msk [vmem:[#allocation2] sm:$0xf] %vm1654, %v1541
        %1656 = vst.msk [vmem:[#allocation2 + $0xc] sm:$0xf] %vm1654, %v1543
        %1657 = vst.msk [vmem:[#allocation2 + $0x18] sm:$0xf] %vm1654, %v1545
        %1658 = vst.msk [vmem:[#allocation2 + $0x24] sm:$0xf] %vm1654, %v1547
        %1659 = vst.msk [vmem:[#allocation2 + $0x30] sm:$0xf] %vm1654, %v1549
        %1660 = vst.msk [vmem:[#allocation2 + $0x3c] sm:$0xf] %vm1654, %v1551
        %1661 = vst.msk [vmem:[#allocation2 + $0x48] sm:$0xf] %vm1654, %v1553
        %1662 = vst.msk [vmem:[#allocation2 + $0x54] sm:$0xf] %vm1654, %v1555
        %1663 = vst.msk [vmem:[#allocation2 + $0x60] sm:$0xf] %vm1654, %v1557
        %1664 = vst.msk [vmem:[#allocation2 + $0x6c] sm:$0xf] %vm1654, %v1559
        %1665 = vst.msk [vmem:[#allocation2 + $0x78] sm:$0xf] %vm1654, %v1561
        %1666 = vst.msk [vmem:[#allocation2 + $0x84] sm:$0xf] %vm1654, %v1563
        %1667 = vst.msk [vmem:[#allocation2 + $0x90] sm:$0xf] %vm1654, %v1565
        %1668 = vst.msk [vmem:[#allocation2 + $0x9c] sm:$0xf] %vm1654, %v1567
        %1669 = vst.msk [vmem:[#allocation2 + $0xa8] sm:$0xf] %vm1654, %v1569
        %1670 = vst.msk [vmem:[#allocation2 + $0xb4] sm:$0xf] %vm1654, %v1571
        %1671 = vst.msk [vmem:[#allocation2 + $0xc0] sm:$0xf] %vm1654, %v1573
        %1672 = vst.msk [vmem:[#allocation2 + $0xcc] sm:$0xf] %vm1654, %v1575
        %1673 = vst.msk [vmem:[#allocation2 + $0xd8] sm:$0xf] %vm1654, %v1577
        %1674 = vst.msk [vmem:[#allocation2 + $0xe4] sm:$0xf] %vm1654, %v1579
        %1675 = vst.msk [vmem:[#allocation2 + $0xf0] sm:$0xf] %vm1654, %v1581
        %1676 = vst.msk [vmem:[#allocation2 + $0xfc] sm:$0xf] %vm1654, %v1583
        %1677 = vst.msk [vmem:[#allocation2 + $0x108] sm:$0xf] %vm1654, %v1585
        %1678 = vst.msk [vmem:[#allocation2 + $0x114] sm:$0xf] %vm1654, %v1587
        %1679 = vst.msk [vmem:[#allocation2 + $0x120] sm:$0xf] %vm1654, %v1589
        %1680 = vst.msk [vmem:[#allocation2 + $0x12c] sm:$0xf] %vm1654, %v1591
        %1681 = vst.msk [vmem:[#allocation2 + $0x138] sm:$0xf] %vm1654, %v1593
        %1682 = vst.msk [vmem:[#allocation2 + $0x144] sm:$0xf] %vm1654, %v1595
        %1683 = vst.msk [vmem:[#allocation2 + $0x150] sm:$0xf] %vm1654, %v1597
        %1684 = vst.msk [vmem:[#allocation2 + $0x15c] sm:$0xf] %vm1654, %v1599
        %1685 = vst.msk [vmem:[#allocation2 + $0x168] sm:$0xf] %vm1654, %v1601
        %1686 = vst.msk [vmem:[#allocation2 + $0x174] sm:$0xf] %vm1654, %v1603
        %1687 = vst.msk [vmem:[#allocation2 + $0x180] sm:$0xf] %vm1654, %v1605
        %1688 = vst.msk [vmem:[#allocation2 + $0x18c] sm:$0xf] %vm1654, %v1607
        %1689 = vst.msk [vmem:[#allocation2 + $0x198] sm:$0xf] %vm1654, %v1609
        %1690 = vst.msk [vmem:[#allocation2 + $0x1a4] sm:$0xf] %vm1654, %v1611
        %1691 = vst.msk [vmem:[#allocation2 + $0x1b0] sm:$0xf] %vm1654, %v1613
        %1692 = vst.msk [vmem:[#allocation2 + $0x1bc] sm:$0xf] %vm1654, %v1615
        %v1693 = vld [vmem:[%s302 + $0x8] sm:$0xe]
        %v1694 = vld [vmem:[%s302 + $0xc] sm:$0xf]
        %v1695 = vld [vmem:[%s302 + $0x10] sm:$0xf]
        %v1696 = vld [vmem:[%s302 + $0x14] sm:$0xf]
        %v1697 = vld [vmem:[%s302 + $0x18] sm:$0xf]
        %v1698 = vld [vmem:[%s302 + $0x1c] sm:$0xf]
        %v1699 = vld [vmem:[%s302 + $0x20] sm:$0xf]
        %v1700 = vld [vmem:[%s302 + $0x24] sm:$0xf]
        %v1701 = vld [vmem:[%s302 + $0x28] sm:$0xf]
        %v1702 = vld [vmem:[%s302 + $0x2c] sm:$0xf]
        %v1703 = vld [vmem:[%s302 + $0x30] sm:$0xf]
        %v1704 = vld [vmem:[%s302 + $0x34] sm:$0xf]
        %v1705 = vld [vmem:[%s302 + $0x38] sm:$0xf]
        %v1706 = vld [vmem:[%s302 + $0x3c] sm:$0xf]
        %v1707 = vld [vmem:[%s302 + $0x40] sm:$0xf]
        %v1708 = vld [vmem:[%s302 + $0x44] sm:$0xf]
        %v1709 = vld [vmem:[%s302 + $0x48] sm:$0xf]
        %v1710 = vld [vmem:[%s302 + $0x4c] sm:$0xf]
        %v1711 = vld [vmem:[%s302 + $0x50] sm:$0xf]
        %v1712 = vld [vmem:[%s302 + $0x54] sm:$0xf]
        %v1713 = vld [vmem:[%s302 + $0x58] sm:$0xf]
        %v1714 = vld [vmem:[%s302 + $0x5c] sm:$0xf]
        %v1715 = vld [vmem:[%s302 + $0x60] sm:$0xf]
        %v1716 = vld [vmem:[%s302 + $0x64] sm:$0xf]
        %v1717 = vld [vmem:[%s302 + $0x68] sm:$0xf]
        %v1718 = vld [vmem:[%s302 + $0x6c] sm:$0xf]
        %v1719 = vld [vmem:[%s302 + $0x70] sm:$0xf]
        %v1720 = vld [vmem:[%s302 + $0x74] sm:$0xf]
        %v1721 = vld [vmem:[%s302 + $0x78] sm:$0xf]
        %v1722 = vld [vmem:[%s302 + $0x7c] sm:$0xf]
        %v1723 = vld [vmem:[%s302 + $0x80] sm:$0xf]
        %v1724 = vld [vmem:[%s302 + $0x84] sm:$0xf]
        %v1725 = vld [vmem:[%s302 + $0x88] sm:$0xf]
        %v1726 = vld [vmem:[%s302 + $0x8c] sm:$0xf]
        %v1727 = vld [vmem:[%s302 + $0x90] sm:$0xf]
        %v1728 = vld [vmem:[%s302 + $0x94] sm:$0xf]
        %v1729 = vld [vmem:[%s302 + $0x98] sm:$0xf]
        %v1730 = vld [vmem:[%s302 + $0x9c] sm:$0xf]
        %v1731 = vld [vmem:[%s302 + $0xa0] sm:$0x3]
        %vm1732 = vsmask.f32 2304
        %vm1733 = vsmask.f32 6416
        %vm1734 = vmor %vm1732, %vm1733
        %v1736 = vshrl.u32 %v1693, 16
        %v1738 = vrot.slane %v1736, 5
        %v1739 = vshll.u32 %v1693, 16
        %v1741 = vrot.slane %v1739, 6
        %v1742 = vor.u32 %v1738, %v1741
        %v1743 = vrot.slane %v1742, 4
        %v1745 = vshrl.u32 %v1694, 16
        %v1747 = vrot.slane %v1745, 5
        %v1748 = vshll.u32 %v1694, 16
        %v1750 = vrot.slane %v1748, 6
        %v1751 = vor.u32 %v1747, %v1750
        %v1752 = vsel %vm1734, %v1743, %v1751
        %v1753 = vrot.slane %v1751, 4
        %v1755 = vshrl.u32 %v1695, 16
        %v1757 = vrot.slane %v1755, 5
        %v1758 = vshll.u32 %v1695, 16
        %v1760 = vrot.slane %v1758, 6
        %v1761 = vor.u32 %v1757, %v1760
        %v1762 = vsel %vm1734, %v1753, %v1761
        %v1763 = vrot.slane %v1761, 4
        %v1765 = vshrl.u32 %v1696, 16
        %v1767 = vrot.slane %v1765, 5
        %v1768 = vshll.u32 %v1696, 16
        %v1770 = vrot.slane %v1768, 6
        %v1771 = vor.u32 %v1767, %v1770
        %v1772 = vsel %vm1734, %v1763, %v1771
        %v1773 = vrot.slane %v1771, 4
        %v1775 = vshrl.u32 %v1697, 16
        %v1777 = vrot.slane %v1775, 5
        %v1778 = vshll.u32 %v1697, 16
        %v1780 = vrot.slane %v1778, 6
        %v1781 = vor.u32 %v1777, %v1780
        %v1782 = vsel %vm1734, %v1773, %v1781
        %v1783 = vrot.slane %v1781, 4
        %v1785 = vshrl.u32 %v1698, 16
        %v1787 = vrot.slane %v1785, 5
        %v1788 = vshll.u32 %v1698, 16
        %v1790 = vrot.slane %v1788, 6
        %v1791 = vor.u32 %v1787, %v1790
        %v1792 = vsel %vm1734, %v1783, %v1791
        %v1793 = vrot.slane %v1791, 4
        %v1795 = vshrl.u32 %v1699, 16
        %v1797 = vrot.slane %v1795, 5
        %v1798 = vshll.u32 %v1699, 16
        %v1800 = vrot.slane %v1798, 6
        %v1801 = vor.u32 %v1797, %v1800
        %v1802 = vsel %vm1734, %v1793, %v1801
        %v1803 = vrot.slane %v1801, 4
        %v1805 = vshrl.u32 %v1700, 16
        %v1807 = vrot.slane %v1805, 5
        %v1808 = vshll.u32 %v1700, 16
        %v1810 = vrot.slane %v1808, 6
        %v1811 = vor.u32 %v1807, %v1810
        %v1812 = vsel %vm1734, %v1803, %v1811
        %v1813 = vrot.slane %v1811, 4
        %v1815 = vshrl.u32 %v1701, 16
        %v1817 = vrot.slane %v1815, 5
        %v1818 = vshll.u32 %v1701, 16
        %v1820 = vrot.slane %v1818, 6
        %v1821 = vor.u32 %v1817, %v1820
        %v1822 = vsel %vm1734, %v1813, %v1821
        %v1823 = vrot.slane %v1821, 4
        %v1825 = vshrl.u32 %v1702, 16
        %v1827 = vrot.slane %v1825, 5
        %v1828 = vshll.u32 %v1702, 16
        %v1830 = vrot.slane %v1828, 6
        %v1831 = vor.u32 %v1827, %v1830
        %v1832 = vsel %vm1734, %v1823, %v1831
        %v1833 = vrot.slane %v1831, 4
        %v1835 = vshrl.u32 %v1703, 16
        %v1837 = vrot.slane %v1835, 5
        %v1838 = vshll.u32 %v1703, 16
        %v1840 = vrot.slane %v1838, 6
        %v1841 = vor.u32 %v1837, %v1840
        %v1842 = vsel %vm1734, %v1833, %v1841
        %v1843 = vrot.slane %v1841, 4
        %v1845 = vshrl.u32 %v1704, 16
        %v1847 = vrot.slane %v1845, 5
        %v1848 = vshll.u32 %v1704, 16
        %v1850 = vrot.slane %v1848, 6
        %v1851 = vor.u32 %v1847, %v1850
        %v1852 = vsel %vm1734, %v1843, %v1851
        %v1853 = vrot.slane %v1851, 4
        %v1855 = vshrl.u32 %v1705, 16
        %v1857 = vrot.slane %v1855, 5
        %v1858 = vshll.u32 %v1705, 16
        %v1860 = vrot.slane %v1858, 6
        %v1861 = vor.u32 %v1857, %v1860
        %v1862 = vsel %vm1734, %v1853, %v1861
        %v1863 = vrot.slane %v1861, 4
        %v1865 = vshrl.u32 %v1706, 16
        %v1867 = vrot.slane %v1865, 5
        %v1868 = vshll.u32 %v1706, 16
        %v1870 = vrot.slane %v1868, 6
        %v1871 = vor.u32 %v1867, %v1870
        %v1872 = vsel %vm1734, %v1863, %v1871
        %v1873 = vrot.slane %v1871, 4
        %v1875 = vshrl.u32 %v1707, 16
        %v1877 = vrot.slane %v1875, 5
        %v1878 = vshll.u32 %v1707, 16
        %v1880 = vrot.slane %v1878, 6
        %v1881 = vor.u32 %v1877, %v1880
        %v1882 = vsel %vm1734, %v1873, %v1881
        %v1883 = vrot.slane %v1881, 4
        %v1885 = vshrl.u32 %v1708, 16
        %v1887 = vrot.slane %v1885, 5
        %v1888 = vshll.u32 %v1708, 16
        %v1890 = vrot.slane %v1888, 6
        %v1891 = vor.u32 %v1887, %v1890
        %v1892 = vsel %vm1734, %v1883, %v1891
        %v1893 = vrot.slane %v1891, 4
        %v1895 = vshrl.u32 %v1709, 16
        %v1897 = vrot.slane %v1895, 5
        %v1898 = vshll.u32 %v1709, 16
        %v1900 = vrot.slane %v1898, 6
        %v1901 = vor.u32 %v1897, %v1900
        %v1902 = vsel %vm1734, %v1893, %v1901
        %v1903 = vrot.slane %v1901, 4
        %v1905 = vshrl.u32 %v1710, 16
        %v1907 = vrot.slane %v1905, 5
        %v1908 = vshll.u32 %v1710, 16
        %v1910 = vrot.slane %v1908, 6
        %v1911 = vor.u32 %v1907, %v1910
        %v1912 = vsel %vm1734, %v1903, %v1911
        %v1913 = vrot.slane %v1911, 4
        %v1915 = vshrl.u32 %v1711, 16
        %v1917 = vrot.slane %v1915, 5
        %v1918 = vshll.u32 %v1711, 16
        %v1920 = vrot.slane %v1918, 6
        %v1921 = vor.u32 %v1917, %v1920
        %v1922 = vsel %vm1734, %v1913, %v1921
        %v1923 = vrot.slane %v1921, 4
        %v1925 = vshrl.u32 %v1712, 16
        %v1927 = vrot.slane %v1925, 5
        %v1928 = vshll.u32 %v1712, 16
        %v1930 = vrot.slane %v1928, 6
        %v1931 = vor.u32 %v1927, %v1930
        %v1932 = vsel %vm1734, %v1923, %v1931
        %v1933 = vrot.slane %v1931, 4
        %v1935 = vshrl.u32 %v1713, 16
        %v1937 = vrot.slane %v1935, 5
        %v1938 = vshll.u32 %v1713, 16
        %v1940 = vrot.slane %v1938, 6
        %v1941 = vor.u32 %v1937, %v1940
        %v1942 = vsel %vm1734, %v1933, %v1941
        %v1943 = vrot.slane %v1941, 4
        %v1945 = vshrl.u32 %v1714, 16
        %v1947 = vrot.slane %v1945, 5
        %v1948 = vshll.u32 %v1714, 16
        %v1950 = vrot.slane %v1948, 6
        %v1951 = vor.u32 %v1947, %v1950
        %v1952 = vsel %vm1734, %v1943, %v1951
        %v1953 = vrot.slane %v1951, 4
        %v1955 = vshrl.u32 %v1715, 16
        %v1957 = vrot.slane %v1955, 5
        %v1958 = vshll.u32 %v1715, 16
        %v1960 = vrot.slane %v1958, 6
        %v1961 = vor.u32 %v1957, %v1960
        %v1962 = vsel %vm1734, %v1953, %v1961
        %v1963 = vrot.slane %v1961, 4
        %v1965 = vshrl.u32 %v1716, 16
        %v1967 = vrot.slane %v1965, 5
        %v1968 = vshll.u32 %v1716, 16
        %v1970 = vrot.slane %v1968, 6
        %v1971 = vor.u32 %v1967, %v1970
        %v1972 = vsel %vm1734, %v1963, %v1971
        %v1973 = vrot.slane %v1971, 4
        %v1975 = vshrl.u32 %v1717, 16
        %v1977 = vrot.slane %v1975, 5
        %v1978 = vshll.u32 %v1717, 16
        %v1980 = vrot.slane %v1978, 6
        %v1981 = vor.u32 %v1977, %v1980
        %v1982 = vsel %vm1734, %v1973, %v1981
        %v1983 = vrot.slane %v1981, 4
        %v1985 = vshrl.u32 %v1718, 16
        %v1987 = vrot.slane %v1985, 5
        %v1988 = vshll.u32 %v1718, 16
        %v1990 = vrot.slane %v1988, 6
        %v1991 = vor.u32 %v1987, %v1990
        %v1992 = vsel %vm1734, %v1983, %v1991
        %v1993 = vrot.slane %v1991, 4
        %v1995 = vshrl.u32 %v1719, 16
        %v1997 = vrot.slane %v1995, 5
        %v1998 = vshll.u32 %v1719, 16
        %v2000 = vrot.slane %v1998, 6
        %v2001 = vor.u32 %v1997, %v2000
        %v2002 = vsel %vm1734, %v1993, %v2001
        %v2003 = vrot.slane %v2001, 4
        %v2005 = vshrl.u32 %v1720, 16
        %v2007 = vrot.slane %v2005, 5
        %v2008 = vshll.u32 %v1720, 16
        %v2010 = vrot.slane %v2008, 6
        %v2011 = vor.u32 %v2007, %v2010
        %v2012 = vsel %vm1734, %v2003, %v2011
        %v2013 = vrot.slane %v2011, 4
        %v2015 = vshrl.u32 %v1721, 16
        %v2017 = vrot.slane %v2015, 5
        %v2018 = vshll.u32 %v1721, 16
        %v2020 = vrot.slane %v2018, 6
        %v2021 = vor.u32 %v2017, %v2020
        %v2022 = vsel %vm1734, %v2013, %v2021
        %v2023 = vrot.slane %v2021, 4
        %v2025 = vshrl.u32 %v1722, 16
        %v2027 = vrot.slane %v2025, 5
        %v2028 = vshll.u32 %v1722, 16
        %v2030 = vrot.slane %v2028, 6
        %v2031 = vor.u32 %v2027, %v2030
        %v2032 = vsel %vm1734, %v2023, %v2031
        %v2033 = vrot.slane %v2031, 4
        %v2035 = vshrl.u32 %v1723, 16
        %v2037 = vrot.slane %v2035, 5
        %v2038 = vshll.u32 %v1723, 16
        %v2040 = vrot.slane %v2038, 6
        %v2041 = vor.u32 %v2037, %v2040
        %v2042 = vsel %vm1734, %v2033, %v2041
        %v2043 = vrot.slane %v2041, 4
        %v2045 = vshrl.u32 %v1724, 16
        %v2047 = vrot.slane %v2045, 5
        %v2048 = vshll.u32 %v1724, 16
        %v2050 = vrot.slane %v2048, 6
        %v2051 = vor.u32 %v2047, %v2050
        %v2052 = vsel %vm1734, %v2043, %v2051
        %v2053 = vrot.slane %v2051, 4
        %v2055 = vshrl.u32 %v1725, 16
        %v2057 = vrot.slane %v2055, 5
        %v2058 = vshll.u32 %v1725, 16
        %v2060 = vrot.slane %v2058, 6
        %v2061 = vor.u32 %v2057, %v2060
        %v2062 = vsel %vm1734, %v2053, %v2061
        %v2063 = vrot.slane %v2061, 4
        %v2065 = vshrl.u32 %v1726, 16
        %v2067 = vrot.slane %v2065, 5
        %v2068 = vshll.u32 %v1726, 16
        %v2070 = vrot.slane %v2068, 6
        %v2071 = vor.u32 %v2067, %v2070
        %v2072 = vsel %vm1734, %v2063, %v2071
        %v2073 = vrot.slane %v2071, 4
        %v2075 = vshrl.u32 %v1727, 16
        %v2077 = vrot.slane %v2075, 5
        %v2078 = vshll.u32 %v1727, 16
        %v2080 = vrot.slane %v2078, 6
        %v2081 = vor.u32 %v2077, %v2080
        %v2082 = vsel %vm1734, %v2073, %v2081
        %v2083 = vrot.slane %v2081, 4
        %v2085 = vshrl.u32 %v1728, 16
        %v2087 = vrot.slane %v2085, 5
        %v2088 = vshll.u32 %v1728, 16
        %v2090 = vrot.slane %v2088, 6
        %v2091 = vor.u32 %v2087, %v2090
        %v2092 = vsel %vm1734, %v2083, %v2091
        %v2093 = vrot.slane %v2091, 4
        %v2095 = vshrl.u32 %v1729, 16
        %v2097 = vrot.slane %v2095, 5
        %v2098 = vshll.u32 %v1729, 16
        %v2100 = vrot.slane %v2098, 6
        %v2101 = vor.u32 %v2097, %v2100
        %v2102 = vsel %vm1734, %v2093, %v2101
        %v2103 = vrot.slane %v2101, 4
        %v2105 = vshrl.u32 %v1730, 16
        %v2107 = vrot.slane %v2105, 5
        %v2108 = vshll.u32 %v1730, 16
        %v2110 = vrot.slane %v2108, 6
        %v2111 = vor.u32 %v2107, %v2110
        %v2112 = vsel %vm1734, %v2103, %v2111
        %v2113 = vrot.slane %v2111, 4
        %v2115 = vshrl.u32 %v1731, 16
        %v2117 = vrot.slane %v2115, 5
        %v2118 = vshll.u32 %v1731, 16
        %v2120 = vrot.slane %v2118, 6
        %v2121 = vor.u32 %v2117, %v2120
        %v2122 = vsel %vm1734, %v2113, %v2121
        %2161 = vst.msk [vmem:[#allocation2 + $0x4] sm:$0xf] %vm380, %v1752
        %2162 = vst.msk [vmem:[#allocation2 + $0x10] sm:$0xf] %vm380, %v1762
        %2163 = vst.msk [vmem:[#allocation2 + $0x1c] sm:$0xf] %vm380, %v1772
        %2164 = vst.msk [vmem:[#allocation2 + $0x28] sm:$0xf] %vm380, %v1782
        %2165 = vst.msk [vmem:[#allocation2 + $0x34] sm:$0xf] %vm380, %v1792
        %2166 = vst.msk [vmem:[#allocation2 + $0x40] sm:$0xf] %vm380, %v1802
        %2167 = vst.msk [vmem:[#allocation2 + $0x4c] sm:$0xf] %vm380, %v1812
        %2168 = vst.msk [vmem:[#allocation2 + $0x58] sm:$0xf] %vm380, %v1822
        %2169 = vst.msk [vmem:[#allocation2 + $0x64] sm:$0xf] %vm380, %v1832
        %2170 = vst.msk [vmem:[#allocation2 + $0x70] sm:$0xf] %vm380, %v1842
        %2171 = vst.msk [vmem:[#allocation2 + $0x7c] sm:$0xf] %vm380, %v1852
        %2172 = vst.msk [vmem:[#allocation2 + $0x88] sm:$0xf] %vm380, %v1862
        %2173 = vst.msk [vmem:[#allocation2 + $0x94] sm:$0xf] %vm380, %v1872
        %2174 = vst.msk [vmem:[#allocation2 + $0xa0] sm:$0xf] %vm380, %v1882
        %2175 = vst.msk [vmem:[#allocation2 + $0xac] sm:$0xf] %vm380, %v1892
        %2176 = vst.msk [vmem:[#allocation2 + $0xb8] sm:$0xf] %vm380, %v1902
        %2177 = vst.msk [vmem:[#allocation2 + $0xc4] sm:$0xf] %vm380, %v1912
        %2178 = vst.msk [vmem:[#allocation2 + $0xd0] sm:$0xf] %vm380, %v1922
        %2179 = vst.msk [vmem:[#allocation2 + $0xdc] sm:$0xf] %vm380, %v1932
        %2180 = vst.msk [vmem:[#allocation2 + $0xe8] sm:$0xf] %vm380, %v1942
        %2181 = vst.msk [vmem:[#allocation2 + $0xf4] sm:$0xf] %vm380, %v1952
        %2182 = vst.msk [vmem:[#allocation2 + $0x100] sm:$0xf] %vm380, %v1962
        %2183 = vst.msk [vmem:[#allocation2 + $0x10c] sm:$0xf] %vm380, %v1972
        %2184 = vst.msk [vmem:[#allocation2 + $0x118] sm:$0xf] %vm380, %v1982
        %2185 = vst.msk [vmem:[#allocation2 + $0x124] sm:$0xf] %vm380, %v1992
        %2186 = vst.msk [vmem:[#allocation2 + $0x130] sm:$0xf] %vm380, %v2002
        %2187 = vst.msk [vmem:[#allocation2 + $0x13c] sm:$0xf] %vm380, %v2012
        %2188 = vst.msk [vmem:[#allocation2 + $0x148] sm:$0xf] %vm380, %v2022
        %2189 = vst.msk [vmem:[#allocation2 + $0x154] sm:$0xf] %vm380, %v2032
        %2190 = vst.msk [vmem:[#allocation2 + $0x160] sm:$0xf] %vm380, %v2042
        %2191 = vst.msk [vmem:[#allocation2 + $0x16c] sm:$0xf] %vm380, %v2052
        %2192 = vst.msk [vmem:[#allocation2 + $0x178] sm:$0xf] %vm380, %v2062
        %2193 = vst.msk [vmem:[#allocation2 + $0x184] sm:$0xf] %vm380, %v2072
        %2194 = vst.msk [vmem:[#allocation2 + $0x190] sm:$0xf] %vm380, %v2082
        %2195 = vst.msk [vmem:[#allocation2 + $0x19c] sm:$0xf] %vm380, %v2092
        %2196 = vst.msk [vmem:[#allocation2 + $0x1a8] sm:$0xf] %vm380, %v2102
        %2197 = vst.msk [vmem:[#allocation2 + $0x1b4] sm:$0xf] %vm380, %v2112
        %2198 = vst.msk [vmem:[#allocation2 + $0x1c0] sm:$0xf] %vm380, %v2122
        %v2199 = vld [vmem:[%s302 + $0x8] sm:$0xc]
        %v2200 = vld [vmem:[%s302 + $0xc] sm:$0xf]
        %v2201 = vld [vmem:[%s302 + $0x10] sm:$0xf]
        %v2202 = vld [vmem:[%s302 + $0x14] sm:$0xf]
        %v2203 = vld [vmem:[%s302 + $0x18] sm:$0xf]
        %v2204 = vld [vmem:[%s302 + $0x1c] sm:$0xf]
        %v2205 = vld [vmem:[%s302 + $0x20] sm:$0xf]
        %v2206 = vld [vmem:[%s302 + $0x24] sm:$0xf]
        %v2207 = vld [vmem:[%s302 + $0x28] sm:$0xf]
        %v2208 = vld [vmem:[%s302 + $0x2c] sm:$0xf]
        %v2209 = vld [vmem:[%s302 + $0x30] sm:$0xf]
        %v2210 = vld [vmem:[%s302 + $0x34] sm:$0xf]
        %v2211 = vld [vmem:[%s302 + $0x38] sm:$0xf]
        %v2212 = vld [vmem:[%s302 + $0x3c] sm:$0xf]
        %v2213 = vld [vmem:[%s302 + $0x40] sm:$0xf]
        %v2214 = vld [vmem:[%s302 + $0x44] sm:$0xf]
        %v2215 = vld [vmem:[%s302 + $0x48] sm:$0xf]
        %v2216 = vld [vmem:[%s302 + $0x4c] sm:$0xf]
        %v2217 = vld [vmem:[%s302 + $0x50] sm:$0xf]
        %v2218 = vld [vmem:[%s302 + $0x54] sm:$0xf]
        %v2219 = vld [vmem:[%s302 + $0x58] sm:$0xf]
        %v2220 = vld [vmem:[%s302 + $0x5c] sm:$0xf]
        %v2221 = vld [vmem:[%s302 + $0x60] sm:$0xf]
        %v2222 = vld [vmem:[%s302 + $0x64] sm:$0xf]
        %v2223 = vld [vmem:[%s302 + $0x68] sm:$0xf]
        %v2224 = vld [vmem:[%s302 + $0x6c] sm:$0xf]
        %v2225 = vld [vmem:[%s302 + $0x70] sm:$0xf]
        %v2226 = vld [vmem:[%s302 + $0x74] sm:$0xf]
        %v2227 = vld [vmem:[%s302 + $0x78] sm:$0xf]
        %v2228 = vld [vmem:[%s302 + $0x7c] sm:$0xf]
        %v2229 = vld [vmem:[%s302 + $0x80] sm:$0xf]
        %v2230 = vld [vmem:[%s302 + $0x84] sm:$0xf]
        %v2231 = vld [vmem:[%s302 + $0x88] sm:$0xf]
        %v2232 = vld [vmem:[%s302 + $0x8c] sm:$0xf]
        %v2233 = vld [vmem:[%s302 + $0x90] sm:$0xf]
        %v2234 = vld [vmem:[%s302 + $0x94] sm:$0xf]
        %v2235 = vld [vmem:[%s302 + $0x98] sm:$0xf]
        %v2236 = vld [vmem:[%s302 + $0x9c] sm:$0xf]
        %v2237 = vld [vmem:[%s302 + $0xa0] sm:$0x3]
        %vm2277 = vcmask 1041408
        %vm2278 = vcmask 1045508
        %vm2279 = vmor %vm2277, %vm2278
        %v2280 = vrot.slane %v2199, 6
        %v2281 = vrot.slane %v2280, 4
        %v2282 = vrot.slane %v2200, 6
        %v2283 = vsel %vm2279, %v2281, %v2282
        %v2284 = vrot.slane %v2282, 4
        %v2285 = vrot.slane %v2201, 6
        %v2286 = vsel %vm2279, %v2284, %v2285
        %v2287 = vrot.slane %v2285, 4
        %v2288 = vrot.slane %v2202, 6
        %v2289 = vsel %vm2279, %v2287, %v2288
        %v2290 = vrot.slane %v2288, 4
        %v2291 = vrot.slane %v2203, 6
        %v2292 = vsel %vm2279, %v2290, %v2291
        %v2293 = vrot.slane %v2291, 4
        %v2294 = vrot.slane %v2204, 6
        %v2295 = vsel %vm2279, %v2293, %v2294
        %v2296 = vrot.slane %v2294, 4
        %v2297 = vrot.slane %v2205, 6
        %v2298 = vsel %vm2279, %v2296, %v2297
        %v2299 = vrot.slane %v2297, 4
        %v2300 = vrot.slane %v2206, 6
        %v2301 = vsel %vm2279, %v2299, %v2300
        %v2302 = vrot.slane %v2300, 4
        %v2303 = vrot.slane %v2207, 6
        %v2304 = vsel %vm2279, %v2302, %v2303
        %v2305 = vrot.slane %v2303, 4
        %v2306 = vrot.slane %v2208, 6
        %v2307 = vsel %vm2279, %v2305, %v2306
        %v2308 = vrot.slane %v2306, 4
        %v2309 = vrot.slane %v2209, 6
        %v2310 = vsel %vm2279, %v2308, %v2309
        %v2311 = vrot.slane %v2309, 4
        %v2312 = vrot.slane %v2210, 6
        %v2313 = vsel %vm2279, %v2311, %v2312
        %v2314 = vrot.slane %v2312, 4
        %v2315 = vrot.slane %v2211, 6
        %v2316 = vsel %vm2279, %v2314, %v2315
        %v2317 = vrot.slane %v2315, 4
        %v2318 = vrot.slane %v2212, 6
        %v2319 = vsel %vm2279, %v2317, %v2318
        %v2320 = vrot.slane %v2318, 4
        %v2321 = vrot.slane %v2213, 6
        %v2322 = vsel %vm2279, %v2320, %v2321
        %v2323 = vrot.slane %v2321, 4
        %v2324 = vrot.slane %v2214, 6
        %v2325 = vsel %vm2279, %v2323, %v2324
        %v2326 = vrot.slane %v2324, 4
        %v2327 = vrot.slane %v2215, 6
        %v2328 = vsel %vm2279, %v2326, %v2327
        %v2329 = vrot.slane %v2327, 4
        %v2330 = vrot.slane %v2216, 6
        %v2331 = vsel %vm2279, %v2329, %v2330
        %v2332 = vrot.slane %v2330, 4
        %v2333 = vrot.slane %v2217, 6
        %v2334 = vsel %vm2279, %v2332, %v2333
        %v2335 = vrot.slane %v2333, 4
        %v2336 = vrot.slane %v2218, 6
        %v2337 = vsel %vm2279, %v2335, %v2336
        %v2338 = vrot.slane %v2336, 4
        %v2339 = vrot.slane %v2219, 6
        %v2340 = vsel %vm2279, %v2338, %v2339
        %v2341 = vrot.slane %v2339, 4
        %v2342 = vrot.slane %v2220, 6
        %v2343 = vsel %vm2279, %v2341, %v2342
        %v2344 = vrot.slane %v2342, 4
        %v2345 = vrot.slane %v2221, 6
        %v2346 = vsel %vm2279, %v2344, %v2345
        %v2347 = vrot.slane %v2345, 4
        %v2348 = vrot.slane %v2222, 6
        %v2349 = vsel %vm2279, %v2347, %v2348
        %v2350 = vrot.slane %v2348, 4
        %v2351 = vrot.slane %v2223, 6
        %v2352 = vsel %vm2279, %v2350, %v2351
        %v2353 = vrot.slane %v2351, 4
        %v2354 = vrot.slane %v2224, 6
        %v2355 = vsel %vm2279, %v2353, %v2354
        %v2356 = vrot.slane %v2354, 4
        %v2357 = vrot.slane %v2225, 6
        %v2358 = vsel %vm2279, %v2356, %v2357
        %v2359 = vrot.slane %v2357, 4
        %v2360 = vrot.slane %v2226, 6
        %v2361 = vsel %vm2279, %v2359, %v2360
        %v2362 = vrot.slane %v2360, 4
        %v2363 = vrot.slane %v2227, 6
        %v2364 = vsel %vm2279, %v2362, %v2363
        %v2365 = vrot.slane %v2363, 4
        %v2366 = vrot.slane %v2228, 6
        %v2367 = vsel %vm2279, %v2365, %v2366
        %v2368 = vrot.slane %v2366, 4
        %v2369 = vrot.slane %v2229, 6
        %v2370 = vsel %vm2279, %v2368, %v2369
        %v2371 = vrot.slane %v2369, 4
        %v2372 = vrot.slane %v2230, 6
        %v2373 = vsel %vm2279, %v2371, %v2372
        %v2374 = vrot.slane %v2372, 4
        %v2375 = vrot.slane %v2231, 6
        %v2376 = vsel %vm2279, %v2374, %v2375
        %v2377 = vrot.slane %v2375, 4
        %v2378 = vrot.slane %v2232, 6
        %v2379 = vsel %vm2279, %v2377, %v2378
        %v2380 = vrot.slane %v2378, 4
        %v2381 = vrot.slane %v2233, 6
        %v2382 = vsel %vm2279, %v2380, %v2381
        %v2383 = vrot.slane %v2381, 4
        %v2384 = vrot.slane %v2234, 6
        %v2385 = vsel %vm2279, %v2383, %v2384
        %v2386 = vrot.slane %v2384, 4
        %v2387 = vrot.slane %v2235, 6
        %v2388 = vsel %vm2279, %v2386, %v2387
        %v2389 = vrot.slane %v2387, 4
        %v2390 = vrot.slane %v2236, 6
        %v2391 = vsel %vm2279, %v2389, %v2390
        %v2392 = vrot.slane %v2390, 4
        %v2393 = vrot.slane %v2237, 6
        %v2394 = vsel %vm2279, %v2392, %v2393
        %2395 = vrot.lane.b32.xlu0 %v2283, 32
        %v2396 = vpop.permute.xlu0 %2395
        %2397 = vrot.lane.b32.xlu0 %v2286, 32
        %v2398 = vpop.permute.xlu0 %2397
        %2399 = vrot.lane.b32.xlu0 %v2289, 32
        %v2400 = vpop.permute.xlu0 %2399
        %2401 = vrot.lane.b32.xlu0 %v2292, 32
        %v2402 = vpop.permute.xlu0 %2401
        %2403 = vrot.lane.b32.xlu0 %v2295, 32
        %v2404 = vpop.permute.xlu0 %2403
        %2405 = vrot.lane.b32.xlu0 %v2298, 32
        %v2406 = vpop.permute.xlu0 %2405
        %2407 = vrot.lane.b32.xlu0 %v2301, 32
        %v2408 = vpop.permute.xlu0 %2407
        %2409 = vrot.lane.b32.xlu0 %v2304, 32
        %v2410 = vpop.permute.xlu0 %2409
        %2411 = vrot.lane.b32.xlu0 %v2307, 32
        %v2412 = vpop.permute.xlu0 %2411
        %2413 = vrot.lane.b32.xlu0 %v2310, 32
        %v2414 = vpop.permute.xlu0 %2413
        %2415 = vrot.lane.b32.xlu0 %v2313, 32
        %v2416 = vpop.permute.xlu0 %2415
        %2417 = vrot.lane.b32.xlu0 %v2316, 32
        %v2418 = vpop.permute.xlu0 %2417
        %2419 = vrot.lane.b32.xlu0 %v2319, 32
        %v2420 = vpop.permute.xlu0 %2419
        %2421 = vrot.lane.b32.xlu0 %v2322, 32
        %v2422 = vpop.permute.xlu0 %2421
        %2423 = vrot.lane.b32.xlu0 %v2325, 32
        %v2424 = vpop.permute.xlu0 %2423
        %2425 = vrot.lane.b32.xlu0 %v2328, 32
        %v2426 = vpop.permute.xlu0 %2425
        %2427 = vrot.lane.b32.xlu0 %v2331, 32
        %v2428 = vpop.permute.xlu0 %2427
        %2429 = vrot.lane.b32.xlu0 %v2334, 32
        %v2430 = vpop.permute.xlu0 %2429
        %2431 = vrot.lane.b32.xlu0 %v2337, 32
        %v2432 = vpop.permute.xlu0 %2431
        %2433 = vrot.lane.b32.xlu0 %v2340, 32
        %v2434 = vpop.permute.xlu0 %2433
        %2435 = vrot.lane.b32.xlu0 %v2343, 32
        %v2436 = vpop.permute.xlu0 %2435
        %2437 = vrot.lane.b32.xlu0 %v2346, 32
        %v2438 = vpop.permute.xlu0 %2437
        %2439 = vrot.lane.b32.xlu0 %v2349, 32
        %v2440 = vpop.permute.xlu0 %2439
        %2441 = vrot.lane.b32.xlu0 %v2352, 32
        %v2442 = vpop.permute.xlu0 %2441
        %2443 = vrot.lane.b32.xlu0 %v2355, 32
        %v2444 = vpop.permute.xlu0 %2443
        %2445 = vrot.lane.b32.xlu0 %v2358, 32
        %v2446 = vpop.permute.xlu0 %2445
        %2447 = vrot.lane.b32.xlu0 %v2361, 32
        %v2448 = vpop.permute.xlu0 %2447
        %2449 = vrot.lane.b32.xlu0 %v2364, 32
        %v2450 = vpop.permute.xlu0 %2449
        %2451 = vrot.lane.b32.xlu0 %v2367, 32
        %v2452 = vpop.permute.xlu0 %2451
        %2453 = vrot.lane.b32.xlu0 %v2370, 32
        %v2454 = vpop.permute.xlu0 %2453
        %2455 = vrot.lane.b32.xlu0 %v2373, 32
        %v2456 = vpop.permute.xlu0 %2455
        %2457 = vrot.lane.b32.xlu0 %v2376, 32
        %v2458 = vpop.permute.xlu0 %2457
        %2459 = vrot.lane.b32.xlu0 %v2379, 32
        %v2460 = vpop.permute.xlu0 %2459
        %2461 = vrot.lane.b32.xlu0 %v2382, 32
        %v2462 = vpop.permute.xlu0 %2461
        %2463 = vrot.lane.b32.xlu0 %v2385, 32
        %v2464 = vpop.permute.xlu0 %2463
        %2465 = vrot.lane.b32.xlu0 %v2388, 32
        %v2466 = vpop.permute.xlu0 %2465
        %2467 = vrot.lane.b32.xlu0 %v2391, 32
        %v2468 = vpop.permute.xlu0 %2467
        %2469 = vrot.lane.b32.xlu0 %v2394, 32
        %v2470 = vpop.permute.xlu0 %2469
        %2509 = vst.msk [vmem:[#allocation2 + $0x4] sm:$0xf] %vm959, %v2396
        %2510 = vst.msk [vmem:[#allocation2 + $0x10] sm:$0xf] %vm959, %v2398
        %2511 = vst.msk [vmem:[#allocation2 + $0x1c] sm:$0xf] %vm959, %v2400
        %2512 = vst.msk [vmem:[#allocation2 + $0x28] sm:$0xf] %vm959, %v2402
        %2513 = vst.msk [vmem:[#allocation2 + $0x34] sm:$0xf] %vm959, %v2404
        %2514 = vst.msk [vmem:[#allocation2 + $0x40] sm:$0xf] %vm959, %v2406
        %2515 = vst.msk [vmem:[#allocation2 + $0x4c] sm:$0xf] %vm959, %v2408
        %2516 = vst.msk [vmem:[#allocation2 + $0x58] sm:$0xf] %vm959, %v2410
        %2517 = vst.msk [vmem:[#allocation2 + $0x64] sm:$0xf] %vm959, %v2412
        %2518 = vst.msk [vmem:[#allocation2 + $0x70] sm:$0xf] %vm959, %v2414
        %2519 = vst.msk [vmem:[#allocation2 + $0x7c] sm:$0xf] %vm959, %v2416
        %2520 = vst.msk [vmem:[#allocation2 + $0x88] sm:$0xf] %vm959, %v2418
        %2521 = vst.msk [vmem:[#allocation2 + $0x94] sm:$0xf] %vm959, %v2420
        %2522 = vst.msk [vmem:[#allocation2 + $0xa0] sm:$0xf] %vm959, %v2422
        %2523 = vst.msk [vmem:[#allocation2 + $0xac] sm:$0xf] %vm959, %v2424
        %2524 = vst.msk [vmem:[#allocation2 + $0xb8] sm:$0xf] %vm959, %v2426
        %2525 = vst.msk [vmem:[#allocation2 + $0xc4] sm:$0xf] %vm959, %v2428
        %2526 = vst.msk [vmem:[#allocation2 + $0xd0] sm:$0xf] %vm959, %v2430
        %2527 = vst.msk [vmem:[#allocation2 + $0xdc] sm:$0xf] %vm959, %v2432
        %2528 = vst.msk [vmem:[#allocation2 + $0xe8] sm:$0xf] %vm959, %v2434
        %2529 = vst.msk [vmem:[#allocation2 + $0xf4] sm:$0xf] %vm959, %v2436
        %2530 = vst.msk [vmem:[#allocation2 + $0x100] sm:$0xf] %vm959, %v2438
        %2531 = vst.msk [vmem:[#allocation2 + $0x10c] sm:$0xf] %vm959, %v2440
        %2532 = vst.msk [vmem:[#allocation2 + $0x118] sm:$0xf] %vm959, %v2442
        %2533 = vst.msk [vmem:[#allocation2 + $0x124] sm:$0xf] %vm959, %v2444
        %2534 = vst.msk [vmem:[#allocation2 + $0x130] sm:$0xf] %vm959, %v2446
        %2535 = vst.msk [vmem:[#allocation2 + $0x13c] sm:$0xf] %vm959, %v2448
        %2536 = vst.msk [vmem:[#allocation2 + $0x148] sm:$0xf] %vm959, %v2450
        %2537 = vst.msk [vmem:[#allocation2 + $0x154] sm:$0xf] %vm959, %v2452
        %2538 = vst.msk [vmem:[#allocation2 + $0x160] sm:$0xf] %vm959, %v2454
        %2539 = vst.msk [vmem:[#allocation2 + $0x16c] sm:$0xf] %vm959, %v2456
        %2540 = vst.msk [vmem:[#allocation2 + $0x178] sm:$0xf] %vm959, %v2458
        %2541 = vst.msk [vmem:[#allocation2 + $0x184] sm:$0xf] %vm959, %v2460
        %2542 = vst.msk [vmem:[#allocation2 + $0x190] sm:$0xf] %vm959, %v2462
        %2543 = vst.msk [vmem:[#allocation2 + $0x19c] sm:$0xf] %vm959, %v2464
        %2544 = vst.msk [vmem:[#allocation2 + $0x1a8] sm:$0xf] %vm959, %v2466
        %2545 = vst.msk [vmem:[#allocation2 + $0x1b4] sm:$0xf] %vm959, %v2468
        %2546 = vst.msk [vmem:[#allocation2 + $0x1c0] sm:$0xf] %vm959, %v2470
        %v2547 = vld [vmem:[%s302 + $0x10] sm:$0xc]
        %v2548 = vld [vmem:[%s302 + $0x14] sm:$0xf]
        %v2549 = vld [vmem:[%s302 + $0x18] sm:$0xf]
        %v2550 = vld [vmem:[%s302 + $0x1c] sm:$0xf]
        %v2551 = vld [vmem:[%s302 + $0x20] sm:$0xf]
        %v2552 = vld [vmem:[%s302 + $0x24] sm:$0xf]
        %v2553 = vld [vmem:[%s302 + $0x28] sm:$0xf]
        %v2554 = vld [vmem:[%s302 + $0x2c] sm:$0xf]
        %v2555 = vld [vmem:[%s302 + $0x30] sm:$0xf]
        %v2556 = vld [vmem:[%s302 + $0x34] sm:$0xf]
        %v2557 = vld [vmem:[%s302 + $0x38] sm:$0xf]
        %v2558 = vld [vmem:[%s302 + $0x3c] sm:$0xf]
        %v2559 = vld [vmem:[%s302 + $0x40] sm:$0xf]
        %v2560 = vld [vmem:[%s302 + $0x44] sm:$0xf]
        %v2561 = vld [vmem:[%s302 + $0x48] sm:$0xf]
        %v2562 = vld [vmem:[%s302 + $0x4c] sm:$0xf]
        %v2563 = vld [vmem:[%s302 + $0x50] sm:$0xf]
        %v2564 = vld [vmem:[%s302 + $0x54] sm:$0xf]
        %v2565 = vld [vmem:[%s302 + $0x58] sm:$0xf]
        %v2566 = vld [vmem:[%s302 + $0x5c] sm:$0xf]
        %v2567 = vld [vmem:[%s302 + $0x60] sm:$0xf]
        %v2568 = vld [vmem:[%s302 + $0x64] sm:$0xf]
        %v2569 = vld [vmem:[%s302 + $0x68] sm:$0xf]
        %v2570 = vld [vmem:[%s302 + $0x6c] sm:$0xf]
        %v2571 = vld [vmem:[%s302 + $0x70] sm:$0xf]
        %v2572 = vld [vmem:[%s302 + $0x74] sm:$0xf]
        %v2573 = vld [vmem:[%s302 + $0x78] sm:$0xf]
        %v2574 = vld [vmem:[%s302 + $0x7c] sm:$0xf]
        %v2575 = vld [vmem:[%s302 + $0x80] sm:$0xf]
        %v2576 = vld [vmem:[%s302 + $0x84] sm:$0xf]
        %v2577 = vld [vmem:[%s302 + $0x88] sm:$0xf]
        %v2578 = vld [vmem:[%s302 + $0x8c] sm:$0xf]
        %v2579 = vld [vmem:[%s302 + $0x90] sm:$0xf]
        %v2580 = vld [vmem:[%s302 + $0x94] sm:$0xf]
        %v2581 = vld [vmem:[%s302 + $0x98] sm:$0xf]
        %v2582 = vld [vmem:[%s302 + $0x9c] sm:$0xf]
        %v2583 = vld [vmem:[%s302 + $0xa0] sm:$0xf]
        %v2584 = vld [vmem:[%s302 + $0xa4] sm:$0xf]
        %v2585 = vld [vmem:[%s302 + $0xa8] sm:$0x3]
        %v2625 = vrot.slane %v2547, 6
        %v2626 = vrot.slane %v2625, 4
        %v2627 = vrot.slane %v2548, 6
        %v2628 = vsel %vm2279, %v2626, %v2627
        %v2629 = vrot.slane %v2627, 4
        %v2630 = vrot.slane %v2549, 6
        %v2631 = vsel %vm2279, %v2629, %v2630
        %v2632 = vrot.slane %v2630, 4
        %v2633 = vrot.slane %v2550, 6
        %v2634 = vsel %vm2279, %v2632, %v2633
        %v2635 = vrot.slane %v2633, 4
        %v2636 = vrot.slane %v2551, 6
        %v2637 = vsel %vm2279, %v2635, %v2636
        %v2638 = vrot.slane %v2636, 4
        %v2639 = vrot.slane %v2552, 6
        %v2640 = vsel %vm2279, %v2638, %v2639
        %v2641 = vrot.slane %v2639, 4
        %v2642 = vrot.slane %v2553, 6
        %v2643 = vsel %vm2279, %v2641, %v2642
        %v2644 = vrot.slane %v2642, 4
        %v2645 = vrot.slane %v2554, 6
        %v2646 = vsel %vm2279, %v2644, %v2645
        %v2647 = vrot.slane %v2645, 4
        %v2648 = vrot.slane %v2555, 6
        %v2649 = vsel %vm2279, %v2647, %v2648
        %v2650 = vrot.slane %v2648, 4
        %v2651 = vrot.slane %v2556, 6
        %v2652 = vsel %vm2279, %v2650, %v2651
        %v2653 = vrot.slane %v2651, 4
        %v2654 = vrot.slane %v2557, 6
        %v2655 = vsel %vm2279, %v2653, %v2654
        %v2656 = vrot.slane %v2654, 4
        %v2657 = vrot.slane %v2558, 6
        %v2658 = vsel %vm2279, %v2656, %v2657
        %v2659 = vrot.slane %v2657, 4
        %v2660 = vrot.slane %v2559, 6
        %v2661 = vsel %vm2279, %v2659, %v2660
        %v2662 = vrot.slane %v2660, 4
        %v2663 = vrot.slane %v2560, 6
        %v2664 = vsel %vm2279, %v2662, %v2663
        %v2665 = vrot.slane %v2663, 4
        %v2666 = vrot.slane %v2561, 6
        %v2667 = vsel %vm2279, %v2665, %v2666
        %v2668 = vrot.slane %v2666, 4
        %v2669 = vrot.slane %v2562, 6
        %v2670 = vsel %vm2279, %v2668, %v2669
        %v2671 = vrot.slane %v2669, 4
        %v2672 = vrot.slane %v2563, 6
        %v2673 = vsel %vm2279, %v2671, %v2672
        %v2674 = vrot.slane %v2672, 4
        %v2675 = vrot.slane %v2564, 6
        %v2676 = vsel %vm2279, %v2674, %v2675
        %v2677 = vrot.slane %v2675, 4
        %v2678 = vrot.slane %v2565, 6
        %v2679 = vsel %vm2279, %v2677, %v2678
        %v2680 = vrot.slane %v2678, 4
        %v2681 = vrot.slane %v2566, 6
        %v2682 = vsel %vm2279, %v2680, %v2681
        %v2683 = vrot.slane %v2681, 4
        %v2684 = vrot.slane %v2567, 6
        %v2685 = vsel %vm2279, %v2683, %v2684
        %v2686 = vrot.slane %v2684, 4
        %v2687 = vrot.slane %v2568, 6
        %v2688 = vsel %vm2279, %v2686, %v2687
        %v2689 = vrot.slane %v2687, 4
        %v2690 = vrot.slane %v2569, 6
        %v2691 = vsel %vm2279, %v2689, %v2690
        %v2692 = vrot.slane %v2690, 4
        %v2693 = vrot.slane %v2570, 6
        %v2694 = vsel %vm2279, %v2692, %v2693
        %v2695 = vrot.slane %v2693, 4
        %v2696 = vrot.slane %v2571, 6
        %v2697 = vsel %vm2279, %v2695, %v2696
        %v2698 = vrot.slane %v2696, 4
        %v2699 = vrot.slane %v2572, 6
        %v2700 = vsel %vm2279, %v2698, %v2699
        %v2701 = vrot.slane %v2699, 4
        %v2702 = vrot.slane %v2573, 6
        %v2703 = vsel %vm2279, %v2701, %v2702
        %v2704 = vrot.slane %v2702, 4
        %v2705 = vrot.slane %v2574, 6
        %v2706 = vsel %vm2279, %v2704, %v2705
        %v2707 = vrot.slane %v2705, 4
        %v2708 = vrot.slane %v2575, 6
        %v2709 = vsel %vm2279, %v2707, %v2708
        %v2710 = vrot.slane %v2708, 4
        %v2711 = vrot.slane %v2576, 6
        %v2712 = vsel %vm2279, %v2710, %v2711
        %v2713 = vrot.slane %v2711, 4
        %v2714 = vrot.slane %v2577, 6
        %v2715 = vsel %vm2279, %v2713, %v2714
        %v2716 = vrot.slane %v2714, 4
        %v2717 = vrot.slane %v2578, 6
        %v2718 = vsel %vm2279, %v2716, %v2717
        %v2719 = vrot.slane %v2717, 4
        %v2720 = vrot.slane %v2579, 6
        %v2721 = vsel %vm2279, %v2719, %v2720
        %v2722 = vrot.slane %v2720, 4
        %v2723 = vrot.slane %v2580, 6
        %v2724 = vsel %vm2279, %v2722, %v2723
        %v2725 = vrot.slane %v2723, 4
        %v2726 = vrot.slane %v2581, 6
        %v2727 = vsel %vm2279, %v2725, %v2726
        %v2728 = vrot.slane %v2726, 4
        %v2729 = vrot.slane %v2582, 6
        %v2730 = vsel %vm2279, %v2728, %v2729
        %v2731 = vrot.slane %v2729, 4
        %v2732 = vrot.slane %v2583, 6
        %v2733 = vsel %vm2279, %v2731, %v2732
        %v2734 = vrot.slane %v2732, 4
        %v2735 = vrot.slane %v2584, 6
        %v2736 = vsel %vm2279, %v2734, %v2735
        %v2737 = vrot.slane %v2735, 4
        %v2738 = vrot.slane %v2585, 6
        %v2739 = vsel %vm2279, %v2737, %v2738
        %2740 = vrot.lane.b32.xlu0 %v2628, 64
        %v2741 = vpop.permute.xlu0 %2740
        %2742 = vrot.lane.b32.xlu0 %v2631, 64
        %v2743 = vpop.permute.xlu0 %2742
        %2744 = vrot.lane.b32.xlu0 %v2634, 64
        %v2745 = vpop.permute.xlu0 %2744
        %2746 = vrot.lane.b32.xlu0 %v2637, 64
        %v2747 = vpop.permute.xlu0 %2746
        %2748 = vrot.lane.b32.xlu0 %v2640, 64
        %v2749 = vpop.permute.xlu0 %2748
        %2750 = vrot.lane.b32.xlu0 %v2643, 64
        %v2751 = vpop.permute.xlu0 %2750
        %2752 = vrot.lane.b32.xlu0 %v2646, 64
        %v2753 = vpop.permute.xlu0 %2752
        %2754 = vrot.lane.b32.xlu0 %v2649, 64
        %v2755 = vpop.permute.xlu0 %2754
        %2756 = vrot.lane.b32.xlu0 %v2652, 64
        %v2757 = vpop.permute.xlu0 %2756
        %2758 = vrot.lane.b32.xlu0 %v2655, 64
        %v2759 = vpop.permute.xlu0 %2758
        %2760 = vrot.lane.b32.xlu0 %v2658, 64
        %v2761 = vpop.permute.xlu0 %2760
        %2762 = vrot.lane.b32.xlu0 %v2661, 64
        %v2763 = vpop.permute.xlu0 %2762
        %2764 = vrot.lane.b32.xlu0 %v2664, 64
        %v2765 = vpop.permute.xlu0 %2764
        %2766 = vrot.lane.b32.xlu0 %v2667, 64
        %v2767 = vpop.permute.xlu0 %2766
        %2768 = vrot.lane.b32.xlu0 %v2670, 64
        %v2769 = vpop.permute.xlu0 %2768
        %2770 = vrot.lane.b32.xlu0 %v2673, 64
        %v2771 = vpop.permute.xlu0 %2770
        %2772 = vrot.lane.b32.xlu0 %v2676, 64
        %v2773 = vpop.permute.xlu0 %2772
        %2774 = vrot.lane.b32.xlu0 %v2679, 64
        %v2775 = vpop.permute.xlu0 %2774
        %2776 = vrot.lane.b32.xlu0 %v2682, 64
        %v2777 = vpop.permute.xlu0 %2776
        %2778 = vrot.lane.b32.xlu0 %v2685, 64
        %v2779 = vpop.permute.xlu0 %2778
        %2780 = vrot.lane.b32.xlu0 %v2688, 64
        %v2781 = vpop.permute.xlu0 %2780
        %2782 = vrot.lane.b32.xlu0 %v2691, 64
        %v2783 = vpop.permute.xlu0 %2782
        %2784 = vrot.lane.b32.xlu0 %v2694, 64
        %v2785 = vpop.permute.xlu0 %2784
        %2786 = vrot.lane.b32.xlu0 %v2697, 64
        %v2787 = vpop.permute.xlu0 %2786
        %2788 = vrot.lane.b32.xlu0 %v2700, 64
        %v2789 = vpop.permute.xlu0 %2788
        %2790 = vrot.lane.b32.xlu0 %v2703, 64
        %v2791 = vpop.permute.xlu0 %2790
        %2792 = vrot.lane.b32.xlu0 %v2706, 64
        %v2793 = vpop.permute.xlu0 %2792
        %2794 = vrot.lane.b32.xlu0 %v2709, 64
        %v2795 = vpop.permute.xlu0 %2794
        %2796 = vrot.lane.b32.xlu0 %v2712, 64
        %v2797 = vpop.permute.xlu0 %2796
        %2798 = vrot.lane.b32.xlu0 %v2715, 64
        %v2799 = vpop.permute.xlu0 %2798
        %2800 = vrot.lane.b32.xlu0 %v2718, 64
        %v2801 = vpop.permute.xlu0 %2800
        %2802 = vrot.lane.b32.xlu0 %v2721, 64
        %v2803 = vpop.permute.xlu0 %2802
        %2804 = vrot.lane.b32.xlu0 %v2724, 64
        %v2805 = vpop.permute.xlu0 %2804
        %2806 = vrot.lane.b32.xlu0 %v2727, 64
        %v2807 = vpop.permute.xlu0 %2806
        %2808 = vrot.lane.b32.xlu0 %v2730, 64
        %v2809 = vpop.permute.xlu0 %2808
        %2810 = vrot.lane.b32.xlu0 %v2733, 64
        %v2811 = vpop.permute.xlu0 %2810
        %2812 = vrot.lane.b32.xlu0 %v2736, 64
        %v2813 = vpop.permute.xlu0 %2812
        %2814 = vrot.lane.b32.xlu0 %v2739, 64
        %v2815 = vpop.permute.xlu0 %2814
        %2854 = vst.msk [vmem:[#allocation2 + $0x4] sm:$0xf] %vm1308, %v2741
        %2855 = vst.msk [vmem:[#allocation2 + $0x10] sm:$0xf] %vm1308, %v2743
        %2856 = vst.msk [vmem:[#allocation2 + $0x1c] sm:$0xf] %vm1308, %v2745
        %2857 = vst.msk [vmem:[#allocation2 + $0x28] sm:$0xf] %vm1308, %v2747
        %2858 = vst.msk [vmem:[#allocation2 + $0x34] sm:$0xf] %vm1308, %v2749
        %2859 = vst.msk [vmem:[#allocation2 + $0x40] sm:$0xf] %vm1308, %v2751
        %2860 = vst.msk [vmem:[#allocation2 + $0x4c] sm:$0xf] %vm1308, %v2753
        %2861 = vst.msk [vmem:[#allocation2 + $0x58] sm:$0xf] %vm1308, %v2755
        %2862 = vst.msk [vmem:[#allocation2 + $0x64] sm:$0xf] %vm1308, %v2757
        %2863 = vst.msk [vmem:[#allocation2 + $0x70] sm:$0xf] %vm1308, %v2759
        %2864 = vst.msk [vmem:[#allocation2 + $0x7c] sm:$0xf] %vm1308, %v2761
        %2865 = vst.msk [vmem:[#allocation2 + $0x88] sm:$0xf] %vm1308, %v2763
        %2866 = vst.msk [vmem:[#allocation2 + $0x94] sm:$0xf] %vm1308, %v2765
        %2867 = vst.msk [vmem:[#allocation2 + $0xa0] sm:$0xf] %vm1308, %v2767
        %2868 = vst.msk [vmem:[#allocation2 + $0xac] sm:$0xf] %vm1308, %v2769
        %2869 = vst.msk [vmem:[#allocation2 + $0xb8] sm:$0xf] %vm1308, %v2771
        %2870 = vst.msk [vmem:[#allocation2 + $0xc4] sm:$0xf] %vm1308, %v2773
        %2871 = vst.msk [vmem:[#allocation2 + $0xd0] sm:$0xf] %vm1308, %v2775
        %2872 = vst.msk [vmem:[#allocation2 + $0xdc] sm:$0xf] %vm1308, %v2777
        %2873 = vst.msk [vmem:[#allocation2 + $0xe8] sm:$0xf] %vm1308, %v2779
        %2874 = vst.msk [vmem:[#allocation2 + $0xf4] sm:$0xf] %vm1308, %v2781
        %2875 = vst.msk [vmem:[#allocation2 + $0x100] sm:$0xf] %vm1308, %v2783
        %2876 = vst.msk [vmem:[#allocation2 + $0x10c] sm:$0xf] %vm1308, %v2785
        %2877 = vst.msk [vmem:[#allocation2 + $0x118] sm:$0xf] %vm1308, %v2787
        %2878 = vst.msk [vmem:[#allocation2 + $0x124] sm:$0xf] %vm1308, %v2789
        %2879 = vst.msk [vmem:[#allocation2 + $0x130] sm:$0xf] %vm1308, %v2791
        %2880 = vst.msk [vmem:[#allocation2 + $0x13c] sm:$0xf] %vm1308, %v2793
        %2881 = vst.msk [vmem:[#allocation2 + $0x148] sm:$0xf] %vm1308, %v2795
        %2882 = vst.msk [vmem:[#allocation2 + $0x154] sm:$0xf] %vm1308, %v2797
        %2883 = vst.msk [vmem:[#allocation2 + $0x160] sm:$0xf] %vm1308, %v2799
        %2884 = vst.msk [vmem:[#allocation2 + $0x16c] sm:$0xf] %vm1308, %v2801
        %2885 = vst.msk [vmem:[#allocation2 + $0x178] sm:$0xf] %vm1308, %v2803
        %2886 = vst.msk [vmem:[#allocation2 + $0x184] sm:$0xf] %vm1308, %v2805
        %2887 = vst.msk [vmem:[#allocation2 + $0x190] sm:$0xf] %vm1308, %v2807
        %2888 = vst.msk [vmem:[#allocation2 + $0x19c] sm:$0xf] %vm1308, %v2809
        %2889 = vst.msk [vmem:[#allocation2 + $0x1a8] sm:$0xf] %vm1308, %v2811
        %2890 = vst.msk [vmem:[#allocation2 + $0x1b4] sm:$0xf] %vm1308, %v2813
        %2891 = vst.msk [vmem:[#allocation2 + $0x1c0] sm:$0xf] %vm1308, %v2815
        %v2892 = vld [vmem:[%s302 + $0x10] sm:$0xc]
        %v2893 = vld [vmem:[%s302 + $0x14] sm:$0xf]
        %v2894 = vld [vmem:[%s302 + $0x18] sm:$0xf]
        %v2895 = vld [vmem:[%s302 + $0x1c] sm:$0xf]
        %v2896 = vld [vmem:[%s302 + $0x20] sm:$0xf]
        %v2897 = vld [vmem:[%s302 + $0x24] sm:$0xf]
        %v2898 = vld [vmem:[%s302 + $0x28] sm:$0xf]
        %v2899 = vld [vmem:[%s302 + $0x2c] sm:$0xf]
        %v2900 = vld [vmem:[%s302 + $0x30] sm:$0xf]
        %v2901 = vld [vmem:[%s302 + $0x34] sm:$0xf]
        %v2902 = vld [vmem:[%s302 + $0x38] sm:$0xf]
        %v2903 = vld [vmem:[%s302 + $0x3c] sm:$0xf]
        %v2904 = vld [vmem:[%s302 + $0x40] sm:$0xf]
        %v2905 = vld [vmem:[%s302 + $0x44] sm:$0xf]
        %v2906 = vld [vmem:[%s302 + $0x48] sm:$0xf]
        %v2907 = vld [vmem:[%s302 + $0x4c] sm:$0xf]
        %v2908 = vld [vmem:[%s302 + $0x50] sm:$0xf]
        %v2909 = vld [vmem:[%s302 + $0x54] sm:$0xf]
        %v2910 = vld [vmem:[%s302 + $0x58] sm:$0xf]
        %v2911 = vld [vmem:[%s302 + $0x5c] sm:$0xf]
        %v2912 = vld [vmem:[%s302 + $0x60] sm:$0xf]
        %v2913 = vld [vmem:[%s302 + $0x64] sm:$0xf]
        %v2914 = vld [vmem:[%s302 + $0x68] sm:$0xf]
        %v2915 = vld [vmem:[%s302 + $0x6c] sm:$0xf]
        %v2916 = vld [vmem:[%s302 + $0x70] sm:$0xf]
        %v2917 = vld [vmem:[%s302 + $0x74] sm:$0xf]
        %v2918 = vld [vmem:[%s302 + $0x78] sm:$0xf]
        %v2919 = vld [vmem:[%s302 + $0x7c] sm:$0xf]
        %v2920 = vld [vmem:[%s302 + $0x80] sm:$0xf]
        %v2921 = vld [vmem:[%s302 + $0x84] sm:$0xf]
        %v2922 = vld [vmem:[%s302 + $0x88] sm:$0xf]
        %v2923 = vld [vmem:[%s302 + $0x8c] sm:$0xf]
        %v2924 = vld [vmem:[%s302 + $0x90] sm:$0xf]
        %v2925 = vld [vmem:[%s302 + $0x94] sm:$0xf]
        %v2926 = vld [vmem:[%s302 + $0x98] sm:$0xf]
        %v2927 = vld [vmem:[%s302 + $0x9c] sm:$0xf]
        %v2928 = vld [vmem:[%s302 + $0xa0] sm:$0xf]
        %v2929 = vld [vmem:[%s302 + $0xa4] sm:$0xf]
        %v2930 = vld [vmem:[%s302 + $0xa8] sm:$0x7]
        %vm2931 = vsmask.f32 1280
        %vm2932 = vsmask.f32 5392
        %vm2933 = vmor %vm2931, %vm2932
        %v2935 = vshrl.u32 %v2892, 16
        %v2937 = vrot.slane %v2935, 6
        %v2938 = vshll.u32 %v2892, 16
        %v2940 = vrot.slane %v2938, 7
        %v2941 = vor.u32 %v2937, %v2940
        %v2942 = vrot.slane %v2941, 4
        %v2944 = vshrl.u32 %v2893, 16
        %v2946 = vrot.slane %v2944, 6
        %v2947 = vshll.u32 %v2893, 16
        %v2949 = vrot.slane %v2947, 7
        %v2950 = vor.u32 %v2946, %v2949
        %v2951 = vsel %vm2933, %v2942, %v2950
        %v2952 = vrot.slane %v2950, 4
        %v2954 = vshrl.u32 %v2894, 16
        %v2956 = vrot.slane %v2954, 6
        %v2957 = vshll.u32 %v2894, 16
        %v2959 = vrot.slane %v2957, 7
        %v2960 = vor.u32 %v2956, %v2959
        %v2961 = vsel %vm2933, %v2952, %v2960
        %v2962 = vrot.slane %v2960, 4
        %v2964 = vshrl.u32 %v2895, 16
        %v2966 = vrot.slane %v2964, 6
        %v2967 = vshll.u32 %v2895, 16
        %v2969 = vrot.slane %v2967, 7
        %v2970 = vor.u32 %v2966, %v2969
        %v2971 = vsel %vm2933, %v2962, %v2970
        %v2972 = vrot.slane %v2970, 4
        %v2974 = vshrl.u32 %v2896, 16
        %v2976 = vrot.slane %v2974, 6
        %v2977 = vshll.u32 %v2896, 16
        %v2979 = vrot.slane %v2977, 7
        %v2980 = vor.u32 %v2976, %v2979
        %v2981 = vsel %vm2933, %v2972, %v2980
        %v2982 = vrot.slane %v2980, 4
        %v2984 = vshrl.u32 %v2897, 16
        %v2986 = vrot.slane %v2984, 6
        %v2987 = vshll.u32 %v2897, 16
        %v2989 = vrot.slane %v2987, 7
        %v2990 = vor.u32 %v2986, %v2989
        %v2991 = vsel %vm2933, %v2982, %v2990
        %v2992 = vrot.slane %v2990, 4
        %v2994 = vshrl.u32 %v2898, 16
        %v2996 = vrot.slane %v2994, 6
        %v2997 = vshll.u32 %v2898, 16
        %v2999 = vrot.slane %v2997, 7
        %v3000 = vor.u32 %v2996, %v2999
        %v3001 = vsel %vm2933, %v2992, %v3000
        %v3002 = vrot.slane %v3000, 4
        %v3004 = vshrl.u32 %v2899, 16
        %v3006 = vrot.slane %v3004, 6
        %v3007 = vshll.u32 %v2899, 16
        %v3009 = vrot.slane %v3007, 7
        %v3010 = vor.u32 %v3006, %v3009
        %v3011 = vsel %vm2933, %v3002, %v3010
        %v3012 = vrot.slane %v3010, 4
        %v3014 = vshrl.u32 %v2900, 16
        %v3016 = vrot.slane %v3014, 6
        %v3017 = vshll.u32 %v2900, 16
        %v3019 = vrot.slane %v3017, 7
        %v3020 = vor.u32 %v3016, %v3019
        %v3021 = vsel %vm2933, %v3012, %v3020
        %v3022 = vrot.slane %v3020, 4
        %v3024 = vshrl.u32 %v2901, 16
        %v3026 = vrot.slane %v3024, 6
        %v3027 = vshll.u32 %v2901, 16
        %v3029 = vrot.slane %v3027, 7
        %v3030 = vor.u32 %v3026, %v3029
        %v3031 = vsel %vm2933, %v3022, %v3030
        %v3032 = vrot.slane %v3030, 4
        %v3034 = vshrl.u32 %v2902, 16
        %v3036 = vrot.slane %v3034, 6
        %v3037 = vshll.u32 %v2902, 16
        %v3039 = vrot.slane %v3037, 7
        %v3040 = vor.u32 %v3036, %v3039
        %v3041 = vsel %vm2933, %v3032, %v3040
        %v3042 = vrot.slane %v3040, 4
        %v3044 = vshrl.u32 %v2903, 16
        %v3046 = vrot.slane %v3044, 6
        %v3047 = vshll.u32 %v2903, 16
        %v3049 = vrot.slane %v3047, 7
        %v3050 = vor.u32 %v3046, %v3049
        %v3051 = vsel %vm2933, %v3042, %v3050
        %v3052 = vrot.slane %v3050, 4
        %v3054 = vshrl.u32 %v2904, 16
        %v3056 = vrot.slane %v3054, 6
        %v3057 = vshll.u32 %v2904, 16
        %v3059 = vrot.slane %v3057, 7
        %v3060 = vor.u32 %v3056, %v3059
        %v3061 = vsel %vm2933, %v3052, %v3060
        %v3062 = vrot.slane %v3060, 4
        %v3064 = vshrl.u32 %v2905, 16
        %v3066 = vrot.slane %v3064, 6
        %v3067 = vshll.u32 %v2905, 16
        %v3069 = vrot.slane %v3067, 7
        %v3070 = vor.u32 %v3066, %v3069
        %v3071 = vsel %vm2933, %v3062, %v3070
        %v3072 = vrot.slane %v3070, 4
        %v3074 = vshrl.u32 %v2906, 16
        %v3076 = vrot.slane %v3074, 6
        %v3077 = vshll.u32 %v2906, 16
        %v3079 = vrot.slane %v3077, 7
        %v3080 = vor.u32 %v3076, %v3079
        %v3081 = vsel %vm2933, %v3072, %v3080
        %v3082 = vrot.slane %v3080, 4
        %v3084 = vshrl.u32 %v2907, 16
        %v3086 = vrot.slane %v3084, 6
        %v3087 = vshll.u32 %v2907, 16
        %v3089 = vrot.slane %v3087, 7
        %v3090 = vor.u32 %v3086, %v3089
        %v3091 = vsel %vm2933, %v3082, %v3090
        %v3092 = vrot.slane %v3090, 4
        %v3094 = vshrl.u32 %v2908, 16
        %v3096 = vrot.slane %v3094, 6
        %v3097 = vshll.u32 %v2908, 16
        %v3099 = vrot.slane %v3097, 7
        %v3100 = vor.u32 %v3096, %v3099
        %v3101 = vsel %vm2933, %v3092, %v3100
        %v3102 = vrot.slane %v3100, 4
        %v3104 = vshrl.u32 %v2909, 16
        %v3106 = vrot.slane %v3104, 6
        %v3107 = vshll.u32 %v2909, 16
        %v3109 = vrot.slane %v3107, 7
        %v3110 = vor.u32 %v3106, %v3109
        %v3111 = vsel %vm2933, %v3102, %v3110
        %v3112 = vrot.slane %v3110, 4
        %v3114 = vshrl.u32 %v2910, 16
        %v3116 = vrot.slane %v3114, 6
        %v3117 = vshll.u32 %v2910, 16
        %v3119 = vrot.slane %v3117, 7
        %v3120 = vor.u32 %v3116, %v3119
        %v3121 = vsel %vm2933, %v3112, %v3120
        %v3122 = vrot.slane %v3120, 4
        %v3124 = vshrl.u32 %v2911, 16
        %v3126 = vrot.slane %v3124, 6
        %v3127 = vshll.u32 %v2911, 16
        %v3129 = vrot.slane %v3127, 7
        %v3130 = vor.u32 %v3126, %v3129
        %v3131 = vsel %vm2933, %v3122, %v3130
        %v3132 = vrot.slane %v3130, 4
        %v3134 = vshrl.u32 %v2912, 16
        %v3136 = vrot.slane %v3134, 6
        %v3137 = vshll.u32 %v2912, 16
        %v3139 = vrot.slane %v3137, 7
        %v3140 = vor.u32 %v3136, %v3139
        %v3141 = vsel %vm2933, %v3132, %v3140
        %v3142 = vrot.slane %v3140, 4
        %v3144 = vshrl.u32 %v2913, 16
        %v3146 = vrot.slane %v3144, 6
        %v3147 = vshll.u32 %v2913, 16
        %v3149 = vrot.slane %v3147, 7
        %v3150 = vor.u32 %v3146, %v3149
        %v3151 = vsel %vm2933, %v3142, %v3150
        %v3152 = vrot.slane %v3150, 4
        %v3154 = vshrl.u32 %v2914, 16
        %v3156 = vrot.slane %v3154, 6
        %v3157 = vshll.u32 %v2914, 16
        %v3159 = vrot.slane %v3157, 7
        %v3160 = vor.u32 %v3156, %v3159
        %v3161 = vsel %vm2933, %v3152, %v3160
        %v3162 = vrot.slane %v3160, 4
        %v3164 = vshrl.u32 %v2915, 16
        %v3166 = vrot.slane %v3164, 6
        %v3167 = vshll.u32 %v2915, 16
        %v3169 = vrot.slane %v3167, 7
        %v3170 = vor.u32 %v3166, %v3169
        %v3171 = vsel %vm2933, %v3162, %v3170
        %v3172 = vrot.slane %v3170, 4
        %v3174 = vshrl.u32 %v2916, 16
        %v3176 = vrot.slane %v3174, 6
        %v3177 = vshll.u32 %v2916, 16
        %v3179 = vrot.slane %v3177, 7
        %v3180 = vor.u32 %v3176, %v3179
        %v3181 = vsel %vm2933, %v3172, %v3180
        %v3182 = vrot.slane %v3180, 4
        %v3184 = vshrl.u32 %v2917, 16
        %v3186 = vrot.slane %v3184, 6
        %v3187 = vshll.u32 %v2917, 16
        %v3189 = vrot.slane %v3187, 7
        %v3190 = vor.u32 %v3186, %v3189
        %v3191 = vsel %vm2933, %v3182, %v3190
        %v3192 = vrot.slane %v3190, 4
        %v3194 = vshrl.u32 %v2918, 16
        %v3196 = vrot.slane %v3194, 6
        %v3197 = vshll.u32 %v2918, 16
        %v3199 = vrot.slane %v3197, 7
        %v3200 = vor.u32 %v3196, %v3199
        %v3201 = vsel %vm2933, %v3192, %v3200
        %v3202 = vrot.slane %v3200, 4
        %v3204 = vshrl.u32 %v2919, 16
        %v3206 = vrot.slane %v3204, 6
        %v3207 = vshll.u32 %v2919, 16
        %v3209 = vrot.slane %v3207, 7
        %v3210 = vor.u32 %v3206, %v3209
        %v3211 = vsel %vm2933, %v3202, %v3210
        %v3212 = vrot.slane %v3210, 4
        %v3214 = vshrl.u32 %v2920, 16
        %v3216 = vrot.slane %v3214, 6
        %v3217 = vshll.u32 %v2920, 16
        %v3219 = vrot.slane %v3217, 7
        %v3220 = vor.u32 %v3216, %v3219
        %v3221 = vsel %vm2933, %v3212, %v3220
        %v3222 = vrot.slane %v3220, 4
        %v3224 = vshrl.u32 %v2921, 16
        %v3226 = vrot.slane %v3224, 6
        %v3227 = vshll.u32 %v2921, 16
        %v3229 = vrot.slane %v3227, 7
        %v3230 = vor.u32 %v3226, %v3229
        %v3231 = vsel %vm2933, %v3222, %v3230
        %v3232 = vrot.slane %v3230, 4
        %v3234 = vshrl.u32 %v2922, 16
        %v3236 = vrot.slane %v3234, 6
        %v3237 = vshll.u32 %v2922, 16
        %v3239 = vrot.slane %v3237, 7
        %v3240 = vor.u32 %v3236, %v3239
        %v3241 = vsel %vm2933, %v3232, %v3240
        %v3242 = vrot.slane %v3240, 4
        %v3244 = vshrl.u32 %v2923, 16
        %v3246 = vrot.slane %v3244, 6
        %v3247 = vshll.u32 %v2923, 16
        %v3249 = vrot.slane %v3247, 7
        %v3250 = vor.u32 %v3246, %v3249
        %v3251 = vsel %vm2933, %v3242, %v3250
        %v3252 = vrot.slane %v3250, 4
        %v3254 = vshrl.u32 %v2924, 16
        %v3256 = vrot.slane %v3254, 6
        %v3257 = vshll.u32 %v2924, 16
        %v3259 = vrot.slane %v3257, 7
        %v3260 = vor.u32 %v3256, %v3259
        %v3261 = vsel %vm2933, %v3252, %v3260
        %v3262 = vrot.slane %v3260, 4
        %v3264 = vshrl.u32 %v2925, 16
        %v3266 = vrot.slane %v3264, 6
        %v3267 = vshll.u32 %v2925, 16
        %v3269 = vrot.slane %v3267, 7
        %v3270 = vor.u32 %v3266, %v3269
        %v3271 = vsel %vm2933, %v3262, %v3270
        %v3272 = vrot.slane %v3270, 4
        %v3274 = vshrl.u32 %v2926, 16
        %v3276 = vrot.slane %v3274, 6
        %v3277 = vshll.u32 %v2926, 16
        %v3279 = vrot.slane %v3277, 7
        %v3280 = vor.u32 %v3276, %v3279
        %v3281 = vsel %vm2933, %v3272, %v3280
        %v3282 = vrot.slane %v3280, 4
        %v3284 = vshrl.u32 %v2927, 16
        %v3286 = vrot.slane %v3284, 6
        %v3287 = vshll.u32 %v2927, 16
        %v3289 = vrot.slane %v3287, 7
        %v3290 = vor.u32 %v3286, %v3289
        %v3291 = vsel %vm2933, %v3282, %v3290
        %v3292 = vrot.slane %v3290, 4
        %v3294 = vshrl.u32 %v2928, 16
        %v3296 = vrot.slane %v3294, 6
        %v3297 = vshll.u32 %v2928, 16
        %v3299 = vrot.slane %v3297, 7
        %v3300 = vor.u32 %v3296, %v3299
        %v3301 = vsel %vm2933, %v3292, %v3300
        %v3302 = vrot.slane %v3300, 4
        %v3304 = vshrl.u32 %v2929, 16
        %v3306 = vrot.slane %v3304, 6
        %v3307 = vshll.u32 %v2929, 16
        %v3309 = vrot.slane %v3307, 7
        %v3310 = vor.u32 %v3306, %v3309
        %v3311 = vsel %vm2933, %v3302, %v3310
        %v3312 = vrot.slane %v3310, 4
        %v3314 = vshrl.u32 %v2930, 16
        %v3316 = vrot.slane %v3314, 6
        %v3317 = vshll.u32 %v2930, 16
        %v3319 = vrot.slane %v3317, 7
        %v3320 = vor.u32 %v3316, %v3319
        %v3321 = vsel %vm2933, %v3312, %v3320
        %3322 = vrot.lane.b32.xlu0 %v2951, 96
        %v3323 = vpop.permute.xlu0 %3322
        %3324 = vrot.lane.b32.xlu0 %v2961, 96
        %v3325 = vpop.permute.xlu0 %3324
        %3326 = vrot.lane.b32.xlu0 %v2971, 96
        %v3327 = vpop.permute.xlu0 %3326
        %3328 = vrot.lane.b32.xlu0 %v2981, 96
        %v3329 = vpop.permute.xlu0 %3328
        %3330 = vrot.lane.b32.xlu0 %v2991, 96
        %v3331 = vpop.permute.xlu0 %3330
        %3332 = vrot.lane.b32.xlu0 %v3001, 96
        %v3333 = vpop.permute.xlu0 %3332
        %3334 = vrot.lane.b32.xlu0 %v3011, 96
        %v3335 = vpop.permute.xlu0 %3334
        %3336 = vrot.lane.b32.xlu0 %v3021, 96
        %v3337 = vpop.permute.xlu0 %3336
        %3338 = vrot.lane.b32.xlu0 %v3031, 96
        %v3339 = vpop.permute.xlu0 %3338
        %3340 = vrot.lane.b32.xlu0 %v3041, 96
        %v3341 = vpop.permute.xlu0 %3340
        %3342 = vrot.lane.b32.xlu0 %v3051, 96
        %v3343 = vpop.permute.xlu0 %3342
        %3344 = vrot.lane.b32.xlu0 %v3061, 96
        %v3345 = vpop.permute.xlu0 %3344
        %3346 = vrot.lane.b32.xlu0 %v3071, 96
        %v3347 = vpop.permute.xlu0 %3346
        %3348 = vrot.lane.b32.xlu0 %v3081, 96
        %v3349 = vpop.permute.xlu0 %3348
        %3350 = vrot.lane.b32.xlu0 %v3091, 96
        %v3351 = vpop.permute.xlu0 %3350
        %3352 = vrot.lane.b32.xlu0 %v3101, 96
        %v3353 = vpop.permute.xlu0 %3352
        %3354 = vrot.lane.b32.xlu0 %v3111, 96
        %v3355 = vpop.permute.xlu0 %3354
        %3356 = vrot.lane.b32.xlu0 %v3121, 96
        %v3357 = vpop.permute.xlu0 %3356
        %3358 = vrot.lane.b32.xlu0 %v3131, 96
        %v3359 = vpop.permute.xlu0 %3358
        %3360 = vrot.lane.b32.xlu0 %v3141, 96
        %v3361 = vpop.permute.xlu0 %3360
        %3362 = vrot.lane.b32.xlu0 %v3151, 96
        %v3363 = vpop.permute.xlu0 %3362
        %3364 = vrot.lane.b32.xlu0 %v3161, 96
        %v3365 = vpop.permute.xlu0 %3364
        %3366 = vrot.lane.b32.xlu0 %v3171, 96
        %v3367 = vpop.permute.xlu0 %3366
        %3368 = vrot.lane.b32.xlu0 %v3181, 96
        %v3369 = vpop.permute.xlu0 %3368
        %3370 = vrot.lane.b32.xlu0 %v3191, 96
        %v3371 = vpop.permute.xlu0 %3370
        %3372 = vrot.lane.b32.xlu0 %v3201, 96
        %v3373 = vpop.permute.xlu0 %3372
        %3374 = vrot.lane.b32.xlu0 %v3211, 96
        %v3375 = vpop.permute.xlu0 %3374
        %3376 = vrot.lane.b32.xlu0 %v3221, 96
        %v3377 = vpop.permute.xlu0 %3376
        %3378 = vrot.lane.b32.xlu0 %v3231, 96
        %v3379 = vpop.permute.xlu0 %3378
        %3380 = vrot.lane.b32.xlu0 %v3241, 96
        %v3381 = vpop.permute.xlu0 %3380
        %3382 = vrot.lane.b32.xlu0 %v3251, 96
        %v3383 = vpop.permute.xlu0 %3382
        %3384 = vrot.lane.b32.xlu0 %v3261, 96
        %v3385 = vpop.permute.xlu0 %3384
        %3386 = vrot.lane.b32.xlu0 %v3271, 96
        %v3387 = vpop.permute.xlu0 %3386
        %3388 = vrot.lane.b32.xlu0 %v3281, 96
        %v3389 = vpop.permute.xlu0 %3388
        %3390 = vrot.lane.b32.xlu0 %v3291, 96
        %v3391 = vpop.permute.xlu0 %3390
        %3392 = vrot.lane.b32.xlu0 %v3301, 96
        %v3393 = vpop.permute.xlu0 %3392
        %3394 = vrot.lane.b32.xlu0 %v3311, 96
        %v3395 = vpop.permute.xlu0 %3394
        %3396 = vrot.lane.b32.xlu0 %v3321, 96
        %v3397 = vpop.permute.xlu0 %3396
        %3436 = vst.msk [vmem:[#allocation2 + $0x4] sm:$0xf] %vm1654, %v3323
        %3437 = vst.msk [vmem:[#allocation2 + $0x10] sm:$0xf] %vm1654, %v3325
        %3438 = vst.msk [vmem:[#allocation2 + $0x1c] sm:$0xf] %vm1654, %v3327
        %3439 = vst.msk [vmem:[#allocation2 + $0x28] sm:$0xf] %vm1654, %v3329
        %3440 = vst.msk [vmem:[#allocation2 + $0x34] sm:$0xf] %vm1654, %v3331
        %3441 = vst.msk [vmem:[#allocation2 + $0x40] sm:$0xf] %vm1654, %v3333
        %3442 = vst.msk [vmem:[#allocation2 + $0x4c] sm:$0xf] %vm1654, %v3335
        %3443 = vst.msk [vmem:[#allocation2 + $0x58] sm:$0xf] %vm1654, %v3337
        %3444 = vst.msk [vmem:[#allocation2 + $0x64] sm:$0xf] %vm1654, %v3339
        %3445 = vst.msk [vmem:[#allocation2 + $0x70] sm:$0xf] %vm1654, %v3341
        %3446 = vst.msk [vmem:[#allocation2 + $0x7c] sm:$0xf] %vm1654, %v3343
        %3447 = vst.msk [vmem:[#allocation2 + $0x88] sm:$0xf] %vm1654, %v3345
        %3448 = vst.msk [vmem:[#allocation2 + $0x94] sm:$0xf] %vm1654, %v3347
        %3449 = vst.msk [vmem:[#allocation2 + $0xa0] sm:$0xf] %vm1654, %v3349
        %3450 = vst.msk [vmem:[#allocation2 + $0xac] sm:$0xf] %vm1654, %v3351
        %3451 = vst.msk [vmem:[#allocation2 + $0xb8] sm:$0xf] %vm1654, %v3353
        %3452 = vst.msk [vmem:[#allocation2 + $0xc4] sm:$0xf] %vm1654, %v3355
        %3453 = vst.msk [vmem:[#allocation2 + $0xd0] sm:$0xf] %vm1654, %v3357
        %3454 = vst.msk [vmem:[#allocation2 + $0xdc] sm:$0xf] %vm1654, %v3359
        %3455 = vst.msk [vmem:[#allocation2 + $0xe8] sm:$0xf] %vm1654, %v3361
        %3456 = vst.msk [vmem:[#allocation2 + $0xf4] sm:$0xf] %vm1654, %v3363
        %3457 = vst.msk [vmem:[#allocation2 + $0x100] sm:$0xf] %vm1654, %v3365
        %3458 = vst.msk [vmem:[#allocation2 + $0x10c] sm:$0xf] %vm1654, %v3367
        %3459 = vst.msk [vmem:[#allocation2 + $0x118] sm:$0xf] %vm1654, %v3369
        %3460 = vst.msk [vmem:[#allocation2 + $0x124] sm:$0xf] %vm1654, %v3371
        %3461 = vst.msk [vmem:[#allocation2 + $0x130] sm:$0xf] %vm1654, %v3373
        %3462 = vst.msk [vmem:[#allocation2 + $0x13c] sm:$0xf] %vm1654, %v3375
        %3463 = vst.msk [vmem:[#allocation2 + $0x148] sm:$0xf] %vm1654, %v3377
        %3464 = vst.msk [vmem:[#allocation2 + $0x154] sm:$0xf] %vm1654, %v3379
        %3465 = vst.msk [vmem:[#allocation2 + $0x160] sm:$0xf] %vm1654, %v3381
        %3466 = vst.msk [vmem:[#allocation2 + $0x16c] sm:$0xf] %vm1654, %v3383
        %3467 = vst.msk [vmem:[#allocation2 + $0x178] sm:$0xf] %vm1654, %v3385
        %3468 = vst.msk [vmem:[#allocation2 + $0x184] sm:$0xf] %vm1654, %v3387
        %3469 = vst.msk [vmem:[#allocation2 + $0x190] sm:$0xf] %vm1654, %v3389
        %3470 = vst.msk [vmem:[#allocation2 + $0x19c] sm:$0xf] %vm1654, %v3391
        %3471 = vst.msk [vmem:[#allocation2 + $0x1a8] sm:$0xf] %vm1654, %v3393
        %3472 = vst.msk [vmem:[#allocation2 + $0x1b4] sm:$0xf] %vm1654, %v3395
        %3473 = vst.msk [vmem:[#allocation2 + $0x1c0] sm:$0xf] %vm1654, %v3397
        %v3474 = vld [vmem:[%s302 + $0x10] sm:$0x8]
        %v3475 = vld [vmem:[%s302 + $0x14] sm:$0xf]
        %v3476 = vld [vmem:[%s302 + $0x18] sm:$0xf]
        %v3477 = vld [vmem:[%s302 + $0x1c] sm:$0xf]
        %v3478 = vld [vmem:[%s302 + $0x20] sm:$0xf]
        %v3479 = vld [vmem:[%s302 + $0x24] sm:$0xf]
        %v3480 = vld [vmem:[%s302 + $0x28] sm:$0xf]
        %v3481 = vld [vmem:[%s302 + $0x2c] sm:$0xf]
        %v3482 = vld [vmem:[%s302 + $0x30] sm:$0xf]
        %v3483 = vld [vmem:[%s302 + $0x34] sm:$0xf]
        %v3484 = vld [vmem:[%s302 + $0x38] sm:$0xf]
        %v3485 = vld [vmem:[%s302 + $0x3c] sm:$0xf]
        %v3486 = vld [vmem:[%s302 + $0x40] sm:$0xf]
        %v3487 = vld [vmem:[%s302 + $0x44] sm:$0xf]
        %v3488 = vld [vmem:[%s302 + $0x48] sm:$0xf]
        %v3489 = vld [vmem:[%s302 + $0x4c] sm:$0xf]
        %v3490 = vld [vmem:[%s302 + $0x50] sm:$0xf]
        %v3491 = vld [vmem:[%s302 + $0x54] sm:$0xf]
        %v3492 = vld [vmem:[%s302 + $0x58] sm:$0xf]
        %v3493 = vld [vmem:[%s302 + $0x5c] sm:$0xf]
        %v3494 = vld [vmem:[%s302 + $0x60] sm:$0xf]
        %v3495 = vld [vmem:[%s302 + $0x64] sm:$0xf]
        %v3496 = vld [vmem:[%s302 + $0x68] sm:$0xf]
        %v3497 = vld [vmem:[%s302 + $0x6c] sm:$0xf]
        %v3498 = vld [vmem:[%s302 + $0x70] sm:$0xf]
        %v3499 = vld [vmem:[%s302 + $0x74] sm:$0xf]
        %v3500 = vld [vmem:[%s302 + $0x78] sm:$0xf]
        %v3501 = vld [vmem:[%s302 + $0x7c] sm:$0xf]
        %v3502 = vld [vmem:[%s302 + $0x80] sm:$0xf]
        %v3503 = vld [vmem:[%s302 + $0x84] sm:$0xf]
        %v3504 = vld [vmem:[%s302 + $0x88] sm:$0xf]
        %v3505 = vld [vmem:[%s302 + $0x8c] sm:$0xf]
        %v3506 = vld [vmem:[%s302 + $0x90] sm:$0xf]
        %v3507 = vld [vmem:[%s302 + $0x94] sm:$0xf]
        %v3508 = vld [vmem:[%s302 + $0x98] sm:$0xf]
        %v3509 = vld [vmem:[%s302 + $0x9c] sm:$0xf]
        %v3510 = vld [vmem:[%s302 + $0xa0] sm:$0xf]
        %v3511 = vld [vmem:[%s302 + $0xa4] sm:$0xf]
        %v3512 = vld [vmem:[%s302 + $0xa8] sm:$0x7]
        %vm3552 = vcmask 1040384
        %vm3553 = vcmask 1044484
        %vm3554 = vmor %vm3552, %vm3553
        %v3555 = vrot.slane %v3474, 7
        %v3556 = vrot.slane %v3555, 4
        %v3557 = vrot.slane %v3475, 7
        %v3558 = vsel %vm3554, %v3556, %v3557
        %v3559 = vrot.slane %v3557, 4
        %v3560 = vrot.slane %v3476, 7
        %v3561 = vsel %vm3554, %v3559, %v3560
        %v3562 = vrot.slane %v3560, 4
        %v3563 = vrot.slane %v3477, 7
        %v3564 = vsel %vm3554, %v3562, %v3563
        %v3565 = vrot.slane %v3563, 4
        %v3566 = vrot.slane %v3478, 7
        %v3567 = vsel %vm3554, %v3565, %v3566
        %v3568 = vrot.slane %v3566, 4
        %v3569 = vrot.slane %v3479, 7
        %v3570 = vsel %vm3554, %v3568, %v3569
        %v3571 = vrot.slane %v3569, 4
        %v3572 = vrot.slane %v3480, 7
        %v3573 = vsel %vm3554, %v3571, %v3572
        %v3574 = vrot.slane %v3572, 4
        %v3575 = vrot.slane %v3481, 7
        %v3576 = vsel %vm3554, %v3574, %v3575
        %v3577 = vrot.slane %v3575, 4
        %v3578 = vrot.slane %v3482, 7
        %v3579 = vsel %vm3554, %v3577, %v3578
        %v3580 = vrot.slane %v3578, 4
        %v3581 = vrot.slane %v3483, 7
        %v3582 = vsel %vm3554, %v3580, %v3581
        %v3583 = vrot.slane %v3581, 4
        %v3584 = vrot.slane %v3484, 7
        %v3585 = vsel %vm3554, %v3583, %v3584
        %v3586 = vrot.slane %v3584, 4
        %v3587 = vrot.slane %v3485, 7
        %v3588 = vsel %vm3554, %v3586, %v3587
        %v3589 = vrot.slane %v3587, 4
        %v3590 = vrot.slane %v3486, 7
        %v3591 = vsel %vm3554, %v3589, %v3590
        %v3592 = vrot.slane %v3590, 4
        %v3593 = vrot.slane %v3487, 7
        %v3594 = vsel %vm3554, %v3592, %v3593
        %v3595 = vrot.slane %v3593, 4
        %v3596 = vrot.slane %v3488, 7
        %v3597 = vsel %vm3554, %v3595, %v3596
        %v3598 = vrot.slane %v3596, 4
        %v3599 = vrot.slane %v3489, 7
        %v3600 = vsel %vm3554, %v3598, %v3599
        %v3601 = vrot.slane %v3599, 4
        %v3602 = vrot.slane %v3490, 7
        %v3603 = vsel %vm3554, %v3601, %v3602
        %v3604 = vrot.slane %v3602, 4
        %v3605 = vrot.slane %v3491, 7
        %v3606 = vsel %vm3554, %v3604, %v3605
        %v3607 = vrot.slane %v3605, 4
        %v3608 = vrot.slane %v3492, 7
        %v3609 = vsel %vm3554, %v3607, %v3608
        %v3610 = vrot.slane %v3608, 4
        %v3611 = vrot.slane %v3493, 7
        %v3612 = vsel %vm3554, %v3610, %v3611
        %v3613 = vrot.slane %v3611, 4
        %v3614 = vrot.slane %v3494, 7
        %v3615 = vsel %vm3554, %v3613, %v3614
        %v3616 = vrot.slane %v3614, 4
        %v3617 = vrot.slane %v3495, 7
        %v3618 = vsel %vm3554, %v3616, %v3617
        %v3619 = vrot.slane %v3617, 4
        %v3620 = vrot.slane %v3496, 7
        %v3621 = vsel %vm3554, %v3619, %v3620
        %v3622 = vrot.slane %v3620, 4
        %v3623 = vrot.slane %v3497, 7
        %v3624 = vsel %vm3554, %v3622, %v3623
        %v3625 = vrot.slane %v3623, 4
        %v3626 = vrot.slane %v3498, 7
        %v3627 = vsel %vm3554, %v3625, %v3626
        %v3628 = vrot.slane %v3626, 4
        %v3629 = vrot.slane %v3499, 7
        %v3630 = vsel %vm3554, %v3628, %v3629
        %v3631 = vrot.slane %v3629, 4
        %v3632 = vrot.slane %v3500, 7
        %v3633 = vsel %vm3554, %v3631, %v3632
        %v3634 = vrot.slane %v3632, 4
        %v3635 = vrot.slane %v3501, 7
        %v3636 = vsel %vm3554, %v3634, %v3635
        %v3637 = vrot.slane %v3635, 4
        %v3638 = vrot.slane %v3502, 7
        %v3639 = vsel %vm3554, %v3637, %v3638
        %v3640 = vrot.slane %v3638, 4
        %v3641 = vrot.slane %v3503, 7
        %v3642 = vsel %vm3554, %v3640, %v3641
        %v3643 = vrot.slane %v3641, 4
        %v3644 = vrot.slane %v3504, 7
        %v3645 = vsel %vm3554, %v3643, %v3644
        %v3646 = vrot.slane %v3644, 4
        %v3647 = vrot.slane %v3505, 7
        %v3648 = vsel %vm3554, %v3646, %v3647
        %v3649 = vrot.slane %v3647, 4
        %v3650 = vrot.slane %v3506, 7
        %v3651 = vsel %vm3554, %v3649, %v3650
        %v3652 = vrot.slane %v3650, 4
        %v3653 = vrot.slane %v3507, 7
        %v3654 = vsel %vm3554, %v3652, %v3653
        %v3655 = vrot.slane %v3653, 4
        %v3656 = vrot.slane %v3508, 7
        %v3657 = vsel %vm3554, %v3655, %v3656
        %v3658 = vrot.slane %v3656, 4
        %v3659 = vrot.slane %v3509, 7
        %v3660 = vsel %vm3554, %v3658, %v3659
        %v3661 = vrot.slane %v3659, 4
        %v3662 = vrot.slane %v3510, 7
        %v3663 = vsel %vm3554, %v3661, %v3662
        %v3664 = vrot.slane %v3662, 4
        %v3665 = vrot.slane %v3511, 7
        %v3666 = vsel %vm3554, %v3664, %v3665
        %v3667 = vrot.slane %v3665, 4
        %v3668 = vrot.slane %v3512, 7
        %v3669 = vsel %vm3554, %v3667, %v3668
        %3708 = vst.msk [vmem:[#allocation2 + $0x8] sm:$0xf] %vm380, %v3558
        %3709 = vst.msk [vmem:[#allocation2 + $0x14] sm:$0xf] %vm380, %v3561
        %3710 = vst.msk [vmem:[#allocation2 + $0x20] sm:$0xf] %vm380, %v3564
        %3711 = vst.msk [vmem:[#allocation2 + $0x2c] sm:$0xf] %vm380, %v3567
        %3712 = vst.msk [vmem:[#allocation2 + $0x38] sm:$0xf] %vm380, %v3570
        %3713 = vst.msk [vmem:[#allocation2 + $0x44] sm:$0xf] %vm380, %v3573
        %3714 = vst.msk [vmem:[#allocation2 + $0x50] sm:$0xf] %vm380, %v3576
        %3715 = vst.msk [vmem:[#allocation2 + $0x5c] sm:$0xf] %vm380, %v3579
        %3716 = vst.msk [vmem:[#allocation2 + $0x68] sm:$0xf] %vm380, %v3582
        %3717 = vst.msk [vmem:[#allocation2 + $0x74] sm:$0xf] %vm380, %v3585
        %3718 = vst.msk [vmem:[#allocation2 + $0x80] sm:$0xf] %vm380, %v3588
        %3719 = vst.msk [vmem:[#allocation2 + $0x8c] sm:$0xf] %vm380, %v3591
        %3720 = vst.msk [vmem:[#allocation2 + $0x98] sm:$0xf] %vm380, %v3594
        %3721 = vst.msk [vmem:[#allocation2 + $0xa4] sm:$0xf] %vm380, %v3597
        %3722 = vst.msk [vmem:[#allocation2 + $0xb0] sm:$0xf] %vm380, %v3600
        %3723 = vst.msk [vmem:[#allocation2 + $0xbc] sm:$0xf] %vm380, %v3603
        %3724 = vst.msk [vmem:[#allocation2 + $0xc8] sm:$0xf] %vm380, %v3606
        %3725 = vst.msk [vmem:[#allocation2 + $0xd4] sm:$0xf] %vm380, %v3609
        %3726 = vst.msk [vmem:[#allocation2 + $0xe0] sm:$0xf] %vm380, %v3612
        %3727 = vst.msk [vmem:[#allocation2 + $0xec] sm:$0xf] %vm380, %v3615
        %3728 = vst.msk [vmem:[#allocation2 + $0xf8] sm:$0xf] %vm380, %v3618
        %3729 = vst.msk [vmem:[#allocation2 + $0x104] sm:$0xf] %vm380, %v3621
        %3730 = vst.msk [vmem:[#allocation2 + $0x110] sm:$0xf] %vm380, %v3624
        %3731 = vst.msk [vmem:[#allocation2 + $0x11c] sm:$0xf] %vm380, %v3627
        %3732 = vst.msk [vmem:[#allocation2 + $0x128] sm:$0xf] %vm380, %v3630
        %3733 = vst.msk [vmem:[#allocation2 + $0x134] sm:$0xf] %vm380, %v3633
        %3734 = vst.msk [vmem:[#allocation2 + $0x140] sm:$0xf] %vm380, %v3636
        %3735 = vst.msk [vmem:[#allocation2 + $0x14c] sm:$0xf] %vm380, %v3639
        %3736 = vst.msk [vmem:[#allocation2 + $0x158] sm:$0xf] %vm380, %v3642
        %3737 = vst.msk [vmem:[#allocation2 + $0x164] sm:$0xf] %vm380, %v3645
        %3738 = vst.msk [vmem:[#allocation2 + $0x170] sm:$0xf] %vm380, %v3648
        %3739 = vst.msk [vmem:[#allocation2 + $0x17c] sm:$0xf] %vm380, %v3651
        %3740 = vst.msk [vmem:[#allocation2 + $0x188] sm:$0xf] %vm380, %v3654
        %3741 = vst.msk [vmem:[#allocation2 + $0x194] sm:$0xf] %vm380, %v3657
        %3742 = vst.msk [vmem:[#allocation2 + $0x1a0] sm:$0xf] %vm380, %v3660
        %3743 = vst.msk [vmem:[#allocation2 + $0x1ac] sm:$0xf] %vm380, %v3663
        %3744 = vst.msk [vmem:[#allocation2 + $0x1b8] sm:$0xf] %vm380, %v3666
        %3745 = vst.msk [vmem:[#allocation2 + $0x1c4] sm:$0xf] %vm380, %v3669
        %v3746 = vld [vmem:[#allocation2] sm:$0xff]
        %v3747 = vld [vmem:[#allocation2 + $0x8] sm:$0xf]
        %v3748 = vld [vmem:[#allocation2 + $0xc] sm:$0xff]
        %v3749 = vld [vmem:[#allocation2 + $0x14] sm:$0xf]
        %v3750 = vld [vmem:[#allocation2 + $0x18] sm:$0xff]
        %v3751 = vld [vmem:[#allocation2 + $0x20] sm:$0xf]
        %v3752 = vld [vmem:[#allocation2 + $0x24] sm:$0xff]
        %v3753 = vld [vmem:[#allocation2 + $0x2c] sm:$0xf]
        %v3754 = vld [vmem:[#allocation2 + $0x30] sm:$0xff]
        %v3755 = vld [vmem:[#allocation2 + $0x38] sm:$0xf]
        %v3756 = vld [vmem:[#allocation2 + $0x3c] sm:$0xff]
        %v3757 = vld [vmem:[#allocation2 + $0x44] sm:$0xf]
        %v3758 = vld [vmem:[#allocation2 + $0x48] sm:$0xff]
        %v3759 = vld [vmem:[#allocation2 + $0x50] sm:$0xf]
        %v3760 = vld [vmem:[#allocation2 + $0x54] sm:$0xff]
        %v3761 = vld [vmem:[#allocation2 + $0x5c] sm:$0xf]
        %v3762 = vld [vmem:[#allocation2 + $0x60] sm:$0xff]
        %v3763 = vld [vmem:[#allocation2 + $0x68] sm:$0xf]
        %v3764 = vld [vmem:[#allocation2 + $0x6c] sm:$0xff]
        %v3765 = vld [vmem:[#allocation2 + $0x74] sm:$0xf]
        %v3766 = vld [vmem:[#allocation2 + $0x78] sm:$0xff]
        %v3767 = vld [vmem:[#allocation2 + $0x80] sm:$0xf]
        %v3768 = vld [vmem:[#allocation2 + $0x84] sm:$0xff]
        %v3769 = vld [vmem:[#allocation2 + $0x8c] sm:$0xf]
        %v3770 = vld [vmem:[#allocation2 + $0x90] sm:$0xff]
        %v3771 = vld [vmem:[#allocation2 + $0x98] sm:$0xf]
        %v3772 = vld [vmem:[#allocation2 + $0x9c] sm:$0xff]
        %v3773 = vld [vmem:[#allocation2 + $0xa4] sm:$0xf]
        %v3774 = vld [vmem:[#allocation2 + $0xa8] sm:$0xff]
        %v3775 = vld [vmem:[#allocation2 + $0xb0] sm:$0xf]
        %v3776 = vld [vmem:[#allocation2 + $0xb4] sm:$0xff]
        %v3777 = vld [vmem:[#allocation2 + $0xbc] sm:$0xf]
        %v3778 = vld [vmem:[#allocation2 + $0xc0] sm:$0xff]
        %v3779 = vld [vmem:[#allocation2 + $0xc8] sm:$0xf]
        %v3780 = vld [vmem:[#allocation2 + $0xcc] sm:$0xff]
        %v3781 = vld [vmem:[#allocation2 + $0xd4] sm:$0xf]
        %v3782 = vld [vmem:[#allocation2 + $0xd8] sm:$0xff]
        %v3783 = vld [vmem:[#allocation2 + $0xe0] sm:$0xf]
        %v3784 = vld [vmem:[#allocation2 + $0xe4] sm:$0xff]
        %v3785 = vld [vmem:[#allocation2 + $0xec] sm:$0xf]
        %v3786 = vld [vmem:[#allocation2 + $0xf0] sm:$0xff]
        %v3787 = vld [vmem:[#allocation2 + $0xf8] sm:$0xf]
        %v3788 = vld [vmem:[#allocation2 + $0xfc] sm:$0xff]
        %v3789 = vld [vmem:[#allocation2 + $0x104] sm:$0xf]
        %v3790 = vld [vmem:[#allocation2 + $0x108] sm:$0xff]
        %v3791 = vld [vmem:[#allocation2 + $0x110] sm:$0xf]
        %v3792 = vld [vmem:[#allocation2 + $0x114] sm:$0xff]
        %v3793 = vld [vmem:[#allocation2 + $0x11c] sm:$0xf]
        %v3794 = vld [vmem:[#allocation2 + $0x120] sm:$0xff]
        %v3795 = vld [vmem:[#allocation2 + $0x128] sm:$0xf]
        %v3796 = vld [vmem:[#allocation2 + $0x12c] sm:$0xff]
        %v3797 = vld [vmem:[#allocation2 + $0x134] sm:$0xf]
        %v3798 = vld [vmem:[#allocation2 + $0x138] sm:$0xff]
        %v3799 = vld [vmem:[#allocation2 + $0x140] sm:$0xf]
        %v3800 = vld [vmem:[#allocation2 + $0x144] sm:$0xff]
        %v3801 = vld [vmem:[#allocation2 + $0x14c] sm:$0xf]
        %v3802 = vld [vmem:[#allocation2 + $0x150] sm:$0xff]
        %v3803 = vld [vmem:[#allocation2 + $0x158] sm:$0xf]
        %v3804 = vld [vmem:[#allocation2 + $0x15c] sm:$0xff]
        %v3805 = vld [vmem:[#allocation2 + $0x164] sm:$0xf]
        %v3806 = vld [vmem:[#allocation2 + $0x168] sm:$0xff]
        %v3807 = vld [vmem:[#allocation2 + $0x170] sm:$0xf]
        %v3808 = vld [vmem:[#allocation2 + $0x174] sm:$0xff]
        %v3809 = vld [vmem:[#allocation2 + $0x17c] sm:$0xf]
        %v3810 = vld [vmem:[#allocation2 + $0x180] sm:$0xff]
        %v3811 = vld [vmem:[#allocation2 + $0x188] sm:$0xf]
        %v3812 = vld [vmem:[#allocation2 + $0x18c] sm:$0xff]
        %v3813 = vld [vmem:[#allocation2 + $0x194] sm:$0xf]
        %v3814 = vld [vmem:[#allocation2 + $0x198] sm:$0xff]
        %v3815 = vld [vmem:[#allocation2 + $0x1a0] sm:$0xf]
        %v3816 = vld [vmem:[#allocation2 + $0x1a4] sm:$0xff]
        %v3817 = vld [vmem:[#allocation2 + $0x1ac] sm:$0xf]
        %v3818 = vld [vmem:[#allocation2 + $0x1b0] sm:$0xff]
        %v3819 = vld [vmem:[#allocation2 + $0x1b8] sm:$0xf]
        %v3820 = vld [vmem:[#allocation2 + $0x1bc] sm:$0xff]
        %v3821 = vld [vmem:[#allocation2 + $0x1c4] sm:$0xf]
        %v3822 = vld [vmem:[%s1] sm:$0xf]
        %v3823 = vld [vmem:[%s1 + $0x4] sm:$0xf]
        %v3824 = vld [vmem:[%s1 + $0x8] sm:$0xf]
        %v3825 = vld [vmem:[%s1 + $0xc] sm:$0xf]
        %v3826 = vld [vmem:[%s1 + $0x10] sm:$0xf]
        %v3827 = vld [vmem:[%s1 + $0x14] sm:$0xf]
        %v3828 = vld [vmem:[%s1 + $0x18] sm:$0xf]
        %v3829 = vld [vmem:[%s1 + $0x1c] sm:$0xf]
        %v3830 = vld [vmem:[%s1 + $0x20] sm:$0xf]
        %v3831 = vld [vmem:[%s1 + $0x24] sm:$0xf]
        %v3832 = vld [vmem:[%s1 + $0x28] sm:$0xf]
        %v3833 = vld [vmem:[%s1 + $0x2c] sm:$0xf]
        %v3834 = vld [vmem:[%s1 + $0x30] sm:$0xf]
        %v3835 = vld [vmem:[%s1 + $0x34] sm:$0xf]
        %v3836 = vld [vmem:[%s1 + $0x38] sm:$0xf]
        %v3837 = vld [vmem:[%s1 + $0x3c] sm:$0xf]
        %v3838 = vld [vmem:[%s1 + $0x40] sm:$0xf]
        %v3839 = vld [vmem:[%s1 + $0x44] sm:$0xf]
        %v3840 = vld [vmem:[%s1 + $0x48] sm:$0xf]
        %v3841 = vld [vmem:[%s1 + $0x4c] sm:$0xf]
        %v3842 = vld [vmem:[%s1 + $0x50] sm:$0xf]
        %v3843 = vld [vmem:[%s1 + $0x54] sm:$0xf]
        %v3844 = vld [vmem:[%s1 + $0x58] sm:$0xf]
        %v3845 = vld [vmem:[%s1 + $0x5c] sm:$0xf]
        %v3846 = vld [vmem:[%s1 + $0x60] sm:$0xf]
        %v3847 = vld [vmem:[%s1 + $0x64] sm:$0xf]
        %v3848 = vld [vmem:[%s1 + $0x68] sm:$0xf]
        %v3849 = vld [vmem:[%s1 + $0x6c] sm:$0xf]
        %v3850 = vld [vmem:[%s1 + $0x70] sm:$0xf]
        %v3851 = vld [vmem:[%s1 + $0x74] sm:$0xf]
        %v3852 = vld [vmem:[%s1 + $0x78] sm:$0xf]
        %v3853 = vld [vmem:[%s1 + $0x7c] sm:$0xf]
        %v3854 = vld [vmem:[%s1 + $0x80] sm:$0xf]
        %v3855 = vld [vmem:[%s1 + $0x84] sm:$0xf]
        %v3856 = vld [vmem:[%s1 + $0x88] sm:$0xf]
        %v3857 = vld [vmem:[%s1 + $0x8c] sm:$0xf]
        %v3858 = vld [vmem:[%s2] sm:$0x1]
        %v3860 = vperm.slane %v3858, 0
        %v3938 = vunpack.c.l.b16 %v3746
        %v3939 = vunpack.c.h.b16 %v3746
        %v3940 = vunpack.c.l.b16 %v3747
        %v3941 = vunpack.c.l.b16 %v3748
        %v3942 = vunpack.c.h.b16 %v3748
        %v3943 = vunpack.c.l.b16 %v3749
        %v3944 = vunpack.c.l.b16 %v3750
        %v3945 = vunpack.c.h.b16 %v3750
        %v3946 = vunpack.c.l.b16 %v3751
        %v3947 = vunpack.c.l.b16 %v3752
        %v3948 = vunpack.c.h.b16 %v3752
        %v3949 = vunpack.c.l.b16 %v3753
        %v3950 = vunpack.c.l.b16 %v3754
        %v3951 = vunpack.c.h.b16 %v3754
        %v3952 = vunpack.c.l.b16 %v3755
        %v3953 = vunpack.c.l.b16 %v3756
        %v3954 = vunpack.c.h.b16 %v3756
        %v3955 = vunpack.c.l.b16 %v3757
        %v3956 = vunpack.c.l.b16 %v3758
        %v3957 = vunpack.c.h.b16 %v3758
        %v3958 = vunpack.c.l.b16 %v3759
        %v3959 = vunpack.c.l.b16 %v3760
        %v3960 = vunpack.c.h.b16 %v3760
        %v3961 = vunpack.c.l.b16 %v3761
        %v3962 = vunpack.c.l.b16 %v3762
        %v3963 = vunpack.c.h.b16 %v3762
        %v3964 = vunpack.c.l.b16 %v3763
        %v3965 = vunpack.c.l.b16 %v3764
        %v3966 = vunpack.c.h.b16 %v3764
        %v3967 = vunpack.c.l.b16 %v3765
        %v3968 = vunpack.c.l.b16 %v3766
        %v3969 = vunpack.c.h.b16 %v3766
        %v3970 = vunpack.c.l.b16 %v3767
        %v3971 = vunpack.c.l.b16 %v3768
        %v3972 = vunpack.c.h.b16 %v3768
        %v3973 = vunpack.c.l.b16 %v3769
        %v3974 = vunpack.c.l.b16 %v3770
        %v3975 = vunpack.c.h.b16 %v3770
        %v3976 = vunpack.c.l.b16 %v3771
        %v3977 = vunpack.c.l.b16 %v3772
        %v3978 = vunpack.c.h.b16 %v3772
        %v3979 = vunpack.c.l.b16 %v3773
        %v3980 = vunpack.c.l.b16 %v3774
        %v3981 = vunpack.c.h.b16 %v3774
        %v3982 = vunpack.c.l.b16 %v3775
        %v3983 = vunpack.c.l.b16 %v3776
        %v3984 = vunpack.c.h.b16 %v3776
        %v3985 = vunpack.c.l.b16 %v3777
        %v3986 = vunpack.c.l.b16 %v3778
        %v3987 = vunpack.c.h.b16 %v3778
        %v3988 = vunpack.c.l.b16 %v3779
        %v3989 = vunpack.c.l.b16 %v3780
        %v3990 = vunpack.c.h.b16 %v3780
        %v3991 = vunpack.c.l.b16 %v3781
        %v3992 = vunpack.c.l.b16 %v3782
        %v3993 = vunpack.c.h.b16 %v3782
        %v3994 = vunpack.c.l.b16 %v3783
        %v3995 = vunpack.c.l.b16 %v3784
        %v3996 = vunpack.c.h.b16 %v3784
        %v3997 = vunpack.c.l.b16 %v3785
        %v3998 = vunpack.c.l.b16 %v3786
        %v3999 = vunpack.c.h.b16 %v3786
        %v4000 = vunpack.c.l.b16 %v3787
        %v4001 = vunpack.c.l.b16 %v3788
        %v4002 = vunpack.c.h.b16 %v3788
        %v4003 = vunpack.c.l.b16 %v3789
        %v4004 = vunpack.c.l.b16 %v3790
        %v4005 = vunpack.c.h.b16 %v3790
        %v4006 = vunpack.c.l.b16 %v3791
        %v4007 = vunpack.c.l.b16 %v3792
        %v4008 = vunpack.c.h.b16 %v3792
        %v4009 = vunpack.c.l.b16 %v3793
        %v4010 = vunpack.c.l.b16 %v3794
        %v4011 = vunpack.c.h.b16 %v3794
        %v4012 = vunpack.c.l.b16 %v3795
        %v4013 = vunpack.c.l.b16 %v3796
        %v4014 = vunpack.c.h.b16 %v3796
        %v4015 = vunpack.c.l.b16 %v3797
        %v4016 = vunpack.c.l.b16 %v3798
        %v4017 = vunpack.c.h.b16 %v3798
        %v4018 = vunpack.c.l.b16 %v3799
        %v4019 = vunpack.c.l.b16 %v3800
        %v4020 = vunpack.c.h.b16 %v3800
        %v4021 = vunpack.c.l.b16 %v3801
        %v4022 = vunpack.c.l.b16 %v3802
        %v4023 = vunpack.c.h.b16 %v3802
        %v4024 = vunpack.c.l.b16 %v3803
        %v4025 = vunpack.c.l.b16 %v3804
        %v4026 = vunpack.c.h.b16 %v3804
        %v4027 = vunpack.c.l.b16 %v3805
        %v4028 = vunpack.c.l.b16 %v3806
        %v4029 = vunpack.c.h.b16 %v3806
        %v4030 = vunpack.c.l.b16 %v3807
        %v4031 = vunpack.c.l.b16 %v3808
        %v4032 = vunpack.c.h.b16 %v3808
        %v4033 = vunpack.c.l.b16 %v3809
        %v4034 = vunpack.c.l.b16 %v3810
        %v4035 = vunpack.c.h.b16 %v3810
        %v4036 = vunpack.c.l.b16 %v3811
        %v4037 = vunpack.c.l.b16 %v3812
        %v4038 = vunpack.c.h.b16 %v3812
        %v4039 = vunpack.c.l.b16 %v3813
        %v4040 = vunpack.c.l.b16 %v3814
        %v4041 = vunpack.c.h.b16 %v3814
        %v4042 = vunpack.c.l.b16 %v3815
        %v4043 = vunpack.c.l.b16 %v3816
        %v4044 = vunpack.c.h.b16 %v3816
        %v4045 = vunpack.c.l.b16 %v3817
        %v4046 = vunpack.c.l.b16 %v3818
        %v4047 = vunpack.c.h.b16 %v3818
        %v4048 = vunpack.c.l.b16 %v3819
        %v4049 = vunpack.c.l.b16 %v3820
        %v4050 = vunpack.c.h.b16 %v3820
        %v4051 = vunpack.c.l.b16 %v3821
        %v4052 = vpack.c.b16 %v3941, %v3938
        %v4053 = vpack.c.b16 %v3942, %v3939
        %v4054 = vpack.c.b16 %v3943, %v3940
        %v4055 = vpack.c.b16 %v3947, %v3944
        %v4056 = vpack.c.b16 %v3948, %v3945
        %v4057 = vpack.c.b16 %v3949, %v3946
        %v4058 = vpack.c.b16 %v3953, %v3950
        %v4059 = vpack.c.b16 %v3954, %v3951
        %v4060 = vpack.c.b16 %v3955, %v3952
        %v4061 = vpack.c.b16 %v3959, %v3956
        %v4062 = vpack.c.b16 %v3960, %v3957
        %v4063 = vpack.c.b16 %v3961, %v3958
        %v4064 = vpack.c.b16 %v3965, %v3962
        %v4065 = vpack.c.b16 %v3966, %v3963
        %v4066 = vpack.c.b16 %v3967, %v3964
        %v4067 = vpack.c.b16 %v3971, %v3968
        %v4068 = vpack.c.b16 %v3972, %v3969
        %v4069 = vpack.c.b16 %v3973, %v3970
        %v4070 = vpack.c.b16 %v3977, %v3974
        %v4071 = vpack.c.b16 %v3978, %v3975
        %v4072 = vpack.c.b16 %v3979, %v3976
        %v4073 = vpack.c.b16 %v3983, %v3980
        %v4074 = vpack.c.b16 %v3984, %v3981
        %v4075 = vpack.c.b16 %v3985, %v3982
        %v4076 = vpack.c.b16 %v3989, %v3986
        %v4077 = vpack.c.b16 %v3990, %v3987
        %v4078 = vpack.c.b16 %v3991, %v3988
        %v4079 = vpack.c.b16 %v3995, %v3992
        %v4080 = vpack.c.b16 %v3996, %v3993
        %v4081 = vpack.c.b16 %v3997, %v3994
        %v4082 = vpack.c.b16 %v4001, %v3998
        %v4083 = vpack.c.b16 %v4002, %v3999
        %v4084 = vpack.c.b16 %v4003, %v4000
        %v4085 = vpack.c.b16 %v4007, %v4004
        %v4086 = vpack.c.b16 %v4008, %v4005
        %v4087 = vpack.c.b16 %v4009, %v4006
        %v4088 = vpack.c.b16 %v4013, %v4010
        %v4089 = vpack.c.b16 %v4014, %v4011
        %v4090 = vpack.c.b16 %v4015, %v4012
        %v4091 = vpack.c.b16 %v4019, %v4016
        %v4092 = vpack.c.b16 %v4020, %v4017
        %v4093 = vpack.c.b16 %v4021, %v4018
        %v4094 = vpack.c.b16 %v4025, %v4022
        %v4095 = vpack.c.b16 %v4026, %v4023
        %v4096 = vpack.c.b16 %v4027, %v4024
        %v4097 = vpack.c.b16 %v4031, %v4028
        %v4098 = vpack.c.b16 %v4032, %v4029
        %v4099 = vpack.c.b16 %v4033, %v4030
        %v4100 = vpack.c.b16 %v4037, %v4034
        %v4101 = vpack.c.b16 %v4038, %v4035
        %v4102 = vpack.c.b16 %v4039, %v4036
        %v4103 = vpack.c.b16 %v4043, %v4040
        %v4104 = vpack.c.b16 %v4044, %v4041
        %v4105 = vpack.c.b16 %v4045, %v4042
        %v4106 = vpack.c.b16 %v4049, %v4046
        %v4107 = vpack.c.b16 %v4050, %v4047
        %v4108 = vpack.c.b16 %v4051, %v4048
        %v4183 = vunpack.c.l.b16 %v3822
        %v4184 = vunpack.c.l.b16 %v3823
        %v4185 = vunpack.c.l.b16 %v3824
        %v4186 = vunpack.c.l.b16 %v3825
        %v4187 = vunpack.c.l.b16 %v3826
        %v4188 = vunpack.c.l.b16 %v3827
        %v4189 = vunpack.c.l.b16 %v3828
        %v4190 = vunpack.c.l.b16 %v3829
        %v4191 = vunpack.c.l.b16 %v3830
        %v4192 = vunpack.c.l.b16 %v3831
        %v4193 = vunpack.c.l.b16 %v3832
        %v4194 = vunpack.c.l.b16 %v3833
        %v4195 = vunpack.c.l.b16 %v3834
        %v4196 = vunpack.c.l.b16 %v3835
        %v4197 = vunpack.c.l.b16 %v3836
        %v4198 = vunpack.c.l.b16 %v3837
        %v4199 = vunpack.c.l.b16 %v3838
        %v4200 = vunpack.c.l.b16 %v3839
        %v4201 = vunpack.c.l.b16 %v3840
        %v4202 = vunpack.c.l.b16 %v3841
        %v4203 = vunpack.c.l.b16 %v3842
        %v4204 = vunpack.c.l.b16 %v3843
        %v4205 = vunpack.c.l.b16 %v3844
        %v4206 = vunpack.c.l.b16 %v3845
        %v4207 = vunpack.c.l.b16 %v3846
        %v4208 = vunpack.c.l.b16 %v3847
        %v4209 = vunpack.c.l.b16 %v3848
        %v4210 = vunpack.c.l.b16 %v3849
        %v4211 = vunpack.c.l.b16 %v3850
        %v4212 = vunpack.c.l.b16 %v3851
        %v4213 = vunpack.c.l.b16 %v3852
        %v4214 = vunpack.c.l.b16 %v3853
        %v4215 = vunpack.c.l.b16 %v3854
        %v4216 = vunpack.c.l.b16 %v3855
        %v4217 = vunpack.c.l.b16 %v3856
        %v4218 = vunpack.c.l.b16 %v3857
        %v4219 = vpack.c.b16 %v4184, %v4183
        %v4220 = vpack.c.b16 %v4186, %v4185
        %v4221 = vpack.c.b16 %v4188, %v4187
        %v4222 = vpack.c.b16 %v4190, %v4189
        %v4223 = vpack.c.b16 %v4192, %v4191
        %v4224 = vpack.c.b16 %v4194, %v4193
        %v4225 = vpack.c.b16 %v4196, %v4195
        %v4226 = vpack.c.b16 %v4198, %v4197
        %v4227 = vpack.c.b16 %v4200, %v4199
        %v4228 = vpack.c.b16 %v4202, %v4201
        %v4229 = vpack.c.b16 %v4204, %v4203
        %v4230 = vpack.c.b16 %v4206, %v4205
        %v4231 = vpack.c.b16 %v4208, %v4207
        %v4232 = vpack.c.b16 %v4210, %v4209
        %v4233 = vpack.c.b16 %v4212, %v4211
        %v4234 = vpack.c.b16 %v4214, %v4213
        %v4235 = vpack.c.b16 %v4216, %v4215
        %v4236 = vpack.c.b16 %v4218, %v4217
        %vm4255 = vcmask 261120
        %v4257 = vsel %vm4255, %v4054, 0
        %v4260 = vsel %vm4255, %v4057, 0
        %v4263 = vsel %vm4255, %v4060, 0
        %v4266 = vsel %vm4255, %v4063, 0
        %v4269 = vsel %vm4255, %v4066, 0
        %v4272 = vsel %vm4255, %v4069, 0
        %v4275 = vsel %vm4255, %v4072, 0
        %v4278 = vsel %vm4255, %v4075, 0
        %v4281 = vsel %vm4255, %v4078, 0
        %v4284 = vsel %vm4255, %v4081, 0
        %v4287 = vsel %vm4255, %v4084, 0
        %v4290 = vsel %vm4255, %v4087, 0
        %v4293 = vsel %vm4255, %v4090, 0
        %v4296 = vsel %vm4255, %v4093, 0
        %v4299 = vsel %vm4255, %v4096, 0
        %v4302 = vsel %vm4255, %v4099, 0
        %v4305 = vsel %vm4255, %v4102, 0
        %v4308 = vsel %vm4255, %v4105, 0
        %v4311 = vsel %vm4255, %v4108, 0
        %4313 = vmatpush.bf16.msra.mxu0 %v4226
        %4314 = vmatpush.bf16.msra.mxu0 %v4225
        %4315 = vmatpush.bf16.msra.mxu0 %v4224
        %4316 = vmatpush.bf16.msra.mxu0 %v4223
        %4317 = vmatpush.bf16.msra.mxu0 %v4222
        %4318 = vmatpush.bf16.msra.mxu0 %v4221
        %4319 = vmatpush.bf16.msra.mxu0 %v4220
        %4320 = vmatpush.bf16.msra.mxu0 %v4219
        %4321 = vmatmul.bf16.gmra.mxu0 %v4052
        %v4322 = vpop.f32.mrf.mxu0
        %v4323 = vadd.f32 %v3860, %v4322
        %v4324 = vpop.f32.mrf.mxu0
        %v4325 = vadd.f32 %v3860, %v4324
        %4326 = vmatmul.bf16.gmra.mxu0 %v4055
        %v4327 = vpop.f32.mrf.mxu0
        %v4328 = vadd.f32 %v3860, %v4327
        %v4329 = vpop.f32.mrf.mxu0
        %v4330 = vadd.f32 %v3860, %v4329
        %4331 = vmatmul.bf16.gmra.mxu0 %v4058
        %v4332 = vpop.f32.mrf.mxu0
        %v4333 = vadd.f32 %v3860, %v4332
        %v4334 = vpop.f32.mrf.mxu0
        %v4335 = vadd.f32 %v3860, %v4334
        %4336 = vmatmul.bf16.gmra.mxu0 %v4061
        %v4337 = vpop.f32.mrf.mxu0
        %v4338 = vadd.f32 %v3860, %v4337
        %v4339 = vpop.f32.mrf.mxu0
        %v4340 = vadd.f32 %v3860, %v4339
        %4341 = vmatmul.bf16.gmra.mxu0 %v4064
        %v4342 = vpop.f32.mrf.mxu0
        %v4343 = vadd.f32 %v3860, %v4342
        %v4344 = vpop.f32.mrf.mxu0
        %v4345 = vadd.f32 %v3860, %v4344
        %4346 = vmatmul.bf16.gmra.mxu0 %v4067
        %v4347 = vpop.f32.mrf.mxu0
        %v4348 = vadd.f32 %v3860, %v4347
        %v4349 = vpop.f32.mrf.mxu0
        %v4350 = vadd.f32 %v3860, %v4349
        %4351 = vmatmul.bf16.gmra.mxu0 %v4070
        %v4352 = vpop.f32.mrf.mxu0
        %v4353 = vadd.f32 %v3860, %v4352
        %v4354 = vpop.f32.mrf.mxu0
        %v4355 = vadd.f32 %v3860, %v4354
        %4356 = vmatmul.bf16.gmra.mxu0 %v4073
        %v4357 = vpop.f32.mrf.mxu0
        %v4358 = vadd.f32 %v3860, %v4357
        %v4359 = vpop.f32.mrf.mxu0
        %v4360 = vadd.f32 %v3860, %v4359
        %4361 = vmatmul.bf16.gmra.mxu0 %v4076
        %v4362 = vpop.f32.mrf.mxu0
        %v4363 = vadd.f32 %v3860, %v4362
        %v4364 = vpop.f32.mrf.mxu0
        %v4365 = vadd.f32 %v3860, %v4364
        %4366 = vmatmul.bf16.gmra.mxu0 %v4079
        %v4367 = vpop.f32.mrf.mxu0
        %v4368 = vadd.f32 %v3860, %v4367
        %v4369 = vpop.f32.mrf.mxu0
        %v4370 = vadd.f32 %v3860, %v4369
        %4371 = vmatmul.bf16.gmra.mxu0 %v4082
        %v4372 = vpop.f32.mrf.mxu0
        %v4373 = vadd.f32 %v3860, %v4372
        %v4374 = vpop.f32.mrf.mxu0
        %v4375 = vadd.f32 %v3860, %v4374
        %4376 = vmatmul.bf16.gmra.mxu0 %v4085
        %v4377 = vpop.f32.mrf.mxu0
        %v4378 = vadd.f32 %v3860, %v4377
        %v4379 = vpop.f32.mrf.mxu0
        %v4380 = vadd.f32 %v3860, %v4379
        %4381 = vmatmul.bf16.gmra.mxu0 %v4088
        %v4382 = vpop.f32.mrf.mxu0
        %v4383 = vadd.f32 %v3860, %v4382
        %v4384 = vpop.f32.mrf.mxu0
        %v4385 = vadd.f32 %v3860, %v4384
        %4386 = vmatmul.bf16.gmra.mxu0 %v4091
        %v4387 = vpop.f32.mrf.mxu0
        %v4388 = vadd.f32 %v3860, %v4387
        %v4389 = vpop.f32.mrf.mxu0
        %v4390 = vadd.f32 %v3860, %v4389
        %4391 = vmatmul.bf16.gmra.mxu0 %v4094
        %v4392 = vpop.f32.mrf.mxu0
        %v4393 = vadd.f32 %v3860, %v4392
        %v4394 = vpop.f32.mrf.mxu0
        %v4395 = vadd.f32 %v3860, %v4394
        %4396 = vmatmul.bf16.gmra.mxu0 %v4097
        %v4397 = vpop.f32.mrf.mxu0
        %v4398 = vadd.f32 %v3860, %v4397
        %v4399 = vpop.f32.mrf.mxu0
        %v4400 = vadd.f32 %v3860, %v4399
        %4401 = vmatmul.bf16.gmra.mxu0 %v4100
        %v4402 = vpop.f32.mrf.mxu0
        %v4403 = vadd.f32 %v3860, %v4402
        %v4404 = vpop.f32.mrf.mxu0
        %v4405 = vadd.f32 %v3860, %v4404
        %4406 = vmatmul.bf16.gmra.mxu0 %v4103
        %v4407 = vpop.f32.mrf.mxu0
        %v4408 = vadd.f32 %v3860, %v4407
        %v4409 = vpop.f32.mrf.mxu0
        %v4410 = vadd.f32 %v3860, %v4409
        %4411 = vmatmul.bf16.gmra.mxu0 %v4106
        %v4412 = vpop.f32.mrf.mxu0
        %v4413 = vadd.f32 %v3860, %v4412
        %v4414 = vpop.f32.mrf.mxu0
        %v4415 = vadd.f32 %v3860, %v4414
        %4416 = vdwg.mxu0
        %4417 = vmatpush.bf16.msra.mxu0 %v4234
        %4418 = vmatpush.bf16.msra.mxu0 %v4233
        %4419 = vmatpush.bf16.msra.mxu0 %v4232
        %4420 = vmatpush.bf16.msra.mxu0 %v4231
        %4421 = vmatpush.bf16.msra.mxu0 %v4230
        %4422 = vmatpush.bf16.msra.mxu0 %v4229
        %4423 = vmatpush.bf16.msra.mxu0 %v4228
        %4424 = vmatpush.bf16.msra.mxu0 %v4227
        %4425 = vmatmul.bf16.gmra.mxu0 %v4053
        %v4426 = vpop.f32.mrf.mxu0
        %v4427 = vadd.f32 %v4323, %v4426
        %v4428 = vpop.f32.mrf.mxu0
        %v4429 = vadd.f32 %v4325, %v4428
        %4430 = vmatmul.bf16.gmra.mxu0 %v4056
        %v4431 = vpop.f32.mrf.mxu0
        %v4432 = vadd.f32 %v4328, %v4431
        %v4433 = vpop.f32.mrf.mxu0
        %v4434 = vadd.f32 %v4330, %v4433
        %4435 = vmatmul.bf16.gmra.mxu0 %v4059
        %v4436 = vpop.f32.mrf.mxu0
        %v4437 = vadd.f32 %v4333, %v4436
        %v4438 = vpop.f32.mrf.mxu0
        %v4439 = vadd.f32 %v4335, %v4438
        %4440 = vmatmul.bf16.gmra.mxu0 %v4062
        %v4441 = vpop.f32.mrf.mxu0
        %v4442 = vadd.f32 %v4338, %v4441
        %v4443 = vpop.f32.mrf.mxu0
        %v4444 = vadd.f32 %v4340, %v4443
        %4445 = vmatmul.bf16.gmra.mxu0 %v4065
        %v4446 = vpop.f32.mrf.mxu0
        %v4447 = vadd.f32 %v4343, %v4446
        %v4448 = vpop.f32.mrf.mxu0
        %v4449 = vadd.f32 %v4345, %v4448
        %4450 = vmatmul.bf16.gmra.mxu0 %v4068
        %v4451 = vpop.f32.mrf.mxu0
        %v4452 = vadd.f32 %v4348, %v4451
        %v4453 = vpop.f32.mrf.mxu0
        %v4454 = vadd.f32 %v4350, %v4453
        %4455 = vmatmul.bf16.gmra.mxu0 %v4071
        %v4456 = vpop.f32.mrf.mxu0
        %v4457 = vadd.f32 %v4353, %v4456
        %v4458 = vpop.f32.mrf.mxu0
        %v4459 = vadd.f32 %v4355, %v4458
        %4460 = vmatmul.bf16.gmra.mxu0 %v4074
        %v4461 = vpop.f32.mrf.mxu0
        %v4462 = vadd.f32 %v4358, %v4461
        %v4463 = vpop.f32.mrf.mxu0
        %v4464 = vadd.f32 %v4360, %v4463
        %4465 = vmatmul.bf16.gmra.mxu0 %v4077
        %v4466 = vpop.f32.mrf.mxu0
        %v4467 = vadd.f32 %v4363, %v4466
        %v4468 = vpop.f32.mrf.mxu0
        %v4469 = vadd.f32 %v4365, %v4468
        %4470 = vmatmul.bf16.gmra.mxu0 %v4080
        %v4471 = vpop.f32.mrf.mxu0
        %v4472 = vadd.f32 %v4368, %v4471
        %v4473 = vpop.f32.mrf.mxu0
        %v4474 = vadd.f32 %v4370, %v4473
        %4475 = vmatmul.bf16.gmra.mxu0 %v4083
        %v4476 = vpop.f32.mrf.mxu0
        %v4477 = vadd.f32 %v4373, %v4476
        %v4478 = vpop.f32.mrf.mxu0
        %v4479 = vadd.f32 %v4375, %v4478
        %4480 = vmatmul.bf16.gmra.mxu0 %v4086
        %v4481 = vpop.f32.mrf.mxu0
        %v4482 = vadd.f32 %v4378, %v4481
        %v4483 = vpop.f32.mrf.mxu0
        %v4484 = vadd.f32 %v4380, %v4483
        %4485 = vmatmul.bf16.gmra.mxu0 %v4089
        %v4486 = vpop.f32.mrf.mxu0
        %v4487 = vadd.f32 %v4383, %v4486
        %v4488 = vpop.f32.mrf.mxu0
        %v4489 = vadd.f32 %v4385, %v4488
        %4490 = vmatmul.bf16.gmra.mxu0 %v4092
        %v4491 = vpop.f32.mrf.mxu0
        %v4492 = vadd.f32 %v4388, %v4491
        %v4493 = vpop.f32.mrf.mxu0
        %v4494 = vadd.f32 %v4390, %v4493
        %4495 = vmatmul.bf16.gmra.mxu0 %v4095
        %v4496 = vpop.f32.mrf.mxu0
        %v4497 = vadd.f32 %v4393, %v4496
        %v4498 = vpop.f32.mrf.mxu0
        %v4499 = vadd.f32 %v4395, %v4498
        %4500 = vmatmul.bf16.gmra.mxu0 %v4098
        %v4501 = vpop.f32.mrf.mxu0
        %v4502 = vadd.f32 %v4398, %v4501
        %v4503 = vpop.f32.mrf.mxu0
        %v4504 = vadd.f32 %v4400, %v4503
        %4505 = vmatmul.bf16.gmra.mxu0 %v4101
        %v4506 = vpop.f32.mrf.mxu0
        %v4507 = vadd.f32 %v4403, %v4506
        %v4508 = vpop.f32.mrf.mxu0
        %v4509 = vadd.f32 %v4405, %v4508
        %4510 = vmatmul.bf16.gmra.mxu0 %v4104
        %v4511 = vpop.f32.mrf.mxu0
        %v4512 = vadd.f32 %v4408, %v4511
        %v4513 = vpop.f32.mrf.mxu0
        %v4514 = vadd.f32 %v4410, %v4513
        %4515 = vmatmul.bf16.gmra.mxu0 %v4107
        %v4516 = vpop.f32.mrf.mxu0
        %v4517 = vadd.f32 %v4413, %v4516
        %v4518 = vpop.f32.mrf.mxu0
        %v4519 = vadd.f32 %v4415, %v4518
        %4520 = vdwg.mxu0
        %4521 = vmatpush.bf16.msra.mxu0 0
        %4522 = vmatpush.bf16.msra.mxu0 0
        %4523 = vmatpush.bf16.msra.mxu0 0
        %4524 = vmatpush.bf16.msra.mxu0 0
        %4525 = vmatpush.bf16.msra.mxu0 0
        %4526 = vmatpush.bf16.msra.mxu0 0
        %4527 = vmatpush.bf16.msra.mxu0 %v4236
        %4528 = vmatpush.bf16.msra.mxu0 %v4235
        %4529 = vmatmul.bf16.gmra.mxu0 %v4257
        %v4530 = vpop.f32.mrf.mxu0
        %v4531 = vadd.f32 %v4427, %v4530
        %v4532 = vpop.f32.mrf.mxu0
        %v4533 = vadd.f32 %v4429, %v4532
        %4534 = vmatmul.bf16.gmra.mxu0 %v4260
        %v4535 = vpop.f32.mrf.mxu0
        %v4536 = vadd.f32 %v4432, %v4535
        %v4537 = vpop.f32.mrf.mxu0
        %v4538 = vadd.f32 %v4434, %v4537
        %4539 = vmatmul.bf16.gmra.mxu0 %v4263
        %v4540 = vpop.f32.mrf.mxu0
        %v4541 = vadd.f32 %v4437, %v4540
        %v4542 = vpop.f32.mrf.mxu0
        %v4543 = vadd.f32 %v4439, %v4542
        %4544 = vmatmul.bf16.gmra.mxu0 %v4266
        %v4545 = vpop.f32.mrf.mxu0
        %v4546 = vadd.f32 %v4442, %v4545
        %v4547 = vpop.f32.mrf.mxu0
        %v4548 = vadd.f32 %v4444, %v4547
        %4549 = vmatmul.bf16.gmra.mxu0 %v4269
        %v4550 = vpop.f32.mrf.mxu0
        %v4551 = vadd.f32 %v4447, %v4550
        %v4552 = vpop.f32.mrf.mxu0
        %v4553 = vadd.f32 %v4449, %v4552
        %4554 = vmatmul.bf16.gmra.mxu0 %v4272
        %v4555 = vpop.f32.mrf.mxu0
        %v4556 = vadd.f32 %v4452, %v4555
        %v4557 = vpop.f32.mrf.mxu0
        %v4558 = vadd.f32 %v4454, %v4557
        %4559 = vmatmul.bf16.gmra.mxu0 %v4275
        %v4560 = vpop.f32.mrf.mxu0
        %v4561 = vadd.f32 %v4457, %v4560
        %v4562 = vpop.f32.mrf.mxu0
        %v4563 = vadd.f32 %v4459, %v4562
        %4564 = vmatmul.bf16.gmra.mxu0 %v4278
        %v4565 = vpop.f32.mrf.mxu0
        %v4566 = vadd.f32 %v4462, %v4565
        %v4567 = vpop.f32.mrf.mxu0
        %v4568 = vadd.f32 %v4464, %v4567
        %4569 = vmatmul.bf16.gmra.mxu0 %v4281
        %v4570 = vpop.f32.mrf.mxu0
        %v4571 = vadd.f32 %v4467, %v4570
        %v4572 = vpop.f32.mrf.mxu0
        %v4573 = vadd.f32 %v4469, %v4572
        %4574 = vmatmul.bf16.gmra.mxu0 %v4284
        %v4575 = vpop.f32.mrf.mxu0
        %v4576 = vadd.f32 %v4472, %v4575
        %v4577 = vpop.f32.mrf.mxu0
        %v4578 = vadd.f32 %v4474, %v4577
        %4579 = vmatmul.bf16.gmra.mxu0 %v4287
        %v4580 = vpop.f32.mrf.mxu0
        %v4581 = vadd.f32 %v4477, %v4580
        %v4582 = vpop.f32.mrf.mxu0
        %v4583 = vadd.f32 %v4479, %v4582
        %4584 = vmatmul.bf16.gmra.mxu0 %v4290
        %v4585 = vpop.f32.mrf.mxu0
        %v4586 = vadd.f32 %v4482, %v4585
        %v4587 = vpop.f32.mrf.mxu0
        %v4588 = vadd.f32 %v4484, %v4587
        %4589 = vmatmul.bf16.gmra.mxu0 %v4293
        %v4590 = vpop.f32.mrf.mxu0
        %v4591 = vadd.f32 %v4487, %v4590
        %v4592 = vpop.f32.mrf.mxu0
        %v4593 = vadd.f32 %v4489, %v4592
        %4594 = vmatmul.bf16.gmra.mxu0 %v4296
        %v4595 = vpop.f32.mrf.mxu0
        %v4596 = vadd.f32 %v4492, %v4595
        %v4597 = vpop.f32.mrf.mxu0
        %v4598 = vadd.f32 %v4494, %v4597
        %4599 = vmatmul.bf16.gmra.mxu0 %v4299
        %v4600 = vpop.f32.mrf.mxu0
        %v4601 = vadd.f32 %v4497, %v4600
        %v4602 = vpop.f32.mrf.mxu0
        %v4603 = vadd.f32 %v4499, %v4602
        %4604 = vmatmul.bf16.gmra.mxu0 %v4302
        %v4605 = vpop.f32.mrf.mxu0
        %v4606 = vadd.f32 %v4502, %v4605
        %v4607 = vpop.f32.mrf.mxu0
        %v4608 = vadd.f32 %v4504, %v4607
        %4609 = vmatmul.bf16.gmra.mxu0 %v4305
        %v4610 = vpop.f32.mrf.mxu0
        %v4611 = vadd.f32 %v4507, %v4610
        %v4612 = vpop.f32.mrf.mxu0
        %v4613 = vadd.f32 %v4509, %v4612
        %4614 = vmatmul.bf16.gmra.mxu0 %v4308
        %v4615 = vpop.f32.mrf.mxu0
        %v4616 = vadd.f32 %v4512, %v4615
        %v4617 = vpop.f32.mrf.mxu0
        %v4618 = vadd.f32 %v4514, %v4617
        %4619 = vmatmul.bf16.gmra.mxu0 %v4311
        %v4620 = vpop.f32.mrf.mxu0
        %v4621 = vadd.f32 %v4517, %v4620
        %v4622 = vpop.f32.mrf.mxu0
        %v4623 = vadd.f32 %v4519, %v4622
        %4624 = vdwg.mxu0
        %v4625 = vmax.f32 %v4531, 0.0
        %v4626 = vmax.f32 %v4533, 0.0
        %v4627 = vmax.f32 %v4536, 0.0
        %v4628 = vmax.f32 %v4538, 0.0
        %v4629 = vmax.f32 %v4541, 0.0
        %v4630 = vmax.f32 %v4543, 0.0
        %v4631 = vmax.f32 %v4546, 0.0
        %v4632 = vmax.f32 %v4548, 0.0
        %v4633 = vmax.f32 %v4551, 0.0
        %v4634 = vmax.f32 %v4553, 0.0
        %v4635 = vmax.f32 %v4556, 0.0
        %v4636 = vmax.f32 %v4558, 0.0
        %v4637 = vmax.f32 %v4561, 0.0
        %v4638 = vmax.f32 %v4563, 0.0
        %v4639 = vmax.f32 %v4566, 0.0
        %v4640 = vmax.f32 %v4568, 0.0
        %v4641 = vmax.f32 %v4571, 0.0
        %v4642 = vmax.f32 %v4573, 0.0
        %v4643 = vmax.f32 %v4576, 0.0
        %v4644 = vmax.f32 %v4578, 0.0
        %v4645 = vmax.f32 %v4581, 0.0
        %v4646 = vmax.f32 %v4583, 0.0
        %v4647 = vmax.f32 %v4586, 0.0
        %v4648 = vmax.f32 %v4588, 0.0
        %v4649 = vmax.f32 %v4591, 0.0
        %v4650 = vmax.f32 %v4593, 0.0
        %v4651 = vmax.f32 %v4596, 0.0
        %v4652 = vmax.f32 %v4598, 0.0
        %v4653 = vmax.f32 %v4601, 0.0
        %v4654 = vmax.f32 %v4603, 0.0
        %v4655 = vmax.f32 %v4606, 0.0
        %v4656 = vmax.f32 %v4608, 0.0
        %v4657 = vmax.f32 %v4611, 0.0
        %v4658 = vmax.f32 %v4613, 0.0
        %v4659 = vmax.f32 %v4616, 0.0
        %v4660 = vmax.f32 %v4618, 0.0
        %v4661 = vmax.f32 %v4621, 0.0
        %v4662 = vmax.f32 %v4623, 0.0
        %4664 = vset.pattern.permute.xlu0 0
        %4665 = vperm.xlu0 %4664, %v304
        %v4666 = vpop.permute.xlu0 %4665
        %4669 = vset.pattern.permute.xlu0 0
        %4670 = vperm.xlu0 %4669, %v305
        %v4671 = vpop.permute.xlu0 %4670
        %4674 = vset.pattern.permute.xlu0 0
        %4675 = vperm.xlu0 %4674, %v306
        %v4676 = vpop.permute.xlu0 %4675
        %4679 = vset.pattern.permute.xlu0 0
        %4680 = vperm.xlu0 %4679, %v307
        %v4681 = vpop.permute.xlu0 %4680
        %4684 = vset.pattern.permute.xlu0 0
        %4685 = vperm.xlu0 %4684, %v308
        %v4686 = vpop.permute.xlu0 %4685
        %4689 = vset.pattern.permute.xlu0 0
        %4690 = vperm.xlu0 %4689, %v309
        %v4691 = vpop.permute.xlu0 %4690
        %4694 = vset.pattern.permute.xlu0 0
        %4695 = vperm.xlu0 %4694, %v310
        %v4696 = vpop.permute.xlu0 %4695
        %4699 = vset.pattern.permute.xlu0 0
        %4700 = vperm.xlu0 %4699, %v311
        %v4701 = vpop.permute.xlu0 %4700
        %4704 = vset.pattern.permute.xlu0 0
        %4705 = vperm.xlu0 %4704, %v312
        %v4706 = vpop.permute.xlu0 %4705
        %4709 = vset.pattern.permute.xlu0 0
        %4710 = vperm.xlu0 %4709, %v313
        %v4711 = vpop.permute.xlu0 %4710
        %4714 = vset.pattern.permute.xlu0 0
        %4715 = vperm.xlu0 %4714, %v314
        %v4716 = vpop.permute.xlu0 %4715
        %4719 = vset.pattern.permute.xlu0 0
        %4720 = vperm.xlu0 %4719, %v315
        %v4721 = vpop.permute.xlu0 %4720
        %4724 = vset.pattern.permute.xlu0 0
        %4725 = vperm.xlu0 %4724, %v316
        %v4726 = vpop.permute.xlu0 %4725
        %4729 = vset.pattern.permute.xlu0 0
        %4730 = vperm.xlu0 %4729, %v317
        %v4731 = vpop.permute.xlu0 %4730
        %4734 = vset.pattern.permute.xlu0 0
        %4735 = vperm.xlu0 %4734, %v318
        %v4736 = vpop.permute.xlu0 %4735
        %4739 = vset.pattern.permute.xlu0 0
        %4740 = vperm.xlu0 %4739, %v319
        %v4741 = vpop.permute.xlu0 %4740
        %4744 = vset.pattern.permute.xlu0 0
        %4745 = vperm.xlu0 %4744, %v320
        %v4746 = vpop.permute.xlu0 %4745
        %4749 = vset.pattern.permute.xlu0 0
        %4750 = vperm.xlu0 %4749, %v321
        %v4751 = vpop.permute.xlu0 %4750
        %4754 = vset.pattern.permute.xlu0 0
        %4755 = vperm.xlu0 %4754, %v322
        %v4756 = vpop.permute.xlu0 %4755
        %4759 = vset.pattern.permute.xlu0 0
        %4760 = vperm.xlu0 %4759, %v323
        %v4761 = vpop.permute.xlu0 %4760
        %4764 = vset.pattern.permute.xlu0 0
        %4765 = vperm.xlu0 %4764, %v324
        %v4766 = vpop.permute.xlu0 %4765
        %4769 = vset.pattern.permute.xlu0 0
        %4770 = vperm.xlu0 %4769, %v325
        %v4771 = vpop.permute.xlu0 %4770
        %4774 = vset.pattern.permute.xlu0 0
        %4775 = vperm.xlu0 %4774, %v326
        %v4776 = vpop.permute.xlu0 %4775
        %4779 = vset.pattern.permute.xlu0 0
        %4780 = vperm.xlu0 %4779, %v327
        %v4781 = vpop.permute.xlu0 %4780
        %4784 = vset.pattern.permute.xlu0 0
        %4785 = vperm.xlu0 %4784, %v328
        %v4786 = vpop.permute.xlu0 %4785
        %4789 = vset.pattern.permute.xlu0 0
        %4790 = vperm.xlu0 %4789, %v329
        %v4791 = vpop.permute.xlu0 %4790
        %4794 = vset.pattern.permute.xlu0 0
        %4795 = vperm.xlu0 %4794, %v330
        %v4796 = vpop.permute.xlu0 %4795
        %4799 = vset.pattern.permute.xlu0 0
        %4800 = vperm.xlu0 %4799, %v331
        %v4801 = vpop.permute.xlu0 %4800
        %4804 = vset.pattern.permute.xlu0 0
        %4805 = vperm.xlu0 %4804, %v332
        %v4806 = vpop.permute.xlu0 %4805
        %4809 = vset.pattern.permute.xlu0 0
        %4810 = vperm.xlu0 %4809, %v333
        %v4811 = vpop.permute.xlu0 %4810
        %4814 = vset.pattern.permute.xlu0 0
        %4815 = vperm.xlu0 %4814, %v334
        %v4816 = vpop.permute.xlu0 %4815
        %4819 = vset.pattern.permute.xlu0 0
        %4820 = vperm.xlu0 %4819, %v335
        %v4821 = vpop.permute.xlu0 %4820
        %4824 = vset.pattern.permute.xlu0 0
        %4825 = vperm.xlu0 %4824, %v336
        %v4826 = vpop.permute.xlu0 %4825
        %4829 = vset.pattern.permute.xlu0 0
        %4830 = vperm.xlu0 %4829, %v337
        %v4831 = vpop.permute.xlu0 %4830
        %4834 = vset.pattern.permute.xlu0 0
        %4835 = vperm.xlu0 %4834, %v338
        %v4836 = vpop.permute.xlu0 %4835
        %4839 = vset.pattern.permute.xlu0 0
        %4840 = vperm.xlu0 %4839, %v339
        %v4841 = vpop.permute.xlu0 %4840
        %4844 = vset.pattern.permute.xlu0 0
        %4845 = vperm.xlu0 %4844, %v340
        %v4846 = vpop.permute.xlu0 %4845
        %4849 = vset.pattern.permute.xlu0 0
        %4850 = vperm.xlu0 %4849, %v341
        %v4851 = vpop.permute.xlu0 %4850
        %v4853 = vmul.f32 %v4625, %v4666
        %v4854 = vmul.f32 %v4626, %v4671
        %v4855 = vmul.f32 %v4627, %v4676
        %v4856 = vmul.f32 %v4628, %v4681
        %v4857 = vmul.f32 %v4629, %v4686
        %v4858 = vmul.f32 %v4630, %v4691
        %v4859 = vmul.f32 %v4631, %v4696
        %v4860 = vmul.f32 %v4632, %v4701
        %v4861 = vmul.f32 %v4633, %v4706
        %v4862 = vmul.f32 %v4634, %v4711
        %v4863 = vmul.f32 %v4635, %v4716
        %v4864 = vmul.f32 %v4636, %v4721
        %v4865 = vmul.f32 %v4637, %v4726
        %v4866 = vmul.f32 %v4638, %v4731
        %v4867 = vmul.f32 %v4639, %v4736
        %v4868 = vmul.f32 %v4640, %v4741
        %v4869 = vmul.f32 %v4641, %v4746
        %v4870 = vmul.f32 %v4642, %v4751
        %v4871 = vmul.f32 %v4643, %v4756
        %v4872 = vmul.f32 %v4644, %v4761
        %v4873 = vmul.f32 %v4645, %v4766
        %v4874 = vmul.f32 %v4646, %v4771
        %v4875 = vmul.f32 %v4647, %v4776
        %v4876 = vmul.f32 %v4648, %v4781
        %v4877 = vmul.f32 %v4649, %v4786
        %v4878 = vmul.f32 %v4650, %v4791
        %v4879 = vmul.f32 %v4651, %v4796
        %v4880 = vmul.f32 %v4652, %v4801
        %v4881 = vmul.f32 %v4653, %v4806
        %v4882 = vmul.f32 %v4654, %v4811
        %v4883 = vmul.f32 %v4655, %v4816
        %v4884 = vmul.f32 %v4656, %v4821
        %v4885 = vmul.f32 %v4657, %v4826
        %v4886 = vmul.f32 %v4658, %v4831
        %v4887 = vmul.f32 %v4659, %v4836
        %v4888 = vmul.f32 %v4660, %v4841
        %v4889 = vmul.f32 %v4661, %v4846
        %v4890 = vmul.f32 %v4662, %v4851
        %4891 = vst.msk [vmem:[#allocation4] sm:$0xf] %vm380, 0
        %4892 = vst.msk [vmem:[#allocation4 + $0x4] sm:$0xf] %vm380, 0
        %vm4893 = vcmask 254976
        %vm4894 = vmand %vm4893, %vm2931
        %v4895 = vld [vmem:[#allocation4 + $0x8] sm:$0x3]
        %v4896 = vsel %vm4894, 0, %v4895
        %4897 = vst [vmem:[#allocation4 + $0x8] sm:$0x3] %v4896
        %v4898 = vpack.c.bf16 %v4853, %v4853
        %v4899 = vpack.c.bf16 %v4854, %v4854
        %v4900 = vpack.c.bf16 %v4855, %v4855
        %v4901 = vpack.c.bf16 %v4856, %v4856
        %v4902 = vpack.c.bf16 %v4857, %v4857
        %v4903 = vpack.c.bf16 %v4858, %v4858
        %v4904 = vpack.c.bf16 %v4859, %v4859
        %v4905 = vpack.c.bf16 %v4860, %v4860
        %v4906 = vpack.c.bf16 %v4861, %v4861
        %v4907 = vpack.c.bf16 %v4862, %v4862
        %v4908 = vpack.c.bf16 %v4863, %v4863
        %v4909 = vpack.c.bf16 %v4864, %v4864
        %v4910 = vpack.c.bf16 %v4865, %v4865
        %v4911 = vpack.c.bf16 %v4866, %v4866
        %v4912 = vpack.c.bf16 %v4867, %v4867
        %v4913 = vpack.c.bf16 %v4868, %v4868
        %v4914 = vpack.c.bf16 %v4869, %v4869
        %v4915 = vpack.c.bf16 %v4870, %v4870
        %v4916 = vpack.c.bf16 %v4871, %v4871
        %v4917 = vpack.c.bf16 %v4872, %v4872
        %v4918 = vpack.c.bf16 %v4873, %v4873
        %v4919 = vpack.c.bf16 %v4874, %v4874
        %v4920 = vpack.c.bf16 %v4875, %v4875
        %v4921 = vpack.c.bf16 %v4876, %v4876
        %v4922 = vpack.c.bf16 %v4877, %v4877
        %v4923 = vpack.c.bf16 %v4878, %v4878
        %v4924 = vpack.c.bf16 %v4879, %v4879
        %v4925 = vpack.c.bf16 %v4880, %v4880
        %v4926 = vpack.c.bf16 %v4881, %v4881
        %v4927 = vpack.c.bf16 %v4882, %v4882
        %v4928 = vpack.c.bf16 %v4883, %v4883
        %v4929 = vpack.c.bf16 %v4884, %v4884
        %v4930 = vpack.c.bf16 %v4885, %v4885
        %v4931 = vpack.c.bf16 %v4886, %v4886
        %v4932 = vpack.c.bf16 %v4887, %v4887
        %v4933 = vpack.c.bf16 %v4888, %v4888
        %v4934 = vpack.c.bf16 %v4889, %v4889
        %v4935 = vpack.c.bf16 %v4890, %v4890
        %v4937 = vshrl.u32 %v4898, 16
        %v4939 = vrot.slane %v4937, 6
        %v4940 = vshll.u32 %v4898, 16
        %v4942 = vrot.slane %v4940, 7
        %v4943 = vor.u32 %v4939, %v4942
        %v4944 = vrot.slane %v4943, 4
        %v4946 = vshrl.u32 %v4899, 16
        %v4948 = vrot.slane %v4946, 6
        %v4949 = vshll.u32 %v4899, 16
        %v4951 = vrot.slane %v4949, 7
        %v4952 = vor.u32 %v4948, %v4951
        %v4953 = vsel %vm2933, %v4944, %v4952
        %v4954 = vrot.slane %v4952, 4
        %v4956 = vshrl.u32 %v4900, 16
        %v4958 = vrot.slane %v4956, 6
        %v4959 = vshll.u32 %v4900, 16
        %v4961 = vrot.slane %v4959, 7
        %v4962 = vor.u32 %v4958, %v4961
        %v4963 = vsel %vm2933, %v4954, %v4962
        %v4964 = vrot.slane %v4962, 4
        %v4966 = vshrl.u32 %v4901, 16
        %v4968 = vrot.slane %v4966, 6
        %v4969 = vshll.u32 %v4901, 16
        %v4971 = vrot.slane %v4969, 7
        %v4972 = vor.u32 %v4968, %v4971
        %v4973 = vsel %vm2933, %v4964, %v4972
        %v4974 = vrot.slane %v4972, 4
        %v4976 = vshrl.u32 %v4902, 16
        %v4978 = vrot.slane %v4976, 6
        %v4979 = vshll.u32 %v4902, 16
        %v4981 = vrot.slane %v4979, 7
        %v4982 = vor.u32 %v4978, %v4981
        %v4983 = vsel %vm2933, %v4974, %v4982
        %v4984 = vrot.slane %v4982, 4
        %v4986 = vshrl.u32 %v4903, 16
        %v4988 = vrot.slane %v4986, 6
        %v4989 = vshll.u32 %v4903, 16
        %v4991 = vrot.slane %v4989, 7
        %v4992 = vor.u32 %v4988, %v4991
        %v4993 = vsel %vm2933, %v4984, %v4992
        %v4994 = vrot.slane %v4992, 4
        %v4996 = vshrl.u32 %v4904, 16
        %v4998 = vrot.slane %v4996, 6
        %v4999 = vshll.u32 %v4904, 16
        %v5001 = vrot.slane %v4999, 7
        %v5002 = vor.u32 %v4998, %v5001
        %v5003 = vsel %vm2933, %v4994, %v5002
        %v5004 = vrot.slane %v5002, 4
        %v5006 = vshrl.u32 %v4905, 16
        %v5008 = vrot.slane %v5006, 6
        %v5009 = vshll.u32 %v4905, 16
        %v5011 = vrot.slane %v5009, 7
        %v5012 = vor.u32 %v5008, %v5011
        %v5013 = vsel %vm2933, %v5004, %v5012
        %v5014 = vrot.slane %v5012, 4
        %v5016 = vshrl.u32 %v4906, 16
        %v5018 = vrot.slane %v5016, 6
        %v5019 = vshll.u32 %v4906, 16
        %v5021 = vrot.slane %v5019, 7
        %v5022 = vor.u32 %v5018, %v5021
        %v5023 = vsel %vm2933, %v5014, %v5022
        %v5024 = vrot.slane %v5022, 4
        %v5026 = vshrl.u32 %v4907, 16
        %v5028 = vrot.slane %v5026, 6
        %v5029 = vshll.u32 %v4907, 16
        %v5031 = vrot.slane %v5029, 7
        %v5032 = vor.u32 %v5028, %v5031
        %v5033 = vsel %vm2933, %v5024, %v5032
        %v5034 = vrot.slane %v5032, 4
        %v5036 = vshrl.u32 %v4908, 16
        %v5038 = vrot.slane %v5036, 6
        %v5039 = vshll.u32 %v4908, 16
        %v5041 = vrot.slane %v5039, 7
        %v5042 = vor.u32 %v5038, %v5041
        %v5043 = vsel %vm2933, %v5034, %v5042
        %v5044 = vrot.slane %v5042, 4
        %v5046 = vshrl.u32 %v4909, 16
        %v5048 = vrot.slane %v5046, 6
        %v5049 = vshll.u32 %v4909, 16
        %v5051 = vrot.slane %v5049, 7
        %v5052 = vor.u32 %v5048, %v5051
        %v5053 = vsel %vm2933, %v5044, %v5052
        %v5054 = vrot.slane %v5052, 4
        %v5056 = vshrl.u32 %v4910, 16
        %v5058 = vrot.slane %v5056, 6
        %v5059 = vshll.u32 %v4910, 16
        %v5061 = vrot.slane %v5059, 7
        %v5062 = vor.u32 %v5058, %v5061
        %v5063 = vsel %vm2933, %v5054, %v5062
        %v5064 = vrot.slane %v5062, 4
        %v5066 = vshrl.u32 %v4911, 16
        %v5068 = vrot.slane %v5066, 6
        %v5069 = vshll.u32 %v4911, 16
        %v5071 = vrot.slane %v5069, 7
        %v5072 = vor.u32 %v5068, %v5071
        %v5073 = vsel %vm2933, %v5064, %v5072
        %v5074 = vrot.slane %v5072, 4
        %v5076 = vshrl.u32 %v4912, 16
        %v5078 = vrot.slane %v5076, 6
        %v5079 = vshll.u32 %v4912, 16
        %v5081 = vrot.slane %v5079, 7
        %v5082 = vor.u32 %v5078, %v5081
        %v5083 = vsel %vm2933, %v5074, %v5082
        %v5084 = vrot.slane %v5082, 4
        %v5086 = vshrl.u32 %v4913, 16
        %v5088 = vrot.slane %v5086, 6
        %v5089 = vshll.u32 %v4913, 16
        %v5091 = vrot.slane %v5089, 7
        %v5092 = vor.u32 %v5088, %v5091
        %v5093 = vsel %vm2933, %v5084, %v5092
        %v5094 = vrot.slane %v5092, 4
        %v5096 = vshrl.u32 %v4914, 16
        %v5098 = vrot.slane %v5096, 6
        %v5099 = vshll.u32 %v4914, 16
        %v5101 = vrot.slane %v5099, 7
        %v5102 = vor.u32 %v5098, %v5101
        %v5103 = vsel %vm2933, %v5094, %v5102
        %v5104 = vrot.slane %v5102, 4
        %v5106 = vshrl.u32 %v4915, 16
        %v5108 = vrot.slane %v5106, 6
        %v5109 = vshll.u32 %v4915, 16
        %v5111 = vrot.slane %v5109, 7
        %v5112 = vor.u32 %v5108, %v5111
        %v5113 = vsel %vm2933, %v5104, %v5112
        %v5114 = vrot.slane %v5112, 4
        %v5116 = vshrl.u32 %v4916, 16
        %v5118 = vrot.slane %v5116, 6
        %v5119 = vshll.u32 %v4916, 16
        %v5121 = vrot.slane %v5119, 7
        %v5122 = vor.u32 %v5118, %v5121
        %v5123 = vsel %vm2933, %v5114, %v5122
        %v5124 = vrot.slane %v5122, 4
        %v5126 = vshrl.u32 %v4917, 16
        %v5128 = vrot.slane %v5126, 6
        %v5129 = vshll.u32 %v4917, 16
        %v5131 = vrot.slane %v5129, 7
        %v5132 = vor.u32 %v5128, %v5131
        %v5133 = vsel %vm2933, %v5124, %v5132
        %v5134 = vrot.slane %v5132, 4
        %v5136 = vshrl.u32 %v4918, 16
        %v5138 = vrot.slane %v5136, 6
        %v5139 = vshll.u32 %v4918, 16
        %v5141 = vrot.slane %v5139, 7
        %v5142 = vor.u32 %v5138, %v5141
        %v5143 = vsel %vm2933, %v5134, %v5142
        %v5144 = vrot.slane %v5142, 4
        %v5146 = vshrl.u32 %v4919, 16
        %v5148 = vrot.slane %v5146, 6
        %v5149 = vshll.u32 %v4919, 16
        %v5151 = vrot.slane %v5149, 7
        %v5152 = vor.u32 %v5148, %v5151
        %v5153 = vsel %vm2933, %v5144, %v5152
        %v5154 = vrot.slane %v5152, 4
        %v5156 = vshrl.u32 %v4920, 16
        %v5158 = vrot.slane %v5156, 6
        %v5159 = vshll.u32 %v4920, 16
        %v5161 = vrot.slane %v5159, 7
        %v5162 = vor.u32 %v5158, %v5161
        %v5163 = vsel %vm2933, %v5154, %v5162
        %v5164 = vrot.slane %v5162, 4
        %v5166 = vshrl.u32 %v4921, 16
        %v5168 = vrot.slane %v5166, 6
        %v5169 = vshll.u32 %v4921, 16
        %v5171 = vrot.slane %v5169, 7
        %v5172 = vor.u32 %v5168, %v5171
        %v5173 = vsel %vm2933, %v5164, %v5172
        %v5174 = vrot.slane %v5172, 4
        %v5176 = vshrl.u32 %v4922, 16
        %v5178 = vrot.slane %v5176, 6
        %v5179 = vshll.u32 %v4922, 16
        %v5181 = vrot.slane %v5179, 7
        %v5182 = vor.u32 %v5178, %v5181
        %v5183 = vsel %vm2933, %v5174, %v5182
        %v5184 = vrot.slane %v5182, 4
        %v5186 = vshrl.u32 %v4923, 16
        %v5188 = vrot.slane %v5186, 6
        %v5189 = vshll.u32 %v4923, 16
        %v5191 = vrot.slane %v5189, 7
        %v5192 = vor.u32 %v5188, %v5191
        %v5193 = vsel %vm2933, %v5184, %v5192
        %v5194 = vrot.slane %v5192, 4
        %v5196 = vshrl.u32 %v4924, 16
        %v5198 = vrot.slane %v5196, 6
        %v5199 = vshll.u32 %v4924, 16
        %v5201 = vrot.slane %v5199, 7
        %v5202 = vor.u32 %v5198, %v5201
        %v5203 = vsel %vm2933, %v5194, %v5202
        %v5204 = vrot.slane %v5202, 4
        %v5206 = vshrl.u32 %v4925, 16
        %v5208 = vrot.slane %v5206, 6
        %v5209 = vshll.u32 %v4925, 16
        %v5211 = vrot.slane %v5209, 7
        %v5212 = vor.u32 %v5208, %v5211
        %v5213 = vsel %vm2933, %v5204, %v5212
        %v5214 = vrot.slane %v5212, 4
        %v5216 = vshrl.u32 %v4926, 16
        %v5218 = vrot.slane %v5216, 6
        %v5219 = vshll.u32 %v4926, 16
        %v5221 = vrot.slane %v5219, 7
        %v5222 = vor.u32 %v5218, %v5221
        %v5223 = vsel %vm2933, %v5214, %v5222
        %v5224 = vrot.slane %v5222, 4
        %v5226 = vshrl.u32 %v4927, 16
        %v5228 = vrot.slane %v5226, 6
        %v5229 = vshll.u32 %v4927, 16
        %v5231 = vrot.slane %v5229, 7
        %v5232 = vor.u32 %v5228, %v5231
        %v5233 = vsel %vm2933, %v5224, %v5232
        %v5234 = vrot.slane %v5232, 4
        %v5236 = vshrl.u32 %v4928, 16
        %v5238 = vrot.slane %v5236, 6
        %v5239 = vshll.u32 %v4928, 16
        %v5241 = vrot.slane %v5239, 7
        %v5242 = vor.u32 %v5238, %v5241
        %v5243 = vsel %vm2933, %v5234, %v5242
        %v5244 = vrot.slane %v5242, 4
        %v5246 = vshrl.u32 %v4929, 16
        %v5248 = vrot.slane %v5246, 6
        %v5249 = vshll.u32 %v4929, 16
        %v5251 = vrot.slane %v5249, 7
        %v5252 = vor.u32 %v5248, %v5251
        %v5253 = vsel %vm2933, %v5244, %v5252
        %v5254 = vrot.slane %v5252, 4
        %v5256 = vshrl.u32 %v4930, 16
        %v5258 = vrot.slane %v5256, 6
        %v5259 = vshll.u32 %v4930, 16
        %v5261 = vrot.slane %v5259, 7
        %v5262 = vor.u32 %v5258, %v5261
        %v5263 = vsel %vm2933, %v5254, %v5262
        %v5264 = vrot.slane %v5262, 4
        %v5266 = vshrl.u32 %v4931, 16
        %v5268 = vrot.slane %v5266, 6
        %v5269 = vshll.u32 %v4931, 16
        %v5271 = vrot.slane %v5269, 7
        %v5272 = vor.u32 %v5268, %v5271
        %v5273 = vsel %vm2933, %v5264, %v5272
        %v5274 = vrot.slane %v5272, 4
        %v5276 = vshrl.u32 %v4932, 16
        %v5278 = vrot.slane %v5276, 6
        %v5279 = vshll.u32 %v4932, 16
        %v5281 = vrot.slane %v5279, 7
        %v5282 = vor.u32 %v5278, %v5281
        %v5283 = vsel %vm2933, %v5274, %v5282
        %v5284 = vrot.slane %v5282, 4
        %v5286 = vshrl.u32 %v4933, 16
        %v5288 = vrot.slane %v5286, 6
        %v5289 = vshll.u32 %v4933, 16
        %v5291 = vrot.slane %v5289, 7
        %v5292 = vor.u32 %v5288, %v5291
        %v5293 = vsel %vm2933, %v5284, %v5292
        %v5294 = vrot.slane %v5292, 4
        %v5296 = vshrl.u32 %v4934, 16
        %v5298 = vrot.slane %v5296, 6
        %v5299 = vshll.u32 %v4934, 16
        %v5301 = vrot.slane %v5299, 7
        %v5302 = vor.u32 %v5298, %v5301
        %v5303 = vsel %vm2933, %v5294, %v5302
        %v5304 = vrot.slane %v5302, 4
        %v5306 = vshrl.u32 %v4935, 16
        %v5308 = vrot.slane %v5306, 6
        %v5309 = vshll.u32 %v4935, 16
        %v5311 = vrot.slane %v5309, 7
        %v5312 = vor.u32 %v5308, %v5311
        %v5313 = vsel %vm2933, %v5304, %v5312
        %v5314 = vrot.slane %v5312, 4
        %vm5354 = vcmask 257025
        %vm5355 = vsmask.f32 7942
        %vm5356 = vmand %vm5354, %vm5355
        %v5357 = vld [vmem:[#allocation4 + $0x8] sm:$0xe]
        %v5358 = vsel %vm5356, %v4943, %v5357
        %5359 = vst [vmem:[#allocation4 + $0x8] sm:$0xe] %v5358
        %5360 = vst.msk [vmem:[#allocation4 + $0xc] sm:$0xf] %vm380, %v4953
        %5361 = vst.msk [vmem:[#allocation4 + $0x10] sm:$0xf] %vm380, %v4963
        %5362 = vst.msk [vmem:[#allocation4 + $0x14] sm:$0xf] %vm380, %v4973
        %5363 = vst.msk [vmem:[#allocation4 + $0x18] sm:$0xf] %vm380, %v4983
        %5364 = vst.msk [vmem:[#allocation4 + $0x1c] sm:$0xf] %vm380, %v4993
        %5365 = vst.msk [vmem:[#allocation4 + $0x20] sm:$0xf] %vm380, %v5003
        %5366 = vst.msk [vmem:[#allocation4 + $0x24] sm:$0xf] %vm380, %v5013
        %5367 = vst.msk [vmem:[#allocation4 + $0x28] sm:$0xf] %vm380, %v5023
        %5368 = vst.msk [vmem:[#allocation4 + $0x2c] sm:$0xf] %vm380, %v5033
        %5369 = vst.msk [vmem:[#allocation4 + $0x30] sm:$0xf] %vm380, %v5043
        %5370 = vst.msk [vmem:[#allocation4 + $0x34] sm:$0xf] %vm380, %v5053
        %5371 = vst.msk [vmem:[#allocation4 + $0x38] sm:$0xf] %vm380, %v5063
        %5372 = vst.msk [vmem:[#allocation4 + $0x3c] sm:$0xf] %vm380, %v5073
        %5373 = vst.msk [vmem:[#allocation4 + $0x40] sm:$0xf] %vm380, %v5083
        %5374 = vst.msk [vmem:[#allocation4 + $0x44] sm:$0xf] %vm380, %v5093
        %5375 = vst.msk [vmem:[#allocation4 + $0x48] sm:$0xf] %vm380, %v5103
        %5376 = vst.msk [vmem:[#allocation4 + $0x4c] sm:$0xf] %vm380, %v5113
        %5377 = vst.msk [vmem:[#allocation4 + $0x50] sm:$0xf] %vm380, %v5123
        %5378 = vst.msk [vmem:[#allocation4 + $0x54] sm:$0xf] %vm380, %v5133
        %5379 = vst.msk [vmem:[#allocation4 + $0x58] sm:$0xf] %vm380, %v5143
        %5380 = vst.msk [vmem:[#allocation4 + $0x5c] sm:$0xf] %vm380, %v5153
        %5381 = vst.msk [vmem:[#allocation4 + $0x60] sm:$0xf] %vm380, %v5163
        %5382 = vst.msk [vmem:[#allocation4 + $0x64] sm:$0xf] %vm380, %v5173
        %5383 = vst.msk [vmem:[#allocation4 + $0x68] sm:$0xf] %vm380, %v5183
        %5384 = vst.msk [vmem:[#allocation4 + $0x6c] sm:$0xf] %vm380, %v5193
        %5385 = vst.msk [vmem:[#allocation4 + $0x70] sm:$0xf] %vm380, %v5203
        %5386 = vst.msk [vmem:[#allocation4 + $0x74] sm:$0xf] %vm380, %v5213
        %5387 = vst.msk [vmem:[#allocation4 + $0x78] sm:$0xf] %vm380, %v5223
        %5388 = vst.msk [vmem:[#allocation4 + $0x7c] sm:$0xf] %vm380, %v5233
        %5389 = vst.msk [vmem:[#allocation4 + $0x80] sm:$0xf] %vm380, %v5243
        %5390 = vst.msk [vmem:[#allocation4 + $0x84] sm:$0xf] %vm380, %v5253
        %5391 = vst.msk [vmem:[#allocation4 + $0x88] sm:$0xf] %vm380, %v5263
        %5392 = vst.msk [vmem:[#allocation4 + $0x8c] sm:$0xf] %vm380, %v5273
        %5393 = vst.msk [vmem:[#allocation4 + $0x90] sm:$0xf] %vm380, %v5283
        %5394 = vst.msk [vmem:[#allocation4 + $0x94] sm:$0xf] %vm380, %v5293
        %5395 = vst.msk [vmem:[#allocation4 + $0x98] sm:$0xf] %vm380, %v5303
        %5396 = vst.msk [vmem:[#allocation4 + $0x9c] sm:$0xf] %vm380, %v5313
        %v5397 = vld [vmem:[#allocation4 + $0xa0] sm:$0x3]
        %v5398 = vsel %vm4894, %v5314, %v5397
        %5399 = vst [vmem:[#allocation4 + $0xa0] sm:$0x3] %v5398
        %v5400 = vld [vmem:[#allocation4 + $0xa0] sm:$0xe]
        %v5401 = vsel %vm5356, 0, %v5400
        %5402 = vst [vmem:[#allocation4 + $0xa0] sm:$0xe] %v5401
        %5403 = vst.msk [vmem:[#allocation4 + $0xa4] sm:$0xf] %vm380, 0
        %5404 = vst.msk [vmem:[#allocation4 + $0xa8] sm:$0xf] %vm380, 0
        %5405 = vst.msk [vmem:[#allocation4 + $0xac] sm:$0xf] %vm380, 0
        %5406 = vst.msk [vmem:[#allocation4 + $0xb0] sm:$0xf] %vm380, 0
        %v5407 = vld [vmem:[#allocation4] sm:$0xf]
        %v5408 = vld [vmem:[#allocation4 + $0x4] sm:$0xf]
        %v5409 = vld [vmem:[#allocation4 + $0x8] sm:$0xf]
        %v5410 = vld [vmem:[#allocation4 + $0xc] sm:$0xf]
        %v5411 = vld [vmem:[#allocation4 + $0x10] sm:$0xf]
        %v5412 = vld [vmem:[#allocation4 + $0x14] sm:$0xf]
        %v5413 = vld [vmem:[#allocation4 + $0x18] sm:$0xf]
        %v5414 = vld [vmem:[#allocation4 + $0x1c] sm:$0xf]
        %v5415 = vld [vmem:[#allocation4 + $0x20] sm:$0xf]
        %v5416 = vld [vmem:[#allocation4 + $0x24] sm:$0xf]
        %v5417 = vld [vmem:[#allocation4 + $0x28] sm:$0xf]
        %v5418 = vld [vmem:[#allocation4 + $0x2c] sm:$0xf]
        %v5419 = vld [vmem:[#allocation4 + $0x30] sm:$0xf]
        %v5420 = vld [vmem:[#allocation4 + $0x34] sm:$0xf]
        %v5421 = vld [vmem:[#allocation4 + $0x38] sm:$0xf]
        %v5422 = vld [vmem:[#allocation4 + $0x3c] sm:$0xf]
        %v5423 = vld [vmem:[#allocation4 + $0x40] sm:$0xf]
        %v5424 = vld [vmem:[#allocation4 + $0x44] sm:$0xf]
        %v5425 = vld [vmem:[#allocation4 + $0x48] sm:$0xf]
        %v5426 = vld [vmem:[#allocation4 + $0x4c] sm:$0xf]
        %v5427 = vld [vmem:[#allocation4 + $0x50] sm:$0xf]
        %v5428 = vld [vmem:[#allocation4 + $0x54] sm:$0xf]
        %v5429 = vld [vmem:[#allocation4 + $0x58] sm:$0xf]
        %v5430 = vld [vmem:[#allocation4 + $0x5c] sm:$0xf]
        %v5431 = vld [vmem:[#allocation4 + $0x60] sm:$0xf]
        %v5432 = vld [vmem:[#allocation4 + $0x64] sm:$0xf]
        %v5433 = vld [vmem:[#allocation4 + $0x68] sm:$0xf]
        %v5434 = vld [vmem:[#allocation4 + $0x6c] sm:$0xf]
        %v5435 = vld [vmem:[#allocation4 + $0x70] sm:$0xf]
        %v5436 = vld [vmem:[#allocation4 + $0x74] sm:$0xf]
        %v5437 = vld [vmem:[#allocation4 + $0x78] sm:$0xf]
        %v5438 = vld [vmem:[#allocation4 + $0x7c] sm:$0xf]
        %v5439 = vld [vmem:[#allocation4 + $0x80] sm:$0xf]
        %v5440 = vld [vmem:[#allocation4 + $0x84] sm:$0xf]
        %v5441 = vld [vmem:[#allocation4 + $0x88] sm:$0xf]
        %v5442 = vld [vmem:[#allocation4 + $0x8c] sm:$0xf]
        %v5443 = vld [vmem:[#allocation4 + $0x90] sm:$0xf]
        %v5444 = vld [vmem:[#allocation4 + $0x94] sm:$0xf]
        %5445 = vst.msk [vmem:[#allocation3] sm:$0xf] %vm380, %v5407
        %5446 = vst.msk [vmem:[#allocation3 + $0xc] sm:$0xf] %vm380, %v5408
        %5447 = vst.msk [vmem:[#allocation3 + $0x18] sm:$0xf] %vm380, %v5409
        %5448 = vst.msk [vmem:[#allocation3 + $0x24] sm:$0xf] %vm380, %v5410
        %5449 = vst.msk [vmem:[#allocation3 + $0x30] sm:$0xf] %vm380, %v5411
        %5450 = vst.msk [vmem:[#allocation3 + $0x3c] sm:$0xf] %vm380, %v5412
        %5451 = vst.msk [vmem:[#allocation3 + $0x48] sm:$0xf] %vm380, %v5413
        %5452 = vst.msk [vmem:[#allocation3 + $0x54] sm:$0xf] %vm380, %v5414
        %5453 = vst.msk [vmem:[#allocation3 + $0x60] sm:$0xf] %vm380, %v5415
        %5454 = vst.msk [vmem:[#allocation3 + $0x6c] sm:$0xf] %vm380, %v5416
        %5455 = vst.msk [vmem:[#allocation3 + $0x78] sm:$0xf] %vm380, %v5417
        %5456 = vst.msk [vmem:[#allocation3 + $0x84] sm:$0xf] %vm380, %v5418
        %5457 = vst.msk [vmem:[#allocation3 + $0x90] sm:$0xf] %vm380, %v5419
        %5458 = vst.msk [vmem:[#allocation3 + $0x9c] sm:$0xf] %vm380, %v5420
        %5459 = vst.msk [vmem:[#allocation3 + $0xa8] sm:$0xf] %vm380, %v5421
        %5460 = vst.msk [vmem:[#allocation3 + $0xb4] sm:$0xf] %vm380, %v5422
        %5461 = vst.msk [vmem:[#allocation3 + $0xc0] sm:$0xf] %vm380, %v5423
        %5462 = vst.msk [vmem:[#allocation3 + $0xcc] sm:$0xf] %vm380, %v5424
        %5463 = vst.msk [vmem:[#allocation3 + $0xd8] sm:$0xf] %vm380, %v5425
        %5464 = vst.msk [vmem:[#allocation3 + $0xe4] sm:$0xf] %vm380, %v5426
        %5465 = vst.msk [vmem:[#allocation3 + $0xf0] sm:$0xf] %vm380, %v5427
        %5466 = vst.msk [vmem:[#allocation3 + $0xfc] sm:$0xf] %vm380, %v5428
        %5467 = vst.msk [vmem:[#allocation3 + $0x108] sm:$0xf] %vm380, %v5429
        %5468 = vst.msk [vmem:[#allocation3 + $0x114] sm:$0xf] %vm380, %v5430
        %5469 = vst.msk [vmem:[#allocation3 + $0x120] sm:$0xf] %vm380, %v5431
        %5470 = vst.msk [vmem:[#allocation3 + $0x12c] sm:$0xf] %vm380, %v5432
        %5471 = vst.msk [vmem:[#allocation3 + $0x138] sm:$0xf] %vm380, %v5433
        %5472 = vst.msk [vmem:[#allocation3 + $0x144] sm:$0xf] %vm380, %v5434
        %5473 = vst.msk [vmem:[#allocation3 + $0x150] sm:$0xf] %vm380, %v5435
        %5474 = vst.msk [vmem:[#allocation3 + $0x15c] sm:$0xf] %vm380, %v5436
        %5475 = vst.msk [vmem:[#allocation3 + $0x168] sm:$0xf] %vm380, %v5437
        %5476 = vst.msk [vmem:[#allocation3 + $0x174] sm:$0xf] %vm380, %v5438
        %5477 = vst.msk [vmem:[#allocation3 + $0x180] sm:$0xf] %vm380, %v5439
        %5478 = vst.msk [vmem:[#allocation3 + $0x18c] sm:$0xf] %vm380, %v5440
        %5479 = vst.msk [vmem:[#allocation3 + $0x198] sm:$0xf] %vm380, %v5441
        %5480 = vst.msk [vmem:[#allocation3 + $0x1a4] sm:$0xf] %vm380, %v5442
        %5481 = vst.msk [vmem:[#allocation3 + $0x1b0] sm:$0xf] %vm380, %v5443
        %5482 = vst.msk [vmem:[#allocation3 + $0x1bc] sm:$0xf] %vm380, %v5444
        %v5483 = vld [vmem:[#allocation4] sm:$0xf]
        %v5484 = vld [vmem:[#allocation4 + $0x4] sm:$0xf]
        %v5485 = vld [vmem:[#allocation4 + $0x8] sm:$0xf]
        %v5486 = vld [vmem:[#allocation4 + $0xc] sm:$0xf]
        %v5487 = vld [vmem:[#allocation4 + $0x10] sm:$0xf]
        %v5488 = vld [vmem:[#allocation4 + $0x14] sm:$0xf]
        %v5489 = vld [vmem:[#allocation4 + $0x18] sm:$0xf]
        %v5490 = vld [vmem:[#allocation4 + $0x1c] sm:$0xf]
        %v5491 = vld [vmem:[#allocation4 + $0x20] sm:$0xf]
        %v5492 = vld [vmem:[#allocation4 + $0x24] sm:$0xf]
        %v5493 = vld [vmem:[#allocation4 + $0x28] sm:$0xf]
        %v5494 = vld [vmem:[#allocation4 + $0x2c] sm:$0xf]
        %v5495 = vld [vmem:[#allocation4 + $0x30] sm:$0xf]
        %v5496 = vld [vmem:[#allocation4 + $0x34] sm:$0xf]
        %v5497 = vld [vmem:[#allocation4 + $0x38] sm:$0xf]
        %v5498 = vld [vmem:[#allocation4 + $0x3c] sm:$0xf]
        %v5499 = vld [vmem:[#allocation4 + $0x40] sm:$0xf]
        %v5500 = vld [vmem:[#allocation4 + $0x44] sm:$0xf]
        %v5501 = vld [vmem:[#allocation4 + $0x48] sm:$0xf]
        %v5502 = vld [vmem:[#allocation4 + $0x4c] sm:$0xf]
        %v5503 = vld [vmem:[#allocation4 + $0x50] sm:$0xf]
        %v5504 = vld [vmem:[#allocation4 + $0x54] sm:$0xf]
        %v5505 = vld [vmem:[#allocation4 + $0x58] sm:$0xf]
        %v5506 = vld [vmem:[#allocation4 + $0x5c] sm:$0xf]
        %v5507 = vld [vmem:[#allocation4 + $0x60] sm:$0xf]
        %v5508 = vld [vmem:[#allocation4 + $0x64] sm:$0xf]
        %v5509 = vld [vmem:[#allocation4 + $0x68] sm:$0xf]
        %v5510 = vld [vmem:[#allocation4 + $0x6c] sm:$0xf]
        %v5511 = vld [vmem:[#allocation4 + $0x70] sm:$0xf]
        %v5512 = vld [vmem:[#allocation4 + $0x74] sm:$0xf]
        %v5513 = vld [vmem:[#allocation4 + $0x78] sm:$0xf]
        %v5514 = vld [vmem:[#allocation4 + $0x7c] sm:$0xf]
        %v5515 = vld [vmem:[#allocation4 + $0x80] sm:$0xf]
        %v5516 = vld [vmem:[#allocation4 + $0x84] sm:$0xf]
        %v5517 = vld [vmem:[#allocation4 + $0x88] sm:$0xf]
        %v5518 = vld [vmem:[#allocation4 + $0x8c] sm:$0xf]
        %v5519 = vld [vmem:[#allocation4 + $0x90] sm:$0xf]
        %v5520 = vld [vmem:[#allocation4 + $0x94] sm:$0xf]
        %v5521 = vld [vmem:[#allocation4 + $0x98] sm:$0x1]
        %v5523 = vshrl.u32 %v5483, 16
        %v5525 = vrot.slane %v5523, 4
        %v5526 = vshll.u32 %v5483, 16
        %v5528 = vrot.slane %v5526, 5
        %v5529 = vor.u32 %v5525, %v5528
        %v5530 = vrot.slane %v5529, 4
        %v5532 = vshll.u32 %v5484, 16
        %v5534 = vrot.slane %v5532, 5
        %v5535 = vsel %vm460, %v5530, %v5534
        %v5536 = vshrl.u32 %v5484, 16
        %v5538 = vrot.slane %v5536, 4
        %v5539 = vor.u32 %v5538, %v5534
        %v5540 = vrot.slane %v5539, 4
        %v5542 = vshll.u32 %v5485, 16
        %v5544 = vrot.slane %v5542, 5
        %v5545 = vsel %vm460, %v5540, %v5544
        %v5546 = vshrl.u32 %v5485, 16
        %v5548 = vrot.slane %v5546, 4
        %v5549 = vor.u32 %v5548, %v5544
        %v5550 = vrot.slane %v5549, 4
        %v5552 = vshll.u32 %v5486, 16
        %v5554 = vrot.slane %v5552, 5
        %v5555 = vsel %vm460, %v5550, %v5554
        %v5556 = vshrl.u32 %v5486, 16
        %v5558 = vrot.slane %v5556, 4
        %v5559 = vor.u32 %v5558, %v5554
        %v5560 = vrot.slane %v5559, 4
        %v5562 = vshll.u32 %v5487, 16
        %v5564 = vrot.slane %v5562, 5
        %v5565 = vsel %vm460, %v5560, %v5564
        %v5566 = vshrl.u32 %v5487, 16
        %v5568 = vrot.slane %v5566, 4
        %v5569 = vor.u32 %v5568, %v5564
        %v5570 = vrot.slane %v5569, 4
        %v5572 = vshll.u32 %v5488, 16
        %v5574 = vrot.slane %v5572, 5
        %v5575 = vsel %vm460, %v5570, %v5574
        %v5576 = vshrl.u32 %v5488, 16
        %v5578 = vrot.slane %v5576, 4
        %v5579 = vor.u32 %v5578, %v5574
        %v5580 = vrot.slane %v5579, 4
        %v5582 = vshll.u32 %v5489, 16
        %v5584 = vrot.slane %v5582, 5
        %v5585 = vsel %vm460, %v5580, %v5584
        %v5586 = vshrl.u32 %v5489, 16
        %v5588 = vrot.slane %v5586, 4
        %v5589 = vor.u32 %v5588, %v5584
        %v5590 = vrot.slane %v5589, 4
        %v5592 = vshll.u32 %v5490, 16
        %v5594 = vrot.slane %v5592, 5
        %v5595 = vsel %vm460, %v5590, %v5594
        %v5596 = vshrl.u32 %v5490, 16
        %v5598 = vrot.slane %v5596, 4
        %v5599 = vor.u32 %v5598, %v5594
        %v5600 = vrot.slane %v5599, 4
        %v5602 = vshll.u32 %v5491, 16
        %v5604 = vrot.slane %v5602, 5
        %v5605 = vsel %vm460, %v5600, %v5604
        %v5606 = vshrl.u32 %v5491, 16
        %v5608 = vrot.slane %v5606, 4
        %v5609 = vor.u32 %v5608, %v5604
        %v5610 = vrot.slane %v5609, 4
        %v5612 = vshll.u32 %v5492, 16
        %v5614 = vrot.slane %v5612, 5
        %v5615 = vsel %vm460, %v5610, %v5614
        %v5616 = vshrl.u32 %v5492, 16
        %v5618 = vrot.slane %v5616, 4
        %v5619 = vor.u32 %v5618, %v5614
        %v5620 = vrot.slane %v5619, 4
        %v5622 = vshll.u32 %v5493, 16
        %v5624 = vrot.slane %v5622, 5
        %v5625 = vsel %vm460, %v5620, %v5624
        %v5626 = vshrl.u32 %v5493, 16
        %v5628 = vrot.slane %v5626, 4
        %v5629 = vor.u32 %v5628, %v5624
        %v5630 = vrot.slane %v5629, 4
        %v5632 = vshll.u32 %v5494, 16
        %v5634 = vrot.slane %v5632, 5
        %v5635 = vsel %vm460, %v5630, %v5634
        %v5636 = vshrl.u32 %v5494, 16
        %v5638 = vrot.slane %v5636, 4
        %v5639 = vor.u32 %v5638, %v5634
        %v5640 = vrot.slane %v5639, 4
        %v5642 = vshll.u32 %v5495, 16
        %v5644 = vrot.slane %v5642, 5
        %v5645 = vsel %vm460, %v5640, %v5644
        %v5646 = vshrl.u32 %v5495, 16
        %v5648 = vrot.slane %v5646, 4
        %v5649 = vor.u32 %v5648, %v5644
        %v5650 = vrot.slane %v5649, 4
        %v5652 = vshll.u32 %v5496, 16
        %v5654 = vrot.slane %v5652, 5
        %v5655 = vsel %vm460, %v5650, %v5654
        %v5656 = vshrl.u32 %v5496, 16
        %v5658 = vrot.slane %v5656, 4
        %v5659 = vor.u32 %v5658, %v5654
        %v5660 = vrot.slane %v5659, 4
        %v5662 = vshll.u32 %v5497, 16
        %v5664 = vrot.slane %v5662, 5
        %v5665 = vsel %vm460, %v5660, %v5664
        %v5666 = vshrl.u32 %v5497, 16
        %v5668 = vrot.slane %v5666, 4
        %v5669 = vor.u32 %v5668, %v5664
        %v5670 = vrot.slane %v5669, 4
        %v5672 = vshll.u32 %v5498, 16
        %v5674 = vrot.slane %v5672, 5
        %v5675 = vsel %vm460, %v5670, %v5674
        %v5676 = vshrl.u32 %v5498, 16
        %v5678 = vrot.slane %v5676, 4
        %v5679 = vor.u32 %v5678, %v5674
        %v5680 = vrot.slane %v5679, 4
        %v5682 = vshll.u32 %v5499, 16
        %v5684 = vrot.slane %v5682, 5
        %v5685 = vsel %vm460, %v5680, %v5684
        %v5686 = vshrl.u32 %v5499, 16
        %v5688 = vrot.slane %v5686, 4
        %v5689 = vor.u32 %v5688, %v5684
        %v5690 = vrot.slane %v5689, 4
        %v5692 = vshll.u32 %v5500, 16
        %v5694 = vrot.slane %v5692, 5
        %v5695 = vsel %vm460, %v5690, %v5694
        %v5696 = vshrl.u32 %v5500, 16
        %v5698 = vrot.slane %v5696, 4
        %v5699 = vor.u32 %v5698, %v5694
        %v5700 = vrot.slane %v5699, 4
        %v5702 = vshll.u32 %v5501, 16
        %v5704 = vrot.slane %v5702, 5
        %v5705 = vsel %vm460, %v5700, %v5704
        %v5706 = vshrl.u32 %v5501, 16
        %v5708 = vrot.slane %v5706, 4
        %v5709 = vor.u32 %v5708, %v5704
        %v5710 = vrot.slane %v5709, 4
        %v5712 = vshll.u32 %v5502, 16
        %v5714 = vrot.slane %v5712, 5
        %v5715 = vsel %vm460, %v5710, %v5714
        %v5716 = vshrl.u32 %v5502, 16
        %v5718 = vrot.slane %v5716, 4
        %v5719 = vor.u32 %v5718, %v5714
        %v5720 = vrot.slane %v5719, 4
        %v5722 = vshll.u32 %v5503, 16
        %v5724 = vrot.slane %v5722, 5
        %v5725 = vsel %vm460, %v5720, %v5724
        %v5726 = vshrl.u32 %v5503, 16
        %v5728 = vrot.slane %v5726, 4
        %v5729 = vor.u32 %v5728, %v5724
        %v5730 = vrot.slane %v5729, 4
        %v5732 = vshll.u32 %v5504, 16
        %v5734 = vrot.slane %v5732, 5
        %v5735 = vsel %vm460, %v5730, %v5734
        %v5736 = vshrl.u32 %v5504, 16
        %v5738 = vrot.slane %v5736, 4
        %v5739 = vor.u32 %v5738, %v5734
        %v5740 = vrot.slane %v5739, 4
        %v5742 = vshll.u32 %v5505, 16
        %v5744 = vrot.slane %v5742, 5
        %v5745 = vsel %vm460, %v5740, %v5744
        %v5746 = vshrl.u32 %v5505, 16
        %v5748 = vrot.slane %v5746, 4
        %v5749 = vor.u32 %v5748, %v5744
        %v5750 = vrot.slane %v5749, 4
        %v5752 = vshll.u32 %v5506, 16
        %v5754 = vrot.slane %v5752, 5
        %v5755 = vsel %vm460, %v5750, %v5754
        %v5756 = vshrl.u32 %v5506, 16
        %v5758 = vrot.slane %v5756, 4
        %v5759 = vor.u32 %v5758, %v5754
        %v5760 = vrot.slane %v5759, 4
        %v5762 = vshll.u32 %v5507, 16
        %v5764 = vrot.slane %v5762, 5
        %v5765 = vsel %vm460, %v5760, %v5764
        %v5766 = vshrl.u32 %v5507, 16
        %v5768 = vrot.slane %v5766, 4
        %v5769 = vor.u32 %v5768, %v5764
        %v5770 = vrot.slane %v5769, 4
        %v5772 = vshll.u32 %v5508, 16
        %v5774 = vrot.slane %v5772, 5
        %v5775 = vsel %vm460, %v5770, %v5774
        %v5776 = vshrl.u32 %v5508, 16
        %v5778 = vrot.slane %v5776, 4
        %v5779 = vor.u32 %v5778, %v5774
        %v5780 = vrot.slane %v5779, 4
        %v5782 = vshll.u32 %v5509, 16
        %v5784 = vrot.slane %v5782, 5
        %v5785 = vsel %vm460, %v5780, %v5784
        %v5786 = vshrl.u32 %v5509, 16
        %v5788 = vrot.slane %v5786, 4
        %v5789 = vor.u32 %v5788, %v5784
        %v5790 = vrot.slane %v5789, 4
        %v5792 = vshll.u32 %v5510, 16
        %v5794 = vrot.slane %v5792, 5
        %v5795 = vsel %vm460, %v5790, %v5794
        %v5796 = vshrl.u32 %v5510, 16
        %v5798 = vrot.slane %v5796, 4
        %v5799 = vor.u32 %v5798, %v5794
        %v5800 = vrot.slane %v5799, 4
        %v5802 = vshll.u32 %v5511, 16
        %v5804 = vrot.slane %v5802, 5
        %v5805 = vsel %vm460, %v5800, %v5804
        %v5806 = vshrl.u32 %v5511, 16
        %v5808 = vrot.slane %v5806, 4
        %v5809 = vor.u32 %v5808, %v5804
        %v5810 = vrot.slane %v5809, 4
        %v5812 = vshll.u32 %v5512, 16
        %v5814 = vrot.slane %v5812, 5
        %v5815 = vsel %vm460, %v5810, %v5814
        %v5816 = vshrl.u32 %v5512, 16
        %v5818 = vrot.slane %v5816, 4
        %v5819 = vor.u32 %v5818, %v5814
        %v5820 = vrot.slane %v5819, 4
        %v5822 = vshll.u32 %v5513, 16
        %v5824 = vrot.slane %v5822, 5
        %v5825 = vsel %vm460, %v5820, %v5824
        %v5826 = vshrl.u32 %v5513, 16
        %v5828 = vrot.slane %v5826, 4
        %v5829 = vor.u32 %v5828, %v5824
        %v5830 = vrot.slane %v5829, 4
        %v5832 = vshll.u32 %v5514, 16
        %v5834 = vrot.slane %v5832, 5
        %v5835 = vsel %vm460, %v5830, %v5834
        %v5836 = vshrl.u32 %v5514, 16
        %v5838 = vrot.slane %v5836, 4
        %v5839 = vor.u32 %v5838, %v5834
        %v5840 = vrot.slane %v5839, 4
        %v5842 = vshll.u32 %v5515, 16
        %v5844 = vrot.slane %v5842, 5
        %v5845 = vsel %vm460, %v5840, %v5844
        %v5846 = vshrl.u32 %v5515, 16
        %v5848 = vrot.slane %v5846, 4
        %v5849 = vor.u32 %v5848, %v5844
        %v5850 = vrot.slane %v5849, 4
        %v5852 = vshll.u32 %v5516, 16
        %v5854 = vrot.slane %v5852, 5
        %v5855 = vsel %vm460, %v5850, %v5854
        %v5856 = vshrl.u32 %v5516, 16
        %v5858 = vrot.slane %v5856, 4
        %v5859 = vor.u32 %v5858, %v5854
        %v5860 = vrot.slane %v5859, 4
        %v5862 = vshll.u32 %v5517, 16
        %v5864 = vrot.slane %v5862, 5
        %v5865 = vsel %vm460, %v5860, %v5864
        %v5866 = vshrl.u32 %v5517, 16
        %v5868 = vrot.slane %v5866, 4
        %v5869 = vor.u32 %v5868, %v5864
        %v5870 = vrot.slane %v5869, 4
        %v5872 = vshll.u32 %v5518, 16
        %v5874 = vrot.slane %v5872, 5
        %v5875 = vsel %vm460, %v5870, %v5874
        %v5876 = vshrl.u32 %v5518, 16
        %v5878 = vrot.slane %v5876, 4
        %v5879 = vor.u32 %v5878, %v5874
        %v5880 = vrot.slane %v5879, 4
        %v5882 = vshll.u32 %v5519, 16
        %v5884 = vrot.slane %v5882, 5
        %v5885 = vsel %vm460, %v5880, %v5884
        %v5886 = vshrl.u32 %v5519, 16
        %v5888 = vrot.slane %v5886, 4
        %v5889 = vor.u32 %v5888, %v5884
        %v5890 = vrot.slane %v5889, 4
        %v5892 = vshll.u32 %v5520, 16
        %v5894 = vrot.slane %v5892, 5
        %v5895 = vsel %vm460, %v5890, %v5894
        %v5896 = vshrl.u32 %v5520, 16
        %v5898 = vrot.slane %v5896, 4
        %v5899 = vor.u32 %v5898, %v5894
        %v5900 = vrot.slane %v5899, 4
        %v5902 = vshll.u32 %v5521, 16
        %v5904 = vrot.slane %v5902, 5
        %v5905 = vsel %vm460, %v5900, %v5904
        %5906 = vrot.lane.b32.xlu0 %v5535, 32
        %v5907 = vpop.permute.xlu0 %5906
        %5908 = vrot.lane.b32.xlu0 %v5545, 32
        %v5909 = vpop.permute.xlu0 %5908
        %5910 = vrot.lane.b32.xlu0 %v5555, 32
        %v5911 = vpop.permute.xlu0 %5910
        %5912 = vrot.lane.b32.xlu0 %v5565, 32
        %v5913 = vpop.permute.xlu0 %5912
        %5914 = vrot.lane.b32.xlu0 %v5575, 32
        %v5915 = vpop.permute.xlu0 %5914
        %5916 = vrot.lane.b32.xlu0 %v5585, 32
        %v5917 = vpop.permute.xlu0 %5916
        %5918 = vrot.lane.b32.xlu0 %v5595, 32
        %v5919 = vpop.permute.xlu0 %5918
        %5920 = vrot.lane.b32.xlu0 %v5605, 32
        %v5921 = vpop.permute.xlu0 %5920
        %5922 = vrot.lane.b32.xlu0 %v5615, 32
        %v5923 = vpop.permute.xlu0 %5922
        %5924 = vrot.lane.b32.xlu0 %v5625, 32
        %v5925 = vpop.permute.xlu0 %5924
        %5926 = vrot.lane.b32.xlu0 %v5635, 32
        %v5927 = vpop.permute.xlu0 %5926
        %5928 = vrot.lane.b32.xlu0 %v5645, 32
        %v5929 = vpop.permute.xlu0 %5928
        %5930 = vrot.lane.b32.xlu0 %v5655, 32
        %v5931 = vpop.permute.xlu0 %5930
        %5932 = vrot.lane.b32.xlu0 %v5665, 32
        %v5933 = vpop.permute.xlu0 %5932
        %5934 = vrot.lane.b32.xlu0 %v5675, 32
        %v5935 = vpop.permute.xlu0 %5934
        %5936 = vrot.lane.b32.xlu0 %v5685, 32
        %v5937 = vpop.permute.xlu0 %5936
        %5938 = vrot.lane.b32.xlu0 %v5695, 32
        %v5939 = vpop.permute.xlu0 %5938
        %5940 = vrot.lane.b32.xlu0 %v5705, 32
        %v5941 = vpop.permute.xlu0 %5940
        %5942 = vrot.lane.b32.xlu0 %v5715, 32
        %v5943 = vpop.permute.xlu0 %5942
        %5944 = vrot.lane.b32.xlu0 %v5725, 32
        %v5945 = vpop.permute.xlu0 %5944
        %5946 = vrot.lane.b32.xlu0 %v5735, 32
        %v5947 = vpop.permute.xlu0 %5946
        %5948 = vrot.lane.b32.xlu0 %v5745, 32
        %v5949 = vpop.permute.xlu0 %5948
        %5950 = vrot.lane.b32.xlu0 %v5755, 32
        %v5951 = vpop.permute.xlu0 %5950
        %5952 = vrot.lane.b32.xlu0 %v5765, 32
        %v5953 = vpop.permute.xlu0 %5952
        %5954 = vrot.lane.b32.xlu0 %v5775, 32
        %v5955 = vpop.permute.xlu0 %5954
        %5956 = vrot.lane.b32.xlu0 %v5785, 32
        %v5957 = vpop.permute.xlu0 %5956
        %5958 = vrot.lane.b32.xlu0 %v5795, 32
        %v5959 = vpop.permute.xlu0 %5958
        %5960 = vrot.lane.b32.xlu0 %v5805, 32
        %v5961 = vpop.permute.xlu0 %5960
        %5962 = vrot.lane.b32.xlu0 %v5815, 32
        %v5963 = vpop.permute.xlu0 %5962
        %5964 = vrot.lane.b32.xlu0 %v5825, 32
        %v5965 = vpop.permute.xlu0 %5964
        %5966 = vrot.lane.b32.xlu0 %v5835, 32
        %v5967 = vpop.permute.xlu0 %5966
        %5968 = vrot.lane.b32.xlu0 %v5845, 32
        %v5969 = vpop.permute.xlu0 %5968
        %5970 = vrot.lane.b32.xlu0 %v5855, 32
        %v5971 = vpop.permute.xlu0 %5970
        %5972 = vrot.lane.b32.xlu0 %v5865, 32
        %v5973 = vpop.permute.xlu0 %5972
        %5974 = vrot.lane.b32.xlu0 %v5875, 32
        %v5975 = vpop.permute.xlu0 %5974
        %5976 = vrot.lane.b32.xlu0 %v5885, 32
        %v5977 = vpop.permute.xlu0 %5976
        %5978 = vrot.lane.b32.xlu0 %v5895, 32
        %v5979 = vpop.permute.xlu0 %5978
        %5980 = vrot.lane.b32.xlu0 %v5905, 32
        %v5981 = vpop.permute.xlu0 %5980
        %6020 = vst.msk [vmem:[#allocation3] sm:$0xf] %vm959, %v5907
        %6021 = vst.msk [vmem:[#allocation3 + $0xc] sm:$0xf] %vm959, %v5909
        %6022 = vst.msk [vmem:[#allocation3 + $0x18] sm:$0xf] %vm959, %v5911
        %6023 = vst.msk [vmem:[#allocation3 + $0x24] sm:$0xf] %vm959, %v5913
        %6024 = vst.msk [vmem:[#allocation3 + $0x30] sm:$0xf] %vm959, %v5915
        %6025 = vst.msk [vmem:[#allocation3 + $0x3c] sm:$0xf] %vm959, %v5917
        %6026 = vst.msk [vmem:[#allocation3 + $0x48] sm:$0xf] %vm959, %v5919
        %6027 = vst.msk [vmem:[#allocation3 + $0x54] sm:$0xf] %vm959, %v5921
        %6028 = vst.msk [vmem:[#allocation3 + $0x60] sm:$0xf] %vm959, %v5923
        %6029 = vst.msk [vmem:[#allocation3 + $0x6c] sm:$0xf] %vm959, %v5925
        %6030 = vst.msk [vmem:[#allocation3 + $0x78] sm:$0xf] %vm959, %v5927
        %6031 = vst.msk [vmem:[#allocation3 + $0x84] sm:$0xf] %vm959, %v5929
        %6032 = vst.msk [vmem:[#allocation3 + $0x90] sm:$0xf] %vm959, %v5931
        %6033 = vst.msk [vmem:[#allocation3 + $0x9c] sm:$0xf] %vm959, %v5933
        %6034 = vst.msk [vmem:[#allocation3 + $0xa8] sm:$0xf] %vm959, %v5935
        %6035 = vst.msk [vmem:[#allocation3 + $0xb4] sm:$0xf] %vm959, %v5937
        %6036 = vst.msk [vmem:[#allocation3 + $0xc0] sm:$0xf] %vm959, %v5939
        %6037 = vst.msk [vmem:[#allocation3 + $0xcc] sm:$0xf] %vm959, %v5941
        %6038 = vst.msk [vmem:[#allocation3 + $0xd8] sm:$0xf] %vm959, %v5943
        %6039 = vst.msk [vmem:[#allocation3 + $0xe4] sm:$0xf] %vm959, %v5945
        %6040 = vst.msk [vmem:[#allocation3 + $0xf0] sm:$0xf] %vm959, %v5947
        %6041 = vst.msk [vmem:[#allocation3 + $0xfc] sm:$0xf] %vm959, %v5949
        %6042 = vst.msk [vmem:[#allocation3 + $0x108] sm:$0xf] %vm959, %v5951
        %6043 = vst.msk [vmem:[#allocation3 + $0x114] sm:$0xf] %vm959, %v5953
        %6044 = vst.msk [vmem:[#allocation3 + $0x120] sm:$0xf] %vm959, %v5955
        %6045 = vst.msk [vmem:[#allocation3 + $0x12c] sm:$0xf] %vm959, %v5957
        %6046 = vst.msk [vmem:[#allocation3 + $0x138] sm:$0xf] %vm959, %v5959
        %6047 = vst.msk [vmem:[#allocation3 + $0x144] sm:$0xf] %vm959, %v5961
        %6048 = vst.msk [vmem:[#allocation3 + $0x150] sm:$0xf] %vm959, %v5963
        %6049 = vst.msk [vmem:[#allocation3 + $0x15c] sm:$0xf] %vm959, %v5965
        %6050 = vst.msk [vmem:[#allocation3 + $0x168] sm:$0xf] %vm959, %v5967
        %6051 = vst.msk [vmem:[#allocation3 + $0x174] sm:$0xf] %vm959, %v5969
        %6052 = vst.msk [vmem:[#allocation3 + $0x180] sm:$0xf] %vm959, %v5971
        %6053 = vst.msk [vmem:[#allocation3 + $0x18c] sm:$0xf] %vm959, %v5973
        %6054 = vst.msk [vmem:[#allocation3 + $0x198] sm:$0xf] %vm959, %v5975
        %6055 = vst.msk [vmem:[#allocation3 + $0x1a4] sm:$0xf] %vm959, %v5977
        %6056 = vst.msk [vmem:[#allocation3 + $0x1b0] sm:$0xf] %vm959, %v5979
        %6057 = vst.msk [vmem:[#allocation3 + $0x1bc] sm:$0xf] %vm959, %v5981
        %v6058 = vld [vmem:[#allocation4] sm:$0xe]
        %v6059 = vld [vmem:[#allocation4 + $0x4] sm:$0xf]
        %v6060 = vld [vmem:[#allocation4 + $0x8] sm:$0xf]
        %v6061 = vld [vmem:[#allocation4 + $0xc] sm:$0xf]
        %v6062 = vld [vmem:[#allocation4 + $0x10] sm:$0xf]
        %v6063 = vld [vmem:[#allocation4 + $0x14] sm:$0xf]
        %v6064 = vld [vmem:[#allocation4 + $0x18] sm:$0xf]
        %v6065 = vld [vmem:[#allocation4 + $0x1c] sm:$0xf]
        %v6066 = vld [vmem:[#allocation4 + $0x20] sm:$0xf]
        %v6067 = vld [vmem:[#allocation4 + $0x24] sm:$0xf]
        %v6068 = vld [vmem:[#allocation4 + $0x28] sm:$0xf]
        %v6069 = vld [vmem:[#allocation4 + $0x2c] sm:$0xf]
        %v6070 = vld [vmem:[#allocation4 + $0x30] sm:$0xf]
        %v6071 = vld [vmem:[#allocation4 + $0x34] sm:$0xf]
        %v6072 = vld [vmem:[#allocation4 + $0x38] sm:$0xf]
        %v6073 = vld [vmem:[#allocation4 + $0x3c] sm:$0xf]
        %v6074 = vld [vmem:[#allocation4 + $0x40] sm:$0xf]
        %v6075 = vld [vmem:[#allocation4 + $0x44] sm:$0xf]
        %v6076 = vld [vmem:[#allocation4 + $0x48] sm:$0xf]
        %v6077 = vld [vmem:[#allocation4 + $0x4c] sm:$0xf]
        %v6078 = vld [vmem:[#allocation4 + $0x50] sm:$0xf]
        %v6079 = vld [vmem:[#allocation4 + $0x54] sm:$0xf]
        %v6080 = vld [vmem:[#allocation4 + $0x58] sm:$0xf]
        %v6081 = vld [vmem:[#allocation4 + $0x5c] sm:$0xf]
        %v6082 = vld [vmem:[#allocation4 + $0x60] sm:$0xf]
        %v6083 = vld [vmem:[#allocation4 + $0x64] sm:$0xf]
        %v6084 = vld [vmem:[#allocation4 + $0x68] sm:$0xf]
        %v6085 = vld [vmem:[#allocation4 + $0x6c] sm:$0xf]
        %v6086 = vld [vmem:[#allocation4 + $0x70] sm:$0xf]
        %v6087 = vld [vmem:[#allocation4 + $0x74] sm:$0xf]
        %v6088 = vld [vmem:[#allocation4 + $0x78] sm:$0xf]
        %v6089 = vld [vmem:[#allocation4 + $0x7c] sm:$0xf]
        %v6090 = vld [vmem:[#allocation4 + $0x80] sm:$0xf]
        %v6091 = vld [vmem:[#allocation4 + $0x84] sm:$0xf]
        %v6092 = vld [vmem:[#allocation4 + $0x88] sm:$0xf]
        %v6093 = vld [vmem:[#allocation4 + $0x8c] sm:$0xf]
        %v6094 = vld [vmem:[#allocation4 + $0x90] sm:$0xf]
        %v6095 = vld [vmem:[#allocation4 + $0x94] sm:$0xf]
        %v6096 = vld [vmem:[#allocation4 + $0x98] sm:$0x1]
        %v6136 = vrot.slane %v6058, 5
        %v6137 = vrot.slane %v6136, 4
        %v6138 = vrot.slane %v6059, 5
        %v6139 = vsel %vm1078, %v6137, %v6138
        %v6140 = vrot.slane %v6138, 4
        %v6141 = vrot.slane %v6060, 5
        %v6142 = vsel %vm1078, %v6140, %v6141
        %v6143 = vrot.slane %v6141, 4
        %v6144 = vrot.slane %v6061, 5
        %v6145 = vsel %vm1078, %v6143, %v6144
        %v6146 = vrot.slane %v6144, 4
        %v6147 = vrot.slane %v6062, 5
        %v6148 = vsel %vm1078, %v6146, %v6147
        %v6149 = vrot.slane %v6147, 4
        %v6150 = vrot.slane %v6063, 5
        %v6151 = vsel %vm1078, %v6149, %v6150
        %v6152 = vrot.slane %v6150, 4
        %v6153 = vrot.slane %v6064, 5
        %v6154 = vsel %vm1078, %v6152, %v6153
        %v6155 = vrot.slane %v6153, 4
        %v6156 = vrot.slane %v6065, 5
        %v6157 = vsel %vm1078, %v6155, %v6156
        %v6158 = vrot.slane %v6156, 4
        %v6159 = vrot.slane %v6066, 5
        %v6160 = vsel %vm1078, %v6158, %v6159
        %v6161 = vrot.slane %v6159, 4
        %v6162 = vrot.slane %v6067, 5
        %v6163 = vsel %vm1078, %v6161, %v6162
        %v6164 = vrot.slane %v6162, 4
        %v6165 = vrot.slane %v6068, 5
        %v6166 = vsel %vm1078, %v6164, %v6165
        %v6167 = vrot.slane %v6165, 4
        %v6168 = vrot.slane %v6069, 5
        %v6169 = vsel %vm1078, %v6167, %v6168
        %v6170 = vrot.slane %v6168, 4
        %v6171 = vrot.slane %v6070, 5
        %v6172 = vsel %vm1078, %v6170, %v6171
        %v6173 = vrot.slane %v6171, 4
        %v6174 = vrot.slane %v6071, 5
        %v6175 = vsel %vm1078, %v6173, %v6174
        %v6176 = vrot.slane %v6174, 4
        %v6177 = vrot.slane %v6072, 5
        %v6178 = vsel %vm1078, %v6176, %v6177
        %v6179 = vrot.slane %v6177, 4
        %v6180 = vrot.slane %v6073, 5
        %v6181 = vsel %vm1078, %v6179, %v6180
        %v6182 = vrot.slane %v6180, 4
        %v6183 = vrot.slane %v6074, 5
        %v6184 = vsel %vm1078, %v6182, %v6183
        %v6185 = vrot.slane %v6183, 4
        %v6186 = vrot.slane %v6075, 5
        %v6187 = vsel %vm1078, %v6185, %v6186
        %v6188 = vrot.slane %v6186, 4
        %v6189 = vrot.slane %v6076, 5
        %v6190 = vsel %vm1078, %v6188, %v6189
        %v6191 = vrot.slane %v6189, 4
        %v6192 = vrot.slane %v6077, 5
        %v6193 = vsel %vm1078, %v6191, %v6192
        %v6194 = vrot.slane %v6192, 4
        %v6195 = vrot.slane %v6078, 5
        %v6196 = vsel %vm1078, %v6194, %v6195
        %v6197 = vrot.slane %v6195, 4
        %v6198 = vrot.slane %v6079, 5
        %v6199 = vsel %vm1078, %v6197, %v6198
        %v6200 = vrot.slane %v6198, 4
        %v6201 = vrot.slane %v6080, 5
        %v6202 = vsel %vm1078, %v6200, %v6201
        %v6203 = vrot.slane %v6201, 4
        %v6204 = vrot.slane %v6081, 5
        %v6205 = vsel %vm1078, %v6203, %v6204
        %v6206 = vrot.slane %v6204, 4
        %v6207 = vrot.slane %v6082, 5
        %v6208 = vsel %vm1078, %v6206, %v6207
        %v6209 = vrot.slane %v6207, 4
        %v6210 = vrot.slane %v6083, 5
        %v6211 = vsel %vm1078, %v6209, %v6210
        %v6212 = vrot.slane %v6210, 4
        %v6213 = vrot.slane %v6084, 5
        %v6214 = vsel %vm1078, %v6212, %v6213
        %v6215 = vrot.slane %v6213, 4
        %v6216 = vrot.slane %v6085, 5
        %v6217 = vsel %vm1078, %v6215, %v6216
        %v6218 = vrot.slane %v6216, 4
        %v6219 = vrot.slane %v6086, 5
        %v6220 = vsel %vm1078, %v6218, %v6219
        %v6221 = vrot.slane %v6219, 4
        %v6222 = vrot.slane %v6087, 5
        %v6223 = vsel %vm1078, %v6221, %v6222
        %v6224 = vrot.slane %v6222, 4
        %v6225 = vrot.slane %v6088, 5
        %v6226 = vsel %vm1078, %v6224, %v6225
        %v6227 = vrot.slane %v6225, 4
        %v6228 = vrot.slane %v6089, 5
        %v6229 = vsel %vm1078, %v6227, %v6228
        %v6230 = vrot.slane %v6228, 4
        %v6231 = vrot.slane %v6090, 5
        %v6232 = vsel %vm1078, %v6230, %v6231
        %v6233 = vrot.slane %v6231, 4
        %v6234 = vrot.slane %v6091, 5
        %v6235 = vsel %vm1078, %v6233, %v6234
        %v6236 = vrot.slane %v6234, 4
        %v6237 = vrot.slane %v6092, 5
        %v6238 = vsel %vm1078, %v6236, %v6237
        %v6239 = vrot.slane %v6237, 4
        %v6240 = vrot.slane %v6093, 5
        %v6241 = vsel %vm1078, %v6239, %v6240
        %v6242 = vrot.slane %v6240, 4
        %v6243 = vrot.slane %v6094, 5
        %v6244 = vsel %vm1078, %v6242, %v6243
        %v6245 = vrot.slane %v6243, 4
        %v6246 = vrot.slane %v6095, 5
        %v6247 = vsel %vm1078, %v6245, %v6246
        %v6248 = vrot.slane %v6246, 4
        %v6249 = vrot.slane %v6096, 5
        %v6250 = vsel %vm1078, %v6248, %v6249
        %6251 = vrot.lane.b32.xlu0 %v6139, 64
        %v6252 = vpop.permute.xlu0 %6251
        %6253 = vrot.lane.b32.xlu0 %v6142, 64
        %v6254 = vpop.permute.xlu0 %6253
        %6255 = vrot.lane.b32.xlu0 %v6145, 64
        %v6256 = vpop.permute.xlu0 %6255
        %6257 = vrot.lane.b32.xlu0 %v6148, 64
        %v6258 = vpop.permute.xlu0 %6257
        %6259 = vrot.lane.b32.xlu0 %v6151, 64
        %v6260 = vpop.permute.xlu0 %6259
        %6261 = vrot.lane.b32.xlu0 %v6154, 64
        %v6262 = vpop.permute.xlu0 %6261
        %6263 = vrot.lane.b32.xlu0 %v6157, 64
        %v6264 = vpop.permute.xlu0 %6263
        %6265 = vrot.lane.b32.xlu0 %v6160, 64
        %v6266 = vpop.permute.xlu0 %6265
        %6267 = vrot.lane.b32.xlu0 %v6163, 64
        %v6268 = vpop.permute.xlu0 %6267
        %6269 = vrot.lane.b32.xlu0 %v6166, 64
        %v6270 = vpop.permute.xlu0 %6269
        %6271 = vrot.lane.b32.xlu0 %v6169, 64
        %v6272 = vpop.permute.xlu0 %6271
        %6273 = vrot.lane.b32.xlu0 %v6172, 64
        %v6274 = vpop.permute.xlu0 %6273
        %6275 = vrot.lane.b32.xlu0 %v6175, 64
        %v6276 = vpop.permute.xlu0 %6275
        %6277 = vrot.lane.b32.xlu0 %v6178, 64
        %v6278 = vpop.permute.xlu0 %6277
        %6279 = vrot.lane.b32.xlu0 %v6181, 64
        %v6280 = vpop.permute.xlu0 %6279
        %6281 = vrot.lane.b32.xlu0 %v6184, 64
        %v6282 = vpop.permute.xlu0 %6281
        %6283 = vrot.lane.b32.xlu0 %v6187, 64
        %v6284 = vpop.permute.xlu0 %6283
        %6285 = vrot.lane.b32.xlu0 %v6190, 64
        %v6286 = vpop.permute.xlu0 %6285
        %6287 = vrot.lane.b32.xlu0 %v6193, 64
        %v6288 = vpop.permute.xlu0 %6287
        %6289 = vrot.lane.b32.xlu0 %v6196, 64
        %v6290 = vpop.permute.xlu0 %6289
        %6291 = vrot.lane.b32.xlu0 %v6199, 64
        %v6292 = vpop.permute.xlu0 %6291
        %6293 = vrot.lane.b32.xlu0 %v6202, 64
        %v6294 = vpop.permute.xlu0 %6293
        %6295 = vrot.lane.b32.xlu0 %v6205, 64
        %v6296 = vpop.permute.xlu0 %6295
        %6297 = vrot.lane.b32.xlu0 %v6208, 64
        %v6298 = vpop.permute.xlu0 %6297
        %6299 = vrot.lane.b32.xlu0 %v6211, 64
        %v6300 = vpop.permute.xlu0 %6299
        %6301 = vrot.lane.b32.xlu0 %v6214, 64
        %v6302 = vpop.permute.xlu0 %6301
        %6303 = vrot.lane.b32.xlu0 %v6217, 64
        %v6304 = vpop.permute.xlu0 %6303
        %6305 = vrot.lane.b32.xlu0 %v6220, 64
        %v6306 = vpop.permute.xlu0 %6305
        %6307 = vrot.lane.b32.xlu0 %v6223, 64
        %v6308 = vpop.permute.xlu0 %6307
        %6309 = vrot.lane.b32.xlu0 %v6226, 64
        %v6310 = vpop.permute.xlu0 %6309
        %6311 = vrot.lane.b32.xlu0 %v6229, 64
        %v6312 = vpop.permute.xlu0 %6311
        %6313 = vrot.lane.b32.xlu0 %v6232, 64
        %v6314 = vpop.permute.xlu0 %6313
        %6315 = vrot.lane.b32.xlu0 %v6235, 64
        %v6316 = vpop.permute.xlu0 %6315
        %6317 = vrot.lane.b32.xlu0 %v6238, 64
        %v6318 = vpop.permute.xlu0 %6317
        %6319 = vrot.lane.b32.xlu0 %v6241, 64
        %v6320 = vpop.permute.xlu0 %6319
        %6321 = vrot.lane.b32.xlu0 %v6244, 64
        %v6322 = vpop.permute.xlu0 %6321
        %6323 = vrot.lane.b32.xlu0 %v6247, 64
        %v6324 = vpop.permute.xlu0 %6323
        %6325 = vrot.lane.b32.xlu0 %v6250, 64
        %v6326 = vpop.permute.xlu0 %6325
        %6365 = vst.msk [vmem:[#allocation3] sm:$0xf] %vm1308, %v6252
        %6366 = vst.msk [vmem:[#allocation3 + $0xc] sm:$0xf] %vm1308, %v6254
        %6367 = vst.msk [vmem:[#allocation3 + $0x18] sm:$0xf] %vm1308, %v6256
        %6368 = vst.msk [vmem:[#allocation3 + $0x24] sm:$0xf] %vm1308, %v6258
        %6369 = vst.msk [vmem:[#allocation3 + $0x30] sm:$0xf] %vm1308, %v6260
        %6370 = vst.msk [vmem:[#allocation3 + $0x3c] sm:$0xf] %vm1308, %v6262
        %6371 = vst.msk [vmem:[#allocation3 + $0x48] sm:$0xf] %vm1308, %v6264
        %6372 = vst.msk [vmem:[#allocation3 + $0x54] sm:$0xf] %vm1308, %v6266
        %6373 = vst.msk [vmem:[#allocation3 + $0x60] sm:$0xf] %vm1308, %v6268
        %6374 = vst.msk [vmem:[#allocation3 + $0x6c] sm:$0xf] %vm1308, %v6270
        %6375 = vst.msk [vmem:[#allocation3 + $0x78] sm:$0xf] %vm1308, %v6272
        %6376 = vst.msk [vmem:[#allocation3 + $0x84] sm:$0xf] %vm1308, %v6274
        %6377 = vst.msk [vmem:[#allocation3 + $0x90] sm:$0xf] %vm1308, %v6276
        %6378 = vst.msk [vmem:[#allocation3 + $0x9c] sm:$0xf] %vm1308, %v6278
        %6379 = vst.msk [vmem:[#allocation3 + $0xa8] sm:$0xf] %vm1308, %v6280
        %6380 = vst.msk [vmem:[#allocation3 + $0xb4] sm:$0xf] %vm1308, %v6282
        %6381 = vst.msk [vmem:[#allocation3 + $0xc0] sm:$0xf] %vm1308, %v6284
        %6382 = vst.msk [vmem:[#allocation3 + $0xcc] sm:$0xf] %vm1308, %v6286
        %6383 = vst.msk [vmem:[#allocation3 + $0xd8] sm:$0xf] %vm1308, %v6288
        %6384 = vst.msk [vmem:[#allocation3 + $0xe4] sm:$0xf] %vm1308, %v6290
        %6385 = vst.msk [vmem:[#allocation3 + $0xf0] sm:$0xf] %vm1308, %v6292
        %6386 = vst.msk [vmem:[#allocation3 + $0xfc] sm:$0xf] %vm1308, %v6294
        %6387 = vst.msk [vmem:[#allocation3 + $0x108] sm:$0xf] %vm1308, %v6296
        %6388 = vst.msk [vmem:[#allocation3 + $0x114] sm:$0xf] %vm1308, %v6298
        %6389 = vst.msk [vmem:[#allocation3 + $0x120] sm:$0xf] %vm1308, %v6300
        %6390 = vst.msk [vmem:[#allocation3 + $0x12c] sm:$0xf] %vm1308, %v6302
        %6391 = vst.msk [vmem:[#allocation3 + $0x138] sm:$0xf] %vm1308, %v6304
        %6392 = vst.msk [vmem:[#allocation3 + $0x144] sm:$0xf] %vm1308, %v6306
        %6393 = vst.msk [vmem:[#allocation3 + $0x150] sm:$0xf] %vm1308, %v6308
        %6394 = vst.msk [vmem:[#allocation3 + $0x15c] sm:$0xf] %vm1308, %v6310
        %6395 = vst.msk [vmem:[#allocation3 + $0x168] sm:$0xf] %vm1308, %v6312
        %6396 = vst.msk [vmem:[#allocation3 + $0x174] sm:$0xf] %vm1308, %v6314
        %6397 = vst.msk [vmem:[#allocation3 + $0x180] sm:$0xf] %vm1308, %v6316
        %6398 = vst.msk [vmem:[#allocation3 + $0x18c] sm:$0xf] %vm1308, %v6318
        %6399 = vst.msk [vmem:[#allocation3 + $0x198] sm:$0xf] %vm1308, %v6320
        %6400 = vst.msk [vmem:[#allocation3 + $0x1a4] sm:$0xf] %vm1308, %v6322
        %6401 = vst.msk [vmem:[#allocation3 + $0x1b0] sm:$0xf] %vm1308, %v6324
        %6402 = vst.msk [vmem:[#allocation3 + $0x1bc] sm:$0xf] %vm1308, %v6326
        %v6403 = vld [vmem:[#allocation4 + $0x8] sm:$0xe]
        %v6404 = vld [vmem:[#allocation4 + $0xc] sm:$0xf]
        %v6405 = vld [vmem:[#allocation4 + $0x10] sm:$0xf]
        %v6406 = vld [vmem:[#allocation4 + $0x14] sm:$0xf]
        %v6407 = vld [vmem:[#allocation4 + $0x18] sm:$0xf]
        %v6408 = vld [vmem:[#allocation4 + $0x1c] sm:$0xf]
        %v6409 = vld [vmem:[#allocation4 + $0x20] sm:$0xf]
        %v6410 = vld [vmem:[#allocation4 + $0x24] sm:$0xf]
        %v6411 = vld [vmem:[#allocation4 + $0x28] sm:$0xf]
        %v6412 = vld [vmem:[#allocation4 + $0x2c] sm:$0xf]
        %v6413 = vld [vmem:[#allocation4 + $0x30] sm:$0xf]
        %v6414 = vld [vmem:[#allocation4 + $0x34] sm:$0xf]
        %v6415 = vld [vmem:[#allocation4 + $0x38] sm:$0xf]
        %v6416 = vld [vmem:[#allocation4 + $0x3c] sm:$0xf]
        %v6417 = vld [vmem:[#allocation4 + $0x40] sm:$0xf]
        %v6418 = vld [vmem:[#allocation4 + $0x44] sm:$0xf]
        %v6419 = vld [vmem:[#allocation4 + $0x48] sm:$0xf]
        %v6420 = vld [vmem:[#allocation4 + $0x4c] sm:$0xf]
        %v6421 = vld [vmem:[#allocation4 + $0x50] sm:$0xf]
        %v6422 = vld [vmem:[#allocation4 + $0x54] sm:$0xf]
        %v6423 = vld [vmem:[#allocation4 + $0x58] sm:$0xf]
        %v6424 = vld [vmem:[#allocation4 + $0x5c] sm:$0xf]
        %v6425 = vld [vmem:[#allocation4 + $0x60] sm:$0xf]
        %v6426 = vld [vmem:[#allocation4 + $0x64] sm:$0xf]
        %v6427 = vld [vmem:[#allocation4 + $0x68] sm:$0xf]
        %v6428 = vld [vmem:[#allocation4 + $0x6c] sm:$0xf]
        %v6429 = vld [vmem:[#allocation4 + $0x70] sm:$0xf]
        %v6430 = vld [vmem:[#allocation4 + $0x74] sm:$0xf]
        %v6431 = vld [vmem:[#allocation4 + $0x78] sm:$0xf]
        %v6432 = vld [vmem:[#allocation4 + $0x7c] sm:$0xf]
        %v6433 = vld [vmem:[#allocation4 + $0x80] sm:$0xf]
        %v6434 = vld [vmem:[#allocation4 + $0x84] sm:$0xf]
        %v6435 = vld [vmem:[#allocation4 + $0x88] sm:$0xf]
        %v6436 = vld [vmem:[#allocation4 + $0x8c] sm:$0xf]
        %v6437 = vld [vmem:[#allocation4 + $0x90] sm:$0xf]
        %v6438 = vld [vmem:[#allocation4 + $0x94] sm:$0xf]
        %v6439 = vld [vmem:[#allocation4 + $0x98] sm:$0xf]
        %v6440 = vld [vmem:[#allocation4 + $0x9c] sm:$0xf]
        %v6441 = vld [vmem:[#allocation4 + $0xa0] sm:$0x1]
        %v6481 = vrot.slane %v6403, 5
        %v6482 = vrot.slane %v6481, 4
        %v6483 = vrot.slane %v6404, 5
        %v6484 = vsel %vm1078, %v6482, %v6483
        %v6485 = vrot.slane %v6483, 4
        %v6486 = vrot.slane %v6405, 5
        %v6487 = vsel %vm1078, %v6485, %v6486
        %v6488 = vrot.slane %v6486, 4
        %v6489 = vrot.slane %v6406, 5
        %v6490 = vsel %vm1078, %v6488, %v6489
        %v6491 = vrot.slane %v6489, 4
        %v6492 = vrot.slane %v6407, 5
        %v6493 = vsel %vm1078, %v6491, %v6492
        %v6494 = vrot.slane %v6492, 4
        %v6495 = vrot.slane %v6408, 5
        %v6496 = vsel %vm1078, %v6494, %v6495
        %v6497 = vrot.slane %v6495, 4
        %v6498 = vrot.slane %v6409, 5
        %v6499 = vsel %vm1078, %v6497, %v6498
        %v6500 = vrot.slane %v6498, 4
        %v6501 = vrot.slane %v6410, 5
        %v6502 = vsel %vm1078, %v6500, %v6501
        %v6503 = vrot.slane %v6501, 4
        %v6504 = vrot.slane %v6411, 5
        %v6505 = vsel %vm1078, %v6503, %v6504
        %v6506 = vrot.slane %v6504, 4
        %v6507 = vrot.slane %v6412, 5
        %v6508 = vsel %vm1078, %v6506, %v6507
        %v6509 = vrot.slane %v6507, 4
        %v6510 = vrot.slane %v6413, 5
        %v6511 = vsel %vm1078, %v6509, %v6510
        %v6512 = vrot.slane %v6510, 4
        %v6513 = vrot.slane %v6414, 5
        %v6514 = vsel %vm1078, %v6512, %v6513
        %v6515 = vrot.slane %v6513, 4
        %v6516 = vrot.slane %v6415, 5
        %v6517 = vsel %vm1078, %v6515, %v6516
        %v6518 = vrot.slane %v6516, 4
        %v6519 = vrot.slane %v6416, 5
        %v6520 = vsel %vm1078, %v6518, %v6519
        %v6521 = vrot.slane %v6519, 4
        %v6522 = vrot.slane %v6417, 5
        %v6523 = vsel %vm1078, %v6521, %v6522
        %v6524 = vrot.slane %v6522, 4
        %v6525 = vrot.slane %v6418, 5
        %v6526 = vsel %vm1078, %v6524, %v6525
        %v6527 = vrot.slane %v6525, 4
        %v6528 = vrot.slane %v6419, 5
        %v6529 = vsel %vm1078, %v6527, %v6528
        %v6530 = vrot.slane %v6528, 4
        %v6531 = vrot.slane %v6420, 5
        %v6532 = vsel %vm1078, %v6530, %v6531
        %v6533 = vrot.slane %v6531, 4
        %v6534 = vrot.slane %v6421, 5
        %v6535 = vsel %vm1078, %v6533, %v6534
        %v6536 = vrot.slane %v6534, 4
        %v6537 = vrot.slane %v6422, 5
        %v6538 = vsel %vm1078, %v6536, %v6537
        %v6539 = vrot.slane %v6537, 4
        %v6540 = vrot.slane %v6423, 5
        %v6541 = vsel %vm1078, %v6539, %v6540
        %v6542 = vrot.slane %v6540, 4
        %v6543 = vrot.slane %v6424, 5
        %v6544 = vsel %vm1078, %v6542, %v6543
        %v6545 = vrot.slane %v6543, 4
        %v6546 = vrot.slane %v6425, 5
        %v6547 = vsel %vm1078, %v6545, %v6546
        %v6548 = vrot.slane %v6546, 4
        %v6549 = vrot.slane %v6426, 5
        %v6550 = vsel %vm1078, %v6548, %v6549
        %v6551 = vrot.slane %v6549, 4
        %v6552 = vrot.slane %v6427, 5
        %v6553 = vsel %vm1078, %v6551, %v6552
        %v6554 = vrot.slane %v6552, 4
        %v6555 = vrot.slane %v6428, 5
        %v6556 = vsel %vm1078, %v6554, %v6555
        %v6557 = vrot.slane %v6555, 4
        %v6558 = vrot.slane %v6429, 5
        %v6559 = vsel %vm1078, %v6557, %v6558
        %v6560 = vrot.slane %v6558, 4
        %v6561 = vrot.slane %v6430, 5
        %v6562 = vsel %vm1078, %v6560, %v6561
        %v6563 = vrot.slane %v6561, 4
        %v6564 = vrot.slane %v6431, 5
        %v6565 = vsel %vm1078, %v6563, %v6564
        %v6566 = vrot.slane %v6564, 4
        %v6567 = vrot.slane %v6432, 5
        %v6568 = vsel %vm1078, %v6566, %v6567
        %v6569 = vrot.slane %v6567, 4
        %v6570 = vrot.slane %v6433, 5
        %v6571 = vsel %vm1078, %v6569, %v6570
        %v6572 = vrot.slane %v6570, 4
        %v6573 = vrot.slane %v6434, 5
        %v6574 = vsel %vm1078, %v6572, %v6573
        %v6575 = vrot.slane %v6573, 4
        %v6576 = vrot.slane %v6435, 5
        %v6577 = vsel %vm1078, %v6575, %v6576
        %v6578 = vrot.slane %v6576, 4
        %v6579 = vrot.slane %v6436, 5
        %v6580 = vsel %vm1078, %v6578, %v6579
        %v6581 = vrot.slane %v6579, 4
        %v6582 = vrot.slane %v6437, 5
        %v6583 = vsel %vm1078, %v6581, %v6582
        %v6584 = vrot.slane %v6582, 4
        %v6585 = vrot.slane %v6438, 5
        %v6586 = vsel %vm1078, %v6584, %v6585
        %v6587 = vrot.slane %v6585, 4
        %v6588 = vrot.slane %v6439, 5
        %v6589 = vsel %vm1078, %v6587, %v6588
        %v6590 = vrot.slane %v6588, 4
        %v6591 = vrot.slane %v6440, 5
        %v6592 = vsel %vm1078, %v6590, %v6591
        %v6593 = vrot.slane %v6591, 4
        %v6594 = vrot.slane %v6441, 5
        %v6595 = vsel %vm1078, %v6593, %v6594
        %6596 = vrot.lane.b32.xlu0 %v6484, 96
        %v6597 = vpop.permute.xlu0 %6596
        %6598 = vrot.lane.b32.xlu0 %v6487, 96
        %v6599 = vpop.permute.xlu0 %6598
        %6600 = vrot.lane.b32.xlu0 %v6490, 96
        %v6601 = vpop.permute.xlu0 %6600
        %6602 = vrot.lane.b32.xlu0 %v6493, 96
        %v6603 = vpop.permute.xlu0 %6602
        %6604 = vrot.lane.b32.xlu0 %v6496, 96
        %v6605 = vpop.permute.xlu0 %6604
        %6606 = vrot.lane.b32.xlu0 %v6499, 96
        %v6607 = vpop.permute.xlu0 %6606
        %6608 = vrot.lane.b32.xlu0 %v6502, 96
        %v6609 = vpop.permute.xlu0 %6608
        %6610 = vrot.lane.b32.xlu0 %v6505, 96
        %v6611 = vpop.permute.xlu0 %6610
        %6612 = vrot.lane.b32.xlu0 %v6508, 96
        %v6613 = vpop.permute.xlu0 %6612
        %6614 = vrot.lane.b32.xlu0 %v6511, 96
        %v6615 = vpop.permute.xlu0 %6614
        %6616 = vrot.lane.b32.xlu0 %v6514, 96
        %v6617 = vpop.permute.xlu0 %6616
        %6618 = vrot.lane.b32.xlu0 %v6517, 96
        %v6619 = vpop.permute.xlu0 %6618
        %6620 = vrot.lane.b32.xlu0 %v6520, 96
        %v6621 = vpop.permute.xlu0 %6620
        %6622 = vrot.lane.b32.xlu0 %v6523, 96
        %v6623 = vpop.permute.xlu0 %6622
        %6624 = vrot.lane.b32.xlu0 %v6526, 96
        %v6625 = vpop.permute.xlu0 %6624
        %6626 = vrot.lane.b32.xlu0 %v6529, 96
        %v6627 = vpop.permute.xlu0 %6626
        %6628 = vrot.lane.b32.xlu0 %v6532, 96
        %v6629 = vpop.permute.xlu0 %6628
        %6630 = vrot.lane.b32.xlu0 %v6535, 96
        %v6631 = vpop.permute.xlu0 %6630
        %6632 = vrot.lane.b32.xlu0 %v6538, 96
        %v6633 = vpop.permute.xlu0 %6632
        %6634 = vrot.lane.b32.xlu0 %v6541, 96
        %v6635 = vpop.permute.xlu0 %6634
        %6636 = vrot.lane.b32.xlu0 %v6544, 96
        %v6637 = vpop.permute.xlu0 %6636
        %6638 = vrot.lane.b32.xlu0 %v6547, 96
        %v6639 = vpop.permute.xlu0 %6638
        %6640 = vrot.lane.b32.xlu0 %v6550, 96
        %v6641 = vpop.permute.xlu0 %6640
        %6642 = vrot.lane.b32.xlu0 %v6553, 96
        %v6643 = vpop.permute.xlu0 %6642
        %6644 = vrot.lane.b32.xlu0 %v6556, 96
        %v6645 = vpop.permute.xlu0 %6644
        %6646 = vrot.lane.b32.xlu0 %v6559, 96
        %v6647 = vpop.permute.xlu0 %6646
        %6648 = vrot.lane.b32.xlu0 %v6562, 96
        %v6649 = vpop.permute.xlu0 %6648
        %6650 = vrot.lane.b32.xlu0 %v6565, 96
        %v6651 = vpop.permute.xlu0 %6650
        %6652 = vrot.lane.b32.xlu0 %v6568, 96
        %v6653 = vpop.permute.xlu0 %6652
        %6654 = vrot.lane.b32.xlu0 %v6571, 96
        %v6655 = vpop.permute.xlu0 %6654
        %6656 = vrot.lane.b32.xlu0 %v6574, 96
        %v6657 = vpop.permute.xlu0 %6656
        %6658 = vrot.lane.b32.xlu0 %v6577, 96
        %v6659 = vpop.permute.xlu0 %6658
        %6660 = vrot.lane.b32.xlu0 %v6580, 96
        %v6661 = vpop.permute.xlu0 %6660
        %6662 = vrot.lane.b32.xlu0 %v6583, 96
        %v6663 = vpop.permute.xlu0 %6662
        %6664 = vrot.lane.b32.xlu0 %v6586, 96
        %v6665 = vpop.permute.xlu0 %6664
        %6666 = vrot.lane.b32.xlu0 %v6589, 96
        %v6667 = vpop.permute.xlu0 %6666
        %6668 = vrot.lane.b32.xlu0 %v6592, 96
        %v6669 = vpop.permute.xlu0 %6668
        %6670 = vrot.lane.b32.xlu0 %v6595, 96
        %v6671 = vpop.permute.xlu0 %6670
        %6710 = vst.msk [vmem:[#allocation3] sm:$0xf] %vm1654, %v6597
        %6711 = vst.msk [vmem:[#allocation3 + $0xc] sm:$0xf] %vm1654, %v6599
        %6712 = vst.msk [vmem:[#allocation3 + $0x18] sm:$0xf] %vm1654, %v6601
        %6713 = vst.msk [vmem:[#allocation3 + $0x24] sm:$0xf] %vm1654, %v6603
        %6714 = vst.msk [vmem:[#allocation3 + $0x30] sm:$0xf] %vm1654, %v6605
        %6715 = vst.msk [vmem:[#allocation3 + $0x3c] sm:$0xf] %vm1654, %v6607
        %6716 = vst.msk [vmem:[#allocation3 + $0x48] sm:$0xf] %vm1654, %v6609
        %6717 = vst.msk [vmem:[#allocation3 + $0x54] sm:$0xf] %vm1654, %v6611
        %6718 = vst.msk [vmem:[#allocation3 + $0x60] sm:$0xf] %vm1654, %v6613
        %6719 = vst.msk [vmem:[#allocation3 + $0x6c] sm:$0xf] %vm1654, %v6615
        %6720 = vst.msk [vmem:[#allocation3 + $0x78] sm:$0xf] %vm1654, %v6617
        %6721 = vst.msk [vmem:[#allocation3 + $0x84] sm:$0xf] %vm1654, %v6619
        %6722 = vst.msk [vmem:[#allocation3 + $0x90] sm:$0xf] %vm1654, %v6621
        %6723 = vst.msk [vmem:[#allocation3 + $0x9c] sm:$0xf] %vm1654, %v6623
        %6724 = vst.msk [vmem:[#allocation3 + $0xa8] sm:$0xf] %vm1654, %v6625
        %6725 = vst.msk [vmem:[#allocation3 + $0xb4] sm:$0xf] %vm1654, %v6627
        %6726 = vst.msk [vmem:[#allocation3 + $0xc0] sm:$0xf] %vm1654, %v6629
        %6727 = vst.msk [vmem:[#allocation3 + $0xcc] sm:$0xf] %vm1654, %v6631
        %6728 = vst.msk [vmem:[#allocation3 + $0xd8] sm:$0xf] %vm1654, %v6633
        %6729 = vst.msk [vmem:[#allocation3 + $0xe4] sm:$0xf] %vm1654, %v6635
        %6730 = vst.msk [vmem:[#allocation3 + $0xf0] sm:$0xf] %vm1654, %v6637
        %6731 = vst.msk [vmem:[#allocation3 + $0xfc] sm:$0xf] %vm1654, %v6639
        %6732 = vst.msk [vmem:[#allocation3 + $0x108] sm:$0xf] %vm1654, %v6641
        %6733 = vst.msk [vmem:[#allocation3 + $0x114] sm:$0xf] %vm1654, %v6643
        %6734 = vst.msk [vmem:[#allocation3 + $0x120] sm:$0xf] %vm1654, %v6645
        %6735 = vst.msk [vmem:[#allocation3 + $0x12c] sm:$0xf] %vm1654, %v6647
        %6736 = vst.msk [vmem:[#allocation3 + $0x138] sm:$0xf] %vm1654, %v6649
        %6737 = vst.msk [vmem:[#allocation3 + $0x144] sm:$0xf] %vm1654, %v6651
        %6738 = vst.msk [vmem:[#allocation3 + $0x150] sm:$0xf] %vm1654, %v6653
        %6739 = vst.msk [vmem:[#allocation3 + $0x15c] sm:$0xf] %vm1654, %v6655
        %6740 = vst.msk [vmem:[#allocation3 + $0x168] sm:$0xf] %vm1654, %v6657
        %6741 = vst.msk [vmem:[#allocation3 + $0x174] sm:$0xf] %vm1654, %v6659
        %6742 = vst.msk [vmem:[#allocation3 + $0x180] sm:$0xf] %vm1654, %v6661
        %6743 = vst.msk [vmem:[#allocation3 + $0x18c] sm:$0xf] %vm1654, %v6663
        %6744 = vst.msk [vmem:[#allocation3 + $0x198] sm:$0xf] %vm1654, %v6665
        %6745 = vst.msk [vmem:[#allocation3 + $0x1a4] sm:$0xf] %vm1654, %v6667
        %6746 = vst.msk [vmem:[#allocation3 + $0x1b0] sm:$0xf] %vm1654, %v6669
        %6747 = vst.msk [vmem:[#allocation3 + $0x1bc] sm:$0xf] %vm1654, %v6671
        %v6748 = vld [vmem:[#allocation4 + $0x8] sm:$0xe]
        %v6749 = vld [vmem:[#allocation4 + $0xc] sm:$0xf]
        %v6750 = vld [vmem:[#allocation4 + $0x10] sm:$0xf]
        %v6751 = vld [vmem:[#allocation4 + $0x14] sm:$0xf]
        %v6752 = vld [vmem:[#allocation4 + $0x18] sm:$0xf]
        %v6753 = vld [vmem:[#allocation4 + $0x1c] sm:$0xf]
        %v6754 = vld [vmem:[#allocation4 + $0x20] sm:$0xf]
        %v6755 = vld [vmem:[#allocation4 + $0x24] sm:$0xf]
        %v6756 = vld [vmem:[#allocation4 + $0x28] sm:$0xf]
        %v6757 = vld [vmem:[#allocation4 + $0x2c] sm:$0xf]
        %v6758 = vld [vmem:[#allocation4 + $0x30] sm:$0xf]
        %v6759 = vld [vmem:[#allocation4 + $0x34] sm:$0xf]
        %v6760 = vld [vmem:[#allocation4 + $0x38] sm:$0xf]
        %v6761 = vld [vmem:[#allocation4 + $0x3c] sm:$0xf]
        %v6762 = vld [vmem:[#allocation4 + $0x40] sm:$0xf]
        %v6763 = vld [vmem:[#allocation4 + $0x44] sm:$0xf]
        %v6764 = vld [vmem:[#allocation4 + $0x48] sm:$0xf]
        %v6765 = vld [vmem:[#allocation4 + $0x4c] sm:$0xf]
        %v6766 = vld [vmem:[#allocation4 + $0x50] sm:$0xf]
        %v6767 = vld [vmem:[#allocation4 + $0x54] sm:$0xf]
        %v6768 = vld [vmem:[#allocation4 + $0x58] sm:$0xf]
        %v6769 = vld [vmem:[#allocation4 + $0x5c] sm:$0xf]
        %v6770 = vld [vmem:[#allocation4 + $0x60] sm:$0xf]
        %v6771 = vld [vmem:[#allocation4 + $0x64] sm:$0xf]
        %v6772 = vld [vmem:[#allocation4 + $0x68] sm:$0xf]
        %v6773 = vld [vmem:[#allocation4 + $0x6c] sm:$0xf]
        %v6774 = vld [vmem:[#allocation4 + $0x70] sm:$0xf]
        %v6775 = vld [vmem:[#allocation4 + $0x74] sm:$0xf]
        %v6776 = vld [vmem:[#allocation4 + $0x78] sm:$0xf]
        %v6777 = vld [vmem:[#allocation4 + $0x7c] sm:$0xf]
        %v6778 = vld [vmem:[#allocation4 + $0x80] sm:$0xf]
        %v6779 = vld [vmem:[#allocation4 + $0x84] sm:$0xf]
        %v6780 = vld [vmem:[#allocation4 + $0x88] sm:$0xf]
        %v6781 = vld [vmem:[#allocation4 + $0x8c] sm:$0xf]
        %v6782 = vld [vmem:[#allocation4 + $0x90] sm:$0xf]
        %v6783 = vld [vmem:[#allocation4 + $0x94] sm:$0xf]
        %v6784 = vld [vmem:[#allocation4 + $0x98] sm:$0xf]
        %v6785 = vld [vmem:[#allocation4 + $0x9c] sm:$0xf]
        %v6786 = vld [vmem:[#allocation4 + $0xa0] sm:$0x3]
        %v6788 = vshrl.u32 %v6748, 16
        %v6790 = vrot.slane %v6788, 5
        %v6791 = vshll.u32 %v6748, 16
        %v6793 = vrot.slane %v6791, 6
        %v6794 = vor.u32 %v6790, %v6793
        %v6795 = vrot.slane %v6794, 4
        %v6797 = vshrl.u32 %v6749, 16
        %v6799 = vrot.slane %v6797, 5
        %v6800 = vshll.u32 %v6749, 16
        %v6802 = vrot.slane %v6800, 6
        %v6803 = vor.u32 %v6799, %v6802
        %v6804 = vsel %vm1734, %v6795, %v6803
        %v6805 = vrot.slane %v6803, 4
        %v6807 = vshrl.u32 %v6750, 16
        %v6809 = vrot.slane %v6807, 5
        %v6810 = vshll.u32 %v6750, 16
        %v6812 = vrot.slane %v6810, 6
        %v6813 = vor.u32 %v6809, %v6812
        %v6814 = vsel %vm1734, %v6805, %v6813
        %v6815 = vrot.slane %v6813, 4
        %v6817 = vshrl.u32 %v6751, 16
        %v6819 = vrot.slane %v6817, 5
        %v6820 = vshll.u32 %v6751, 16
        %v6822 = vrot.slane %v6820, 6
        %v6823 = vor.u32 %v6819, %v6822
        %v6824 = vsel %vm1734, %v6815, %v6823
        %v6825 = vrot.slane %v6823, 4
        %v6827 = vshrl.u32 %v6752, 16
        %v6829 = vrot.slane %v6827, 5
        %v6830 = vshll.u32 %v6752, 16
        %v6832 = vrot.slane %v6830, 6
        %v6833 = vor.u32 %v6829, %v6832
        %v6834 = vsel %vm1734, %v6825, %v6833
        %v6835 = vrot.slane %v6833, 4
        %v6837 = vshrl.u32 %v6753, 16
        %v6839 = vrot.slane %v6837, 5
        %v6840 = vshll.u32 %v6753, 16
        %v6842 = vrot.slane %v6840, 6
        %v6843 = vor.u32 %v6839, %v6842
        %v6844 = vsel %vm1734, %v6835, %v6843
        %v6845 = vrot.slane %v6843, 4
        %v6847 = vshrl.u32 %v6754, 16
        %v6849 = vrot.slane %v6847, 5
        %v6850 = vshll.u32 %v6754, 16
        %v6852 = vrot.slane %v6850, 6
        %v6853 = vor.u32 %v6849, %v6852
        %v6854 = vsel %vm1734, %v6845, %v6853
        %v6855 = vrot.slane %v6853, 4
        %v6857 = vshrl.u32 %v6755, 16
        %v6859 = vrot.slane %v6857, 5
        %v6860 = vshll.u32 %v6755, 16
        %v6862 = vrot.slane %v6860, 6
        %v6863 = vor.u32 %v6859, %v6862
        %v6864 = vsel %vm1734, %v6855, %v6863
        %v6865 = vrot.slane %v6863, 4
        %v6867 = vshrl.u32 %v6756, 16
        %v6869 = vrot.slane %v6867, 5
        %v6870 = vshll.u32 %v6756, 16
        %v6872 = vrot.slane %v6870, 6
        %v6873 = vor.u32 %v6869, %v6872
        %v6874 = vsel %vm1734, %v6865, %v6873
        %v6875 = vrot.slane %v6873, 4
        %v6877 = vshrl.u32 %v6757, 16
        %v6879 = vrot.slane %v6877, 5
        %v6880 = vshll.u32 %v6757, 16
        %v6882 = vrot.slane %v6880, 6
        %v6883 = vor.u32 %v6879, %v6882
        %v6884 = vsel %vm1734, %v6875, %v6883
        %v6885 = vrot.slane %v6883, 4
        %v6887 = vshrl.u32 %v6758, 16
        %v6889 = vrot.slane %v6887, 5
        %v6890 = vshll.u32 %v6758, 16
        %v6892 = vrot.slane %v6890, 6
        %v6893 = vor.u32 %v6889, %v6892
        %v6894 = vsel %vm1734, %v6885, %v6893
        %v6895 = vrot.slane %v6893, 4
        %v6897 = vshrl.u32 %v6759, 16
        %v6899 = vrot.slane %v6897, 5
        %v6900 = vshll.u32 %v6759, 16
        %v6902 = vrot.slane %v6900, 6
        %v6903 = vor.u32 %v6899, %v6902
        %v6904 = vsel %vm1734, %v6895, %v6903
        %v6905 = vrot.slane %v6903, 4
        %v6907 = vshrl.u32 %v6760, 16
        %v6909 = vrot.slane %v6907, 5
        %v6910 = vshll.u32 %v6760, 16
        %v6912 = vrot.slane %v6910, 6
        %v6913 = vor.u32 %v6909, %v6912
        %v6914 = vsel %vm1734, %v6905, %v6913
        %v6915 = vrot.slane %v6913, 4
        %v6917 = vshrl.u32 %v6761, 16
        %v6919 = vrot.slane %v6917, 5
        %v6920 = vshll.u32 %v6761, 16
        %v6922 = vrot.slane %v6920, 6
        %v6923 = vor.u32 %v6919, %v6922
        %v6924 = vsel %vm1734, %v6915, %v6923
        %v6925 = vrot.slane %v6923, 4
        %v6927 = vshrl.u32 %v6762, 16
        %v6929 = vrot.slane %v6927, 5
        %v6930 = vshll.u32 %v6762, 16
        %v6932 = vrot.slane %v6930, 6
        %v6933 = vor.u32 %v6929, %v6932
        %v6934 = vsel %vm1734, %v6925, %v6933
        %v6935 = vrot.slane %v6933, 4
        %v6937 = vshrl.u32 %v6763, 16
        %v6939 = vrot.slane %v6937, 5
        %v6940 = vshll.u32 %v6763, 16
        %v6942 = vrot.slane %v6940, 6
        %v6943 = vor.u32 %v6939, %v6942
        %v6944 = vsel %vm1734, %v6935, %v6943
        %v6945 = vrot.slane %v6943, 4
        %v6947 = vshrl.u32 %v6764, 16
        %v6949 = vrot.slane %v6947, 5
        %v6950 = vshll.u32 %v6764, 16
        %v6952 = vrot.slane %v6950, 6
        %v6953 = vor.u32 %v6949, %v6952
        %v6954 = vsel %vm1734, %v6945, %v6953
        %v6955 = vrot.slane %v6953, 4
        %v6957 = vshrl.u32 %v6765, 16
        %v6959 = vrot.slane %v6957, 5
        %v6960 = vshll.u32 %v6765, 16
        %v6962 = vrot.slane %v6960, 6
        %v6963 = vor.u32 %v6959, %v6962
        %v6964 = vsel %vm1734, %v6955, %v6963
        %v6965 = vrot.slane %v6963, 4
        %v6967 = vshrl.u32 %v6766, 16
        %v6969 = vrot.slane %v6967, 5
        %v6970 = vshll.u32 %v6766, 16
        %v6972 = vrot.slane %v6970, 6
        %v6973 = vor.u32 %v6969, %v6972
        %v6974 = vsel %vm1734, %v6965, %v6973
        %v6975 = vrot.slane %v6973, 4
        %v6977 = vshrl.u32 %v6767, 16
        %v6979 = vrot.slane %v6977, 5
        %v6980 = vshll.u32 %v6767, 16
        %v6982 = vrot.slane %v6980, 6
        %v6983 = vor.u32 %v6979, %v6982
        %v6984 = vsel %vm1734, %v6975, %v6983
        %v6985 = vrot.slane %v6983, 4
        %v6987 = vshrl.u32 %v6768, 16
        %v6989 = vrot.slane %v6987, 5
        %v6990 = vshll.u32 %v6768, 16
        %v6992 = vrot.slane %v6990, 6
        %v6993 = vor.u32 %v6989, %v6992
        %v6994 = vsel %vm1734, %v6985, %v6993
        %v6995 = vrot.slane %v6993, 4
        %v6997 = vshrl.u32 %v6769, 16
        %v6999 = vrot.slane %v6997, 5
        %v7000 = vshll.u32 %v6769, 16
        %v7002 = vrot.slane %v7000, 6
        %v7003 = vor.u32 %v6999, %v7002
        %v7004 = vsel %vm1734, %v6995, %v7003
        %v7005 = vrot.slane %v7003, 4
        %v7007 = vshrl.u32 %v6770, 16
        %v7009 = vrot.slane %v7007, 5
        %v7010 = vshll.u32 %v6770, 16
        %v7012 = vrot.slane %v7010, 6
        %v7013 = vor.u32 %v7009, %v7012
        %v7014 = vsel %vm1734, %v7005, %v7013
        %v7015 = vrot.slane %v7013, 4
        %v7017 = vshrl.u32 %v6771, 16
        %v7019 = vrot.slane %v7017, 5
        %v7020 = vshll.u32 %v6771, 16
        %v7022 = vrot.slane %v7020, 6
        %v7023 = vor.u32 %v7019, %v7022
        %v7024 = vsel %vm1734, %v7015, %v7023
        %v7025 = vrot.slane %v7023, 4
        %v7027 = vshrl.u32 %v6772, 16
        %v7029 = vrot.slane %v7027, 5
        %v7030 = vshll.u32 %v6772, 16
        %v7032 = vrot.slane %v7030, 6
        %v7033 = vor.u32 %v7029, %v7032
        %v7034 = vsel %vm1734, %v7025, %v7033
        %v7035 = vrot.slane %v7033, 4
        %v7037 = vshrl.u32 %v6773, 16
        %v7039 = vrot.slane %v7037, 5
        %v7040 = vshll.u32 %v6773, 16
        %v7042 = vrot.slane %v7040, 6
        %v7043 = vor.u32 %v7039, %v7042
        %v7044 = vsel %vm1734, %v7035, %v7043
        %v7045 = vrot.slane %v7043, 4
        %v7047 = vshrl.u32 %v6774, 16
        %v7049 = vrot.slane %v7047, 5
        %v7050 = vshll.u32 %v6774, 16
        %v7052 = vrot.slane %v7050, 6
        %v7053 = vor.u32 %v7049, %v7052
        %v7054 = vsel %vm1734, %v7045, %v7053
        %v7055 = vrot.slane %v7053, 4
        %v7057 = vshrl.u32 %v6775, 16
        %v7059 = vrot.slane %v7057, 5
        %v7060 = vshll.u32 %v6775, 16
        %v7062 = vrot.slane %v7060, 6
        %v7063 = vor.u32 %v7059, %v7062
        %v7064 = vsel %vm1734, %v7055, %v7063
        %v7065 = vrot.slane %v7063, 4
        %v7067 = vshrl.u32 %v6776, 16
        %v7069 = vrot.slane %v7067, 5
        %v7070 = vshll.u32 %v6776, 16
        %v7072 = vrot.slane %v7070, 6
        %v7073 = vor.u32 %v7069, %v7072
        %v7074 = vsel %vm1734, %v7065, %v7073
        %v7075 = vrot.slane %v7073, 4
        %v7077 = vshrl.u32 %v6777, 16
        %v7079 = vrot.slane %v7077, 5
        %v7080 = vshll.u32 %v6777, 16
        %v7082 = vrot.slane %v7080, 6
        %v7083 = vor.u32 %v7079, %v7082
        %v7084 = vsel %vm1734, %v7075, %v7083
        %v7085 = vrot.slane %v7083, 4
        %v7087 = vshrl.u32 %v6778, 16
        %v7089 = vrot.slane %v7087, 5
        %v7090 = vshll.u32 %v6778, 16
        %v7092 = vrot.slane %v7090, 6
        %v7093 = vor.u32 %v7089, %v7092
        %v7094 = vsel %vm1734, %v7085, %v7093
        %v7095 = vrot.slane %v7093, 4
        %v7097 = vshrl.u32 %v6779, 16
        %v7099 = vrot.slane %v7097, 5
        %v7100 = vshll.u32 %v6779, 16
        %v7102 = vrot.slane %v7100, 6
        %v7103 = vor.u32 %v7099, %v7102
        %v7104 = vsel %vm1734, %v7095, %v7103
        %v7105 = vrot.slane %v7103, 4
        %v7107 = vshrl.u32 %v6780, 16
        %v7109 = vrot.slane %v7107, 5
        %v7110 = vshll.u32 %v6780, 16
        %v7112 = vrot.slane %v7110, 6
        %v7113 = vor.u32 %v7109, %v7112
        %v7114 = vsel %vm1734, %v7105, %v7113
        %v7115 = vrot.slane %v7113, 4
        %v7117 = vshrl.u32 %v6781, 16
        %v7119 = vrot.slane %v7117, 5
        %v7120 = vshll.u32 %v6781, 16
        %v7122 = vrot.slane %v7120, 6
        %v7123 = vor.u32 %v7119, %v7122
        %v7124 = vsel %vm1734, %v7115, %v7123
        %v7125 = vrot.slane %v7123, 4
        %v7127 = vshrl.u32 %v6782, 16
        %v7129 = vrot.slane %v7127, 5
        %v7130 = vshll.u32 %v6782, 16
        %v7132 = vrot.slane %v7130, 6
        %v7133 = vor.u32 %v7129, %v7132
        %v7134 = vsel %vm1734, %v7125, %v7133
        %v7135 = vrot.slane %v7133, 4
        %v7137 = vshrl.u32 %v6783, 16
        %v7139 = vrot.slane %v7137, 5
        %v7140 = vshll.u32 %v6783, 16
        %v7142 = vrot.slane %v7140, 6
        %v7143 = vor.u32 %v7139, %v7142
        %v7144 = vsel %vm1734, %v7135, %v7143
        %v7145 = vrot.slane %v7143, 4
        %v7147 = vshrl.u32 %v6784, 16
        %v7149 = vrot.slane %v7147, 5
        %v7150 = vshll.u32 %v6784, 16
        %v7152 = vrot.slane %v7150, 6
        %v7153 = vor.u32 %v7149, %v7152
        %v7154 = vsel %vm1734, %v7145, %v7153
        %v7155 = vrot.slane %v7153, 4
        %v7157 = vshrl.u32 %v6785, 16
        %v7159 = vrot.slane %v7157, 5
        %v7160 = vshll.u32 %v6785, 16
        %v7162 = vrot.slane %v7160, 6
        %v7163 = vor.u32 %v7159, %v7162
        %v7164 = vsel %vm1734, %v7155, %v7163
        %v7165 = vrot.slane %v7163, 4
        %v7167 = vshrl.u32 %v6786, 16
        %v7169 = vrot.slane %v7167, 5
        %v7170 = vshll.u32 %v6786, 16
        %v7172 = vrot.slane %v7170, 6
        %v7173 = vor.u32 %v7169, %v7172
        %v7174 = vsel %vm1734, %v7165, %v7173
        %7213 = vst.msk [vmem:[#allocation3 + $0x4] sm:$0xf] %vm380, %v6804
        %7214 = vst.msk [vmem:[#allocation3 + $0x10] sm:$0xf] %vm380, %v6814
        %7215 = vst.msk [vmem:[#allocation3 + $0x1c] sm:$0xf] %vm380, %v6824
        %7216 = vst.msk [vmem:[#allocation3 + $0x28] sm:$0xf] %vm380, %v6834
        %7217 = vst.msk [vmem:[#allocation3 + $0x34] sm:$0xf] %vm380, %v6844
        %7218 = vst.msk [vmem:[#allocation3 + $0x40] sm:$0xf] %vm380, %v6854
        %7219 = vst.msk [vmem:[#allocation3 + $0x4c] sm:$0xf] %vm380, %v6864
        %7220 = vst.msk [vmem:[#allocation3 + $0x58] sm:$0xf] %vm380, %v6874
        %7221 = vst.msk [vmem:[#allocation3 + $0x64] sm:$0xf] %vm380, %v6884
        %7222 = vst.msk [vmem:[#allocation3 + $0x70] sm:$0xf] %vm380, %v6894
        %7223 = vst.msk [vmem:[#allocation3 + $0x7c] sm:$0xf] %vm380, %v6904
        %7224 = vst.msk [vmem:[#allocation3 + $0x88] sm:$0xf] %vm380, %v6914
        %7225 = vst.msk [vmem:[#allocation3 + $0x94] sm:$0xf] %vm380, %v6924
        %7226 = vst.msk [vmem:[#allocation3 + $0xa0] sm:$0xf] %vm380, %v6934
        %7227 = vst.msk [vmem:[#allocation3 + $0xac] sm:$0xf] %vm380, %v6944
        %7228 = vst.msk [vmem:[#allocation3 + $0xb8] sm:$0xf] %vm380, %v6954
        %7229 = vst.msk [vmem:[#allocation3 + $0xc4] sm:$0xf] %vm380, %v6964
        %7230 = vst.msk [vmem:[#allocation3 + $0xd0] sm:$0xf] %vm380, %v6974
        %7231 = vst.msk [vmem:[#allocation3 + $0xdc] sm:$0xf] %vm380, %v6984
        %7232 = vst.msk [vmem:[#allocation3 + $0xe8] sm:$0xf] %vm380, %v6994
        %7233 = vst.msk [vmem:[#allocation3 + $0xf4] sm:$0xf] %vm380, %v7004
        %7234 = vst.msk [vmem:[#allocation3 + $0x100] sm:$0xf] %vm380, %v7014
        %7235 = vst.msk [vmem:[#allocation3 + $0x10c] sm:$0xf] %vm380, %v7024
        %7236 = vst.msk [vmem:[#allocation3 + $0x118] sm:$0xf] %vm380, %v7034
        %7237 = vst.msk [vmem:[#allocation3 + $0x124] sm:$0xf] %vm380, %v7044
        %7238 = vst.msk [vmem:[#allocation3 + $0x130] sm:$0xf] %vm380, %v7054
        %7239 = vst.msk [vmem:[#allocation3 + $0x13c] sm:$0xf] %vm380, %v7064
        %7240 = vst.msk [vmem:[#allocation3 + $0x148] sm:$0xf] %vm380, %v7074
        %7241 = vst.msk [vmem:[#allocation3 + $0x154] sm:$0xf] %vm380, %v7084
        %7242 = vst.msk [vmem:[#allocation3 + $0x160] sm:$0xf] %vm380, %v7094
        %7243 = vst.msk [vmem:[#allocation3 + $0x16c] sm:$0xf] %vm380, %v7104
        %7244 = vst.msk [vmem:[#allocation3 + $0x178] sm:$0xf] %vm380, %v7114
        %7245 = vst.msk [vmem:[#allocation3 + $0x184] sm:$0xf] %vm380, %v7124
        %7246 = vst.msk [vmem:[#allocation3 + $0x190] sm:$0xf] %vm380, %v7134
        %7247 = vst.msk [vmem:[#allocation3 + $0x19c] sm:$0xf] %vm380, %v7144
        %7248 = vst.msk [vmem:[#allocation3 + $0x1a8] sm:$0xf] %vm380, %v7154
        %7249 = vst.msk [vmem:[#allocation3 + $0x1b4] sm:$0xf] %vm380, %v7164
        %7250 = vst.msk [vmem:[#allocation3 + $0x1c0] sm:$0xf] %vm380, %v7174
        %v7251 = vld [vmem:[#allocation4 + $0x8] sm:$0xc]
        %v7252 = vld [vmem:[#allocation4 + $0xc] sm:$0xf]
        %v7253 = vld [vmem:[#allocation4 + $0x10] sm:$0xf]
        %v7254 = vld [vmem:[#allocation4 + $0x14] sm:$0xf]
        %v7255 = vld [vmem:[#allocation4 + $0x18] sm:$0xf]
        %v7256 = vld [vmem:[#allocation4 + $0x1c] sm:$0xf]
        %v7257 = vld [vmem:[#allocation4 + $0x20] sm:$0xf]
        %v7258 = vld [vmem:[#allocation4 + $0x24] sm:$0xf]
        %v7259 = vld [vmem:[#allocation4 + $0x28] sm:$0xf]
        %v7260 = vld [vmem:[#allocation4 + $0x2c] sm:$0xf]
        %v7261 = vld [vmem:[#allocation4 + $0x30] sm:$0xf]
        %v7262 = vld [vmem:[#allocation4 + $0x34] sm:$0xf]
        %v7263 = vld [vmem:[#allocation4 + $0x38] sm:$0xf]
        %v7264 = vld [vmem:[#allocation4 + $0x3c] sm:$0xf]
        %v7265 = vld [vmem:[#allocation4 + $0x40] sm:$0xf]
        %v7266 = vld [vmem:[#allocation4 + $0x44] sm:$0xf]
        %v7267 = vld [vmem:[#allocation4 + $0x48] sm:$0xf]
        %v7268 = vld [vmem:[#allocation4 + $0x4c] sm:$0xf]
        %v7269 = vld [vmem:[#allocation4 + $0x50] sm:$0xf]
        %v7270 = vld [vmem:[#allocation4 + $0x54] sm:$0xf]
        %v7271 = vld [vmem:[#allocation4 + $0x58] sm:$0xf]
        %v7272 = vld [vmem:[#allocation4 + $0x5c] sm:$0xf]
        %v7273 = vld [vmem:[#allocation4 + $0x60] sm:$0xf]
        %v7274 = vld [vmem:[#allocation4 + $0x64] sm:$0xf]
        %v7275 = vld [vmem:[#allocation4 + $0x68] sm:$0xf]
        %v7276 = vld [vmem:[#allocation4 + $0x6c] sm:$0xf]
        %v7277 = vld [vmem:[#allocation4 + $0x70] sm:$0xf]
        %v7278 = vld [vmem:[#allocation4 + $0x74] sm:$0xf]
        %v7279 = vld [vmem:[#allocation4 + $0x78] sm:$0xf]
        %v7280 = vld [vmem:[#allocation4 + $0x7c] sm:$0xf]
        %v7281 = vld [vmem:[#allocation4 + $0x80] sm:$0xf]
        %v7282 = vld [vmem:[#allocation4 + $0x84] sm:$0xf]
        %v7283 = vld [vmem:[#allocation4 + $0x88] sm:$0xf]
        %v7284 = vld [vmem:[#allocation4 + $0x8c] sm:$0xf]
        %v7285 = vld [vmem:[#allocation4 + $0x90] sm:$0xf]
        %v7286 = vld [vmem:[#allocation4 + $0x94] sm:$0xf]
        %v7287 = vld [vmem:[#allocation4 + $0x98] sm:$0xf]
        %v7288 = vld [vmem:[#allocation4 + $0x9c] sm:$0xf]
        %v7289 = vld [vmem:[#allocation4 + $0xa0] sm:$0x3]
        %v7329 = vrot.slane %v7251, 6
        %v7330 = vrot.slane %v7329, 4
        %v7331 = vrot.slane %v7252, 6
        %v7332 = vsel %vm2279, %v7330, %v7331
        %v7333 = vrot.slane %v7331, 4
        %v7334 = vrot.slane %v7253, 6
        %v7335 = vsel %vm2279, %v7333, %v7334
        %v7336 = vrot.slane %v7334, 4
        %v7337 = vrot.slane %v7254, 6
        %v7338 = vsel %vm2279, %v7336, %v7337
        %v7339 = vrot.slane %v7337, 4
        %v7340 = vrot.slane %v7255, 6
        %v7341 = vsel %vm2279, %v7339, %v7340
        %v7342 = vrot.slane %v7340, 4
        %v7343 = vrot.slane %v7256, 6
        %v7344 = vsel %vm2279, %v7342, %v7343
        %v7345 = vrot.slane %v7343, 4
        %v7346 = vrot.slane %v7257, 6
        %v7347 = vsel %vm2279, %v7345, %v7346
        %v7348 = vrot.slane %v7346, 4
        %v7349 = vrot.slane %v7258, 6
        %v7350 = vsel %vm2279, %v7348, %v7349
        %v7351 = vrot.slane %v7349, 4
        %v7352 = vrot.slane %v7259, 6
        %v7353 = vsel %vm2279, %v7351, %v7352
        %v7354 = vrot.slane %v7352, 4
        %v7355 = vrot.slane %v7260, 6
        %v7356 = vsel %vm2279, %v7354, %v7355
        %v7357 = vrot.slane %v7355, 4
        %v7358 = vrot.slane %v7261, 6
        %v7359 = vsel %vm2279, %v7357, %v7358
        %v7360 = vrot.slane %v7358, 4
        %v7361 = vrot.slane %v7262, 6
        %v7362 = vsel %vm2279, %v7360, %v7361
        %v7363 = vrot.slane %v7361, 4
        %v7364 = vrot.slane %v7263, 6
        %v7365 = vsel %vm2279, %v7363, %v7364
        %v7366 = vrot.slane %v7364, 4
        %v7367 = vrot.slane %v7264, 6
        %v7368 = vsel %vm2279, %v7366, %v7367
        %v7369 = vrot.slane %v7367, 4
        %v7370 = vrot.slane %v7265, 6
        %v7371 = vsel %vm2279, %v7369, %v7370
        %v7372 = vrot.slane %v7370, 4
        %v7373 = vrot.slane %v7266, 6
        %v7374 = vsel %vm2279, %v7372, %v7373
        %v7375 = vrot.slane %v7373, 4
        %v7376 = vrot.slane %v7267, 6
        %v7377 = vsel %vm2279, %v7375, %v7376
        %v7378 = vrot.slane %v7376, 4
        %v7379 = vrot.slane %v7268, 6
        %v7380 = vsel %vm2279, %v7378, %v7379
        %v7381 = vrot.slane %v7379, 4
        %v7382 = vrot.slane %v7269, 6
        %v7383 = vsel %vm2279, %v7381, %v7382
        %v7384 = vrot.slane %v7382, 4
        %v7385 = vrot.slane %v7270, 6
        %v7386 = vsel %vm2279, %v7384, %v7385
        %v7387 = vrot.slane %v7385, 4
        %v7388 = vrot.slane %v7271, 6
        %v7389 = vsel %vm2279, %v7387, %v7388
        %v7390 = vrot.slane %v7388, 4
        %v7391 = vrot.slane %v7272, 6
        %v7392 = vsel %vm2279, %v7390, %v7391
        %v7393 = vrot.slane %v7391, 4
        %v7394 = vrot.slane %v7273, 6
        %v7395 = vsel %vm2279, %v7393, %v7394
        %v7396 = vrot.slane %v7394, 4
        %v7397 = vrot.slane %v7274, 6
        %v7398 = vsel %vm2279, %v7396, %v7397
        %v7399 = vrot.slane %v7397, 4
        %v7400 = vrot.slane %v7275, 6
        %v7401 = vsel %vm2279, %v7399, %v7400
        %v7402 = vrot.slane %v7400, 4
        %v7403 = vrot.slane %v7276, 6
        %v7404 = vsel %vm2279, %v7402, %v7403
        %v7405 = vrot.slane %v7403, 4
        %v7406 = vrot.slane %v7277, 6
        %v7407 = vsel %vm2279, %v7405, %v7406
        %v7408 = vrot.slane %v7406, 4
        %v7409 = vrot.slane %v7278, 6
        %v7410 = vsel %vm2279, %v7408, %v7409
        %v7411 = vrot.slane %v7409, 4
        %v7412 = vrot.slane %v7279, 6
        %v7413 = vsel %vm2279, %v7411, %v7412
        %v7414 = vrot.slane %v7412, 4
        %v7415 = vrot.slane %v7280, 6
        %v7416 = vsel %vm2279, %v7414, %v7415
        %v7417 = vrot.slane %v7415, 4
        %v7418 = vrot.slane %v7281, 6
        %v7419 = vsel %vm2279, %v7417, %v7418
        %v7420 = vrot.slane %v7418, 4
        %v7421 = vrot.slane %v7282, 6
        %v7422 = vsel %vm2279, %v7420, %v7421
        %v7423 = vrot.slane %v7421, 4
        %v7424 = vrot.slane %v7283, 6
        %v7425 = vsel %vm2279, %v7423, %v7424
        %v7426 = vrot.slane %v7424, 4
        %v7427 = vrot.slane %v7284, 6
        %v7428 = vsel %vm2279, %v7426, %v7427
        %v7429 = vrot.slane %v7427, 4
        %v7430 = vrot.slane %v7285, 6
        %v7431 = vsel %vm2279, %v7429, %v7430
        %v7432 = vrot.slane %v7430, 4
        %v7433 = vrot.slane %v7286, 6
        %v7434 = vsel %vm2279, %v7432, %v7433
        %v7435 = vrot.slane %v7433, 4
        %v7436 = vrot.slane %v7287, 6
        %v7437 = vsel %vm2279, %v7435, %v7436
        %v7438 = vrot.slane %v7436, 4
        %v7439 = vrot.slane %v7288, 6
        %v7440 = vsel %vm2279, %v7438, %v7439
        %v7441 = vrot.slane %v7439, 4
        %v7442 = vrot.slane %v7289, 6
        %v7443 = vsel %vm2279, %v7441, %v7442
        %7444 = vrot.lane.b32.xlu0 %v7332, 32
        %v7445 = vpop.permute.xlu0 %7444
        %7446 = vrot.lane.b32.xlu0 %v7335, 32
        %v7447 = vpop.permute.xlu0 %7446
        %7448 = vrot.lane.b32.xlu0 %v7338, 32
        %v7449 = vpop.permute.xlu0 %7448
        %7450 = vrot.lane.b32.xlu0 %v7341, 32
        %v7451 = vpop.permute.xlu0 %7450
        %7452 = vrot.lane.b32.xlu0 %v7344, 32
        %v7453 = vpop.permute.xlu0 %7452
        %7454 = vrot.lane.b32.xlu0 %v7347, 32
        %v7455 = vpop.permute.xlu0 %7454
        %7456 = vrot.lane.b32.xlu0 %v7350, 32
        %v7457 = vpop.permute.xlu0 %7456
        %7458 = vrot.lane.b32.xlu0 %v7353, 32
        %v7459 = vpop.permute.xlu0 %7458
        %7460 = vrot.lane.b32.xlu0 %v7356, 32
        %v7461 = vpop.permute.xlu0 %7460
        %7462 = vrot.lane.b32.xlu0 %v7359, 32
        %v7463 = vpop.permute.xlu0 %7462
        %7464 = vrot.lane.b32.xlu0 %v7362, 32
        %v7465 = vpop.permute.xlu0 %7464
        %7466 = vrot.lane.b32.xlu0 %v7365, 32
        %v7467 = vpop.permute.xlu0 %7466
        %7468 = vrot.lane.b32.xlu0 %v7368, 32
        %v7469 = vpop.permute.xlu0 %7468
        %7470 = vrot.lane.b32.xlu0 %v7371, 32
        %v7471 = vpop.permute.xlu0 %7470
        %7472 = vrot.lane.b32.xlu0 %v7374, 32
        %v7473 = vpop.permute.xlu0 %7472
        %7474 = vrot.lane.b32.xlu0 %v7377, 32
        %v7475 = vpop.permute.xlu0 %7474
        %7476 = vrot.lane.b32.xlu0 %v7380, 32
        %v7477 = vpop.permute.xlu0 %7476
        %7478 = vrot.lane.b32.xlu0 %v7383, 32
        %v7479 = vpop.permute.xlu0 %7478
        %7480 = vrot.lane.b32.xlu0 %v7386, 32
        %v7481 = vpop.permute.xlu0 %7480
        %7482 = vrot.lane.b32.xlu0 %v7389, 32
        %v7483 = vpop.permute.xlu0 %7482
        %7484 = vrot.lane.b32.xlu0 %v7392, 32
        %v7485 = vpop.permute.xlu0 %7484
        %7486 = vrot.lane.b32.xlu0 %v7395, 32
        %v7487 = vpop.permute.xlu0 %7486
        %7488 = vrot.lane.b32.xlu0 %v7398, 32
        %v7489 = vpop.permute.xlu0 %7488
        %7490 = vrot.lane.b32.xlu0 %v7401, 32
        %v7491 = vpop.permute.xlu0 %7490
        %7492 = vrot.lane.b32.xlu0 %v7404, 32
        %v7493 = vpop.permute.xlu0 %7492
        %7494 = vrot.lane.b32.xlu0 %v7407, 32
        %v7495 = vpop.permute.xlu0 %7494
        %7496 = vrot.lane.b32.xlu0 %v7410, 32
        %v7497 = vpop.permute.xlu0 %7496
        %7498 = vrot.lane.b32.xlu0 %v7413, 32
        %v7499 = vpop.permute.xlu0 %7498
        %7500 = vrot.lane.b32.xlu0 %v7416, 32
        %v7501 = vpop.permute.xlu0 %7500
        %7502 = vrot.lane.b32.xlu0 %v7419, 32
        %v7503 = vpop.permute.xlu0 %7502
        %7504 = vrot.lane.b32.xlu0 %v7422, 32
        %v7505 = vpop.permute.xlu0 %7504
        %7506 = vrot.lane.b32.xlu0 %v7425, 32
        %v7507 = vpop.permute.xlu0 %7506
        %7508 = vrot.lane.b32.xlu0 %v7428, 32
        %v7509 = vpop.permute.xlu0 %7508
        %7510 = vrot.lane.b32.xlu0 %v7431, 32
        %v7511 = vpop.permute.xlu0 %7510
        %7512 = vrot.lane.b32.xlu0 %v7434, 32
        %v7513 = vpop.permute.xlu0 %7512
        %7514 = vrot.lane.b32.xlu0 %v7437, 32
        %v7515 = vpop.permute.xlu0 %7514
        %7516 = vrot.lane.b32.xlu0 %v7440, 32
        %v7517 = vpop.permute.xlu0 %7516
        %7518 = vrot.lane.b32.xlu0 %v7443, 32
        %v7519 = vpop.permute.xlu0 %7518
        %7558 = vst.msk [vmem:[#allocation3 + $0x4] sm:$0xf] %vm959, %v7445
        %7559 = vst.msk [vmem:[#allocation3 + $0x10] sm:$0xf] %vm959, %v7447
        %7560 = vst.msk [vmem:[#allocation3 + $0x1c] sm:$0xf] %vm959, %v7449
        %7561 = vst.msk [vmem:[#allocation3 + $0x28] sm:$0xf] %vm959, %v7451
        %7562 = vst.msk [vmem:[#allocation3 + $0x34] sm:$0xf] %vm959, %v7453
        %7563 = vst.msk [vmem:[#allocation3 + $0x40] sm:$0xf] %vm959, %v7455
        %7564 = vst.msk [vmem:[#allocation3 + $0x4c] sm:$0xf] %vm959, %v7457
        %7565 = vst.msk [vmem:[#allocation3 + $0x58] sm:$0xf] %vm959, %v7459
        %7566 = vst.msk [vmem:[#allocation3 + $0x64] sm:$0xf] %vm959, %v7461
        %7567 = vst.msk [vmem:[#allocation3 + $0x70] sm:$0xf] %vm959, %v7463
        %7568 = vst.msk [vmem:[#allocation3 + $0x7c] sm:$0xf] %vm959, %v7465
        %7569 = vst.msk [vmem:[#allocation3 + $0x88] sm:$0xf] %vm959, %v7467
        %7570 = vst.msk [vmem:[#allocation3 + $0x94] sm:$0xf] %vm959, %v7469
        %7571 = vst.msk [vmem:[#allocation3 + $0xa0] sm:$0xf] %vm959, %v7471
        %7572 = vst.msk [vmem:[#allocation3 + $0xac] sm:$0xf] %vm959, %v7473
        %7573 = vst.msk [vmem:[#allocation3 + $0xb8] sm:$0xf] %vm959, %v7475
        %7574 = vst.msk [vmem:[#allocation3 + $0xc4] sm:$0xf] %vm959, %v7477
        %7575 = vst.msk [vmem:[#allocation3 + $0xd0] sm:$0xf] %vm959, %v7479
        %7576 = vst.msk [vmem:[#allocation3 + $0xdc] sm:$0xf] %vm959, %v7481
        %7577 = vst.msk [vmem:[#allocation3 + $0xe8] sm:$0xf] %vm959, %v7483
        %7578 = vst.msk [vmem:[#allocation3 + $0xf4] sm:$0xf] %vm959, %v7485
        %7579 = vst.msk [vmem:[#allocation3 + $0x100] sm:$0xf] %vm959, %v7487
        %7580 = vst.msk [vmem:[#allocation3 + $0x10c] sm:$0xf] %vm959, %v7489
        %7581 = vst.msk [vmem:[#allocation3 + $0x118] sm:$0xf] %vm959, %v7491
        %7582 = vst.msk [vmem:[#allocation3 + $0x124] sm:$0xf] %vm959, %v7493
        %7583 = vst.msk [vmem:[#allocation3 + $0x130] sm:$0xf] %vm959, %v7495
        %7584 = vst.msk [vmem:[#allocation3 + $0x13c] sm:$0xf] %vm959, %v7497
        %7585 = vst.msk [vmem:[#allocation3 + $0x148] sm:$0xf] %vm959, %v7499
        %7586 = vst.msk [vmem:[#allocation3 + $0x154] sm:$0xf] %vm959, %v7501
        %7587 = vst.msk [vmem:[#allocation3 + $0x160] sm:$0xf] %vm959, %v7503
        %7588 = vst.msk [vmem:[#allocation3 + $0x16c] sm:$0xf] %vm959, %v7505
        %7589 = vst.msk [vmem:[#allocation3 + $0x178] sm:$0xf] %vm959, %v7507
        %7590 = vst.msk [vmem:[#allocation3 + $0x184] sm:$0xf] %vm959, %v7509
        %7591 = vst.msk [vmem:[#allocation3 + $0x190] sm:$0xf] %vm959, %v7511
        %7592 = vst.msk [vmem:[#allocation3 + $0x19c] sm:$0xf] %vm959, %v7513
        %7593 = vst.msk [vmem:[#allocation3 + $0x1a8] sm:$0xf] %vm959, %v7515
        %7594 = vst.msk [vmem:[#allocation3 + $0x1b4] sm:$0xf] %vm959, %v7517
        %7595 = vst.msk [vmem:[#allocation3 + $0x1c0] sm:$0xf] %vm959, %v7519
        %v7596 = vld [vmem:[#allocation4 + $0x10] sm:$0xc]
        %v7597 = vld [vmem:[#allocation4 + $0x14] sm:$0xf]
        %v7598 = vld [vmem:[#allocation4 + $0x18] sm:$0xf]
        %v7599 = vld [vmem:[#allocation4 + $0x1c] sm:$0xf]
        %v7600 = vld [vmem:[#allocation4 + $0x20] sm:$0xf]
        %v7601 = vld [vmem:[#allocation4 + $0x24] sm:$0xf]
        %v7602 = vld [vmem:[#allocation4 + $0x28] sm:$0xf]
        %v7603 = vld [vmem:[#allocation4 + $0x2c] sm:$0xf]
        %v7604 = vld [vmem:[#allocation4 + $0x30] sm:$0xf]
        %v7605 = vld [vmem:[#allocation4 + $0x34] sm:$0xf]
        %v7606 = vld [vmem:[#allocation4 + $0x38] sm:$0xf]
        %v7607 = vld [vmem:[#allocation4 + $0x3c] sm:$0xf]
        %v7608 = vld [vmem:[#allocation4 + $0x40] sm:$0xf]
        %v7609 = vld [vmem:[#allocation4 + $0x44] sm:$0xf]
        %v7610 = vld [vmem:[#allocation4 + $0x48] sm:$0xf]
        %v7611 = vld [vmem:[#allocation4 + $0x4c] sm:$0xf]
        %v7612 = vld [vmem:[#allocation4 + $0x50] sm:$0xf]
        %v7613 = vld [vmem:[#allocation4 + $0x54] sm:$0xf]
        %v7614 = vld [vmem:[#allocation4 + $0x58] sm:$0xf]
        %v7615 = vld [vmem:[#allocation4 + $0x5c] sm:$0xf]
        %v7616 = vld [vmem:[#allocation4 + $0x60] sm:$0xf]
        %v7617 = vld [vmem:[#allocation4 + $0x64] sm:$0xf]
        %v7618 = vld [vmem:[#allocation4 + $0x68] sm:$0xf]
        %v7619 = vld [vmem:[#allocation4 + $0x6c] sm:$0xf]
        %v7620 = vld [vmem:[#allocation4 + $0x70] sm:$0xf]
        %v7621 = vld [vmem:[#allocation4 + $0x74] sm:$0xf]
        %v7622 = vld [vmem:[#allocation4 + $0x78] sm:$0xf]
        %v7623 = vld [vmem:[#allocation4 + $0x7c] sm:$0xf]
        %v7624 = vld [vmem:[#allocation4 + $0x80] sm:$0xf]
        %v7625 = vld [vmem:[#allocation4 + $0x84] sm:$0xf]
        %v7626 = vld [vmem:[#allocation4 + $0x88] sm:$0xf]
        %v7627 = vld [vmem:[#allocation4 + $0x8c] sm:$0xf]
        %v7628 = vld [vmem:[#allocation4 + $0x90] sm:$0xf]
        %v7629 = vld [vmem:[#allocation4 + $0x94] sm:$0xf]
        %v7630 = vld [vmem:[#allocation4 + $0x98] sm:$0xf]
        %v7631 = vld [vmem:[#allocation4 + $0x9c] sm:$0xf]
        %v7632 = vld [vmem:[#allocation4 + $0xa0] sm:$0xf]
        %v7633 = vld [vmem:[#allocation4 + $0xa4] sm:$0xf]
        %v7634 = vld [vmem:[#allocation4 + $0xa8] sm:$0x3]
        %v7674 = vrot.slane %v7596, 6
        %v7675 = vrot.slane %v7674, 4
        %v7676 = vrot.slane %v7597, 6
        %v7677 = vsel %vm2279, %v7675, %v7676
        %v7678 = vrot.slane %v7676, 4
        %v7679 = vrot.slane %v7598, 6
        %v7680 = vsel %vm2279, %v7678, %v7679
        %v7681 = vrot.slane %v7679, 4
        %v7682 = vrot.slane %v7599, 6
        %v7683 = vsel %vm2279, %v7681, %v7682
        %v7684 = vrot.slane %v7682, 4
        %v7685 = vrot.slane %v7600, 6
        %v7686 = vsel %vm2279, %v7684, %v7685
        %v7687 = vrot.slane %v7685, 4
        %v7688 = vrot.slane %v7601, 6
        %v7689 = vsel %vm2279, %v7687, %v7688
        %v7690 = vrot.slane %v7688, 4
        %v7691 = vrot.slane %v7602, 6
        %v7692 = vsel %vm2279, %v7690, %v7691
        %v7693 = vrot.slane %v7691, 4
        %v7694 = vrot.slane %v7603, 6
        %v7695 = vsel %vm2279, %v7693, %v7694
        %v7696 = vrot.slane %v7694, 4
        %v7697 = vrot.slane %v7604, 6
        %v7698 = vsel %vm2279, %v7696, %v7697
        %v7699 = vrot.slane %v7697, 4
        %v7700 = vrot.slane %v7605, 6
        %v7701 = vsel %vm2279, %v7699, %v7700
        %v7702 = vrot.slane %v7700, 4
        %v7703 = vrot.slane %v7606, 6
        %v7704 = vsel %vm2279, %v7702, %v7703
        %v7705 = vrot.slane %v7703, 4
        %v7706 = vrot.slane %v7607, 6
        %v7707 = vsel %vm2279, %v7705, %v7706
        %v7708 = vrot.slane %v7706, 4
        %v7709 = vrot.slane %v7608, 6
        %v7710 = vsel %vm2279, %v7708, %v7709
        %v7711 = vrot.slane %v7709, 4
        %v7712 = vrot.slane %v7609, 6
        %v7713 = vsel %vm2279, %v7711, %v7712
        %v7714 = vrot.slane %v7712, 4
        %v7715 = vrot.slane %v7610, 6
        %v7716 = vsel %vm2279, %v7714, %v7715
        %v7717 = vrot.slane %v7715, 4
        %v7718 = vrot.slane %v7611, 6
        %v7719 = vsel %vm2279, %v7717, %v7718
        %v7720 = vrot.slane %v7718, 4
        %v7721 = vrot.slane %v7612, 6
        %v7722 = vsel %vm2279, %v7720, %v7721
        %v7723 = vrot.slane %v7721, 4
        %v7724 = vrot.slane %v7613, 6
        %v7725 = vsel %vm2279, %v7723, %v7724
        %v7726 = vrot.slane %v7724, 4
        %v7727 = vrot.slane %v7614, 6
        %v7728 = vsel %vm2279, %v7726, %v7727
        %v7729 = vrot.slane %v7727, 4
        %v7730 = vrot.slane %v7615, 6
        %v7731 = vsel %vm2279, %v7729, %v7730
        %v7732 = vrot.slane %v7730, 4
        %v7733 = vrot.slane %v7616, 6
        %v7734 = vsel %vm2279, %v7732, %v7733
        %v7735 = vrot.slane %v7733, 4
        %v7736 = vrot.slane %v7617, 6
        %v7737 = vsel %vm2279, %v7735, %v7736
        %v7738 = vrot.slane %v7736, 4
        %v7739 = vrot.slane %v7618, 6
        %v7740 = vsel %vm2279, %v7738, %v7739
        %v7741 = vrot.slane %v7739, 4
        %v7742 = vrot.slane %v7619, 6
        %v7743 = vsel %vm2279, %v7741, %v7742
        %v7744 = vrot.slane %v7742, 4
        %v7745 = vrot.slane %v7620, 6
        %v7746 = vsel %vm2279, %v7744, %v7745
        %v7747 = vrot.slane %v7745, 4
        %v7748 = vrot.slane %v7621, 6
        %v7749 = vsel %vm2279, %v7747, %v7748
        %v7750 = vrot.slane %v7748, 4
        %v7751 = vrot.slane %v7622, 6
        %v7752 = vsel %vm2279, %v7750, %v7751
        %v7753 = vrot.slane %v7751, 4
        %v7754 = vrot.slane %v7623, 6
        %v7755 = vsel %vm2279, %v7753, %v7754
        %v7756 = vrot.slane %v7754, 4
        %v7757 = vrot.slane %v7624, 6
        %v7758 = vsel %vm2279, %v7756, %v7757
        %v7759 = vrot.slane %v7757, 4
        %v7760 = vrot.slane %v7625, 6
        %v7761 = vsel %vm2279, %v7759, %v7760
        %v7762 = vrot.slane %v7760, 4
        %v7763 = vrot.slane %v7626, 6
        %v7764 = vsel %vm2279, %v7762, %v7763
        %v7765 = vrot.slane %v7763, 4
        %v7766 = vrot.slane %v7627, 6
        %v7767 = vsel %vm2279, %v7765, %v7766
        %v7768 = vrot.slane %v7766, 4
        %v7769 = vrot.slane %v7628, 6
        %v7770 = vsel %vm2279, %v7768, %v7769
        %v7771 = vrot.slane %v7769, 4
        %v7772 = vrot.slane %v7629, 6
        %v7773 = vsel %vm2279, %v7771, %v7772
        %v7774 = vrot.slane %v7772, 4
        %v7775 = vrot.slane %v7630, 6
        %v7776 = vsel %vm2279, %v7774, %v7775
        %v7777 = vrot.slane %v7775, 4
        %v7778 = vrot.slane %v7631, 6
        %v7779 = vsel %vm2279, %v7777, %v7778
        %v7780 = vrot.slane %v7778, 4
        %v7781 = vrot.slane %v7632, 6
        %v7782 = vsel %vm2279, %v7780, %v7781
        %v7783 = vrot.slane %v7781, 4
        %v7784 = vrot.slane %v7633, 6
        %v7785 = vsel %vm2279, %v7783, %v7784
        %v7786 = vrot.slane %v7784, 4
        %v7787 = vrot.slane %v7634, 6
        %v7788 = vsel %vm2279, %v7786, %v7787
        %7789 = vrot.lane.b32.xlu0 %v7677, 64
        %v7790 = vpop.permute.xlu0 %7789
        %7791 = vrot.lane.b32.xlu0 %v7680, 64
        %v7792 = vpop.permute.xlu0 %7791
        %7793 = vrot.lane.b32.xlu0 %v7683, 64
        %v7794 = vpop.permute.xlu0 %7793
        %7795 = vrot.lane.b32.xlu0 %v7686, 64
        %v7796 = vpop.permute.xlu0 %7795
        %7797 = vrot.lane.b32.xlu0 %v7689, 64
        %v7798 = vpop.permute.xlu0 %7797
        %7799 = vrot.lane.b32.xlu0 %v7692, 64
        %v7800 = vpop.permute.xlu0 %7799
        %7801 = vrot.lane.b32.xlu0 %v7695, 64
        %v7802 = vpop.permute.xlu0 %7801
        %7803 = vrot.lane.b32.xlu0 %v7698, 64
        %v7804 = vpop.permute.xlu0 %7803
        %7805 = vrot.lane.b32.xlu0 %v7701, 64
        %v7806 = vpop.permute.xlu0 %7805
        %7807 = vrot.lane.b32.xlu0 %v7704, 64
        %v7808 = vpop.permute.xlu0 %7807
        %7809 = vrot.lane.b32.xlu0 %v7707, 64
        %v7810 = vpop.permute.xlu0 %7809
        %7811 = vrot.lane.b32.xlu0 %v7710, 64
        %v7812 = vpop.permute.xlu0 %7811
        %7813 = vrot.lane.b32.xlu0 %v7713, 64
        %v7814 = vpop.permute.xlu0 %7813
        %7815 = vrot.lane.b32.xlu0 %v7716, 64
        %v7816 = vpop.permute.xlu0 %7815
        %7817 = vrot.lane.b32.xlu0 %v7719, 64
        %v7818 = vpop.permute.xlu0 %7817
        %7819 = vrot.lane.b32.xlu0 %v7722, 64
        %v7820 = vpop.permute.xlu0 %7819
        %7821 = vrot.lane.b32.xlu0 %v7725, 64
        %v7822 = vpop.permute.xlu0 %7821
        %7823 = vrot.lane.b32.xlu0 %v7728, 64
        %v7824 = vpop.permute.xlu0 %7823
        %7825 = vrot.lane.b32.xlu0 %v7731, 64
        %v7826 = vpop.permute.xlu0 %7825
        %7827 = vrot.lane.b32.xlu0 %v7734, 64
        %v7828 = vpop.permute.xlu0 %7827
        %7829 = vrot.lane.b32.xlu0 %v7737, 64
        %v7830 = vpop.permute.xlu0 %7829
        %7831 = vrot.lane.b32.xlu0 %v7740, 64
        %v7832 = vpop.permute.xlu0 %7831
        %7833 = vrot.lane.b32.xlu0 %v7743, 64
        %v7834 = vpop.permute.xlu0 %7833
        %7835 = vrot.lane.b32.xlu0 %v7746, 64
        %v7836 = vpop.permute.xlu0 %7835
        %7837 = vrot.lane.b32.xlu0 %v7749, 64
        %v7838 = vpop.permute.xlu0 %7837
        %7839 = vrot.lane.b32.xlu0 %v7752, 64
        %v7840 = vpop.permute.xlu0 %7839
        %7841 = vrot.lane.b32.xlu0 %v7755, 64
        %v7842 = vpop.permute.xlu0 %7841
        %7843 = vrot.lane.b32.xlu0 %v7758, 64
        %v7844 = vpop.permute.xlu0 %7843
        %7845 = vrot.lane.b32.xlu0 %v7761, 64
        %v7846 = vpop.permute.xlu0 %7845
        %7847 = vrot.lane.b32.xlu0 %v7764, 64
        %v7848 = vpop.permute.xlu0 %7847
        %7849 = vrot.lane.b32.xlu0 %v7767, 64
        %v7850 = vpop.permute.xlu0 %7849
        %7851 = vrot.lane.b32.xlu0 %v7770, 64
        %v7852 = vpop.permute.xlu0 %7851
        %7853 = vrot.lane.b32.xlu0 %v7773, 64
        %v7854 = vpop.permute.xlu0 %7853
        %7855 = vrot.lane.b32.xlu0 %v7776, 64
        %v7856 = vpop.permute.xlu0 %7855
        %7857 = vrot.lane.b32.xlu0 %v7779, 64
        %v7858 = vpop.permute.xlu0 %7857
        %7859 = vrot.lane.b32.xlu0 %v7782, 64
        %v7860 = vpop.permute.xlu0 %7859
        %7861 = vrot.lane.b32.xlu0 %v7785, 64
        %v7862 = vpop.permute.xlu0 %7861
        %7863 = vrot.lane.b32.xlu0 %v7788, 64
        %v7864 = vpop.permute.xlu0 %7863
        %7903 = vst.msk [vmem:[#allocation3 + $0x4] sm:$0xf] %vm1308, %v7790
        %7904 = vst.msk [vmem:[#allocation3 + $0x10] sm:$0xf] %vm1308, %v7792
        %7905 = vst.msk [vmem:[#allocation3 + $0x1c] sm:$0xf] %vm1308, %v7794
        %7906 = vst.msk [vmem:[#allocation3 + $0x28] sm:$0xf] %vm1308, %v7796
        %7907 = vst.msk [vmem:[#allocation3 + $0x34] sm:$0xf] %vm1308, %v7798
        %7908 = vst.msk [vmem:[#allocation3 + $0x40] sm:$0xf] %vm1308, %v7800
        %7909 = vst.msk [vmem:[#allocation3 + $0x4c] sm:$0xf] %vm1308, %v7802
        %7910 = vst.msk [vmem:[#allocation3 + $0x58] sm:$0xf] %vm1308, %v7804
        %7911 = vst.msk [vmem:[#allocation3 + $0x64] sm:$0xf] %vm1308, %v7806
        %7912 = vst.msk [vmem:[#allocation3 + $0x70] sm:$0xf] %vm1308, %v7808
        %7913 = vst.msk [vmem:[#allocation3 + $0x7c] sm:$0xf] %vm1308, %v7810
        %7914 = vst.msk [vmem:[#allocation3 + $0x88] sm:$0xf] %vm1308, %v7812
        %7915 = vst.msk [vmem:[#allocation3 + $0x94] sm:$0xf] %vm1308, %v7814
        %7916 = vst.msk [vmem:[#allocation3 + $0xa0] sm:$0xf] %vm1308, %v7816
        %7917 = vst.msk [vmem:[#allocation3 + $0xac] sm:$0xf] %vm1308, %v7818
        %7918 = vst.msk [vmem:[#allocation3 + $0xb8] sm:$0xf] %vm1308, %v7820
        %7919 = vst.msk [vmem:[#allocation3 + $0xc4] sm:$0xf] %vm1308, %v7822
        %7920 = vst.msk [vmem:[#allocation3 + $0xd0] sm:$0xf] %vm1308, %v7824
        %7921 = vst.msk [vmem:[#allocation3 + $0xdc] sm:$0xf] %vm1308, %v7826
        %7922 = vst.msk [vmem:[#allocation3 + $0xe8] sm:$0xf] %vm1308, %v7828
        %7923 = vst.msk [vmem:[#allocation3 + $0xf4] sm:$0xf] %vm1308, %v7830
        %7924 = vst.msk [vmem:[#allocation3 + $0x100] sm:$0xf] %vm1308, %v7832
        %7925 = vst.msk [vmem:[#allocation3 + $0x10c] sm:$0xf] %vm1308, %v7834
        %7926 = vst.msk [vmem:[#allocation3 + $0x118] sm:$0xf] %vm1308, %v7836
        %7927 = vst.msk [vmem:[#allocation3 + $0x124] sm:$0xf] %vm1308, %v7838
        %7928 = vst.msk [vmem:[#allocation3 + $0x130] sm:$0xf] %vm1308, %v7840
        %7929 = vst.msk [vmem:[#allocation3 + $0x13c] sm:$0xf] %vm1308, %v7842
        %7930 = vst.msk [vmem:[#allocation3 + $0x148] sm:$0xf] %vm1308, %v7844
        %7931 = vst.msk [vmem:[#allocation3 + $0x154] sm:$0xf] %vm1308, %v7846
        %7932 = vst.msk [vmem:[#allocation3 + $0x160] sm:$0xf] %vm1308, %v7848
        %7933 = vst.msk [vmem:[#allocation3 + $0x16c] sm:$0xf] %vm1308, %v7850
        %7934 = vst.msk [vmem:[#allocation3 + $0x178] sm:$0xf] %vm1308, %v7852
        %7935 = vst.msk [vmem:[#allocation3 + $0x184] sm:$0xf] %vm1308, %v7854
        %7936 = vst.msk [vmem:[#allocation3 + $0x190] sm:$0xf] %vm1308, %v7856
        %7937 = vst.msk [vmem:[#allocation3 + $0x19c] sm:$0xf] %vm1308, %v7858
        %7938 = vst.msk [vmem:[#allocation3 + $0x1a8] sm:$0xf] %vm1308, %v7860
        %7939 = vst.msk [vmem:[#allocation3 + $0x1b4] sm:$0xf] %vm1308, %v7862
        %7940 = vst.msk [vmem:[#allocation3 + $0x1c0] sm:$0xf] %vm1308, %v7864
        %v7941 = vld [vmem:[#allocation4 + $0x10] sm:$0xc]
        %v7942 = vld [vmem:[#allocation4 + $0x14] sm:$0xf]
        %v7943 = vld [vmem:[#allocation4 + $0x18] sm:$0xf]
        %v7944 = vld [vmem:[#allocation4 + $0x1c] sm:$0xf]
        %v7945 = vld [vmem:[#allocation4 + $0x20] sm:$0xf]
        %v7946 = vld [vmem:[#allocation4 + $0x24] sm:$0xf]
        %v7947 = vld [vmem:[#allocation4 + $0x28] sm:$0xf]
        %v7948 = vld [vmem:[#allocation4 + $0x2c] sm:$0xf]
        %v7949 = vld [vmem:[#allocation4 + $0x30] sm:$0xf]
        %v7950 = vld [vmem:[#allocation4 + $0x34] sm:$0xf]
        %v7951 = vld [vmem:[#allocation4 + $0x38] sm:$0xf]
        %v7952 = vld [vmem:[#allocation4 + $0x3c] sm:$0xf]
        %v7953 = vld [vmem:[#allocation4 + $0x40] sm:$0xf]
        %v7954 = vld [vmem:[#allocation4 + $0x44] sm:$0xf]
        %v7955 = vld [vmem:[#allocation4 + $0x48] sm:$0xf]
        %v7956 = vld [vmem:[#allocation4 + $0x4c] sm:$0xf]
        %v7957 = vld [vmem:[#allocation4 + $0x50] sm:$0xf]
        %v7958 = vld [vmem:[#allocation4 + $0x54] sm:$0xf]
        %v7959 = vld [vmem:[#allocation4 + $0x58] sm:$0xf]
        %v7960 = vld [vmem:[#allocation4 + $0x5c] sm:$0xf]
        %v7961 = vld [vmem:[#allocation4 + $0x60] sm:$0xf]
        %v7962 = vld [vmem:[#allocation4 + $0x64] sm:$0xf]
        %v7963 = vld [vmem:[#allocation4 + $0x68] sm:$0xf]
        %v7964 = vld [vmem:[#allocation4 + $0x6c] sm:$0xf]
        %v7965 = vld [vmem:[#allocation4 + $0x70] sm:$0xf]
        %v7966 = vld [vmem:[#allocation4 + $0x74] sm:$0xf]
        %v7967 = vld [vmem:[#allocation4 + $0x78] sm:$0xf]
        %v7968 = vld [vmem:[#allocation4 + $0x7c] sm:$0xf]
        %v7969 = vld [vmem:[#allocation4 + $0x80] sm:$0xf]
        %v7970 = vld [vmem:[#allocation4 + $0x84] sm:$0xf]
        %v7971 = vld [vmem:[#allocation4 + $0x88] sm:$0xf]
        %v7972 = vld [vmem:[#allocation4 + $0x8c] sm:$0xf]
        %v7973 = vld [vmem:[#allocation4 + $0x90] sm:$0xf]
        %v7974 = vld [vmem:[#allocation4 + $0x94] sm:$0xf]
        %v7975 = vld [vmem:[#allocation4 + $0x98] sm:$0xf]
        %v7976 = vld [vmem:[#allocation4 + $0x9c] sm:$0xf]
        %v7977 = vld [vmem:[#allocation4 + $0xa0] sm:$0xf]
        %v7978 = vld [vmem:[#allocation4 + $0xa4] sm:$0xf]
        %v7979 = vld [vmem:[#allocation4 + $0xa8] sm:$0x7]
        %v7981 = vshrl.u32 %v7941, 16
        %v7983 = vrot.slane %v7981, 6
        %v7984 = vshll.u32 %v7941, 16
        %v7986 = vrot.slane %v7984, 7
        %v7987 = vor.u32 %v7983, %v7986
        %v7988 = vrot.slane %v7987, 4
        %v7990 = vshrl.u32 %v7942, 16
        %v7992 = vrot.slane %v7990, 6
        %v7993 = vshll.u32 %v7942, 16
        %v7995 = vrot.slane %v7993, 7
        %v7996 = vor.u32 %v7992, %v7995
        %v7997 = vsel %vm2933, %v7988, %v7996
        %v7998 = vrot.slane %v7996, 4
        %v8000 = vshrl.u32 %v7943, 16
        %v8002 = vrot.slane %v8000, 6
        %v8003 = vshll.u32 %v7943, 16
        %v8005 = vrot.slane %v8003, 7
        %v8006 = vor.u32 %v8002, %v8005
        %v8007 = vsel %vm2933, %v7998, %v8006
        %v8008 = vrot.slane %v8006, 4
        %v8010 = vshrl.u32 %v7944, 16
        %v8012 = vrot.slane %v8010, 6
        %v8013 = vshll.u32 %v7944, 16
        %v8015 = vrot.slane %v8013, 7
        %v8016 = vor.u32 %v8012, %v8015
        %v8017 = vsel %vm2933, %v8008, %v8016
        %v8018 = vrot.slane %v8016, 4
        %v8020 = vshrl.u32 %v7945, 16
        %v8022 = vrot.slane %v8020, 6
        %v8023 = vshll.u32 %v7945, 16
        %v8025 = vrot.slane %v8023, 7
        %v8026 = vor.u32 %v8022, %v8025
        %v8027 = vsel %vm2933, %v8018, %v8026
        %v8028 = vrot.slane %v8026, 4
        %v8030 = vshrl.u32 %v7946, 16
        %v8032 = vrot.slane %v8030, 6
        %v8033 = vshll.u32 %v7946, 16
        %v8035 = vrot.slane %v8033, 7
        %v8036 = vor.u32 %v8032, %v8035
        %v8037 = vsel %vm2933, %v8028, %v8036
        %v8038 = vrot.slane %v8036, 4
        %v8040 = vshrl.u32 %v7947, 16
        %v8042 = vrot.slane %v8040, 6
        %v8043 = vshll.u32 %v7947, 16
        %v8045 = vrot.slane %v8043, 7
        %v8046 = vor.u32 %v8042, %v8045
        %v8047 = vsel %vm2933, %v8038, %v8046
        %v8048 = vrot.slane %v8046, 4
        %v8050 = vshrl.u32 %v7948, 16
        %v8052 = vrot.slane %v8050, 6
        %v8053 = vshll.u32 %v7948, 16
        %v8055 = vrot.slane %v8053, 7
        %v8056 = vor.u32 %v8052, %v8055
        %v8057 = vsel %vm2933, %v8048, %v8056
        %v8058 = vrot.slane %v8056, 4
        %v8060 = vshrl.u32 %v7949, 16
        %v8062 = vrot.slane %v8060, 6
        %v8063 = vshll.u32 %v7949, 16
        %v8065 = vrot.slane %v8063, 7
        %v8066 = vor.u32 %v8062, %v8065
        %v8067 = vsel %vm2933, %v8058, %v8066
        %v8068 = vrot.slane %v8066, 4
        %v8070 = vshrl.u32 %v7950, 16
        %v8072 = vrot.slane %v8070, 6
        %v8073 = vshll.u32 %v7950, 16
        %v8075 = vrot.slane %v8073, 7
        %v8076 = vor.u32 %v8072, %v8075
        %v8077 = vsel %vm2933, %v8068, %v8076
        %v8078 = vrot.slane %v8076, 4
        %v8080 = vshrl.u32 %v7951, 16
        %v8082 = vrot.slane %v8080, 6
        %v8083 = vshll.u32 %v7951, 16
        %v8085 = vrot.slane %v8083, 7
        %v8086 = vor.u32 %v8082, %v8085
        %v8087 = vsel %vm2933, %v8078, %v8086
        %v8088 = vrot.slane %v8086, 4
        %v8090 = vshrl.u32 %v7952, 16
        %v8092 = vrot.slane %v8090, 6
        %v8093 = vshll.u32 %v7952, 16
        %v8095 = vrot.slane %v8093, 7
        %v8096 = vor.u32 %v8092, %v8095
        %v8097 = vsel %vm2933, %v8088, %v8096
        %v8098 = vrot.slane %v8096, 4
        %v8100 = vshrl.u32 %v7953, 16
        %v8102 = vrot.slane %v8100, 6
        %v8103 = vshll.u32 %v7953, 16
        %v8105 = vrot.slane %v8103, 7
        %v8106 = vor.u32 %v8102, %v8105
        %v8107 = vsel %vm2933, %v8098, %v8106
        %v8108 = vrot.slane %v8106, 4
        %v8110 = vshrl.u32 %v7954, 16
        %v8112 = vrot.slane %v8110, 6
        %v8113 = vshll.u32 %v7954, 16
        %v8115 = vrot.slane %v8113, 7
        %v8116 = vor.u32 %v8112, %v8115
        %v8117 = vsel %vm2933, %v8108, %v8116
        %v8118 = vrot.slane %v8116, 4
        %v8120 = vshrl.u32 %v7955, 16
        %v8122 = vrot.slane %v8120, 6
        %v8123 = vshll.u32 %v7955, 16
        %v8125 = vrot.slane %v8123, 7
        %v8126 = vor.u32 %v8122, %v8125
        %v8127 = vsel %vm2933, %v8118, %v8126
        %v8128 = vrot.slane %v8126, 4
        %v8130 = vshrl.u32 %v7956, 16
        %v8132 = vrot.slane %v8130, 6
        %v8133 = vshll.u32 %v7956, 16
        %v8135 = vrot.slane %v8133, 7
        %v8136 = vor.u32 %v8132, %v8135
        %v8137 = vsel %vm2933, %v8128, %v8136
        %v8138 = vrot.slane %v8136, 4
        %v8140 = vshrl.u32 %v7957, 16
        %v8142 = vrot.slane %v8140, 6
        %v8143 = vshll.u32 %v7957, 16
        %v8145 = vrot.slane %v8143, 7
        %v8146 = vor.u32 %v8142, %v8145
        %v8147 = vsel %vm2933, %v8138, %v8146
        %v8148 = vrot.slane %v8146, 4
        %v8150 = vshrl.u32 %v7958, 16
        %v8152 = vrot.slane %v8150, 6
        %v8153 = vshll.u32 %v7958, 16
        %v8155 = vrot.slane %v8153, 7
        %v8156 = vor.u32 %v8152, %v8155
        %v8157 = vsel %vm2933, %v8148, %v8156
        %v8158 = vrot.slane %v8156, 4
        %v8160 = vshrl.u32 %v7959, 16
        %v8162 = vrot.slane %v8160, 6
        %v8163 = vshll.u32 %v7959, 16
        %v8165 = vrot.slane %v8163, 7
        %v8166 = vor.u32 %v8162, %v8165
        %v8167 = vsel %vm2933, %v8158, %v8166
        %v8168 = vrot.slane %v8166, 4
        %v8170 = vshrl.u32 %v7960, 16
        %v8172 = vrot.slane %v8170, 6
        %v8173 = vshll.u32 %v7960, 16
        %v8175 = vrot.slane %v8173, 7
        %v8176 = vor.u32 %v8172, %v8175
        %v8177 = vsel %vm2933, %v8168, %v8176
        %v8178 = vrot.slane %v8176, 4
        %v8180 = vshrl.u32 %v7961, 16
        %v8182 = vrot.slane %v8180, 6
        %v8183 = vshll.u32 %v7961, 16
        %v8185 = vrot.slane %v8183, 7
        %v8186 = vor.u32 %v8182, %v8185
        %v8187 = vsel %vm2933, %v8178, %v8186
        %v8188 = vrot.slane %v8186, 4
        %v8190 = vshrl.u32 %v7962, 16
        %v8192 = vrot.slane %v8190, 6
        %v8193 = vshll.u32 %v7962, 16
        %v8195 = vrot.slane %v8193, 7
        %v8196 = vor.u32 %v8192, %v8195
        %v8197 = vsel %vm2933, %v8188, %v8196
        %v8198 = vrot.slane %v8196, 4
        %v8200 = vshrl.u32 %v7963, 16
        %v8202 = vrot.slane %v8200, 6
        %v8203 = vshll.u32 %v7963, 16
        %v8205 = vrot.slane %v8203, 7
        %v8206 = vor.u32 %v8202, %v8205
        %v8207 = vsel %vm2933, %v8198, %v8206
        %v8208 = vrot.slane %v8206, 4
        %v8210 = vshrl.u32 %v7964, 16
        %v8212 = vrot.slane %v8210, 6
        %v8213 = vshll.u32 %v7964, 16
        %v8215 = vrot.slane %v8213, 7
        %v8216 = vor.u32 %v8212, %v8215
        %v8217 = vsel %vm2933, %v8208, %v8216
        %v8218 = vrot.slane %v8216, 4
        %v8220 = vshrl.u32 %v7965, 16
        %v8222 = vrot.slane %v8220, 6
        %v8223 = vshll.u32 %v7965, 16
        %v8225 = vrot.slane %v8223, 7
        %v8226 = vor.u32 %v8222, %v8225
        %v8227 = vsel %vm2933, %v8218, %v8226
        %v8228 = vrot.slane %v8226, 4
        %v8230 = vshrl.u32 %v7966, 16
        %v8232 = vrot.slane %v8230, 6
        %v8233 = vshll.u32 %v7966, 16
        %v8235 = vrot.slane %v8233, 7
        %v8236 = vor.u32 %v8232, %v8235
        %v8237 = vsel %vm2933, %v8228, %v8236
        %v8238 = vrot.slane %v8236, 4
        %v8240 = vshrl.u32 %v7967, 16
        %v8242 = vrot.slane %v8240, 6
        %v8243 = vshll.u32 %v7967, 16
        %v8245 = vrot.slane %v8243, 7
        %v8246 = vor.u32 %v8242, %v8245
        %v8247 = vsel %vm2933, %v8238, %v8246
        %v8248 = vrot.slane %v8246, 4
        %v8250 = vshrl.u32 %v7968, 16
        %v8252 = vrot.slane %v8250, 6
        %v8253 = vshll.u32 %v7968, 16
        %v8255 = vrot.slane %v8253, 7
        %v8256 = vor.u32 %v8252, %v8255
        %v8257 = vsel %vm2933, %v8248, %v8256
        %v8258 = vrot.slane %v8256, 4
        %v8260 = vshrl.u32 %v7969, 16
        %v8262 = vrot.slane %v8260, 6
        %v8263 = vshll.u32 %v7969, 16
        %v8265 = vrot.slane %v8263, 7
        %v8266 = vor.u32 %v8262, %v8265
        %v8267 = vsel %vm2933, %v8258, %v8266
        %v8268 = vrot.slane %v8266, 4
        %v8270 = vshrl.u32 %v7970, 16
        %v8272 = vrot.slane %v8270, 6
        %v8273 = vshll.u32 %v7970, 16
        %v8275 = vrot.slane %v8273, 7
        %v8276 = vor.u32 %v8272, %v8275
        %v8277 = vsel %vm2933, %v8268, %v8276
        %v8278 = vrot.slane %v8276, 4
        %v8280 = vshrl.u32 %v7971, 16
        %v8282 = vrot.slane %v8280, 6
        %v8283 = vshll.u32 %v7971, 16
        %v8285 = vrot.slane %v8283, 7
        %v8286 = vor.u32 %v8282, %v8285
        %v8287 = vsel %vm2933, %v8278, %v8286
        %v8288 = vrot.slane %v8286, 4
        %v8290 = vshrl.u32 %v7972, 16
        %v8292 = vrot.slane %v8290, 6
        %v8293 = vshll.u32 %v7972, 16
        %v8295 = vrot.slane %v8293, 7
        %v8296 = vor.u32 %v8292, %v8295
        %v8297 = vsel %vm2933, %v8288, %v8296
        %v8298 = vrot.slane %v8296, 4
        %v8300 = vshrl.u32 %v7973, 16
        %v8302 = vrot.slane %v8300, 6
        %v8303 = vshll.u32 %v7973, 16
        %v8305 = vrot.slane %v8303, 7
        %v8306 = vor.u32 %v8302, %v8305
        %v8307 = vsel %vm2933, %v8298, %v8306
        %v8308 = vrot.slane %v8306, 4
        %v8310 = vshrl.u32 %v7974, 16
        %v8312 = vrot.slane %v8310, 6
        %v8313 = vshll.u32 %v7974, 16
        %v8315 = vrot.slane %v8313, 7
        %v8316 = vor.u32 %v8312, %v8315
        %v8317 = vsel %vm2933, %v8308, %v8316
        %v8318 = vrot.slane %v8316, 4
        %v8320 = vshrl.u32 %v7975, 16
        %v8322 = vrot.slane %v8320, 6
        %v8323 = vshll.u32 %v7975, 16
        %v8325 = vrot.slane %v8323, 7
        %v8326 = vor.u32 %v8322, %v8325
        %v8327 = vsel %vm2933, %v8318, %v8326
        %v8328 = vrot.slane %v8326, 4
        %v8330 = vshrl.u32 %v7976, 16
        %v8332 = vrot.slane %v8330, 6
        %v8333 = vshll.u32 %v7976, 16
        %v8335 = vrot.slane %v8333, 7
        %v8336 = vor.u32 %v8332, %v8335
        %v8337 = vsel %vm2933, %v8328, %v8336
        %v8338 = vrot.slane %v8336, 4
        %v8340 = vshrl.u32 %v7977, 16
        %v8342 = vrot.slane %v8340, 6
        %v8343 = vshll.u32 %v7977, 16
        %v8345 = vrot.slane %v8343, 7
        %v8346 = vor.u32 %v8342, %v8345
        %v8347 = vsel %vm2933, %v8338, %v8346
        %v8348 = vrot.slane %v8346, 4
        %v8350 = vshrl.u32 %v7978, 16
        %v8352 = vrot.slane %v8350, 6
        %v8353 = vshll.u32 %v7978, 16
        %v8355 = vrot.slane %v8353, 7
        %v8356 = vor.u32 %v8352, %v8355
        %v8357 = vsel %vm2933, %v8348, %v8356
        %v8358 = vrot.slane %v8356, 4
        %v8360 = vshrl.u32 %v7979, 16
        %v8362 = vrot.slane %v8360, 6
        %v8363 = vshll.u32 %v7979, 16
        %v8365 = vrot.slane %v8363, 7
        %v8366 = vor.u32 %v8362, %v8365
        %v8367 = vsel %vm2933, %v8358, %v8366
        %8368 = vrot.lane.b32.xlu0 %v7997, 96
        %v8369 = vpop.permute.xlu0 %8368
        %8370 = vrot.lane.b32.xlu0 %v8007, 96
        %v8371 = vpop.permute.xlu0 %8370
        %8372 = vrot.lane.b32.xlu0 %v8017, 96
        %v8373 = vpop.permute.xlu0 %8372
        %8374 = vrot.lane.b32.xlu0 %v8027, 96
        %v8375 = vpop.permute.xlu0 %8374
        %8376 = vrot.lane.b32.xlu0 %v8037, 96
        %v8377 = vpop.permute.xlu0 %8376
        %8378 = vrot.lane.b32.xlu0 %v8047, 96
        %v8379 = vpop.permute.xlu0 %8378
        %8380 = vrot.lane.b32.xlu0 %v8057, 96
        %v8381 = vpop.permute.xlu0 %8380
        %8382 = vrot.lane.b32.xlu0 %v8067, 96
        %v8383 = vpop.permute.xlu0 %8382
        %8384 = vrot.lane.b32.xlu0 %v8077, 96
        %v8385 = vpop.permute.xlu0 %8384
        %8386 = vrot.lane.b32.xlu0 %v8087, 96
        %v8387 = vpop.permute.xlu0 %8386
        %8388 = vrot.lane.b32.xlu0 %v8097, 96
        %v8389 = vpop.permute.xlu0 %8388
        %8390 = vrot.lane.b32.xlu0 %v8107, 96
        %v8391 = vpop.permute.xlu0 %8390
        %8392 = vrot.lane.b32.xlu0 %v8117, 96
        %v8393 = vpop.permute.xlu0 %8392
        %8394 = vrot.lane.b32.xlu0 %v8127, 96
        %v8395 = vpop.permute.xlu0 %8394
        %8396 = vrot.lane.b32.xlu0 %v8137, 96
        %v8397 = vpop.permute.xlu0 %8396
        %8398 = vrot.lane.b32.xlu0 %v8147, 96
        %v8399 = vpop.permute.xlu0 %8398
        %8400 = vrot.lane.b32.xlu0 %v8157, 96
        %v8401 = vpop.permute.xlu0 %8400
        %8402 = vrot.lane.b32.xlu0 %v8167, 96
        %v8403 = vpop.permute.xlu0 %8402
        %8404 = vrot.lane.b32.xlu0 %v8177, 96
        %v8405 = vpop.permute.xlu0 %8404
        %8406 = vrot.lane.b32.xlu0 %v8187, 96
        %v8407 = vpop.permute.xlu0 %8406
        %8408 = vrot.lane.b32.xlu0 %v8197, 96
        %v8409 = vpop.permute.xlu0 %8408
        %8410 = vrot.lane.b32.xlu0 %v8207, 96
        %v8411 = vpop.permute.xlu0 %8410
        %8412 = vrot.lane.b32.xlu0 %v8217, 96
        %v8413 = vpop.permute.xlu0 %8412
        %8414 = vrot.lane.b32.xlu0 %v8227, 96
        %v8415 = vpop.permute.xlu0 %8414
        %8416 = vrot.lane.b32.xlu0 %v8237, 96
        %v8417 = vpop.permute.xlu0 %8416
        %8418 = vrot.lane.b32.xlu0 %v8247, 96
        %v8419 = vpop.permute.xlu0 %8418
        %8420 = vrot.lane.b32.xlu0 %v8257, 96
        %v8421 = vpop.permute.xlu0 %8420
        %8422 = vrot.lane.b32.xlu0 %v8267, 96
        %v8423 = vpop.permute.xlu0 %8422
        %8424 = vrot.lane.b32.xlu0 %v8277, 96
        %v8425 = vpop.permute.xlu0 %8424
        %8426 = vrot.lane.b32.xlu0 %v8287, 96
        %v8427 = vpop.permute.xlu0 %8426
        %8428 = vrot.lane.b32.xlu0 %v8297, 96
        %v8429 = vpop.permute.xlu0 %8428
        %8430 = vrot.lane.b32.xlu0 %v8307, 96
        %v8431 = vpop.permute.xlu0 %8430
        %8432 = vrot.lane.b32.xlu0 %v8317, 96
        %v8433 = vpop.permute.xlu0 %8432
        %8434 = vrot.lane.b32.xlu0 %v8327, 96
        %v8435 = vpop.permute.xlu0 %8434
        %8436 = vrot.lane.b32.xlu0 %v8337, 96
        %v8437 = vpop.permute.xlu0 %8436
        %8438 = vrot.lane.b32.xlu0 %v8347, 96
        %v8439 = vpop.permute.xlu0 %8438
        %8440 = vrot.lane.b32.xlu0 %v8357, 96
        %v8441 = vpop.permute.xlu0 %8440
        %8442 = vrot.lane.b32.xlu0 %v8367, 96
        %v8443 = vpop.permute.xlu0 %8442
        %8482 = vst.msk [vmem:[#allocation3 + $0x4] sm:$0xf] %vm1654, %v8369
        %8483 = vst.msk [vmem:[#allocation3 + $0x10] sm:$0xf] %vm1654, %v8371
        %8484 = vst.msk [vmem:[#allocation3 + $0x1c] sm:$0xf] %vm1654, %v8373
        %8485 = vst.msk [vmem:[#allocation3 + $0x28] sm:$0xf] %vm1654, %v8375
        %8486 = vst.msk [vmem:[#allocation3 + $0x34] sm:$0xf] %vm1654, %v8377
        %8487 = vst.msk [vmem:[#allocation3 + $0x40] sm:$0xf] %vm1654, %v8379
        %8488 = vst.msk [vmem:[#allocation3 + $0x4c] sm:$0xf] %vm1654, %v8381
        %8489 = vst.msk [vmem:[#allocation3 + $0x58] sm:$0xf] %vm1654, %v8383
        %8490 = vst.msk [vmem:[#allocation3 + $0x64] sm:$0xf] %vm1654, %v8385
        %8491 = vst.msk [vmem:[#allocation3 + $0x70] sm:$0xf] %vm1654, %v8387
        %8492 = vst.msk [vmem:[#allocation3 + $0x7c] sm:$0xf] %vm1654, %v8389
        %8493 = vst.msk [vmem:[#allocation3 + $0x88] sm:$0xf] %vm1654, %v8391
        %8494 = vst.msk [vmem:[#allocation3 + $0x94] sm:$0xf] %vm1654, %v8393
        %8495 = vst.msk [vmem:[#allocation3 + $0xa0] sm:$0xf] %vm1654, %v8395
        %8496 = vst.msk [vmem:[#allocation3 + $0xac] sm:$0xf] %vm1654, %v8397
        %8497 = vst.msk [vmem:[#allocation3 + $0xb8] sm:$0xf] %vm1654, %v8399
        %8498 = vst.msk [vmem:[#allocation3 + $0xc4] sm:$0xf] %vm1654, %v8401
        %8499 = vst.msk [vmem:[#allocation3 + $0xd0] sm:$0xf] %vm1654, %v8403
        %8500 = vst.msk [vmem:[#allocation3 + $0xdc] sm:$0xf] %vm1654, %v8405
        %8501 = vst.msk [vmem:[#allocation3 + $0xe8] sm:$0xf] %vm1654, %v8407
        %8502 = vst.msk [vmem:[#allocation3 + $0xf4] sm:$0xf] %vm1654, %v8409
        %8503 = vst.msk [vmem:[#allocation3 + $0x100] sm:$0xf] %vm1654, %v8411
        %8504 = vst.msk [vmem:[#allocation3 + $0x10c] sm:$0xf] %vm1654, %v8413
        %8505 = vst.msk [vmem:[#allocation3 + $0x118] sm:$0xf] %vm1654, %v8415
        %8506 = vst.msk [vmem:[#allocation3 + $0x124] sm:$0xf] %vm1654, %v8417
        %8507 = vst.msk [vmem:[#allocation3 + $0x130] sm:$0xf] %vm1654, %v8419
        %8508 = vst.msk [vmem:[#allocation3 + $0x13c] sm:$0xf] %vm1654, %v8421
        %8509 = vst.msk [vmem:[#allocation3 + $0x148] sm:$0xf] %vm1654, %v8423
        %8510 = vst.msk [vmem:[#allocation3 + $0x154] sm:$0xf] %vm1654, %v8425
        %8511 = vst.msk [vmem:[#allocation3 + $0x160] sm:$0xf] %vm1654, %v8427
        %8512 = vst.msk [vmem:[#allocation3 + $0x16c] sm:$0xf] %vm1654, %v8429
        %8513 = vst.msk [vmem:[#allocation3 + $0x178] sm:$0xf] %vm1654, %v8431
        %8514 = vst.msk [vmem:[#allocation3 + $0x184] sm:$0xf] %vm1654, %v8433
        %8515 = vst.msk [vmem:[#allocation3 + $0x190] sm:$0xf] %vm1654, %v8435
        %8516 = vst.msk [vmem:[#allocation3 + $0x19c] sm:$0xf] %vm1654, %v8437
        %8517 = vst.msk [vmem:[#allocation3 + $0x1a8] sm:$0xf] %vm1654, %v8439
        %8518 = vst.msk [vmem:[#allocation3 + $0x1b4] sm:$0xf] %vm1654, %v8441
        %8519 = vst.msk [vmem:[#allocation3 + $0x1c0] sm:$0xf] %vm1654, %v8443
        %v8520 = vld [vmem:[#allocation4 + $0x10] sm:$0x8]
        %v8521 = vld [vmem:[#allocation4 + $0x14] sm:$0xf]
        %v8522 = vld [vmem:[#allocation4 + $0x18] sm:$0xf]
        %v8523 = vld [vmem:[#allocation4 + $0x1c] sm:$0xf]
        %v8524 = vld [vmem:[#allocation4 + $0x20] sm:$0xf]
        %v8525 = vld [vmem:[#allocation4 + $0x24] sm:$0xf]
        %v8526 = vld [vmem:[#allocation4 + $0x28] sm:$0xf]
        %v8527 = vld [vmem:[#allocation4 + $0x2c] sm:$0xf]
        %v8528 = vld [vmem:[#allocation4 + $0x30] sm:$0xf]
        %v8529 = vld [vmem:[#allocation4 + $0x34] sm:$0xf]
        %v8530 = vld [vmem:[#allocation4 + $0x38] sm:$0xf]
        %v8531 = vld [vmem:[#allocation4 + $0x3c] sm:$0xf]
        %v8532 = vld [vmem:[#allocation4 + $0x40] sm:$0xf]
        %v8533 = vld [vmem:[#allocation4 + $0x44] sm:$0xf]
        %v8534 = vld [vmem:[#allocation4 + $0x48] sm:$0xf]
        %v8535 = vld [vmem:[#allocation4 + $0x4c] sm:$0xf]
        %v8536 = vld [vmem:[#allocation4 + $0x50] sm:$0xf]
        %v8537 = vld [vmem:[#allocation4 + $0x54] sm:$0xf]
        %v8538 = vld [vmem:[#allocation4 + $0x58] sm:$0xf]
        %v8539 = vld [vmem:[#allocation4 + $0x5c] sm:$0xf]
        %v8540 = vld [vmem:[#allocation4 + $0x60] sm:$0xf]
        %v8541 = vld [vmem:[#allocation4 + $0x64] sm:$0xf]
        %v8542 = vld [vmem:[#allocation4 + $0x68] sm:$0xf]
        %v8543 = vld [vmem:[#allocation4 + $0x6c] sm:$0xf]
        %v8544 = vld [vmem:[#allocation4 + $0x70] sm:$0xf]
        %v8545 = vld [vmem:[#allocation4 + $0x74] sm:$0xf]
        %v8546 = vld [vmem:[#allocation4 + $0x78] sm:$0xf]
        %v8547 = vld [vmem:[#allocation4 + $0x7c] sm:$0xf]
        %v8548 = vld [vmem:[#allocation4 + $0x80] sm:$0xf]
        %v8549 = vld [vmem:[#allocation4 + $0x84] sm:$0xf]
        %v8550 = vld [vmem:[#allocation4 + $0x88] sm:$0xf]
        %v8551 = vld [vmem:[#allocation4 + $0x8c] sm:$0xf]
        %v8552 = vld [vmem:[#allocation4 + $0x90] sm:$0xf]
        %v8553 = vld [vmem:[#allocation4 + $0x94] sm:$0xf]
        %v8554 = vld [vmem:[#allocation4 + $0x98] sm:$0xf]
        %v8555 = vld [vmem:[#allocation4 + $0x9c] sm:$0xf]
        %v8556 = vld [vmem:[#allocation4 + $0xa0] sm:$0xf]
        %v8557 = vld [vmem:[#allocation4 + $0xa4] sm:$0xf]
        %v8558 = vld [vmem:[#allocation4 + $0xa8] sm:$0x7]
        %v8598 = vrot.slane %v8520, 7
        %v8599 = vrot.slane %v8598, 4
        %v8600 = vrot.slane %v8521, 7
        %v8601 = vsel %vm3554, %v8599, %v8600
        %v8602 = vrot.slane %v8600, 4
        %v8603 = vrot.slane %v8522, 7
        %v8604 = vsel %vm3554, %v8602, %v8603
        %v8605 = vrot.slane %v8603, 4
        %v8606 = vrot.slane %v8523, 7
        %v8607 = vsel %vm3554, %v8605, %v8606
        %v8608 = vrot.slane %v8606, 4
        %v8609 = vrot.slane %v8524, 7
        %v8610 = vsel %vm3554, %v8608, %v8609
        %v8611 = vrot.slane %v8609, 4
        %v8612 = vrot.slane %v8525, 7
        %v8613 = vsel %vm3554, %v8611, %v8612
        %v8614 = vrot.slane %v8612, 4
        %v8615 = vrot.slane %v8526, 7
        %v8616 = vsel %vm3554, %v8614, %v8615
        %v8617 = vrot.slane %v8615, 4
        %v8618 = vrot.slane %v8527, 7
        %v8619 = vsel %vm3554, %v8617, %v8618
        %v8620 = vrot.slane %v8618, 4
        %v8621 = vrot.slane %v8528, 7
        %v8622 = vsel %vm3554, %v8620, %v8621
        %v8623 = vrot.slane %v8621, 4
        %v8624 = vrot.slane %v8529, 7
        %v8625 = vsel %vm3554, %v8623, %v8624
        %v8626 = vrot.slane %v8624, 4
        %v8627 = vrot.slane %v8530, 7
        %v8628 = vsel %vm3554, %v8626, %v8627
        %v8629 = vrot.slane %v8627, 4
        %v8630 = vrot.slane %v8531, 7
        %v8631 = vsel %vm3554, %v8629, %v8630
        %v8632 = vrot.slane %v8630, 4
        %v8633 = vrot.slane %v8532, 7
        %v8634 = vsel %vm3554, %v8632, %v8633
        %v8635 = vrot.slane %v8633, 4
        %v8636 = vrot.slane %v8533, 7
        %v8637 = vsel %vm3554, %v8635, %v8636
        %v8638 = vrot.slane %v8636, 4
        %v8639 = vrot.slane %v8534, 7
        %v8640 = vsel %vm3554, %v8638, %v8639
        %v8641 = vrot.slane %v8639, 4
        %v8642 = vrot.slane %v8535, 7
        %v8643 = vsel %vm3554, %v8641, %v8642
        %v8644 = vrot.slane %v8642, 4
        %v8645 = vrot.slane %v8536, 7
        %v8646 = vsel %vm3554, %v8644, %v8645
        %v8647 = vrot.slane %v8645, 4
        %v8648 = vrot.slane %v8537, 7
        %v8649 = vsel %vm3554, %v8647, %v8648
        %v8650 = vrot.slane %v8648, 4
        %v8651 = vrot.slane %v8538, 7
        %v8652 = vsel %vm3554, %v8650, %v8651
        %v8653 = vrot.slane %v8651, 4
        %v8654 = vrot.slane %v8539, 7
        %v8655 = vsel %vm3554, %v8653, %v8654
        %v8656 = vrot.slane %v8654, 4
        %v8657 = vrot.slane %v8540, 7
        %v8658 = vsel %vm3554, %v8656, %v8657
        %v8659 = vrot.slane %v8657, 4
        %v8660 = vrot.slane %v8541, 7
        %v8661 = vsel %vm3554, %v8659, %v8660
        %v8662 = vrot.slane %v8660, 4
        %v8663 = vrot.slane %v8542, 7
        %v8664 = vsel %vm3554, %v8662, %v8663
        %v8665 = vrot.slane %v8663, 4
        %v8666 = vrot.slane %v8543, 7
        %v8667 = vsel %vm3554, %v8665, %v8666
        %v8668 = vrot.slane %v8666, 4
        %v8669 = vrot.slane %v8544, 7
        %v8670 = vsel %vm3554, %v8668, %v8669
        %v8671 = vrot.slane %v8669, 4
        %v8672 = vrot.slane %v8545, 7
        %v8673 = vsel %vm3554, %v8671, %v8672
        %v8674 = vrot.slane %v8672, 4
        %v8675 = vrot.slane %v8546, 7
        %v8676 = vsel %vm3554, %v8674, %v8675
        %v8677 = vrot.slane %v8675, 4
        %v8678 = vrot.slane %v8547, 7
        %v8679 = vsel %vm3554, %v8677, %v8678
        %v8680 = vrot.slane %v8678, 4
        %v8681 = vrot.slane %v8548, 7
        %v8682 = vsel %vm3554, %v8680, %v8681
        %v8683 = vrot.slane %v8681, 4
        %v8684 = vrot.slane %v8549, 7
        %v8685 = vsel %vm3554, %v8683, %v8684
        %v8686 = vrot.slane %v8684, 4
        %v8687 = vrot.slane %v8550, 7
        %v8688 = vsel %vm3554, %v8686, %v8687
        %v8689 = vrot.slane %v8687, 4
        %v8690 = vrot.slane %v8551, 7
        %v8691 = vsel %vm3554, %v8689, %v8690
        %v8692 = vrot.slane %v8690, 4
        %v8693 = vrot.slane %v8552, 7
        %v8694 = vsel %vm3554, %v8692, %v8693
        %v8695 = vrot.slane %v8693, 4
        %v8696 = vrot.slane %v8553, 7
        %v8697 = vsel %vm3554, %v8695, %v8696
        %v8698 = vrot.slane %v8696, 4
        %v8699 = vrot.slane %v8554, 7
        %v8700 = vsel %vm3554, %v8698, %v8699
        %v8701 = vrot.slane %v8699, 4
        %v8702 = vrot.slane %v8555, 7
        %v8703 = vsel %vm3554, %v8701, %v8702
        %v8704 = vrot.slane %v8702, 4
        %v8705 = vrot.slane %v8556, 7
        %v8706 = vsel %vm3554, %v8704, %v8705
        %v8707 = vrot.slane %v8705, 4
        %v8708 = vrot.slane %v8557, 7
        %v8709 = vsel %vm3554, %v8707, %v8708
        %v8710 = vrot.slane %v8708, 4
        %v8711 = vrot.slane %v8558, 7
        %v8712 = vsel %vm3554, %v8710, %v8711
        %8751 = vst.msk [vmem:[#allocation3 + $0x8] sm:$0xf] %vm380, %v8601
        %8752 = vst.msk [vmem:[#allocation3 + $0x14] sm:$0xf] %vm380, %v8604
        %8753 = vst.msk [vmem:[#allocation3 + $0x20] sm:$0xf] %vm380, %v8607
        %8754 = vst.msk [vmem:[#allocation3 + $0x2c] sm:$0xf] %vm380, %v8610
        %8755 = vst.msk [vmem:[#allocation3 + $0x38] sm:$0xf] %vm380, %v8613
        %8756 = vst.msk [vmem:[#allocation3 + $0x44] sm:$0xf] %vm380, %v8616
        %8757 = vst.msk [vmem:[#allocation3 + $0x50] sm:$0xf] %vm380, %v8619
        %8758 = vst.msk [vmem:[#allocation3 + $0x5c] sm:$0xf] %vm380, %v8622
        %8759 = vst.msk [vmem:[#allocation3 + $0x68] sm:$0xf] %vm380, %v8625
        %8760 = vst.msk [vmem:[#allocation3 + $0x74] sm:$0xf] %vm380, %v8628
        %8761 = vst.msk [vmem:[#allocation3 + $0x80] sm:$0xf] %vm380, %v8631
        %8762 = vst.msk [vmem:[#allocation3 + $0x8c] sm:$0xf] %vm380, %v8634
        %8763 = vst.msk [vmem:[#allocation3 + $0x98] sm:$0xf] %vm380, %v8637
        %8764 = vst.msk [vmem:[#allocation3 + $0xa4] sm:$0xf] %vm380, %v8640
        %8765 = vst.msk [vmem:[#allocation3 + $0xb0] sm:$0xf] %vm380, %v8643
        %8766 = vst.msk [vmem:[#allocation3 + $0xbc] sm:$0xf] %vm380, %v8646
        %8767 = vst.msk [vmem:[#allocation3 + $0xc8] sm:$0xf] %vm380, %v8649
        %8768 = vst.msk [vmem:[#allocation3 + $0xd4] sm:$0xf] %vm380, %v8652
        %8769 = vst.msk [vmem:[#allocation3 + $0xe0] sm:$0xf] %vm380, %v8655
        %8770 = vst.msk [vmem:[#allocation3 + $0xec] sm:$0xf] %vm380, %v8658
        %8771 = vst.msk [vmem:[#allocation3 + $0xf8] sm:$0xf] %vm380, %v8661
        %8772 = vst.msk [vmem:[#allocation3 + $0x104] sm:$0xf] %vm380, %v8664
        %8773 = vst.msk [vmem:[#allocation3 + $0x110] sm:$0xf] %vm380, %v8667
        %8774 = vst.msk [vmem:[#allocation3 + $0x11c] sm:$0xf] %vm380, %v8670
        %8775 = vst.msk [vmem:[#allocation3 + $0x128] sm:$0xf] %vm380, %v8673
        %8776 = vst.msk [vmem:[#allocation3 + $0x134] sm:$0xf] %vm380, %v8676
        %8777 = vst.msk [vmem:[#allocation3 + $0x140] sm:$0xf] %vm380, %v8679
        %8778 = vst.msk [vmem:[#allocation3 + $0x14c] sm:$0xf] %vm380, %v8682
        %8779 = vst.msk [vmem:[#allocation3 + $0x158] sm:$0xf] %vm380, %v8685
        %8780 = vst.msk [vmem:[#allocation3 + $0x164] sm:$0xf] %vm380, %v8688
        %8781 = vst.msk [vmem:[#allocation3 + $0x170] sm:$0xf] %vm380, %v8691
        %8782 = vst.msk [vmem:[#allocation3 + $0x17c] sm:$0xf] %vm380, %v8694
        %8783 = vst.msk [vmem:[#allocation3 + $0x188] sm:$0xf] %vm380, %v8697
        %8784 = vst.msk [vmem:[#allocation3 + $0x194] sm:$0xf] %vm380, %v8700
        %8785 = vst.msk [vmem:[#allocation3 + $0x1a0] sm:$0xf] %vm380, %v8703
        %8786 = vst.msk [vmem:[#allocation3 + $0x1ac] sm:$0xf] %vm380, %v8706
        %8787 = vst.msk [vmem:[#allocation3 + $0x1b8] sm:$0xf] %vm380, %v8709
        %8788 = vst.msk [vmem:[#allocation3 + $0x1c4] sm:$0xf] %vm380, %v8712
        %v8789 = vld [vmem:[#allocation3] sm:$0xff]
        %v8790 = vld [vmem:[#allocation3 + $0x8] sm:$0xf]
        %v8791 = vld [vmem:[#allocation3 + $0xc] sm:$0xff]
        %v8792 = vld [vmem:[#allocation3 + $0x14] sm:$0xf]
        %v8793 = vld [vmem:[#allocation3 + $0x18] sm:$0xff]
        %v8794 = vld [vmem:[#allocation3 + $0x20] sm:$0xf]
        %v8795 = vld [vmem:[#allocation3 + $0x24] sm:$0xff]
        %v8796 = vld [vmem:[#allocation3 + $0x2c] sm:$0xf]
        %v8797 = vld [vmem:[#allocation3 + $0x30] sm:$0xff]
        %v8798 = vld [vmem:[#allocation3 + $0x38] sm:$0xf]
        %v8799 = vld [vmem:[#allocation3 + $0x3c] sm:$0xff]
        %v8800 = vld [vmem:[#allocation3 + $0x44] sm:$0xf]
        %v8801 = vld [vmem:[#allocation3 + $0x48] sm:$0xff]
        %v8802 = vld [vmem:[#allocation3 + $0x50] sm:$0xf]
        %v8803 = vld [vmem:[#allocation3 + $0x54] sm:$0xff]
        %v8804 = vld [vmem:[#allocation3 + $0x5c] sm:$0xf]
        %v8805 = vld [vmem:[#allocation3 + $0x60] sm:$0xff]
        %v8806 = vld [vmem:[#allocation3 + $0x68] sm:$0xf]
        %v8807 = vld [vmem:[#allocation3 + $0x6c] sm:$0xff]
        %v8808 = vld [vmem:[#allocation3 + $0x74] sm:$0xf]
        %v8809 = vld [vmem:[#allocation3 + $0x78] sm:$0xff]
        %v8810 = vld [vmem:[#allocation3 + $0x80] sm:$0xf]
        %v8811 = vld [vmem:[#allocation3 + $0x84] sm:$0xff]
        %v8812 = vld [vmem:[#allocation3 + $0x8c] sm:$0xf]
        %v8813 = vld [vmem:[#allocation3 + $0x90] sm:$0xff]
        %v8814 = vld [vmem:[#allocation3 + $0x98] sm:$0xf]
        %v8815 = vld [vmem:[#allocation3 + $0x9c] sm:$0xff]
        %v8816 = vld [vmem:[#allocation3 + $0xa4] sm:$0xf]
        %v8817 = vld [vmem:[#allocation3 + $0xa8] sm:$0xff]
        %v8818 = vld [vmem:[#allocation3 + $0xb0] sm:$0xf]
        %v8819 = vld [vmem:[#allocation3 + $0xb4] sm:$0xff]
        %v8820 = vld [vmem:[#allocation3 + $0xbc] sm:$0xf]
        %v8821 = vld [vmem:[#allocation3 + $0xc0] sm:$0xff]
        %v8822 = vld [vmem:[#allocation3 + $0xc8] sm:$0xf]
        %v8823 = vld [vmem:[#allocation3 + $0xcc] sm:$0xff]
        %v8824 = vld [vmem:[#allocation3 + $0xd4] sm:$0xf]
        %v8825 = vld [vmem:[#allocation3 + $0xd8] sm:$0xff]
        %v8826 = vld [vmem:[#allocation3 + $0xe0] sm:$0xf]
        %v8827 = vld [vmem:[#allocation3 + $0xe4] sm:$0xff]
        %v8828 = vld [vmem:[#allocation3 + $0xec] sm:$0xf]
        %v8829 = vld [vmem:[#allocation3 + $0xf0] sm:$0xff]
        %v8830 = vld [vmem:[#allocation3 + $0xf8] sm:$0xf]
        %v8831 = vld [vmem:[#allocation3 + $0xfc] sm:$0xff]
        %v8832 = vld [vmem:[#allocation3 + $0x104] sm:$0xf]
        %v8833 = vld [vmem:[#allocation3 + $0x108] sm:$0xff]
        %v8834 = vld [vmem:[#allocation3 + $0x110] sm:$0xf]
        %v8835 = vld [vmem:[#allocation3 + $0x114] sm:$0xff]
        %v8836 = vld [vmem:[#allocation3 + $0x11c] sm:$0xf]
        %v8837 = vld [vmem:[#allocation3 + $0x120] sm:$0xff]
        %v8838 = vld [vmem:[#allocation3 + $0x128] sm:$0xf]
        %v8839 = vld [vmem:[#allocation3 + $0x12c] sm:$0xff]
        %v8840 = vld [vmem:[#allocation3 + $0x134] sm:$0xf]
        %v8841 = vld [vmem:[#allocation3 + $0x138] sm:$0xff]
        %v8842 = vld [vmem:[#allocation3 + $0x140] sm:$0xf]
        %v8843 = vld [vmem:[#allocation3 + $0x144] sm:$0xff]
        %v8844 = vld [vmem:[#allocation3 + $0x14c] sm:$0xf]
        %v8845 = vld [vmem:[#allocation3 + $0x150] sm:$0xff]
        %v8846 = vld [vmem:[#allocation3 + $0x158] sm:$0xf]
        %v8847 = vld [vmem:[#allocation3 + $0x15c] sm:$0xff]
        %v8848 = vld [vmem:[#allocation3 + $0x164] sm:$0xf]
        %v8849 = vld [vmem:[#allocation3 + $0x168] sm:$0xff]
        %v8850 = vld [vmem:[#allocation3 + $0x170] sm:$0xf]
        %v8851 = vld [vmem:[#allocation3 + $0x174] sm:$0xff]
        %v8852 = vld [vmem:[#allocation3 + $0x17c] sm:$0xf]
        %v8853 = vld [vmem:[#allocation3 + $0x180] sm:$0xff]
        %v8854 = vld [vmem:[#allocation3 + $0x188] sm:$0xf]
        %v8855 = vld [vmem:[#allocation3 + $0x18c] sm:$0xff]
        %v8856 = vld [vmem:[#allocation3 + $0x194] sm:$0xf]
        %v8857 = vld [vmem:[#allocation3 + $0x198] sm:$0xff]
        %v8858 = vld [vmem:[#allocation3 + $0x1a0] sm:$0xf]
        %v8859 = vld [vmem:[#allocation3 + $0x1a4] sm:$0xff]
        %v8860 = vld [vmem:[#allocation3 + $0x1ac] sm:$0xf]
        %v8861 = vld [vmem:[#allocation3 + $0x1b0] sm:$0xff]
        %v8862 = vld [vmem:[#allocation3 + $0x1b8] sm:$0xf]
        %v8863 = vld [vmem:[#allocation3 + $0x1bc] sm:$0xff]
        %v8864 = vld [vmem:[#allocation3 + $0x1c4] sm:$0xf]
        %v8865 = vld [vmem:[%s3] sm:$0xf]
        %v8866 = vld [vmem:[%s3 + $0x4] sm:$0xf]
        %v8867 = vld [vmem:[%s3 + $0x8] sm:$0xf]
        %v8868 = vld [vmem:[%s3 + $0xc] sm:$0xf]
        %v8869 = vld [vmem:[%s3 + $0x10] sm:$0xf]
        %v8870 = vld [vmem:[%s3 + $0x14] sm:$0xf]
        %v8871 = vld [vmem:[%s3 + $0x18] sm:$0xf]
        %v8872 = vld [vmem:[%s3 + $0x1c] sm:$0xf]
        %v8873 = vld [vmem:[%s3 + $0x20] sm:$0xf]
        %v8874 = vld [vmem:[%s3 + $0x24] sm:$0xf]
        %v8875 = vld [vmem:[%s3 + $0x28] sm:$0xf]
        %v8876 = vld [vmem:[%s3 + $0x2c] sm:$0xf]
        %v8877 = vld [vmem:[%s3 + $0x30] sm:$0xf]
        %v8878 = vld [vmem:[%s3 + $0x34] sm:$0xf]
        %v8879 = vld [vmem:[%s3 + $0x38] sm:$0xf]
        %v8880 = vld [vmem:[%s3 + $0x3c] sm:$0xf]
        %v8881 = vld [vmem:[%s3 + $0x40] sm:$0xf]
        %v8882 = vld [vmem:[%s3 + $0x44] sm:$0xf]
        %v8883 = vld [vmem:[%s3 + $0x48] sm:$0xf]
        %v8884 = vld [vmem:[%s3 + $0x4c] sm:$0xf]
        %v8885 = vld [vmem:[%s3 + $0x50] sm:$0xf]
        %v8886 = vld [vmem:[%s3 + $0x54] sm:$0xf]
        %v8887 = vld [vmem:[%s3 + $0x58] sm:$0xf]
        %v8888 = vld [vmem:[%s3 + $0x5c] sm:$0xf]
        %v8889 = vld [vmem:[%s3 + $0x60] sm:$0xf]
        %v8890 = vld [vmem:[%s3 + $0x64] sm:$0xf]
        %v8891 = vld [vmem:[%s3 + $0x68] sm:$0xf]
        %v8892 = vld [vmem:[%s3 + $0x6c] sm:$0xf]
        %v8893 = vld [vmem:[%s3 + $0x70] sm:$0xf]
        %v8894 = vld [vmem:[%s3 + $0x74] sm:$0xf]
        %v8895 = vld [vmem:[%s3 + $0x78] sm:$0xf]
        %v8896 = vld [vmem:[%s3 + $0x7c] sm:$0xf]
        %v8897 = vld [vmem:[%s3 + $0x80] sm:$0xf]
        %v8898 = vld [vmem:[%s3 + $0x84] sm:$0xf]
        %v8899 = vld [vmem:[%s3 + $0x88] sm:$0xf]
        %v8900 = vld [vmem:[%s3 + $0x8c] sm:$0xf]
        %v8901 = vld [vmem:[#allocation4 + $0x8] sm:$0xe]
        %v8902 = vld [vmem:[#allocation4 + $0xc] sm:$0xf]
        %v8903 = vld [vmem:[#allocation4 + $0x10] sm:$0xf]
        %v8904 = vld [vmem:[#allocation4 + $0x14] sm:$0xf]
        %v8905 = vld [vmem:[#allocation4 + $0x18] sm:$0xf]
        %v8906 = vld [vmem:[#allocation4 + $0x1c] sm:$0xf]
        %v8907 = vld [vmem:[#allocation4 + $0x20] sm:$0xf]
        %v8908 = vld [vmem:[#allocation4 + $0x24] sm:$0xf]
        %v8909 = vld [vmem:[#allocation4 + $0x28] sm:$0xf]
        %v8910 = vld [vmem:[#allocation4 + $0x2c] sm:$0xf]
        %v8911 = vld [vmem:[#allocation4 + $0x30] sm:$0xf]
        %v8912 = vld [vmem:[#allocation4 + $0x34] sm:$0xf]
        %v8913 = vld [vmem:[#allocation4 + $0x38] sm:$0xf]
        %v8914 = vld [vmem:[#allocation4 + $0x3c] sm:$0xf]
        %v8915 = vld [vmem:[#allocation4 + $0x40] sm:$0xf]
        %v8916 = vld [vmem:[#allocation4 + $0x44] sm:$0xf]
        %v8917 = vld [vmem:[#allocation4 + $0x48] sm:$0xf]
        %v8918 = vld [vmem:[#allocation4 + $0x4c] sm:$0xf]
        %v8919 = vld [vmem:[#allocation4 + $0x50] sm:$0xf]
        %v8920 = vld [vmem:[#allocation4 + $0x54] sm:$0xf]
        %v8921 = vld [vmem:[#allocation4 + $0x58] sm:$0xf]
        %v8922 = vld [vmem:[#allocation4 + $0x5c] sm:$0xf]
        %v8923 = vld [vmem:[#allocation4 + $0x60] sm:$0xf]
        %v8924 = vld [vmem:[#allocation4 + $0x64] sm:$0xf]
        %v8925 = vld [vmem:[#allocation4 + $0x68] sm:$0xf]
        %v8926 = vld [vmem:[#allocation4 + $0x6c] sm:$0xf]
        %v8927 = vld [vmem:[#allocation4 + $0x70] sm:$0xf]
        %v8928 = vld [vmem:[#allocation4 + $0x74] sm:$0xf]
        %v8929 = vld [vmem:[#allocation4 + $0x78] sm:$0xf]
        %v8930 = vld [vmem:[#allocation4 + $0x7c] sm:$0xf]
        %v8931 = vld [vmem:[#allocation4 + $0x80] sm:$0xf]
        %v8932 = vld [vmem:[#allocation4 + $0x84] sm:$0xf]
        %v8933 = vld [vmem:[#allocation4 + $0x88] sm:$0xf]
        %v8934 = vld [vmem:[#allocation4 + $0x8c] sm:$0xf]
        %v8935 = vld [vmem:[#allocation4 + $0x90] sm:$0xf]
        %v8936 = vld [vmem:[#allocation4 + $0x94] sm:$0xf]
        %v8937 = vld [vmem:[#allocation4 + $0x98] sm:$0xf]
        %v8938 = vld [vmem:[#allocation4 + $0x9c] sm:$0xf]
        %v8939 = vld [vmem:[#allocation4 + $0xa0] sm:$0x3]
        %v8940 = vunpack.c.l.bf16 %v8901
        %v8941 = vunpack.c.l.bf16 %v8902
        %v8942 = vunpack.c.l.bf16 %v8903
        %v8943 = vunpack.c.l.bf16 %v8904
        %v8944 = vunpack.c.l.bf16 %v8905
        %v8945 = vunpack.c.l.bf16 %v8906
        %v8946 = vunpack.c.l.bf16 %v8907
        %v8947 = vunpack.c.l.bf16 %v8908
        %v8948 = vunpack.c.l.bf16 %v8909
        %v8949 = vunpack.c.l.bf16 %v8910
        %v8950 = vunpack.c.l.bf16 %v8911
        %v8951 = vunpack.c.l.bf16 %v8912
        %v8952 = vunpack.c.l.bf16 %v8913
        %v8953 = vunpack.c.l.bf16 %v8914
        %v8954 = vunpack.c.l.bf16 %v8915
        %v8955 = vunpack.c.l.bf16 %v8916
        %v8956 = vunpack.c.l.bf16 %v8917
        %v8957 = vunpack.c.l.bf16 %v8918
        %v8958 = vunpack.c.l.bf16 %v8919
        %v8959 = vunpack.c.l.bf16 %v8920
        %v8960 = vunpack.c.l.bf16 %v8921
        %v8961 = vunpack.c.l.bf16 %v8922
        %v8962 = vunpack.c.l.bf16 %v8923
        %v8963 = vunpack.c.l.bf16 %v8924
        %v8964 = vunpack.c.l.bf16 %v8925
        %v8965 = vunpack.c.l.bf16 %v8926
        %v8966 = vunpack.c.l.bf16 %v8927
        %v8967 = vunpack.c.l.bf16 %v8928
        %v8968 = vunpack.c.l.bf16 %v8929
        %v8969 = vunpack.c.l.bf16 %v8930
        %v8970 = vunpack.c.l.bf16 %v8931
        %v8971 = vunpack.c.l.bf16 %v8932
        %v8972 = vunpack.c.l.bf16 %v8933
        %v8973 = vunpack.c.l.bf16 %v8934
        %v8974 = vunpack.c.l.bf16 %v8935
        %v8975 = vunpack.c.l.bf16 %v8936
        %v8976 = vunpack.c.l.bf16 %v8937
        %v8977 = vunpack.c.l.bf16 %v8938
        %v8978 = vunpack.c.l.bf16 %v8939
        %v9055 = vunpack.c.l.b16 %v8789
        %v9056 = vunpack.c.h.b16 %v8789
        %v9057 = vunpack.c.l.b16 %v8790
        %v9058 = vunpack.c.l.b16 %v8791
        %v9059 = vunpack.c.h.b16 %v8791
        %v9060 = vunpack.c.l.b16 %v8792
        %v9061 = vunpack.c.l.b16 %v8793
        %v9062 = vunpack.c.h.b16 %v8793
        %v9063 = vunpack.c.l.b16 %v8794
        %v9064 = vunpack.c.l.b16 %v8795
        %v9065 = vunpack.c.h.b16 %v8795
        %v9066 = vunpack.c.l.b16 %v8796
        %v9067 = vunpack.c.l.b16 %v8797
        %v9068 = vunpack.c.h.b16 %v8797
        %v9069 = vunpack.c.l.b16 %v8798
        %v9070 = vunpack.c.l.b16 %v8799
        %v9071 = vunpack.c.h.b16 %v8799
        %v9072 = vunpack.c.l.b16 %v8800
        %v9073 = vunpack.c.l.b16 %v8801
        %v9074 = vunpack.c.h.b16 %v8801
        %v9075 = vunpack.c.l.b16 %v8802
        %v9076 = vunpack.c.l.b16 %v8803
        %v9077 = vunpack.c.h.b16 %v8803
        %v9078 = vunpack.c.l.b16 %v8804
        %v9079 = vunpack.c.l.b16 %v8805
        %v9080 = vunpack.c.h.b16 %v8805
        %v9081 = vunpack.c.l.b16 %v8806
        %v9082 = vunpack.c.l.b16 %v8807
        %v9083 = vunpack.c.h.b16 %v8807
        %v9084 = vunpack.c.l.b16 %v8808
        %v9085 = vunpack.c.l.b16 %v8809
        %v9086 = vunpack.c.h.b16 %v8809
        %v9087 = vunpack.c.l.b16 %v8810
        %v9088 = vunpack.c.l.b16 %v8811
        %v9089 = vunpack.c.h.b16 %v8811
        %v9090 = vunpack.c.l.b16 %v8812
        %v9091 = vunpack.c.l.b16 %v8813
        %v9092 = vunpack.c.h.b16 %v8813
        %v9093 = vunpack.c.l.b16 %v8814
        %v9094 = vunpack.c.l.b16 %v8815
        %v9095 = vunpack.c.h.b16 %v8815
        %v9096 = vunpack.c.l.b16 %v8816
        %v9097 = vunpack.c.l.b16 %v8817
        %v9098 = vunpack.c.h.b16 %v8817
        %v9099 = vunpack.c.l.b16 %v8818
        %v9100 = vunpack.c.l.b16 %v8819
        %v9101 = vunpack.c.h.b16 %v8819
        %v9102 = vunpack.c.l.b16 %v8820
        %v9103 = vunpack.c.l.b16 %v8821
        %v9104 = vunpack.c.h.b16 %v8821
        %v9105 = vunpack.c.l.b16 %v8822
        %v9106 = vunpack.c.l.b16 %v8823
        %v9107 = vunpack.c.h.b16 %v8823
        %v9108 = vunpack.c.l.b16 %v8824
        %v9109 = vunpack.c.l.b16 %v8825
        %v9110 = vunpack.c.h.b16 %v8825
        %v9111 = vunpack.c.l.b16 %v8826
        %v9112 = vunpack.c.l.b16 %v8827
        %v9113 = vunpack.c.h.b16 %v8827
        %v9114 = vunpack.c.l.b16 %v8828
        %v9115 = vunpack.c.l.b16 %v8829
        %v9116 = vunpack.c.h.b16 %v8829
        %v9117 = vunpack.c.l.b16 %v8830
        %v9118 = vunpack.c.l.b16 %v8831
        %v9119 = vunpack.c.h.b16 %v8831
        %v9120 = vunpack.c.l.b16 %v8832
        %v9121 = vunpack.c.l.b16 %v8833
        %v9122 = vunpack.c.h.b16 %v8833
        %v9123 = vunpack.c.l.b16 %v8834
        %v9124 = vunpack.c.l.b16 %v8835
        %v9125 = vunpack.c.h.b16 %v8835
        %v9126 = vunpack.c.l.b16 %v8836
        %v9127 = vunpack.c.l.b16 %v8837
        %v9128 = vunpack.c.h.b16 %v8837
        %v9129 = vunpack.c.l.b16 %v8838
        %v9130 = vunpack.c.l.b16 %v8839
        %v9131 = vunpack.c.h.b16 %v8839
        %v9132 = vunpack.c.l.b16 %v8840
        %v9133 = vunpack.c.l.b16 %v8841
        %v9134 = vunpack.c.h.b16 %v8841
        %v9135 = vunpack.c.l.b16 %v8842
        %v9136 = vunpack.c.l.b16 %v8843
        %v9137 = vunpack.c.h.b16 %v8843
        %v9138 = vunpack.c.l.b16 %v8844
        %v9139 = vunpack.c.l.b16 %v8845
        %v9140 = vunpack.c.h.b16 %v8845
        %v9141 = vunpack.c.l.b16 %v8846
        %v9142 = vunpack.c.l.b16 %v8847
        %v9143 = vunpack.c.h.b16 %v8847
        %v9144 = vunpack.c.l.b16 %v8848
        %v9145 = vunpack.c.l.b16 %v8849
        %v9146 = vunpack.c.h.b16 %v8849
        %v9147 = vunpack.c.l.b16 %v8850
        %v9148 = vunpack.c.l.b16 %v8851
        %v9149 = vunpack.c.h.b16 %v8851
        %v9150 = vunpack.c.l.b16 %v8852
        %v9151 = vunpack.c.l.b16 %v8853
        %v9152 = vunpack.c.h.b16 %v8853
        %v9153 = vunpack.c.l.b16 %v8854
        %v9154 = vunpack.c.l.b16 %v8855
        %v9155 = vunpack.c.h.b16 %v8855
        %v9156 = vunpack.c.l.b16 %v8856
        %v9157 = vunpack.c.l.b16 %v8857
        %v9158 = vunpack.c.h.b16 %v8857
        %v9159 = vunpack.c.l.b16 %v8858
        %v9160 = vunpack.c.l.b16 %v8859
        %v9161 = vunpack.c.h.b16 %v8859
        %v9162 = vunpack.c.l.b16 %v8860
        %v9163 = vunpack.c.l.b16 %v8861
        %v9164 = vunpack.c.h.b16 %v8861
        %v9165 = vunpack.c.l.b16 %v8862
        %v9166 = vunpack.c.l.b16 %v8863
        %v9167 = vunpack.c.h.b16 %v8863
        %v9168 = vunpack.c.l.b16 %v8864
        %v9169 = vpack.c.b16 %v9058, %v9055
        %v9170 = vpack.c.b16 %v9059, %v9056
        %v9171 = vpack.c.b16 %v9060, %v9057
        %v9172 = vpack.c.b16 %v9064, %v9061
        %v9173 = vpack.c.b16 %v9065, %v9062
        %v9174 = vpack.c.b16 %v9066, %v9063
        %v9175 = vpack.c.b16 %v9070, %v9067
        %v9176 = vpack.c.b16 %v9071, %v9068
        %v9177 = vpack.c.b16 %v9072, %v9069
        %v9178 = vpack.c.b16 %v9076, %v9073
        %v9179 = vpack.c.b16 %v9077, %v9074
        %v9180 = vpack.c.b16 %v9078, %v9075
        %v9181 = vpack.c.b16 %v9082, %v9079
        %v9182 = vpack.c.b16 %v9083, %v9080
        %v9183 = vpack.c.b16 %v9084, %v9081
        %v9184 = vpack.c.b16 %v9088, %v9085
        %v9185 = vpack.c.b16 %v9089, %v9086
        %v9186 = vpack.c.b16 %v9090, %v9087
        %v9187 = vpack.c.b16 %v9094, %v9091
        %v9188 = vpack.c.b16 %v9095, %v9092
        %v9189 = vpack.c.b16 %v9096, %v9093
        %v9190 = vpack.c.b16 %v9100, %v9097
        %v9191 = vpack.c.b16 %v9101, %v9098
        %v9192 = vpack.c.b16 %v9102, %v9099
        %v9193 = vpack.c.b16 %v9106, %v9103
        %v9194 = vpack.c.b16 %v9107, %v9104
        %v9195 = vpack.c.b16 %v9108, %v9105
        %v9196 = vpack.c.b16 %v9112, %v9109
        %v9197 = vpack.c.b16 %v9113, %v9110
        %v9198 = vpack.c.b16 %v9114, %v9111
        %v9199 = vpack.c.b16 %v9118, %v9115
        %v9200 = vpack.c.b16 %v9119, %v9116
        %v9201 = vpack.c.b16 %v9120, %v9117
        %v9202 = vpack.c.b16 %v9124, %v9121
        %v9203 = vpack.c.b16 %v9125, %v9122
        %v9204 = vpack.c.b16 %v9126, %v9123
        %v9205 = vpack.c.b16 %v9130, %v9127
        %v9206 = vpack.c.b16 %v9131, %v9128
        %v9207 = vpack.c.b16 %v9132, %v9129
        %v9208 = vpack.c.b16 %v9136, %v9133
        %v9209 = vpack.c.b16 %v9137, %v9134
        %v9210 = vpack.c.b16 %v9138, %v9135
        %v9211 = vpack.c.b16 %v9142, %v9139
        %v9212 = vpack.c.b16 %v9143, %v9140
        %v9213 = vpack.c.b16 %v9144, %v9141
        %v9214 = vpack.c.b16 %v9148, %v9145
        %v9215 = vpack.c.b16 %v9149, %v9146
        %v9216 = vpack.c.b16 %v9150, %v9147
        %v9217 = vpack.c.b16 %v9154, %v9151
        %v9218 = vpack.c.b16 %v9155, %v9152
        %v9219 = vpack.c.b16 %v9156, %v9153
        %v9220 = vpack.c.b16 %v9160, %v9157
        %v9221 = vpack.c.b16 %v9161, %v9158
        %v9222 = vpack.c.b16 %v9162, %v9159
        %v9223 = vpack.c.b16 %v9166, %v9163
        %v9224 = vpack.c.b16 %v9167, %v9164
        %v9225 = vpack.c.b16 %v9168, %v9165
        %v9300 = vunpack.c.l.b16 %v8865
        %v9301 = vunpack.c.l.b16 %v8866
        %v9302 = vunpack.c.l.b16 %v8867
        %v9303 = vunpack.c.l.b16 %v8868
        %v9304 = vunpack.c.l.b16 %v8869
        %v9305 = vunpack.c.l.b16 %v8870
        %v9306 = vunpack.c.l.b16 %v8871
        %v9307 = vunpack.c.l.b16 %v8872
        %v9308 = vunpack.c.l.b16 %v8873
        %v9309 = vunpack.c.l.b16 %v8874
        %v9310 = vunpack.c.l.b16 %v8875
        %v9311 = vunpack.c.l.b16 %v8876
        %v9312 = vunpack.c.l.b16 %v8877
        %v9313 = vunpack.c.l.b16 %v8878
        %v9314 = vunpack.c.l.b16 %v8879
        %v9315 = vunpack.c.l.b16 %v8880
        %v9316 = vunpack.c.l.b16 %v8881
        %v9317 = vunpack.c.l.b16 %v8882
        %v9318 = vunpack.c.l.b16 %v8883
        %v9319 = vunpack.c.l.b16 %v8884
        %v9320 = vunpack.c.l.b16 %v8885
        %v9321 = vunpack.c.l.b16 %v8886
        %v9322 = vunpack.c.l.b16 %v8887
        %v9323 = vunpack.c.l.b16 %v8888
        %v9324 = vunpack.c.l.b16 %v8889
        %v9325 = vunpack.c.l.b16 %v8890
        %v9326 = vunpack.c.l.b16 %v8891
        %v9327 = vunpack.c.l.b16 %v8892
        %v9328 = vunpack.c.l.b16 %v8893
        %v9329 = vunpack.c.l.b16 %v8894
        %v9330 = vunpack.c.l.b16 %v8895
        %v9331 = vunpack.c.l.b16 %v8896
        %v9332 = vunpack.c.l.b16 %v8897
        %v9333 = vunpack.c.l.b16 %v8898
        %v9334 = vunpack.c.l.b16 %v8899
        %v9335 = vunpack.c.l.b16 %v8900
        %v9336 = vpack.c.b16 %v9301, %v9300
        %v9337 = vpack.c.b16 %v9303, %v9302
        %v9338 = vpack.c.b16 %v9305, %v9304
        %v9339 = vpack.c.b16 %v9307, %v9306
        %v9340 = vpack.c.b16 %v9309, %v9308
        %v9341 = vpack.c.b16 %v9311, %v9310
        %v9342 = vpack.c.b16 %v9313, %v9312
        %v9343 = vpack.c.b16 %v9315, %v9314
        %v9344 = vpack.c.b16 %v9317, %v9316
        %v9345 = vpack.c.b16 %v9319, %v9318
        %v9346 = vpack.c.b16 %v9321, %v9320
        %v9347 = vpack.c.b16 %v9323, %v9322
        %v9348 = vpack.c.b16 %v9325, %v9324
        %v9349 = vpack.c.b16 %v9327, %v9326
        %v9350 = vpack.c.b16 %v9329, %v9328
        %v9351 = vpack.c.b16 %v9331, %v9330
        %v9352 = vpack.c.b16 %v9333, %v9332
        %v9353 = vpack.c.b16 %v9335, %v9334
        %vm9411 = vcmask 1044480
        %v9412 = vrot.slane %v8940, 3
        %v9413 = vrot.slane %v8941, 3
        %v9414 = vsel %vm9411, %v9412, %v9413
        %v9415 = vrot.slane %v8942, 3
        %v9416 = vsel %vm9411, %v9413, %v9415
        %v9417 = vrot.slane %v8943, 3
        %v9418 = vsel %vm9411, %v9415, %v9417
        %v9419 = vrot.slane %v8944, 3
        %v9420 = vsel %vm9411, %v9417, %v9419
        %v9421 = vrot.slane %v8945, 3
        %v9422 = vsel %vm9411, %v9419, %v9421
        %v9423 = vrot.slane %v8946, 3
        %v9424 = vsel %vm9411, %v9421, %v9423
        %v9425 = vrot.slane %v8947, 3
        %v9426 = vsel %vm9411, %v9423, %v9425
        %v9427 = vrot.slane %v8948, 3
        %v9428 = vsel %vm9411, %v9425, %v9427
        %v9429 = vrot.slane %v8949, 3
        %v9430 = vsel %vm9411, %v9427, %v9429
        %v9431 = vrot.slane %v8950, 3
        %v9432 = vsel %vm9411, %v9429, %v9431
        %v9433 = vrot.slane %v8951, 3
        %v9434 = vsel %vm9411, %v9431, %v9433
        %v9435 = vrot.slane %v8952, 3
        %v9436 = vsel %vm9411, %v9433, %v9435
        %v9437 = vrot.slane %v8953, 3
        %v9438 = vsel %vm9411, %v9435, %v9437
        %v9439 = vrot.slane %v8954, 3
        %v9440 = vsel %vm9411, %v9437, %v9439
        %v9441 = vrot.slane %v8955, 3
        %v9442 = vsel %vm9411, %v9439, %v9441
        %v9443 = vrot.slane %v8956, 3
        %v9444 = vsel %vm9411, %v9441, %v9443
        %v9445 = vrot.slane %v8957, 3
        %v9446 = vsel %vm9411, %v9443, %v9445
        %v9447 = vrot.slane %v8958, 3
        %v9448 = vsel %vm9411, %v9445, %v9447
        %v9449 = vrot.slane %v8959, 3
        %v9450 = vsel %vm9411, %v9447, %v9449
        %v9451 = vrot.slane %v8960, 3
        %v9452 = vsel %vm9411, %v9449, %v9451
        %v9453 = vrot.slane %v8961, 3
        %v9454 = vsel %vm9411, %v9451, %v9453
        %v9455 = vrot.slane %v8962, 3
        %v9456 = vsel %vm9411, %v9453, %v9455
        %v9457 = vrot.slane %v8963, 3
        %v9458 = vsel %vm9411, %v9455, %v9457
        %v9459 = vrot.slane %v8964, 3
        %v9460 = vsel %vm9411, %v9457, %v9459
        %v9461 = vrot.slane %v8965, 3
        %v9462 = vsel %vm9411, %v9459, %v9461
        %v9463 = vrot.slane %v8966, 3
        %v9464 = vsel %vm9411, %v9461, %v9463
        %v9465 = vrot.slane %v8967, 3
        %v9466 = vsel %vm9411, %v9463, %v9465
        %v9467 = vrot.slane %v8968, 3
        %v9468 = vsel %vm9411, %v9465, %v9467
        %v9469 = vrot.slane %v8969, 3
        %v9470 = vsel %vm9411, %v9467, %v9469
        %v9471 = vrot.slane %v8970, 3
        %v9472 = vsel %vm9411, %v9469, %v9471
        %v9473 = vrot.slane %v8971, 3
        %v9474 = vsel %vm9411, %v9471, %v9473
        %v9475 = vrot.slane %v8972, 3
        %v9476 = vsel %vm9411, %v9473, %v9475
        %v9477 = vrot.slane %v8973, 3
        %v9478 = vsel %vm9411, %v9475, %v9477
        %v9479 = vrot.slane %v8974, 3
        %v9480 = vsel %vm9411, %v9477, %v9479
        %v9481 = vrot.slane %v8975, 3
        %v9482 = vsel %vm9411, %v9479, %v9481
        %v9483 = vrot.slane %v8976, 3
        %v9484 = vsel %vm9411, %v9481, %v9483
        %v9485 = vrot.slane %v8977, 3
        %v9486 = vsel %vm9411, %v9483, %v9485
        %v9487 = vrot.slane %v8978, 3
        %v9488 = vsel %vm9411, %v9485, %v9487
        %v9528 = vsel %vm4255, %v9171, 0
        %v9531 = vsel %vm4255, %v9174, 0
        %v9534 = vsel %vm4255, %v9177, 0
        %v9537 = vsel %vm4255, %v9180, 0
        %v9540 = vsel %vm4255, %v9183, 0
        %v9543 = vsel %vm4255, %v9186, 0
        %v9546 = vsel %vm4255, %v9189, 0
        %v9549 = vsel %vm4255, %v9192, 0
        %v9552 = vsel %vm4255, %v9195, 0
        %v9555 = vsel %vm4255, %v9198, 0
        %v9558 = vsel %vm4255, %v9201, 0
        %v9561 = vsel %vm4255, %v9204, 0
        %v9564 = vsel %vm4255, %v9207, 0
        %v9567 = vsel %vm4255, %v9210, 0
        %v9570 = vsel %vm4255, %v9213, 0
        %v9573 = vsel %vm4255, %v9216, 0
        %v9576 = vsel %vm4255, %v9219, 0
        %v9579 = vsel %vm4255, %v9222, 0
        %v9582 = vsel %vm4255, %v9225, 0
        %9584 = vmatpush.bf16.msra.mxu0 %v9343
        %9585 = vmatpush.bf16.msra.mxu0 %v9342
        %9586 = vmatpush.bf16.msra.mxu0 %v9341
        %9587 = vmatpush.bf16.msra.mxu0 %v9340
        %9588 = vmatpush.bf16.msra.mxu0 %v9339
        %9589 = vmatpush.bf16.msra.mxu0 %v9338
        %9590 = vmatpush.bf16.msra.mxu0 %v9337
        %9591 = vmatpush.bf16.msra.mxu0 %v9336
        %9592 = vmatmul.bf16.gmra.mxu0 %v9169
        %v9593 = vpop.f32.mrf.mxu0
        %v9594 = vadd.f32 %v9414, %v9593
        %v9595 = vpop.f32.mrf.mxu0
        %v9596 = vadd.f32 %v9416, %v9595
        %9597 = vmatmul.bf16.gmra.mxu0 %v9172
        %v9598 = vpop.f32.mrf.mxu0
        %v9599 = vadd.f32 %v9418, %v9598
        %v9600 = vpop.f32.mrf.mxu0
        %v9601 = vadd.f32 %v9420, %v9600
        %9602 = vmatmul.bf16.gmra.mxu0 %v9175
        %v9603 = vpop.f32.mrf.mxu0
        %v9604 = vadd.f32 %v9422, %v9603
        %v9605 = vpop.f32.mrf.mxu0
        %v9606 = vadd.f32 %v9424, %v9605
        %9607 = vmatmul.bf16.gmra.mxu0 %v9178
        %v9608 = vpop.f32.mrf.mxu0
        %v9609 = vadd.f32 %v9426, %v9608
        %v9610 = vpop.f32.mrf.mxu0
        %v9611 = vadd.f32 %v9428, %v9610
        %9612 = vmatmul.bf16.gmra.mxu0 %v9181
        %v9613 = vpop.f32.mrf.mxu0
        %v9614 = vadd.f32 %v9430, %v9613
        %v9615 = vpop.f32.mrf.mxu0
        %v9616 = vadd.f32 %v9432, %v9615
        %9617 = vmatmul.bf16.gmra.mxu0 %v9184
        %v9618 = vpop.f32.mrf.mxu0
        %v9619 = vadd.f32 %v9434, %v9618
        %v9620 = vpop.f32.mrf.mxu0
        %v9621 = vadd.f32 %v9436, %v9620
        %9622 = vmatmul.bf16.gmra.mxu0 %v9187
        %v9623 = vpop.f32.mrf.mxu0
        %v9624 = vadd.f32 %v9438, %v9623
        %v9625 = vpop.f32.mrf.mxu0
        %v9626 = vadd.f32 %v9440, %v9625
        %9627 = vmatmul.bf16.gmra.mxu0 %v9190
        %v9628 = vpop.f32.mrf.mxu0
        %v9629 = vadd.f32 %v9442, %v9628
        %v9630 = vpop.f32.mrf.mxu0
        %v9631 = vadd.f32 %v9444, %v9630
        %9632 = vmatmul.bf16.gmra.mxu0 %v9193
        %v9633 = vpop.f32.mrf.mxu0
        %v9634 = vadd.f32 %v9446, %v9633
        %v9635 = vpop.f32.mrf.mxu0
        %v9636 = vadd.f32 %v9448, %v9635
        %9637 = vmatmul.bf16.gmra.mxu0 %v9196
        %v9638 = vpop.f32.mrf.mxu0
        %v9639 = vadd.f32 %v9450, %v9638
        %v9640 = vpop.f32.mrf.mxu0
        %v9641 = vadd.f32 %v9452, %v9640
        %9642 = vmatmul.bf16.gmra.mxu0 %v9199
        %v9643 = vpop.f32.mrf.mxu0
        %v9644 = vadd.f32 %v9454, %v9643
        %v9645 = vpop.f32.mrf.mxu0
        %v9646 = vadd.f32 %v9456, %v9645
        %9647 = vmatmul.bf16.gmra.mxu0 %v9202
        %v9648 = vpop.f32.mrf.mxu0
        %v9649 = vadd.f32 %v9458, %v9648
        %v9650 = vpop.f32.mrf.mxu0
        %v9651 = vadd.f32 %v9460, %v9650
        %9652 = vmatmul.bf16.gmra.mxu0 %v9205
        %v9653 = vpop.f32.mrf.mxu0
        %v9654 = vadd.f32 %v9462, %v9653
        %v9655 = vpop.f32.mrf.mxu0
        %v9656 = vadd.f32 %v9464, %v9655
        %9657 = vmatmul.bf16.gmra.mxu0 %v9208
        %v9658 = vpop.f32.mrf.mxu0
        %v9659 = vadd.f32 %v9466, %v9658
        %v9660 = vpop.f32.mrf.mxu0
        %v9661 = vadd.f32 %v9468, %v9660
        %9662 = vmatmul.bf16.gmra.mxu0 %v9211
        %v9663 = vpop.f32.mrf.mxu0
        %v9664 = vadd.f32 %v9470, %v9663
        %v9665 = vpop.f32.mrf.mxu0
        %v9666 = vadd.f32 %v9472, %v9665
        %9667 = vmatmul.bf16.gmra.mxu0 %v9214
        %v9668 = vpop.f32.mrf.mxu0
        %v9669 = vadd.f32 %v9474, %v9668
        %v9670 = vpop.f32.mrf.mxu0
        %v9671 = vadd.f32 %v9476, %v9670
        %9672 = vmatmul.bf16.gmra.mxu0 %v9217
        %v9673 = vpop.f32.mrf.mxu0
        %v9674 = vadd.f32 %v9478, %v9673
        %v9675 = vpop.f32.mrf.mxu0
        %v9676 = vadd.f32 %v9480, %v9675
        %9677 = vmatmul.bf16.gmra.mxu0 %v9220
        %v9678 = vpop.f32.mrf.mxu0
        %v9679 = vadd.f32 %v9482, %v9678
        %v9680 = vpop.f32.mrf.mxu0
        %v9681 = vadd.f32 %v9484, %v9680
        %9682 = vmatmul.bf16.gmra.mxu0 %v9223
        %v9683 = vpop.f32.mrf.mxu0
        %v9684 = vadd.f32 %v9486, %v9683
        %v9685 = vpop.f32.mrf.mxu0
        %v9686 = vadd.f32 %v9488, %v9685
        %9687 = vdwg.mxu0
        %9688 = vmatpush.bf16.msra.mxu0 %v9351
        %9689 = vmatpush.bf16.msra.mxu0 %v9350
        %9690 = vmatpush.bf16.msra.mxu0 %v9349
        %9691 = vmatpush.bf16.msra.mxu0 %v9348
        %9692 = vmatpush.bf16.msra.mxu0 %v9347
        %9693 = vmatpush.bf16.msra.mxu0 %v9346
        %9694 = vmatpush.bf16.msra.mxu0 %v9345
        %9695 = vmatpush.bf16.msra.mxu0 %v9344
        %9696 = vmatmul.bf16.gmra.mxu0 %v9170
        %v9697 = vpop.f32.mrf.mxu0
        %v9698 = vadd.f32 %v9594, %v9697
        %v9699 = vpop.f32.mrf.mxu0
        %v9700 = vadd.f32 %v9596, %v9699
        %9701 = vmatmul.bf16.gmra.mxu0 %v9173
        %v9702 = vpop.f32.mrf.mxu0
        %v9703 = vadd.f32 %v9599, %v9702
        %v9704 = vpop.f32.mrf.mxu0
        %v9705 = vadd.f32 %v9601, %v9704
        %9706 = vmatmul.bf16.gmra.mxu0 %v9176
        %v9707 = vpop.f32.mrf.mxu0
        %v9708 = vadd.f32 %v9604, %v9707
        %v9709 = vpop.f32.mrf.mxu0
        %v9710 = vadd.f32 %v9606, %v9709
        %9711 = vmatmul.bf16.gmra.mxu0 %v9179
        %v9712 = vpop.f32.mrf.mxu0
        %v9713 = vadd.f32 %v9609, %v9712
        %v9714 = vpop.f32.mrf.mxu0
        %v9715 = vadd.f32 %v9611, %v9714
        %9716 = vmatmul.bf16.gmra.mxu0 %v9182
        %v9717 = vpop.f32.mrf.mxu0
        %v9718 = vadd.f32 %v9614, %v9717
        %v9719 = vpop.f32.mrf.mxu0
        %v9720 = vadd.f32 %v9616, %v9719
        %9721 = vmatmul.bf16.gmra.mxu0 %v9185
        %v9722 = vpop.f32.mrf.mxu0
        %v9723 = vadd.f32 %v9619, %v9722
        %v9724 = vpop.f32.mrf.mxu0
        %v9725 = vadd.f32 %v9621, %v9724
        %9726 = vmatmul.bf16.gmra.mxu0 %v9188
        %v9727 = vpop.f32.mrf.mxu0
        %v9728 = vadd.f32 %v9624, %v9727
        %v9729 = vpop.f32.mrf.mxu0
        %v9730 = vadd.f32 %v9626, %v9729
        %9731 = vmatmul.bf16.gmra.mxu0 %v9191
        %v9732 = vpop.f32.mrf.mxu0
        %v9733 = vadd.f32 %v9629, %v9732
        %v9734 = vpop.f32.mrf.mxu0
        %v9735 = vadd.f32 %v9631, %v9734
        %9736 = vmatmul.bf16.gmra.mxu0 %v9194
        %v9737 = vpop.f32.mrf.mxu0
        %v9738 = vadd.f32 %v9634, %v9737
        %v9739 = vpop.f32.mrf.mxu0
        %v9740 = vadd.f32 %v9636, %v9739
        %9741 = vmatmul.bf16.gmra.mxu0 %v9197
        %v9742 = vpop.f32.mrf.mxu0
        %v9743 = vadd.f32 %v9639, %v9742
        %v9744 = vpop.f32.mrf.mxu0
        %v9745 = vadd.f32 %v9641, %v9744
        %9746 = vmatmul.bf16.gmra.mxu0 %v9200
        %v9747 = vpop.f32.mrf.mxu0
        %v9748 = vadd.f32 %v9644, %v9747
        %v9749 = vpop.f32.mrf.mxu0
        %v9750 = vadd.f32 %v9646, %v9749
        %9751 = vmatmul.bf16.gmra.mxu0 %v9203
        %v9752 = vpop.f32.mrf.mxu0
        %v9753 = vadd.f32 %v9649, %v9752
        %v9754 = vpop.f32.mrf.mxu0
        %v9755 = vadd.f32 %v9651, %v9754
        %9756 = vmatmul.bf16.gmra.mxu0 %v9206
        %v9757 = vpop.f32.mrf.mxu0
        %v9758 = vadd.f32 %v9654, %v9757
        %v9759 = vpop.f32.mrf.mxu0
        %v9760 = vadd.f32 %v9656, %v9759
        %9761 = vmatmul.bf16.gmra.mxu0 %v9209
        %v9762 = vpop.f32.mrf.mxu0
        %v9763 = vadd.f32 %v9659, %v9762
        %v9764 = vpop.f32.mrf.mxu0
        %v9765 = vadd.f32 %v9661, %v9764
        %9766 = vmatmul.bf16.gmra.mxu0 %v9212
        %v9767 = vpop.f32.mrf.mxu0
        %v9768 = vadd.f32 %v9664, %v9767
        %v9769 = vpop.f32.mrf.mxu0
        %v9770 = vadd.f32 %v9666, %v9769
        %9771 = vmatmul.bf16.gmra.mxu0 %v9215
        %v9772 = vpop.f32.mrf.mxu0
        %v9773 = vadd.f32 %v9669, %v9772
        %v9774 = vpop.f32.mrf.mxu0
        %v9775 = vadd.f32 %v9671, %v9774
        %9776 = vmatmul.bf16.gmra.mxu0 %v9218
        %v9777 = vpop.f32.mrf.mxu0
        %v9778 = vadd.f32 %v9674, %v9777
        %v9779 = vpop.f32.mrf.mxu0
        %v9780 = vadd.f32 %v9676, %v9779
        %9781 = vmatmul.bf16.gmra.mxu0 %v9221
        %v9782 = vpop.f32.mrf.mxu0
        %v9783 = vadd.f32 %v9679, %v9782
        %v9784 = vpop.f32.mrf.mxu0
        %v9785 = vadd.f32 %v9681, %v9784
        %9786 = vmatmul.bf16.gmra.mxu0 %v9224
        %v9787 = vpop.f32.mrf.mxu0
        %v9788 = vadd.f32 %v9684, %v9787
        %v9789 = vpop.f32.mrf.mxu0
        %v9790 = vadd.f32 %v9686, %v9789
        %9791 = vdwg.mxu0
        %9792 = vmatpush.bf16.msra.mxu0 0
        %9793 = vmatpush.bf16.msra.mxu0 0
        %9794 = vmatpush.bf16.msra.mxu0 0
        %9795 = vmatpush.bf16.msra.mxu0 0
        %9796 = vmatpush.bf16.msra.mxu0 0
        %9797 = vmatpush.bf16.msra.mxu0 0
        %9798 = vmatpush.bf16.msra.mxu0 %v9353
        %9799 = vmatpush.bf16.msra.mxu0 %v9352
        %9800 = vmatmul.bf16.gmra.mxu0 %v9528
        %v9801 = vpop.f32.mrf.mxu0
        %v9802 = vadd.f32 %v9698, %v9801
        %v9803 = vpop.f32.mrf.mxu0
        %v9804 = vadd.f32 %v9700, %v9803
        %9805 = vmatmul.bf16.gmra.mxu0 %v9531
        %v9806 = vpop.f32.mrf.mxu0
        %v9807 = vadd.f32 %v9703, %v9806
        %v9808 = vpop.f32.mrf.mxu0
        %v9809 = vadd.f32 %v9705, %v9808
        %9810 = vmatmul.bf16.gmra.mxu0 %v9534
        %v9811 = vpop.f32.mrf.mxu0
        %v9812 = vadd.f32 %v9708, %v9811
        %v9813 = vpop.f32.mrf.mxu0
        %v9814 = vadd.f32 %v9710, %v9813
        %9815 = vmatmul.bf16.gmra.mxu0 %v9537
        %v9816 = vpop.f32.mrf.mxu0
        %v9817 = vadd.f32 %v9713, %v9816
        %v9818 = vpop.f32.mrf.mxu0
        %v9819 = vadd.f32 %v9715, %v9818
        %9820 = vmatmul.bf16.gmra.mxu0 %v9540
        %v9821 = vpop.f32.mrf.mxu0
        %v9822 = vadd.f32 %v9718, %v9821
        %v9823 = vpop.f32.mrf.mxu0
        %v9824 = vadd.f32 %v9720, %v9823
        %9825 = vmatmul.bf16.gmra.mxu0 %v9543
        %v9826 = vpop.f32.mrf.mxu0
        %v9827 = vadd.f32 %v9723, %v9826
        %v9828 = vpop.f32.mrf.mxu0
        %v9829 = vadd.f32 %v9725, %v9828
        %9830 = vmatmul.bf16.gmra.mxu0 %v9546
        %v9831 = vpop.f32.mrf.mxu0
        %v9832 = vadd.f32 %v9728, %v9831
        %v9833 = vpop.f32.mrf.mxu0
        %v9834 = vadd.f32 %v9730, %v9833
        %9835 = vmatmul.bf16.gmra.mxu0 %v9549
        %v9836 = vpop.f32.mrf.mxu0
        %v9837 = vadd.f32 %v9733, %v9836
        %v9838 = vpop.f32.mrf.mxu0
        %v9839 = vadd.f32 %v9735, %v9838
        %9840 = vmatmul.bf16.gmra.mxu0 %v9552
        %v9841 = vpop.f32.mrf.mxu0
        %v9842 = vadd.f32 %v9738, %v9841
        %v9843 = vpop.f32.mrf.mxu0
        %v9844 = vadd.f32 %v9740, %v9843
        %9845 = vmatmul.bf16.gmra.mxu0 %v9555
        %v9846 = vpop.f32.mrf.mxu0
        %v9847 = vadd.f32 %v9743, %v9846
        %v9848 = vpop.f32.mrf.mxu0
        %v9849 = vadd.f32 %v9745, %v9848
        %9850 = vmatmul.bf16.gmra.mxu0 %v9558
        %v9851 = vpop.f32.mrf.mxu0
        %v9852 = vadd.f32 %v9748, %v9851
        %v9853 = vpop.f32.mrf.mxu0
        %v9854 = vadd.f32 %v9750, %v9853
        %9855 = vmatmul.bf16.gmra.mxu0 %v9561
        %v9856 = vpop.f32.mrf.mxu0
        %v9857 = vadd.f32 %v9753, %v9856
        %v9858 = vpop.f32.mrf.mxu0
        %v9859 = vadd.f32 %v9755, %v9858
        %9860 = vmatmul.bf16.gmra.mxu0 %v9564
        %v9861 = vpop.f32.mrf.mxu0
        %v9862 = vadd.f32 %v9758, %v9861
        %v9863 = vpop.f32.mrf.mxu0
        %v9864 = vadd.f32 %v9760, %v9863
        %9865 = vmatmul.bf16.gmra.mxu0 %v9567
        %v9866 = vpop.f32.mrf.mxu0
        %v9867 = vadd.f32 %v9763, %v9866
        %v9868 = vpop.f32.mrf.mxu0
        %v9869 = vadd.f32 %v9765, %v9868
        %9870 = vmatmul.bf16.gmra.mxu0 %v9570
        %v9871 = vpop.f32.mrf.mxu0
        %v9872 = vadd.f32 %v9768, %v9871
        %v9873 = vpop.f32.mrf.mxu0
        %v9874 = vadd.f32 %v9770, %v9873
        %9875 = vmatmul.bf16.gmra.mxu0 %v9573
        %v9876 = vpop.f32.mrf.mxu0
        %v9877 = vadd.f32 %v9773, %v9876
        %v9878 = vpop.f32.mrf.mxu0
        %v9879 = vadd.f32 %v9775, %v9878
        %9880 = vmatmul.bf16.gmra.mxu0 %v9576
        %v9881 = vpop.f32.mrf.mxu0
        %v9882 = vadd.f32 %v9778, %v9881
        %v9883 = vpop.f32.mrf.mxu0
        %v9884 = vadd.f32 %v9780, %v9883
        %9885 = vmatmul.bf16.gmra.mxu0 %v9579
        %v9886 = vpop.f32.mrf.mxu0
        %v9887 = vadd.f32 %v9783, %v9886
        %v9888 = vpop.f32.mrf.mxu0
        %v9889 = vadd.f32 %v9785, %v9888
        %9890 = vmatmul.bf16.gmra.mxu0 %v9582
        %v9891 = vpop.f32.mrf.mxu0
        %v9892 = vadd.f32 %v9788, %v9891
        %v9893 = vpop.f32.mrf.mxu0
        %v9894 = vadd.f32 %v9790, %v9893
        %9895 = vdwg.mxu0
        %v9896 = vld [vmem:[%s4] sm:$0x1]
        %v9898 = vperm.slane %v9896, 0
        %v9900 = vadd.f32 %v9802, %v9898
        %v9901 = vadd.f32 %v9804, %v9898
        %v9902 = vadd.f32 %v9807, %v9898
        %v9903 = vadd.f32 %v9809, %v9898
        %v9904 = vadd.f32 %v9812, %v9898
        %v9905 = vadd.f32 %v9814, %v9898
        %v9906 = vadd.f32 %v9817, %v9898
        %v9907 = vadd.f32 %v9819, %v9898
        %v9908 = vadd.f32 %v9822, %v9898
        %v9909 = vadd.f32 %v9824, %v9898
        %v9910 = vadd.f32 %v9827, %v9898
        %v9911 = vadd.f32 %v9829, %v9898
        %v9912 = vadd.f32 %v9832, %v9898
        %v9913 = vadd.f32 %v9834, %v9898
        %v9914 = vadd.f32 %v9837, %v9898
        %v9915 = vadd.f32 %v9839, %v9898
        %v9916 = vadd.f32 %v9842, %v9898
        %v9917 = vadd.f32 %v9844, %v9898
        %v9918 = vadd.f32 %v9847, %v9898
        %v9919 = vadd.f32 %v9849, %v9898
        %v9920 = vadd.f32 %v9852, %v9898
        %v9921 = vadd.f32 %v9854, %v9898
        %v9922 = vadd.f32 %v9857, %v9898
        %v9923 = vadd.f32 %v9859, %v9898
        %v9924 = vadd.f32 %v9862, %v9898
        %v9925 = vadd.f32 %v9864, %v9898
        %v9926 = vadd.f32 %v9867, %v9898
        %v9927 = vadd.f32 %v9869, %v9898
        %v9928 = vadd.f32 %v9872, %v9898
        %v9929 = vadd.f32 %v9874, %v9898
        %v9930 = vadd.f32 %v9877, %v9898
        %v9931 = vadd.f32 %v9879, %v9898
        %v9932 = vadd.f32 %v9882, %v9898
        %v9933 = vadd.f32 %v9884, %v9898
        %v9934 = vadd.f32 %v9887, %v9898
        %v9935 = vadd.f32 %v9889, %v9898
        %v9936 = vadd.f32 %v9892, %v9898
        %v9937 = vadd.f32 %v9894, %v9898
        %v9938 = vmax.f32 %v9900, 0.0
        %v9939 = vmax.f32 %v9901, 0.0
        %v9940 = vmax.f32 %v9902, 0.0
        %v9941 = vmax.f32 %v9903, 0.0
        %v9942 = vmax.f32 %v9904, 0.0
        %v9943 = vmax.f32 %v9905, 0.0
        %v9944 = vmax.f32 %v9906, 0.0
        %v9945 = vmax.f32 %v9907, 0.0
        %v9946 = vmax.f32 %v9908, 0.0
        %v9947 = vmax.f32 %v9909, 0.0
        %v9948 = vmax.f32 %v9910, 0.0
        %v9949 = vmax.f32 %v9911, 0.0
        %v9950 = vmax.f32 %v9912, 0.0
        %v9951 = vmax.f32 %v9913, 0.0
        %v9952 = vmax.f32 %v9914, 0.0
        %v9953 = vmax.f32 %v9915, 0.0
        %v9954 = vmax.f32 %v9916, 0.0
        %v9955 = vmax.f32 %v9917, 0.0
        %v9956 = vmax.f32 %v9918, 0.0
        %v9957 = vmax.f32 %v9919, 0.0
        %v9958 = vmax.f32 %v9920, 0.0
        %v9959 = vmax.f32 %v9921, 0.0
        %v9960 = vmax.f32 %v9922, 0.0
        %v9961 = vmax.f32 %v9923, 0.0
        %v9962 = vmax.f32 %v9924, 0.0
        %v9963 = vmax.f32 %v9925, 0.0
        %v9964 = vmax.f32 %v9926, 0.0
        %v9965 = vmax.f32 %v9927, 0.0
        %v9966 = vmax.f32 %v9928, 0.0
        %v9967 = vmax.f32 %v9929, 0.0
        %v9968 = vmax.f32 %v9930, 0.0
        %v9969 = vmax.f32 %v9931, 0.0
        %v9970 = vmax.f32 %v9932, 0.0
        %v9971 = vmax.f32 %v9933, 0.0
        %v9972 = vmax.f32 %v9934, 0.0
        %v9973 = vmax.f32 %v9935, 0.0
        %v9974 = vmax.f32 %v9936, 0.0
        %v9975 = vmax.f32 %v9937, 0.0
        %v9976 = vmul.f32 %v9938, %v4666
        %v9977 = vmul.f32 %v9939, %v4671
        %v9978 = vmul.f32 %v9940, %v4676
        %v9979 = vmul.f32 %v9941, %v4681
        %v9980 = vmul.f32 %v9942, %v4686
        %v9981 = vmul.f32 %v9943, %v4691
        %v9982 = vmul.f32 %v9944, %v4696
        %v9983 = vmul.f32 %v9945, %v4701
        %v9984 = vmul.f32 %v9946, %v4706
        %v9985 = vmul.f32 %v9947, %v4711
        %v9986 = vmul.f32 %v9948, %v4716
        %v9987 = vmul.f32 %v9949, %v4721
        %v9988 = vmul.f32 %v9950, %v4726
        %v9989 = vmul.f32 %v9951, %v4731
        %v9990 = vmul.f32 %v9952, %v4736
        %v9991 = vmul.f32 %v9953, %v4741
        %v9992 = vmul.f32 %v9954, %v4746
        %v9993 = vmul.f32 %v9955, %v4751
        %v9994 = vmul.f32 %v9956, %v4756
        %v9995 = vmul.f32 %v9957, %v4761
        %v9996 = vmul.f32 %v9958, %v4766
        %v9997 = vmul.f32 %v9959, %v4771
        %v9998 = vmul.f32 %v9960, %v4776
        %v9999 = vmul.f32 %v9961, %v4781
        %v10000 = vmul.f32 %v9962, %v4786
        %v10001 = vmul.f32 %v9963, %v4791
        %v10002 = vmul.f32 %v9964, %v4796
        %v10003 = vmul.f32 %v9965, %v4801
        %v10004 = vmul.f32 %v9966, %v4806
        %v10005 = vmul.f32 %v9967, %v4811
        %v10006 = vmul.f32 %v9968, %v4816
        %v10007 = vmul.f32 %v9969, %v4821
        %v10008 = vmul.f32 %v9970, %v4826
        %v10009 = vmul.f32 %v9971, %v4831
        %v10010 = vmul.f32 %v9972, %v4836
        %v10011 = vmul.f32 %v9973, %v4841
        %v10012 = vmul.f32 %v9974, %v4846
        %v10013 = vmul.f32 %v9975, %v4851
        %v10014 = vsel %vm4255, %v9976, 0.0
        %v10015 = vsel %vm4255, %v9977, 0.0
        %v10016 = vadd.f32 %v10014, %v10015
        %v10017 = vsel %vm4255, %v9978, 0.0
        %v10018 = vadd.f32 %v10016, %v10017
        %v10019 = vsel %vm4255, %v9979, 0.0
        %v10020 = vadd.f32 %v10018, %v10019
        %v10021 = vsel %vm4255, %v9980, 0.0
        %v10022 = vadd.f32 %v10020, %v10021
        %v10023 = vsel %vm4255, %v9981, 0.0
        %v10024 = vadd.f32 %v10022, %v10023
        %v10025 = vsel %vm4255, %v9982, 0.0
        %v10026 = vadd.f32 %v10024, %v10025
        %v10027 = vsel %vm4255, %v9983, 0.0
        %v10028 = vadd.f32 %v10026, %v10027
        %v10029 = vsel %vm4255, %v9984, 0.0
        %v10030 = vadd.f32 %v10028, %v10029
        %v10031 = vsel %vm4255, %v9985, 0.0
        %v10032 = vadd.f32 %v10030, %v10031
        %v10033 = vsel %vm4255, %v9986, 0.0
        %v10034 = vadd.f32 %v10032, %v10033
        %v10035 = vsel %vm4255, %v9987, 0.0
        %v10036 = vadd.f32 %v10034, %v10035
        %v10037 = vsel %vm4255, %v9988, 0.0
        %v10038 = vadd.f32 %v10036, %v10037
        %v10039 = vsel %vm4255, %v9989, 0.0
        %v10040 = vadd.f32 %v10038, %v10039
        %v10041 = vsel %vm4255, %v9990, 0.0
        %v10042 = vadd.f32 %v10040, %v10041
        %v10043 = vsel %vm4255, %v9991, 0.0
        %v10044 = vadd.f32 %v10042, %v10043
        %v10045 = vsel %vm4255, %v9992, 0.0
        %v10046 = vadd.f32 %v10044, %v10045
        %v10047 = vsel %vm4255, %v9993, 0.0
        %v10048 = vadd.f32 %v10046, %v10047
        %v10049 = vsel %vm4255, %v9994, 0.0
        %v10050 = vadd.f32 %v10048, %v10049
        %v10051 = vsel %vm4255, %v9995, 0.0
        %v10052 = vadd.f32 %v10050, %v10051
        %v10053 = vsel %vm4255, %v9996, 0.0
        %v10054 = vadd.f32 %v10052, %v10053
        %v10055 = vsel %vm4255, %v9997, 0.0
        %v10056 = vadd.f32 %v10054, %v10055
        %v10057 = vsel %vm4255, %v9998, 0.0
        %v10058 = vadd.f32 %v10056, %v10057
        %v10059 = vsel %vm4255, %v9999, 0.0
        %v10060 = vadd.f32 %v10058, %v10059
        %v10061 = vsel %vm4255, %v10000, 0.0
        %v10062 = vadd.f32 %v10060, %v10061
        %v10063 = vsel %vm4255, %v10001, 0.0
        %v10064 = vadd.f32 %v10062, %v10063
        %v10065 = vsel %vm4255, %v10002, 0.0
        %v10066 = vadd.f32 %v10064, %v10065
        %v10067 = vsel %vm4255, %v10003, 0.0
        %v10068 = vadd.f32 %v10066, %v10067
        %v10069 = vsel %vm4255, %v10004, 0.0
        %v10070 = vadd.f32 %v10068, %v10069
        %v10071 = vsel %vm4255, %v10005, 0.0
        %v10072 = vadd.f32 %v10070, %v10071
        %v10073 = vsel %vm4255, %v10006, 0.0
        %v10074 = vadd.f32 %v10072, %v10073
        %v10075 = vsel %vm4255, %v10007, 0.0
        %v10076 = vadd.f32 %v10074, %v10075
        %v10077 = vsel %vm4255, %v10008, 0.0
        %v10078 = vadd.f32 %v10076, %v10077
        %v10079 = vsel %vm4255, %v10009, 0.0
        %v10080 = vadd.f32 %v10078, %v10079
        %v10081 = vsel %vm4255, %v10010, 0.0
        %v10082 = vadd.f32 %v10080, %v10081
        %v10083 = vsel %vm4255, %v10011, 0.0
        %v10084 = vadd.f32 %v10082, %v10083
        %v10085 = vsel %vm4255, %v10012, 0.0
        %v10086 = vadd.f32 %v10084, %v10085
        %v10087 = vsel %vm4255, %v10013, 0.0
        %v10088 = vadd.f32 %v10086, %v10087
        %v10089 = vrot.slane %v10088, 4
        %v10090 = vadd.f32 %v10088, %v10089
        %v10091 = vrot.slane %v10090, 2
        %v10092 = vadd.f32 %v10090, %v10091
        %v10093 = vrot.slane %v10092, 1
        %v10094 = vadd.f32 %v10092, %v10093
        %v10095 = vmul.f32 %v10094, 0.00390625
        %v10096 = vld [vmem:[%s5] sm:$0xff]
        %v10097 = vld [vmem:[%s5 + $0x8] sm:$0xff]
        %v10098 = vld [vmem:[%s5 + $0x10] sm:$0xff]
        %v10099 = vld [vmem:[%s5 + $0x18] sm:$0xff]
        %v10100 = vld [vmem:[%s6] sm:$0x1]
        %v10102 = vsel %vm4255, %v10095, 0
        %10104 = vmatpush.msra.mxu0 0.0
        %10105 = vmatpush.msra.mxu0 0.0
        %10106 = vmatpush.msra.mxu0 0.0
        %10107 = vmatpush.msra.mxu0 0.0
        %10108 = vmatpush.msra.mxu0 0.0
        %10109 = vmatpush.msra.mxu0 0.0
        %10110 = vmatpush.msra.mxu0 0.0
        %10111 = vmatpush.msra.mxu0 0.0
        %10112 = vmatpush.msra.mxu0 0.0
        %10113 = vmatpush.msra.mxu0 0.0
        %10114 = vmatpush.msra.mxu0 0.0
        %10115 = vmatpush.msra.mxu0 0.0
        %10116 = vmatpush.msra.mxu0 %v10099
        %10117 = vmatpush.msra.mxu0 %v10098
        %10118 = vmatpush.msra.mxu0 %v10097
        %10119 = vmatpush.msra.mxu0 %v10096
        %10120 = vmatmul.f32.gmra.mxu0 %v10102
        %v10121 = vpop.f32.mrf.mxu0
        %v10122 = vadd.f32 %v10100, %v10121
        %10123 = vdwg.mxu0
        %vm10124 = vcmask 73728
        %10125 = vst.msk [vmem:[%s297] sm:$0x1] %vm10124, %v10122
        %s10126 = sand.u32 %s203, 1
        %s10127 = scalar_lea.sflag [#allocation6], %s10126
        %s10128 = sand.u32 %s203, 1
        %s10129 = scalar_lea.vmem [#allocation5], %s10128
        // Predicated region
        $region53: #{resnet_model_forward.1} parent=51 // pred_check
          %p10130 = pneg %p213
        $region54: #{resnet_model_forward.1} parent=51 // pred_check_branch
          %10132 = sbr.rel (%p10130) target = $region56
        $region55: #{resnet_model_forward.1} parent=51 // pred_region
          %10134 = vsyncadd %s10127, 0
          %s10135 = scalar_lea.hbm %s8, %s22
          %s10137 = sshll.u32 %s10129, 4
          %s10138 = int_to_ptr.vmem [resolvable:$true] %s10137
          %s10139 = sshll.u32 %s10135, 4
          %s10140 = int_to_ptr.hbm [resolvable:$true] %s10139
          %10142 = dma.vmem_to_hbm [thread:$0]  %s10138, 16, %s10140, %s10127
        $region56: #{resnet_model_forward.1} parent=51 // pred_fallthru
          _
      $region52: #{resnet_model_forward.1} parent=5 // pred_fallthru
        _
      %p10143 = scmp.le.s32.totalorder 2, %s17
      // Predicated region
      $region57: #{resnet_model_forward.1} parent=5 // pred_check
        %p10144 = pneg %p10143
      $region58: #{resnet_model_forward.1} parent=5 // pred_check_branch
        %10146 = sbr.rel (%p10144) target = $region60
      $region59: #{resnet_model_forward.1} parent=5 // pred_region
        %s10147 = ssub.s32 %s17, 2
        // Predicated region
        $region61: #{resnet_model_forward.1} parent=59 // pred_check
          %p10148 = pneg %p219
        $region62: #{resnet_model_forward.1} parent=59 // pred_check_branch
          %10150 = sbr.rel (%p10148) target = $region64
        $region63: #{resnet_model_forward.1} parent=59 // pred_region
          %s10151 = sand.u32 %s204, 1
          %s10152 = scalar_lea.sflag [#allocation6], %s10151
          %s10153 = sand.u32 %s204, 1
          %s10154 = scalar_lea.vmem [#allocation5], %s10153
          %10156 = dma.done %s10152, 16
        $region64: #{resnet_model_forward.1} parent=59 // pred_fallthru
          _
      $region60: #{resnet_model_forward.1} parent=5 // pred_fallthru
        _
    $region6: #{resnet_model_forward.1} parent=1 // loop_footer
      %s21 = sadd.s32 1, %s17
    $region7: #{resnet_model_forward.1} parent=1 // loop_footer_branch
      %16 = sbr.rel target = $region3
    $region8: #{resnet_model_forward.1} parent=1 // loop_exit
      _
    %10157 = vsyncpa [#allocation6], 1
    %s10158 = scalar_lea.sflag [#allocation6], 1
    %10159 = vsyncpa %s10158, 1

</llo_original>
